<compile_context>
chip_gen: v7x
topology: tpu7x:2x2x1
jax: 0.10.0
libtpu: 0.0.40
codegen_flags: <defaults>
</compile_context>

<pallas_src>
import numpy as np

import jax
import jax.numpy as jnp
from jax.experimental import pallas as pl
from jax.experimental.pallas import tpu as pltpu


_LANE = 128
_BN_EPS = 1e-5

# layeridx: (cout, kernel, pad, has_bn)
_CONV_CFGS = {
    0: (32, 3, 2, True),
    2: (64, 3, 2, True),
    4: (128, 3, 1, True),
    5: (256, 2, 1, False),
    6: (128, 2, 1, False),
}
# (conv layer idx, followed by MaxPool2d(2,2)?)  -- pools at 1, 3, 7 are fused.
_FWD_CFG = ((0, True), (2, True), (4, False), (5, False), (6, True))


def _round_up(x, m):
    return (x + m - 1) // m * m


# ----------------------------------------------------------------------------
# Static per-layer geometry + constant repack (select/scatter) matrices.
# ----------------------------------------------------------------------------
def _make_plan(h_in, w_in, in_channels):
    """All-static plan for the fused kernel.

    Activations are flat row-major (rows, C); `rowlen` is the flat row length
    (output width for L0's im2col path, padded width for interior layers).
    The `repack` matrix of layer l is a constant 0/1 matrix that (a) selects
    the valid (optionally 2x2-pooled) conv outputs out of the flat tensor and
    (b) scatters them into the next layer's zero-padded flat input (or the
    compact final output), all as one small matmul.
    """
    geo = []
    h, w = h_in, w_in
    for l, (idx, pool) in enumerate(_FWD_CFG):
        cout, k, pad, has_bn = _CONV_CFGS[idx]
        hp, wp = h + 2 * pad, w + 2 * pad
        oh, ow = hp - k + 1, wp - k + 1
        rowlen = ow if l == 0 else wp          # flat row length of this layer's acc
        m = oh * rowlen                        # GEMM M (all output rows at once)
        oh_o, ow_o = (oh // 2, ow // 2) if pool else (oh, ow)
        geo.append(dict(idx=idx, k=k, pad=pad, pool=pool, has_bn=has_bn,
                        cout=cout, cout_p=_round_up(cout, _LANE),
                        hp=hp, wp=wp, oh=oh, ow=ow, oh_o=oh_o, ow_o=ow_o,
                        rowlen=rowlen, m=m))
        h, w = oh_o, ow_o

    for l, g in enumerate(geo):
        rowlen = g["rowlen"]
        if g["pool"]:
            src_len = g["m"] - rowlen - 1      # rows of the 2x2-max'd flat tensor
            n_r, n_c, rs, cs = g["oh_o"], g["ow_o"], 2 * rowlen, 2
        else:
            src_len = g["m"]
            n_r, n_c, rs, cs = g["oh"], g["ow"], rowlen, 1
        if l + 1 < len(geo):
            g2 = geo[l + 1]
            pad_n, wp_n = g2["pad"], g2["wp"]
            # +(k-1) trailing zero rows so every conv-tap slice stays in-bounds
            dst_len = g2["hp"] * wp_n + (g2["k"] - 1)
        else:
            pad_n, wp_n = 0, n_c
            dst_len = n_r * n_c
        rmat = np.zeros((dst_len, src_len), np.float32)
        for r in range(n_r):
            for c in range(n_c):
                rmat[(r + pad_n) * wp_n + (c + pad_n), r * rs + c * cs] = 1.0
        g["src_len"], g["dst_len"], g["repack"] = src_len, dst_len, rmat

    geo[0]["k0p"] = _round_up(_CONV_CFGS[0][1] ** 2 * in_channels, 8)
    return geo


# ----------------------------------------------------------------------------
# Fused Pallas kernel: the whole network for one image per grid step.
# ----------------------------------------------------------------------------
def _make_kernel(plan):
    n_layers = len(plan)

    def kernel(*refs):
        # refs = (x_im2col, [w, scale/shift, repack] * n_layers, out)
        o_ref = refs[1 + 3 * n_layers]
        a = refs[0][0]                                   # (M0, K0p) bf16 im2col of L0
        for l, g in enumerate(plan):
            w_ref = refs[1 + 3 * l]
            ss_ref = refs[2 + 3 * l]
            r_ref = refs[3 + 3 * l]
            m, rowlen, k = g["m"], g["rowlen"], g["k"]

            if l == 0:
                # Layer 0: single GEMM with K = k*k*Cin (Cin=3 -> K=27, padded 32).
                acc = jnp.dot(a, w_ref[...], preferred_element_type=jnp.float32)
            else:
                # Tap-accumulated GEMMs over the flat (rows, Cin) activation:
                # each tap is one matmul with M = OH*Wp, K = Cin, N = Cout_p.
                acc = None
                for dh in range(k):
                    for dw in range(k):
                        off = dh * rowlen + dw
                        part = jnp.dot(a[off:off + m, :], w_ref[dh * k + dw],
                                       preferred_element_type=jnp.float32)
                        acc = part if acc is None else acc + part

            # Folded BN / bias + ReLU, single cast to bf16 (hoisted, once/layer).
            scale = ss_ref[0:1, :]
            shift = ss_ref[1:2, :]
            act = jnp.maximum(acc * scale + shift, 0.0).astype(jnp.bfloat16)

            if g["pool"]:
                # Fused MaxPool2d(2,2): whole-tensor shifted maxes (no per-column
                # stores).  hm[j] = max over horizontal pair, src[j] = 2x2 max
                # with top-left at flat position j.
                hm = jnp.maximum(act[:-1, :], act[1:, :])
                src = jnp.maximum(hm[:-rowlen, :], hm[rowlen:, :])
            else:
                src = act

            # One constant 0/1 matmul selects the (stride-2) valid rows and
            # scatters them into the next layer's zero-padded flat input
            # (exact copy of bf16 values; lane-dense; runs on the MXU).
            a = jnp.dot(r_ref[...], src,
                        preferred_element_type=jnp.float32).astype(jnp.bfloat16)

        o_ref[0] = a                                     # (PH*PW, 128) bf16

    return kernel


# ----------------------------------------------------------------------------
# Wrapper
# ----------------------------------------------------------------------------
def _resident_spec(shape):
    nd = len(shape)
    return pl.BlockSpec(shape, lambda i: (0,) * nd)


def _im2col_first(x_nhwc, k, pad, k0p):
    """Layer-0 im2col in the XLA wrapper (tiny: 18*18 x 27 per image)."""
    n, h, w, c = x_nhwc.shape
    xp = jnp.pad(x_nhwc, ((0, 0), (pad, pad), (pad, pad), (0, 0)))
    oh, ow = h + 2 * pad - k + 1, w + 2 * pad - k + 1
    cols = [xp[:, dh:dh + oh, dw:dw + ow, :] for dh in range(k) for dw in range(k)]
    patches = jnp.concatenate(cols, axis=-1).reshape(n, oh * ow, k * k * c)
    patches = jnp.pad(patches, ((0, 0), (0, 0), (0, k0p - k * k * c)))
    return patches.astype(jnp.bfloat16)


@jax.jit
def alexnet_forward(x_nchw, params):
    n, c, h, w = x_nchw.shape
    plan = _make_plan(h, w, c)                           # static (trace-time)

    k0, pad0 = _CONV_CFGS[0][1], _CONV_CFGS[0][2]
    x = jnp.transpose(x_nchw, (0, 2, 3, 1))              # NHWC
    x1 = _im2col_first(x, k0, pad0, plan[0]["k0p"])      # (N, M0, K0p) bf16

    inputs = [x1]
    in_specs = [pl.BlockSpec((1,) + x1.shape[1:], lambda i: (i, 0, 0))]
    for l, g in enumerate(plan):
        p = params[l]
        rmat = jnp.asarray(g["repack"], jnp.bfloat16)    # 0/1 -> exact in bf16
        for arr in (p["w"], p["ss"], rmat):
            inputs.append(arr)
            in_specs.append(_resident_spec(arr.shape))

    dst_last = plan[-1]["dst_len"]
    cp_last = plan[-1]["cout_p"]
    out = pl.pallas_call(
        _make_kernel(plan),
        out_shape=jax.ShapeDtypeStruct((n, dst_last, cp_last), jnp.bfloat16),
        grid=(n,),
        in_specs=in_specs,
        out_specs=pl.BlockSpec((1, dst_last, cp_last), lambda i: (i, 0, 0)),
        compiler_params=pltpu.CompilerParams(
            dimension_semantics=("parallel",),           # one image per core on v7x
            vmem_limit_bytes=16 * 1024 * 1024,           # fused working set << 16 MiB
        ),
    )(*inputs)

    ph, pw = plan[-1]["oh_o"], plan[-1]["ow_o"]
    out = out.reshape(n, ph, pw, cp_last)
    # Final layer Cout == Cout_p == 128, so no channel padding to strip.
    return jnp.transpose(out, (0, 3, 1, 2)).astype(jnp.float32)   # NCHW, f32


# ----------------------------------------------------------------------------
# Parameter construction (deterministic, synthetic).  All transposes /
# padding / tap-stacking of weights happen once here, never per forward.
# ----------------------------------------------------------------------------
def init_params(in_channels, key):
    params = []
    cin_actual, cin_padded = in_channels, in_channels
    for pos, (idx, _pool) in enumerate(_FWD_CFG):
        cout, k, pad, has_bn = _CONV_CFGS[idx]
        cout_p = _round_up(cout, _LANE)
        key, kw_, kg, kb = jax.random.split(key, 4)
        w = jax.random.normal(kw_, (cout, cin_actual, k, k), jnp.float32) * 0.05
        if has_bn:
            # BatchNorm (inference): gamma ~ 1, beta small, running mean=0, var=1.
            gamma = 1.0 + 0.1 * jax.random.normal(kg, (cout,), jnp.float32)
            beta = 0.1 * jax.random.normal(kb, (cout,), jnp.float32)
            rmean = jnp.zeros((cout,), jnp.float32)
            rvar = jnp.ones((cout,), jnp.float32)
            scale = gamma / jnp.sqrt(rvar + _BN_EPS)
            shift = beta - rmean * scale
        else:
            # Plain Conv2d bias (no norm layer).
            bias = 0.1 * jax.random.normal(kb, (cout,), jnp.float32)
            scale = jnp.ones((cout,), jnp.float32)
            shift = bias

        w_t = jnp.transpose(w, (2, 3, 1, 0))             # (kh, kw, cin, cout)
        if pos == 0:
            k0 = k * k * cin_actual
            k0p = _round_up(k0, 8)
            wk = w_t.reshape(k0, cout)
            wk = jnp.pad(wk, ((0, k0p - k0), (0, cout_p - cout)))
        else:
            wk = w_t.reshape(k * k, cin_actual, cout)
            wk = jnp.pad(wk, ((0, 0), (0, cin_padded - cin_actual),
                              (0, cout_p - cout)))
        ss = jnp.stack([jnp.pad(scale, (0, cout_p - cout)),
                        jnp.pad(shift, (0, cout_p - cout))], axis=0)   # (2, cout_p)
        params.append(dict(w=wk.astype(jnp.bfloat16), ss=ss.astype(jnp.float32)))
        cin_actual, cin_padded = cout, cout_p
    return params


# ----------------------------------------------------------------------------
if __name__ == "__main__":
    key = jax.random.PRNGKey(0)
    key, kx = jax.random.split(key)

    in_channels = 3
    x = jax.random.normal(kx, (2, in_channels, 16, 16), jnp.float32)  # NCHW

    params = init_params(in_channels, key)

    out = alexnet_forward(x, params)
    out = jax.block_until_ready(out)

    # expected output shape: (2, 128, 3, 3)
    assert out.shape == (2, 128, 3, 3), out.shape
    assert bool(jnp.all(jnp.isfinite(out)))
    print("KERNEL_OK")
</pallas_src>

<mosaic_0001>
module attributes {stable_mosaic.version = 11 : i64} {
  func.func @kernel(%arg0: i32, %arg1: memref<1x324x32xbf16, #tpu.memory_space<vmem>>, %arg2: memref<32x128xbf16, #tpu.memory_space<vmem>>, %arg3: memref<2x128xf32, #tpu.memory_space<vmem>>, %arg4: memref<171x305xbf16, #tpu.memory_space<vmem>>, %arg5: memref<9x128x128xbf16, #tpu.memory_space<vmem>>, %arg6: memref<2x128xf32, #tpu.memory_space<vmem>>, %arg7: memref<51x129xbf16, #tpu.memory_space<vmem>>, %arg8: memref<9x128x128xbf16, #tpu.memory_space<vmem>>, %arg9: memref<2x128xf32, #tpu.memory_space<vmem>>, %arg10: memref<50x35xbf16, #tpu.memory_space<vmem>>, %arg11: memref<4x128x256xbf16, #tpu.memory_space<vmem>>, %arg12: memref<2x256xf32, #tpu.memory_space<vmem>>, %arg13: memref<65x42xbf16, #tpu.memory_space<vmem>>, %arg14: memref<4x256x128xbf16, #tpu.memory_space<vmem>>, %arg15: memref<2x128xf32, #tpu.memory_space<vmem>>, %arg16: memref<9x47xbf16, #tpu.memory_space<vmem>>, %arg17: memref<1x9x128xbf16, #tpu.memory_space<vmem>>) attributes {dimension_semantics = [#tpu.dimension_semantics<parallel>], iteration_bounds = array<i64: 2>, scalar_prefetch = 0 : i64, scratch_operands = 0 : i64, tpu.core_type = #tpu.core_type<tc>, window_params = [{transform_indices = @transform_0, window_bounds = array<i64: 1, 324, 32>}, {pipeline_mode = #tpu.pipeline_mode<synchronous>, transform_indices = @transform_1, window_bounds = array<i64: 32, 128>}, {pipeline_mode = #tpu.pipeline_mode<synchronous>, transform_indices = @transform_2, window_bounds = array<i64: 2, 128>}, {pipeline_mode = #tpu.pipeline_mode<synchronous>, transform_indices = @transform_3, window_bounds = array<i64: 171, 305>}, {pipeline_mode = #tpu.pipeline_mode<synchronous>, transform_indices = @transform_4, window_bounds = array<i64: 9, 128, 128>}, {pipeline_mode = #tpu.pipeline_mode<synchronous>, transform_indices = @transform_5, window_bounds = array<i64: 2, 128>}, {pipeline_mode = #tpu.pipeline_mode<synchronous>, transform_indices = @transform_6, window_bounds = array<i64: 51, 129>}, {pipeline_mode = #tpu.pipeline_mode<synchronous>, transform_indices = @transform_7, window_bounds = array<i64: 9, 128, 128>}, {pipeline_mode = #tpu.pipeline_mode<synchronous>, transform_indices = @transform_8, window_bounds = array<i64: 2, 128>}, {pipeline_mode = #tpu.pipeline_mode<synchronous>, transform_indices = @transform_9, window_bounds = array<i64: 50, 35>}, {pipeline_mode = #tpu.pipeline_mode<synchronous>, transform_indices = @transform_10, window_bounds = array<i64: 4, 128, 256>}, {pipeline_mode = #tpu.pipeline_mode<synchronous>, transform_indices = @transform_11, window_bounds = array<i64: 2, 256>}, {pipeline_mode = #tpu.pipeline_mode<synchronous>, transform_indices = @transform_12, window_bounds = array<i64: 65, 42>}, {pipeline_mode = #tpu.pipeline_mode<synchronous>, transform_indices = @transform_13, window_bounds = array<i64: 4, 256, 128>}, {pipeline_mode = #tpu.pipeline_mode<synchronous>, transform_indices = @transform_14, window_bounds = array<i64: 2, 128>}, {pipeline_mode = #tpu.pipeline_mode<synchronous>, transform_indices = @transform_15, window_bounds = array<i64: 9, 47>}, {transform_indices = @transform_16, window_bounds = array<i64: 1, 9, 128>}]} {
    %c0 = arith.constant 0 : index
    %c0_0 = arith.constant 0 : index
    %c0_1 = arith.constant 0 : index
    %0 = vector.load %arg1[%c0, %c0_0, %c0_1] : memref<1x324x32xbf16, #tpu.memory_space<vmem>>, vector<1x324x32xbf16>
    %1 = vector.shape_cast %0 : vector<1x324x32xbf16> to vector<324x32xbf16>
    %c0_2 = arith.constant 0 : index
    %c0_3 = arith.constant 0 : index
    %2 = vector.load %arg2[%c0_2, %c0_3] : memref<32x128xbf16, #tpu.memory_space<vmem>>, vector<32x128xbf16>
    %cst = arith.constant dense<0.000000e+00> : vector<324x128xf32>
    %3 = tpu.matmul %1, %2, %cst {dimension_numbers = #tpu.dot_dimension_numbers<[1], [0], [0], [1], [0, 0, 1, 1], [], []>} : vector<324x32xbf16>, vector<32x128xbf16>, vector<324x128xf32> -> vector<324x128xf32>
    %c0_4 = arith.constant 0 : index
    %c0_5 = arith.constant 0 : index
    %4 = vector.load %arg3[%c0_4, %c0_5] : memref<2x128xf32, #tpu.memory_space<vmem>>, vector<1x128xf32>
    %c1 = arith.constant 1 : index
    %c0_6 = arith.constant 0 : index
    %5 = vector.load %arg3[%c1, %c0_6] : memref<2x128xf32, #tpu.memory_space<vmem>>, vector<1x128xf32>
    %6 = vector.broadcast %4 : vector<1x128xf32> to vector<324x128xf32>
    %7 = arith.mulf %3, %6 : vector<324x128xf32>
    %8 = vector.broadcast %5 : vector<1x128xf32> to vector<324x128xf32>
    %9 = arith.addf %7, %8 : vector<324x128xf32>
    %cst_7 = arith.constant 0.000000e+00 : f32
    %10 = vector.broadcast %cst_7 : f32 to vector<324x128xf32>
    %11 = arith.maximumf %9, %10 : vector<324x128xf32>
    %12 = arith.truncf %11 : vector<324x128xf32> to vector<324x128xbf16>
    %13 = vector.extract_strided_slice %12 {offsets = [0, 0], sizes = [323, 128], strides = [1, 1]} : vector<324x128xbf16> to vector<323x128xbf16>
    %14 = vector.extract_strided_slice %12 {offsets = [1, 0], sizes = [323, 128], strides = [1, 1]} : vector<324x128xbf16> to vector<323x128xbf16>
    %15 = arith.maximumf %13, %14 : vector<323x128xbf16>
    %16 = vector.extract_strided_slice %15 {offsets = [0, 0], sizes = [305, 128], strides = [1, 1]} : vector<323x128xbf16> to vector<305x128xbf16>
    %17 = vector.extract_strided_slice %15 {offsets = [18, 0], sizes = [305, 128], strides = [1, 1]} : vector<323x128xbf16> to vector<305x128xbf16>
    %18 = arith.maximumf %16, %17 : vector<305x128xbf16>
    %c0_8 = arith.constant 0 : index
    %c0_9 = arith.constant 0 : index
    %19 = vector.load %arg4[%c0_8, %c0_9] : memref<171x305xbf16, #tpu.memory_space<vmem>>, vector<171x305xbf16>
    %cst_10 = arith.constant dense<0.000000e+00> : vector<171x128xf32>
    %20 = tpu.matmul %19, %18, %cst_10 {dimension_numbers = #tpu.dot_dimension_numbers<[1], [0], [0], [1], [0, 0, 1, 1], [], []>} : vector<171x305xbf16>, vector<305x128xbf16>, vector<171x128xf32> -> vector<171x128xf32>
    %21 = arith.truncf %20 : vector<171x128xf32> to vector<171x128xbf16>
    %22 = vector.extract_strided_slice %21 {offsets = [0, 0], sizes = [143, 128], strides = [1, 1]} : vector<171x128xbf16> to vector<143x128xbf16>
    %c0_11 = arith.constant 0 : index
    %c0_12 = arith.constant 0 : index
    %c0_13 = arith.constant 0 : index
    %23 = vector.load %arg5[%c0_11, %c0_12, %c0_13] : memref<9x128x128xbf16, #tpu.memory_space<vmem>>, vector<1x128x128xbf16>
    %24 = vector.shape_cast %23 : vector<1x128x128xbf16> to vector<128x128xbf16>
    %cst_14 = arith.constant dense<0.000000e+00> : vector<143x128xf32>
    %25 = tpu.matmul %22, %24, %cst_14 {dimension_numbers = #tpu.dot_dimension_numbers<[1], [0], [0], [1], [0, 0, 1, 1], [], []>} : vector<143x128xbf16>, vector<128x128xbf16>, vector<143x128xf32> -> vector<143x128xf32>
    %26 = vector.extract_strided_slice %21 {offsets = [1, 0], sizes = [143, 128], strides = [1, 1]} : vector<171x128xbf16> to vector<143x128xbf16>
    %c1_15 = arith.constant 1 : index
    %c0_16 = arith.constant 0 : index
    %c0_17 = arith.constant 0 : index
    %27 = vector.load %arg5[%c1_15, %c0_16, %c0_17] : memref<9x128x128xbf16, #tpu.memory_space<vmem>>, vector<1x128x128xbf16>
    %28 = vector.shape_cast %27 : vector<1x128x128xbf16> to vector<128x128xbf16>
    %cst_18 = arith.constant dense<0.000000e+00> : vector<143x128xf32>
    %29 = tpu.matmul %26, %28, %cst_18 {dimension_numbers = #tpu.dot_dimension_numbers<[1], [0], [0], [1], [0, 0, 1, 1], [], []>} : vector<143x128xbf16>, vector<128x128xbf16>, vector<143x128xf32> -> vector<143x128xf32>
    %30 = arith.addf %25, %29 : vector<143x128xf32>
    %31 = vector.extract_strided_slice %21 {offsets = [2, 0], sizes = [143, 128], strides = [1, 1]} : vector<171x128xbf16> to vector<143x128xbf16>
    %c2 = arith.constant 2 : index
    %c0_19 = arith.constant 0 : index
    %c0_20 = arith.constant 0 : index
    %32 = vector.load %arg5[%c2, %c0_19, %c0_20] : memref<9x128x128xbf16, #tpu.memory_space<vmem>>, vector<1x128x128xbf16>
    %33 = vector.shape_cast %32 : vector<1x128x128xbf16> to vector<128x128xbf16>
    %cst_21 = arith.constant dense<0.000000e+00> : vector<143x128xf32>
    %34 = tpu.matmul %31, %33, %cst_21 {dimension_numbers = #tpu.dot_dimension_numbers<[1], [0], [0], [1], [0, 0, 1, 1], [], []>} : vector<143x128xbf16>, vector<128x128xbf16>, vector<143x128xf32> -> vector<143x128xf32>
    %35 = arith.addf %30, %34 : vector<143x128xf32>
    %36 = vector.extract_strided_slice %21 {offsets = [13, 0], sizes = [143, 128], strides = [1, 1]} : vector<171x128xbf16> to vector<143x128xbf16>
    %c3 = arith.constant 3 : index
    %c0_22 = arith.constant 0 : index
    %c0_23 = arith.constant 0 : index
    %37 = vector.load %arg5[%c3, %c0_22, %c0_23] : memref<9x128x128xbf16, #tpu.memory_space<vmem>>, vector<1x128x128xbf16>
    %38 = vector.shape_cast %37 : vector<1x128x128xbf16> to vector<128x128xbf16>
    %cst_24 = arith.constant dense<0.000000e+00> : vector<143x128xf32>
    %39 = tpu.matmul %36, %38, %cst_24 {dimension_numbers = #tpu.dot_dimension_numbers<[1], [0], [0], [1], [0, 0, 1, 1], [], []>} : vector<143x128xbf16>, vector<128x128xbf16>, vector<143x128xf32> -> vector<143x128xf32>
    %40 = arith.addf %35, %39 : vector<143x128xf32>
    %41 = vector.extract_strided_slice %21 {offsets = [14, 0], sizes = [143, 128], strides = [1, 1]} : vector<171x128xbf16> to vector<143x128xbf16>
    %c4 = arith.constant 4 : index
    %c0_25 = arith.constant 0 : index
    %c0_26 = arith.constant 0 : index
    %42 = vector.load %arg5[%c4, %c0_25, %c0_26] : memref<9x128x128xbf16, #tpu.memory_space<vmem>>, vector<1x128x128xbf16>
    %43 = vector.shape_cast %42 : vector<1x128x128xbf16> to vector<128x128xbf16>
    %cst_27 = arith.constant dense<0.000000e+00> : vector<143x128xf32>
    %44 = tpu.matmul %41, %43, %cst_27 {dimension_numbers = #tpu.dot_dimension_numbers<[1], [0], [0], [1], [0, 0, 1, 1], [], []>} : vector<143x128xbf16>, vector<128x128xbf16>, vector<143x128xf32> -> vector<143x128xf32>
    %45 = arith.addf %40, %44 : vector<143x128xf32>
    %46 = vector.extract_strided_slice %21 {offsets = [15, 0], sizes = [143, 128], strides = [1, 1]} : vector<171x128xbf16> to vector<143x128xbf16>
    %c5 = arith.constant 5 : index
    %c0_28 = arith.constant 0 : index
    %c0_29 = arith.constant 0 : index
    %47 = vector.load %arg5[%c5, %c0_28, %c0_29] : memref<9x128x128xbf16, #tpu.memory_space<vmem>>, vector<1x128x128xbf16>
    %48 = vector.shape_cast %47 : vector<1x128x128xbf16> to vector<128x128xbf16>
    %cst_30 = arith.constant dense<0.000000e+00> : vector<143x128xf32>
    %49 = tpu.matmul %46, %48, %cst_30 {dimension_numbers = #tpu.dot_dimension_numbers<[1], [0], [0], [1], [0, 0, 1, 1], [], []>} : vector<143x128xbf16>, vector<128x128xbf16>, vector<143x128xf32> -> vector<143x128xf32>
    %50 = arith.addf %45, %49 : vector<143x128xf32>
    %51 = vector.extract_strided_slice %21 {offsets = [26, 0], sizes = [143, 128], strides = [1, 1]} : vector<171x128xbf16> to vector<143x128xbf16>
    %c6 = arith.constant 6 : index
    %c0_31 = arith.constant 0 : index
    %c0_32 = arith.constant 0 : index
    %52 = vector.load %arg5[%c6, %c0_31, %c0_32] : memref<9x128x128xbf16, #tpu.memory_space<vmem>>, vector<1x128x128xbf16>
    %53 = vector.shape_cast %52 : vector<1x128x128xbf16> to vector<128x128xbf16>
    %cst_33 = arith.constant dense<0.000000e+00> : vector<143x128xf32>
    %54 = tpu.matmul %51, %53, %cst_33 {dimension_numbers = #tpu.dot_dimension_numbers<[1], [0], [0], [1], [0, 0, 1, 1], [], []>} : vector<143x128xbf16>, vector<128x128xbf16>, vector<143x128xf32> -> vector<143x128xf32>
    %55 = arith.addf %50, %54 : vector<143x128xf32>
    %56 = vector.extract_strided_slice %21 {offsets = [27, 0], sizes = [143, 128], strides = [1, 1]} : vector<171x128xbf16> to vector<143x128xbf16>
    %c7 = arith.constant 7 : index
    %c0_34 = arith.constant 0 : index
    %c0_35 = arith.constant 0 : index
    %57 = vector.load %arg5[%c7, %c0_34, %c0_35] : memref<9x128x128xbf16, #tpu.memory_space<vmem>>, vector<1x128x128xbf16>
    %58 = vector.shape_cast %57 : vector<1x128x128xbf16> to vector<128x128xbf16>
    %cst_36 = arith.constant dense<0.000000e+00> : vector<143x128xf32>
    %59 = tpu.matmul %56, %58, %cst_36 {dimension_numbers = #tpu.dot_dimension_numbers<[1], [0], [0], [1], [0, 0, 1, 1], [], []>} : vector<143x128xbf16>, vector<128x128xbf16>, vector<143x128xf32> -> vector<143x128xf32>
    %60 = arith.addf %55, %59 : vector<143x128xf32>
    %61 = vector.extract_strided_slice %21 {offsets = [28, 0], sizes = [143, 128], strides = [1, 1]} : vector<171x128xbf16> to vector<143x128xbf16>
    %c8 = arith.constant 8 : index
    %c0_37 = arith.constant 0 : index
    %c0_38 = arith.constant 0 : index
    %62 = vector.load %arg5[%c8, %c0_37, %c0_38] : memref<9x128x128xbf16, #tpu.memory_space<vmem>>, vector<1x128x128xbf16>
    %63 = vector.shape_cast %62 : vector<1x128x128xbf16> to vector<128x128xbf16>
    %cst_39 = arith.constant dense<0.000000e+00> : vector<143x128xf32>
    %64 = tpu.matmul %61, %63, %cst_39 {dimension_numbers = #tpu.dot_dimension_numbers<[1], [0], [0], [1], [0, 0, 1, 1], [], []>} : vector<143x128xbf16>, vector<128x128xbf16>, vector<143x128xf32> -> vector<143x128xf32>
    %65 = arith.addf %60, %64 : vector<143x128xf32>
    %c0_40 = arith.constant 0 : index
    %c0_41 = arith.constant 0 : index
    %66 = vector.load %arg6[%c0_40, %c0_41] : memref<2x128xf32, #tpu.memory_space<vmem>>, vector<1x128xf32>
    %c1_42 = arith.constant 1 : index
    %c0_43 = arith.constant 0 : index
    %67 = vector.load %arg6[%c1_42, %c0_43] : memref<2x128xf32, #tpu.memory_space<vmem>>, vector<1x128xf32>
    %68 = vector.broadcast %66 : vector<1x128xf32> to vector<143x128xf32>
    %69 = arith.mulf %65, %68 : vector<143x128xf32>
    %70 = vector.broadcast %67 : vector<1x128xf32> to vector<143x128xf32>
    %71 = arith.addf %69, %70 : vector<143x128xf32>
    %cst_44 = arith.constant 0.000000e+00 : f32
    %72 = vector.broadcast %cst_44 : f32 to vector<143x128xf32>
    %73 = arith.maximumf %71, %72 : vector<143x128xf32>
    %74 = arith.truncf %73 : vector<143x128xf32> to vector<143x128xbf16>
    %75 = vector.extract_strided_slice %74 {offsets = [0, 0], sizes = [142, 128], strides = [1, 1]} : vector<143x128xbf16> to vector<142x128xbf16>
    %76 = vector.extract_strided_slice %74 {offsets = [1, 0], sizes = [142, 128], strides = [1, 1]} : vector<143x128xbf16> to vector<142x128xbf16>
    %77 = arith.maximumf %75, %76 : vector<142x128xbf16>
    %78 = vector.extract_strided_slice %77 {offsets = [0, 0], sizes = [129, 128], strides = [1, 1]} : vector<142x128xbf16> to vector<129x128xbf16>
    %79 = vector.extract_strided_slice %77 {offsets = [13, 0], sizes = [129, 128], strides = [1, 1]} : vector<142x128xbf16> to vector<129x128xbf16>
    %80 = arith.maximumf %78, %79 : vector<129x128xbf16>
    %c0_45 = arith.constant 0 : index
    %c0_46 = arith.constant 0 : index
    %81 = vector.load %arg7[%c0_45, %c0_46] : memref<51x129xbf16, #tpu.memory_space<vmem>>, vector<51x129xbf16>
    %cst_47 = arith.constant dense<0.000000e+00> : vector<51x128xf32>
    %82 = tpu.matmul %81, %80, %cst_47 {dimension_numbers = #tpu.dot_dimension_numbers<[1], [0], [0], [1], [0, 0, 1, 1], [], []>} : vector<51x129xbf16>, vector<129x128xbf16>, vector<51x128xf32> -> vector<51x128xf32>
    %83 = arith.truncf %82 : vector<51x128xf32> to vector<51x128xbf16>
    %84 = vector.extract_strided_slice %83 {offsets = [0, 0], sizes = [35, 128], strides = [1, 1]} : vector<51x128xbf16> to vector<35x128xbf16>
    %c0_48 = arith.constant 0 : index
    %c0_49 = arith.constant 0 : index
    %c0_50 = arith.constant 0 : index
    %85 = vector.load %arg8[%c0_48, %c0_49, %c0_50] : memref<9x128x128xbf16, #tpu.memory_space<vmem>>, vector<1x128x128xbf16>
    %86 = vector.shape_cast %85 : vector<1x128x128xbf16> to vector<128x128xbf16>
    %cst_51 = arith.constant dense<0.000000e+00> : vector<35x128xf32>
    %87 = tpu.matmul %84, %86, %cst_51 {dimension_numbers = #tpu.dot_dimension_numbers<[1], [0], [0], [1], [0, 0, 1, 1], [], []>} : vector<35x128xbf16>, vector<128x128xbf16>, vector<35x128xf32> -> vector<35x128xf32>
    %88 = vector.extract_strided_slice %83 {offsets = [1, 0], sizes = [35, 128], strides = [1, 1]} : vector<51x128xbf16> to vector<35x128xbf16>
    %c1_52 = arith.constant 1 : index
    %c0_53 = arith.constant 0 : index
    %c0_54 = arith.constant 0 : index
    %89 = vector.load %arg8[%c1_52, %c0_53, %c0_54] : memref<9x128x128xbf16, #tpu.memory_space<vmem>>, vector<1x128x128xbf16>
    %90 = vector.shape_cast %89 : vector<1x128x128xbf16> to vector<128x128xbf16>
    %cst_55 = arith.constant dense<0.000000e+00> : vector<35x128xf32>
    %91 = tpu.matmul %88, %90, %cst_55 {dimension_numbers = #tpu.dot_dimension_numbers<[1], [0], [0], [1], [0, 0, 1, 1], [], []>} : vector<35x128xbf16>, vector<128x128xbf16>, vector<35x128xf32> -> vector<35x128xf32>
    %92 = arith.addf %87, %91 : vector<35x128xf32>
    %93 = vector.extract_strided_slice %83 {offsets = [2, 0], sizes = [35, 128], strides = [1, 1]} : vector<51x128xbf16> to vector<35x128xbf16>
    %c2_56 = arith.constant 2 : index
    %c0_57 = arith.constant 0 : index
    %c0_58 = arith.constant 0 : index
    %94 = vector.load %arg8[%c2_56, %c0_57, %c0_58] : memref<9x128x128xbf16, #tpu.memory_space<vmem>>, vector<1x128x128xbf16>
    %95 = vector.shape_cast %94 : vector<1x128x128xbf16> to vector<128x128xbf16>
    %cst_59 = arith.constant dense<0.000000e+00> : vector<35x128xf32>
    %96 = tpu.matmul %93, %95, %cst_59 {dimension_numbers = #tpu.dot_dimension_numbers<[1], [0], [0], [1], [0, 0, 1, 1], [], []>} : vector<35x128xbf16>, vector<128x128xbf16>, vector<35x128xf32> -> vector<35x128xf32>
    %97 = arith.addf %92, %96 : vector<35x128xf32>
    %98 = vector.extract_strided_slice %83 {offsets = [7, 0], sizes = [35, 128], strides = [1, 1]} : vector<51x128xbf16> to vector<35x128xbf16>
    %c3_60 = arith.constant 3 : index
    %c0_61 = arith.constant 0 : index
    %c0_62 = arith.constant 0 : index
    %99 = vector.load %arg8[%c3_60, %c0_61, %c0_62] : memref<9x128x128xbf16, #tpu.memory_space<vmem>>, vector<1x128x128xbf16>
    %100 = vector.shape_cast %99 : vector<1x128x128xbf16> to vector<128x128xbf16>
    %cst_63 = arith.constant dense<0.000000e+00> : vector<35x128xf32>
    %101 = tpu.matmul %98, %100, %cst_63 {dimension_numbers = #tpu.dot_dimension_numbers<[1], [0], [0], [1], [0, 0, 1, 1], [], []>} : vector<35x128xbf16>, vector<128x128xbf16>, vector<35x128xf32> -> vector<35x128xf32>
    %102 = arith.addf %97, %101 : vector<35x128xf32>
    %103 = vector.extract_strided_slice %83 {offsets = [8, 0], sizes = [35, 128], strides = [1, 1]} : vector<51x128xbf16> to vector<35x128xbf16>
    %c4_64 = arith.constant 4 : index
    %c0_65 = arith.constant 0 : index
    %c0_66 = arith.constant 0 : index
    %104 = vector.load %arg8[%c4_64, %c0_65, %c0_66] : memref<9x128x128xbf16, #tpu.memory_space<vmem>>, vector<1x128x128xbf16>
    %105 = vector.shape_cast %104 : vector<1x128x128xbf16> to vector<128x128xbf16>
    %cst_67 = arith.constant dense<0.000000e+00> : vector<35x128xf32>
    %106 = tpu.matmul %103, %105, %cst_67 {dimension_numbers = #tpu.dot_dimension_numbers<[1], [0], [0], [1], [0, 0, 1, 1], [], []>} : vector<35x128xbf16>, vector<128x128xbf16>, vector<35x128xf32> -> vector<35x128xf32>
    %107 = arith.addf %102, %106 : vector<35x128xf32>
    %108 = vector.extract_strided_slice %83 {offsets = [9, 0], sizes = [35, 128], strides = [1, 1]} : vector<51x128xbf16> to vector<35x128xbf16>
    %c5_68 = arith.constant 5 : index
    %c0_69 = arith.constant 0 : index
    %c0_70 = arith.constant 0 : index
    %109 = vector.load %arg8[%c5_68, %c0_69, %c0_70] : memref<9x128x128xbf16, #tpu.memory_space<vmem>>, vector<1x128x128xbf16>
    %110 = vector.shape_cast %109 : vector<1x128x128xbf16> to vector<128x128xbf16>
    %cst_71 = arith.constant dense<0.000000e+00> : vector<35x128xf32>
    %111 = tpu.matmul %108, %110, %cst_71 {dimension_numbers = #tpu.dot_dimension_numbers<[1], [0], [0], [1], [0, 0, 1, 1], [], []>} : vector<35x128xbf16>, vector<128x128xbf16>, vector<35x128xf32> -> vector<35x128xf32>
    %112 = arith.addf %107, %111 : vector<35x128xf32>
    %113 = vector.extract_strided_slice %83 {offsets = [14, 0], sizes = [35, 128], strides = [1, 1]} : vector<51x128xbf16> to vector<35x128xbf16>
    %c6_72 = arith.constant 6 : index
    %c0_73 = arith.constant 0 : index
    %c0_74 = arith.constant 0 : index
    %114 = vector.load %arg8[%c6_72, %c0_73, %c0_74] : memref<9x128x128xbf16, #tpu.memory_space<vmem>>, vector<1x128x128xbf16>
    %115 = vector.shape_cast %114 : vector<1x128x128xbf16> to vector<128x128xbf16>
    %cst_75 = arith.constant dense<0.000000e+00> : vector<35x128xf32>
    %116 = tpu.matmul %113, %115, %cst_75 {dimension_numbers = #tpu.dot_dimension_numbers<[1], [0], [0], [1], [0, 0, 1, 1], [], []>} : vector<35x128xbf16>, vector<128x128xbf16>, vector<35x128xf32> -> vector<35x128xf32>
    %117 = arith.addf %112, %116 : vector<35x128xf32>
    %118 = vector.extract_strided_slice %83 {offsets = [15, 0], sizes = [35, 128], strides = [1, 1]} : vector<51x128xbf16> to vector<35x128xbf16>
    %c7_76 = arith.constant 7 : index
    %c0_77 = arith.constant 0 : index
    %c0_78 = arith.constant 0 : index
    %119 = vector.load %arg8[%c7_76, %c0_77, %c0_78] : memref<9x128x128xbf16, #tpu.memory_space<vmem>>, vector<1x128x128xbf16>
    %120 = vector.shape_cast %119 : vector<1x128x128xbf16> to vector<128x128xbf16>
    %cst_79 = arith.constant dense<0.000000e+00> : vector<35x128xf32>
    %121 = tpu.matmul %118, %120, %cst_79 {dimension_numbers = #tpu.dot_dimension_numbers<[1], [0], [0], [1], [0, 0, 1, 1], [], []>} : vector<35x128xbf16>, vector<128x128xbf16>, vector<35x128xf32> -> vector<35x128xf32>
    %122 = arith.addf %117, %121 : vector<35x128xf32>
    %123 = vector.extract_strided_slice %83 {offsets = [16, 0], sizes = [35, 128], strides = [1, 1]} : vector<51x128xbf16> to vector<35x128xbf16>
    %c8_80 = arith.constant 8 : index
    %c0_81 = arith.constant 0 : index
    %c0_82 = arith.constant 0 : index
    %124 = vector.load %arg8[%c8_80, %c0_81, %c0_82] : memref<9x128x128xbf16, #tpu.memory_space<vmem>>, vector<1x128x128xbf16>
    %125 = vector.shape_cast %124 : vector<1x128x128xbf16> to vector<128x128xbf16>
    %cst_83 = arith.constant dense<0.000000e+00> : vector<35x128xf32>
    %126 = tpu.matmul %123, %125, %cst_83 {dimension_numbers = #tpu.dot_dimension_numbers<[1], [0], [0], [1], [0, 0, 1, 1], [], []>} : vector<35x128xbf16>, vector<128x128xbf16>, vector<35x128xf32> -> vector<35x128xf32>
    %127 = arith.addf %122, %126 : vector<35x128xf32>
    %c0_84 = arith.constant 0 : index
    %c0_85 = arith.constant 0 : index
    %128 = vector.load %arg9[%c0_84, %c0_85] : memref<2x128xf32, #tpu.memory_space<vmem>>, vector<1x128xf32>
    %c1_86 = arith.constant 1 : index
    %c0_87 = arith.constant 0 : index
    %129 = vector.load %arg9[%c1_86, %c0_87] : memref<2x128xf32, #tpu.memory_space<vmem>>, vector<1x128xf32>
    %130 = vector.broadcast %128 : vector<1x128xf32> to vector<35x128xf32>
    %131 = arith.mulf %127, %130 : vector<35x128xf32>
    %132 = vector.broadcast %129 : vector<1x128xf32> to vector<35x128xf32>
    %133 = arith.addf %131, %132 : vector<35x128xf32>
    %cst_88 = arith.constant 0.000000e+00 : f32
    %134 = vector.broadcast %cst_88 : f32 to vector<35x128xf32>
    %135 = arith.maximumf %133, %134 : vector<35x128xf32>
    %136 = arith.truncf %135 : vector<35x128xf32> to vector<35x128xbf16>
    %c0_89 = arith.constant 0 : index
    %c0_90 = arith.constant 0 : index
    %137 = vector.load %arg10[%c0_89, %c0_90] : memref<50x35xbf16, #tpu.memory_space<vmem>>, vector<50x35xbf16>
    %cst_91 = arith.constant dense<0.000000e+00> : vector<50x128xf32>
    %138 = tpu.matmul %137, %136, %cst_91 {dimension_numbers = #tpu.dot_dimension_numbers<[1], [0], [0], [1], [0, 0, 1, 1], [], []>} : vector<50x35xbf16>, vector<35x128xbf16>, vector<50x128xf32> -> vector<50x128xf32>
    %139 = arith.truncf %138 : vector<50x128xf32> to vector<50x128xbf16>
    %140 = vector.extract_strided_slice %139 {offsets = [0, 0], sizes = [42, 128], strides = [1, 1]} : vector<50x128xbf16> to vector<42x128xbf16>
    %c0_92 = arith.constant 0 : index
    %c0_93 = arith.constant 0 : index
    %c0_94 = arith.constant 0 : index
    %141 = vector.load %arg11[%c0_92, %c0_93, %c0_94] : memref<4x128x256xbf16, #tpu.memory_space<vmem>>, vector<1x128x256xbf16>
    %142 = vector.shape_cast %141 : vector<1x128x256xbf16> to vector<128x256xbf16>
    %cst_95 = arith.constant dense<0.000000e+00> : vector<42x256xf32>
    %143 = tpu.matmul %140, %142, %cst_95 {dimension_numbers = #tpu.dot_dimension_numbers<[1], [0], [0], [1], [0, 0, 1, 1], [], []>} : vector<42x128xbf16>, vector<128x256xbf16>, vector<42x256xf32> -> vector<42x256xf32>
    %144 = vector.extract_strided_slice %139 {offsets = [1, 0], sizes = [42, 128], strides = [1, 1]} : vector<50x128xbf16> to vector<42x128xbf16>
    %c1_96 = arith.constant 1 : index
    %c0_97 = arith.constant 0 : index
    %c0_98 = arith.constant 0 : index
    %145 = vector.load %arg11[%c1_96, %c0_97, %c0_98] : memref<4x128x256xbf16, #tpu.memory_space<vmem>>, vector<1x128x256xbf16>
    %146 = vector.shape_cast %145 : vector<1x128x256xbf16> to vector<128x256xbf16>
    %cst_99 = arith.constant dense<0.000000e+00> : vector<42x256xf32>
    %147 = tpu.matmul %144, %146, %cst_99 {dimension_numbers = #tpu.dot_dimension_numbers<[1], [0], [0], [1], [0, 0, 1, 1], [], []>} : vector<42x128xbf16>, vector<128x256xbf16>, vector<42x256xf32> -> vector<42x256xf32>
    %148 = arith.addf %143, %147 : vector<42x256xf32>
    %149 = vector.extract_strided_slice %139 {offsets = [7, 0], sizes = [42, 128], strides = [1, 1]} : vector<50x128xbf16> to vector<42x128xbf16>
    %c2_100 = arith.constant 2 : index
    %c0_101 = arith.constant 0 : index
    %c0_102 = arith.constant 0 : index
    %150 = vector.load %arg11[%c2_100, %c0_101, %c0_102] : memref<4x128x256xbf16, #tpu.memory_space<vmem>>, vector<1x128x256xbf16>
    %151 = vector.shape_cast %150 : vector<1x128x256xbf16> to vector<128x256xbf16>
    %cst_103 = arith.constant dense<0.000000e+00> : vector<42x256xf32>
    %152 = tpu.matmul %149, %151, %cst_103 {dimension_numbers = #tpu.dot_dimension_numbers<[1], [0], [0], [1], [0, 0, 1, 1], [], []>} : vector<42x128xbf16>, vector<128x256xbf16>, vector<42x256xf32> -> vector<42x256xf32>
    %153 = arith.addf %148, %152 : vector<42x256xf32>
    %154 = vector.extract_strided_slice %139 {offsets = [8, 0], sizes = [42, 128], strides = [1, 1]} : vector<50x128xbf16> to vector<42x128xbf16>
    %c3_104 = arith.constant 3 : index
    %c0_105 = arith.constant 0 : index
    %c0_106 = arith.constant 0 : index
    %155 = vector.load %arg11[%c3_104, %c0_105, %c0_106] : memref<4x128x256xbf16, #tpu.memory_space<vmem>>, vector<1x128x256xbf16>
    %156 = vector.shape_cast %155 : vector<1x128x256xbf16> to vector<128x256xbf16>
    %cst_107 = arith.constant dense<0.000000e+00> : vector<42x256xf32>
    %157 = tpu.matmul %154, %156, %cst_107 {dimension_numbers = #tpu.dot_dimension_numbers<[1], [0], [0], [1], [0, 0, 1, 1], [], []>} : vector<42x128xbf16>, vector<128x256xbf16>, vector<42x256xf32> -> vector<42x256xf32>
    %158 = arith.addf %153, %157 : vector<42x256xf32>
    %c0_108 = arith.constant 0 : index
    %c0_109 = arith.constant 0 : index
    %159 = vector.load %arg12[%c0_108, %c0_109] : memref<2x256xf32, #tpu.memory_space<vmem>>, vector<1x256xf32>
    %c1_110 = arith.constant 1 : index
    %c0_111 = arith.constant 0 : index
    %160 = vector.load %arg12[%c1_110, %c0_111] : memref<2x256xf32, #tpu.memory_space<vmem>>, vector<1x256xf32>
    %161 = vector.broadcast %159 : vector<1x256xf32> to vector<42x256xf32>
    %162 = arith.mulf %158, %161 : vector<42x256xf32>
    %163 = vector.broadcast %160 : vector<1x256xf32> to vector<42x256xf32>
    %164 = arith.addf %162, %163 : vector<42x256xf32>
    %cst_112 = arith.constant 0.000000e+00 : f32
    %165 = vector.broadcast %cst_112 : f32 to vector<42x256xf32>
    %166 = arith.maximumf %164, %165 : vector<42x256xf32>
    %167 = arith.truncf %166 : vector<42x256xf32> to vector<42x256xbf16>
    %c0_113 = arith.constant 0 : index
    %c0_114 = arith.constant 0 : index
    %168 = vector.load %arg13[%c0_113, %c0_114] : memref<65x42xbf16, #tpu.memory_space<vmem>>, vector<65x42xbf16>
    %cst_115 = arith.constant dense<0.000000e+00> : vector<65x256xf32>
    %169 = tpu.matmul %168, %167, %cst_115 {dimension_numbers = #tpu.dot_dimension_numbers<[1], [0], [0], [1], [0, 0, 1, 1], [], []>} : vector<65x42xbf16>, vector<42x256xbf16>, vector<65x256xf32> -> vector<65x256xf32>
    %170 = arith.truncf %169 : vector<65x256xf32> to vector<65x256xbf16>
    %171 = vector.extract_strided_slice %170 {offsets = [0, 0], sizes = [56, 256], strides = [1, 1]} : vector<65x256xbf16> to vector<56x256xbf16>
    %c0_116 = arith.constant 0 : index
    %c0_117 = arith.constant 0 : index
    %c0_118 = arith.constant 0 : index
    %172 = vector.load %arg14[%c0_116, %c0_117, %c0_118] : memref<4x256x128xbf16, #tpu.memory_space<vmem>>, vector<1x256x128xbf16>
    %173 = vector.shape_cast %172 : vector<1x256x128xbf16> to vector<256x128xbf16>
    %cst_119 = arith.constant dense<0.000000e+00> : vector<56x128xf32>
    %174 = tpu.matmul %171, %173, %cst_119 {dimension_numbers = #tpu.dot_dimension_numbers<[1], [0], [0], [1], [0, 0, 1, 1], [], []>} : vector<56x256xbf16>, vector<256x128xbf16>, vector<56x128xf32> -> vector<56x128xf32>
    %175 = vector.extract_strided_slice %170 {offsets = [1, 0], sizes = [56, 256], strides = [1, 1]} : vector<65x256xbf16> to vector<56x256xbf16>
    %c1_120 = arith.constant 1 : index
    %c0_121 = arith.constant 0 : index
    %c0_122 = arith.constant 0 : index
    %176 = vector.load %arg14[%c1_120, %c0_121, %c0_122] : memref<4x256x128xbf16, #tpu.memory_space<vmem>>, vector<1x256x128xbf16>
    %177 = vector.shape_cast %176 : vector<1x256x128xbf16> to vector<256x128xbf16>
    %cst_123 = arith.constant dense<0.000000e+00> : vector<56x128xf32>
    %178 = tpu.matmul %175, %177, %cst_123 {dimension_numbers = #tpu.dot_dimension_numbers<[1], [0], [0], [1], [0, 0, 1, 1], [], []>} : vector<56x256xbf16>, vector<256x128xbf16>, vector<56x128xf32> -> vector<56x128xf32>
    %179 = arith.addf %174, %178 : vector<56x128xf32>
    %180 = vector.extract_strided_slice %170 {offsets = [8, 0], sizes = [56, 256], strides = [1, 1]} : vector<65x256xbf16> to vector<56x256xbf16>
    %c2_124 = arith.constant 2 : index
    %c0_125 = arith.constant 0 : index
    %c0_126 = arith.constant 0 : index
    %181 = vector.load %arg14[%c2_124, %c0_125, %c0_126] : memref<4x256x128xbf16, #tpu.memory_space<vmem>>, vector<1x256x128xbf16>
    %182 = vector.shape_cast %181 : vector<1x256x128xbf16> to vector<256x128xbf16>
    %cst_127 = arith.constant dense<0.000000e+00> : vector<56x128xf32>
    %183 = tpu.matmul %180, %182, %cst_127 {dimension_numbers = #tpu.dot_dimension_numbers<[1], [0], [0], [1], [0, 0, 1, 1], [], []>} : vector<56x256xbf16>, vector<256x128xbf16>, vector<56x128xf32> -> vector<56x128xf32>
    %184 = arith.addf %179, %183 : vector<56x128xf32>
    %185 = vector.extract_strided_slice %170 {offsets = [9, 0], sizes = [56, 256], strides = [1, 1]} : vector<65x256xbf16> to vector<56x256xbf16>
    %c3_128 = arith.constant 3 : index
    %c0_129 = arith.constant 0 : index
    %c0_130 = arith.constant 0 : index
    %186 = vector.load %arg14[%c3_128, %c0_129, %c0_130] : memref<4x256x128xbf16, #tpu.memory_space<vmem>>, vector<1x256x128xbf16>
    %187 = vector.shape_cast %186 : vector<1x256x128xbf16> to vector<256x128xbf16>
    %cst_131 = arith.constant dense<0.000000e+00> : vector<56x128xf32>
    %188 = tpu.matmul %185, %187, %cst_131 {dimension_numbers = #tpu.dot_dimension_numbers<[1], [0], [0], [1], [0, 0, 1, 1], [], []>} : vector<56x256xbf16>, vector<256x128xbf16>, vector<56x128xf32> -> vector<56x128xf32>
    %189 = arith.addf %184, %188 : vector<56x128xf32>
    %c0_132 = arith.constant 0 : index
    %c0_133 = arith.constant 0 : index
    %190 = vector.load %arg15[%c0_132, %c0_133] : memref<2x128xf32, #tpu.memory_space<vmem>>, vector<1x128xf32>
    %c1_134 = arith.constant 1 : index
    %c0_135 = arith.constant 0 : index
    %191 = vector.load %arg15[%c1_134, %c0_135] : memref<2x128xf32, #tpu.memory_space<vmem>>, vector<1x128xf32>
    %192 = vector.broadcast %190 : vector<1x128xf32> to vector<56x128xf32>
    %193 = arith.mulf %189, %192 : vector<56x128xf32>
    %194 = vector.broadcast %191 : vector<1x128xf32> to vector<56x128xf32>
    %195 = arith.addf %193, %194 : vector<56x128xf32>
    %cst_136 = arith.constant 0.000000e+00 : f32
    %196 = vector.broadcast %cst_136 : f32 to vector<56x128xf32>
    %197 = arith.maximumf %195, %196 : vector<56x128xf32>
    %198 = arith.truncf %197 : vector<56x128xf32> to vector<56x128xbf16>
    %199 = vector.extract_strided_slice %198 {offsets = [0, 0], sizes = [55, 128], strides = [1, 1]} : vector<56x128xbf16> to vector<55x128xbf16>
    %200 = vector.extract_strided_slice %198 {offsets = [1, 0], sizes = [55, 128], strides = [1, 1]} : vector<56x128xbf16> to vector<55x128xbf16>
    %201 = arith.maximumf %199, %200 : vector<55x128xbf16>
    %202 = vector.extract_strided_slice %201 {offsets = [0, 0], sizes = [47, 128], strides = [1, 1]} : vector<55x128xbf16> to vector<47x128xbf16>
    %203 = vector.extract_strided_slice %201 {offsets = [8, 0], sizes = [47, 128], strides = [1, 1]} : vector<55x128xbf16> to vector<47x128xbf16>
    %204 = arith.maximumf %202, %203 : vector<47x128xbf16>
    %c0_137 = arith.constant 0 : index
    %c0_138 = arith.constant 0 : index
    %205 = vector.load %arg16[%c0_137, %c0_138] : memref<9x47xbf16, #tpu.memory_space<vmem>>, vector<9x47xbf16>
    %cst_139 = arith.constant dense<0.000000e+00> : vector<9x128xf32>
    %206 = tpu.matmul %205, %204, %cst_139 {dimension_numbers = #tpu.dot_dimension_numbers<[1], [0], [0], [1], [0, 0, 1, 1], [], []>} : vector<9x47xbf16>, vector<47x128xbf16>, vector<9x128xf32> -> vector<9x128xf32>
    %207 = arith.truncf %206 : vector<9x128xf32> to vector<9x128xbf16>
    %c0_140 = arith.constant 0 : index
    %c0_141 = arith.constant 0 : index
    %c0_142 = arith.constant 0 : index
    %208 = vector.load %arg17[%c0_140, %c0_141, %c0_142] : memref<1x9x128xbf16, #tpu.memory_space<vmem>>, vector<1x9x128xbf16>
    %209 = vector.shape_cast %208 : vector<1x9x128xbf16> to vector<9x128xbf16>
    %210 = vector.shape_cast %207 : vector<9x128xbf16> to vector<1x9x128xbf16>
    tpu.vector_store %arg17[%c0_140, %c0_141, %c0_142], %210 {strides = array<i32>} : memref<1x9x128xbf16, #tpu.memory_space<vmem>>, vector<1x9x128xbf16>,
    return
  }
  func.func @transform_0(%arg0: i32) -> (i32, i32, i32) {
    %c0_i32 = arith.constant 0 : i32
    %c0_i32_0 = arith.constant 0 : i32
    %c0_i32_1 = arith.constant 0 : i32
    return %arg0, %c0_i32, %c0_i32_0 : i32, i32, i32
  }
  func.func @transform_1(%arg0: i32) -> (i32, i32) {
    %c0_i32 = arith.constant 0 : i32
    %c0_i32_0 = arith.constant 0 : i32
    %c0_i32_1 = arith.constant 0 : i32
    return %c0_i32, %c0_i32_0 : i32, i32
  }
  func.func @transform_2(%arg0: i32) -> (i32, i32) {
    %c0_i32 = arith.constant 0 : i32
    %c0_i32_0 = arith.constant 0 : i32
    %c0_i32_1 = arith.constant 0 : i32
    return %c0_i32, %c0_i32_0 : i32, i32
  }
  func.func @transform_3(%arg0: i32) -> (i32, i32) {
    %c0_i32 = arith.constant 0 : i32
    %c0_i32_0 = arith.constant 0 : i32
    %c0_i32_1 = arith.constant 0 : i32
    return %c0_i32, %c0_i32_0 : i32, i32
  }
  func.func @transform_4(%arg0: i32) -> (i32, i32, i32) {
    %c0_i32 = arith.constant 0 : i32
    %c0_i32_0 = arith.constant 0 : i32
    %c0_i32_1 = arith.constant 0 : i32
    %c0_i32_2 = arith.constant 0 : i32
    return %c0_i32, %c0_i32_0, %c0_i32_1 : i32, i32, i32
  }
  func.func @transform_5(%arg0: i32) -> (i32, i32) {
    %c0_i32 = arith.constant 0 : i32
    %c0_i32_0 = arith.constant 0 : i32
    %c0_i32_1 = arith.constant 0 : i32
    return %c0_i32, %c0_i32_0 : i32, i32
  }
  func.func @transform_6(%arg0: i32) -> (i32, i32) {
    %c0_i32 = arith.constant 0 : i32
    %c0_i32_0 = arith.constant 0 : i32
    %c0_i32_1 = arith.constant 0 : i32
    return %c0_i32, %c0_i32_0 : i32, i32
  }
  func.func @transform_7(%arg0: i32) -> (i32, i32, i32) {
    %c0_i32 = arith.constant 0 : i32
    %c0_i32_0 = arith.constant 0 : i32
    %c0_i32_1 = arith.constant 0 : i32
    %c0_i32_2 = arith.constant 0 : i32
    return %c0_i32, %c0_i32_0, %c0_i32_1 : i32, i32, i32
  }
  func.func @transform_8(%arg0: i32) -> (i32, i32) {
    %c0_i32 = arith.constant 0 : i32
    %c0_i32_0 = arith.constant 0 : i32
    %c0_i32_1 = arith.constant 0 : i32
    return %c0_i32, %c0_i32_0 : i32, i32
  }
  func.func @transform_9(%arg0: i32) -> (i32, i32) {
    %c0_i32 = arith.constant 0 : i32
    %c0_i32_0 = arith.constant 0 : i32
    %c0_i32_1 = arith.constant 0 : i32
    return %c0_i32, %c0_i32_0 : i32, i32
  }
  func.func @transform_10(%arg0: i32) -> (i32, i32, i32) {
    %c0_i32 = arith.constant 0 : i32
    %c0_i32_0 = arith.constant 0 : i32
    %c0_i32_1 = arith.constant 0 : i32
    %c0_i32_2 = arith.constant 0 : i32
    return %c0_i32, %c0_i32_0, %c0_i32_1 : i32, i32, i32
  }
  func.func @transform_11(%arg0: i32) -> (i32, i32) {
    %c0_i32 = arith.constant 0 : i32
    %c0_i32_0 = arith.constant 0 : i32
    %c0_i32_1 = arith.constant 0 : i32
    return %c0_i32, %c0_i32_0 : i32, i32
  }
  func.func @transform_12(%arg0: i32) -> (i32, i32) {
    %c0_i32 = arith.constant 0 : i32
    %c0_i32_0 = arith.constant 0 : i32
    %c0_i32_1 = arith.constant 0 : i32
    return %c0_i32, %c0_i32_0 : i32, i32
  }
  func.func @transform_13(%arg0: i32) -> (i32, i32, i32) {
    %c0_i32 = arith.constant 0 : i32
    %c0_i32_0 = arith.constant 0 : i32
    %c0_i32_1 = arith.constant 0 : i32
    %c0_i32_2 = arith.constant 0 : i32
    return %c0_i32, %c0_i32_0, %c0_i32_1 : i32, i32, i32
  }
  func.func @transform_14(%arg0: i32) -> (i32, i32) {
    %c0_i32 = arith.constant 0 : i32
    %c0_i32_0 = arith.constant 0 : i32
    %c0_i32_1 = arith.constant 0 : i32
    return %c0_i32, %c0_i32_0 : i32, i32
  }
  func.func @transform_15(%arg0: i32) -> (i32, i32) {
    %c0_i32 = arith.constant 0 : i32
    %c0_i32_0 = arith.constant 0 : i32
    %c0_i32_1 = arith.constant 0 : i32
    return %c0_i32, %c0_i32_0 : i32, i32
  }
  func.func @transform_16(%arg0: i32) -> (i32, i32, i32) {
    %c0_i32 = arith.constant 0 : i32
    %c0_i32_0 = arith.constant 0 : i32
    %c0_i32_1 = arith.constant 0 : i32
    return %arg0, %c0_i32, %c0_i32_0 : i32, i32, i32
  }
}

</mosaic_0001>

<llo_original>
// kernel: alexnet_forward.1
$region0: #{alexnet_forward.1}
  #allocation0 [shape = 'u32[]', space=smem, size = 0x4, offset = 0x4, fixed_abs, tag = 'smem constant byte address 0x4 - core index']
  #allocation1 [shape = 'u32[144,128]{1,0:T(1,128)}', space=vmem, size = 0x12000, scoped, tag = 'internal scratch']
  %s0 = inlined_call_operand.vmem [shape: bf16[2,324,32], index: 0, kind: input, shape index: {}]
  %s1 = inlined_call_operand.vmem [shape: bf16[32,128], index: 1, kind: input, shape index: {}]
  %s2 = inlined_call_operand.vmem [shape: f32[2,128], index: 2, kind: input, shape index: {}]
  %s3 = inlined_call_operand.vmem [shape: bf16[171,305], index: 3, kind: input, shape index: {}]
  %s4 = inlined_call_operand.vmem [shape: bf16[9,128,128], index: 4, kind: input, shape index: {}]
  %s5 = inlined_call_operand.vmem [shape: f32[2,128], index: 5, kind: input, shape index: {}]
  %s6 = inlined_call_operand.vmem [shape: bf16[51,129], index: 6, kind: input, shape index: {}]
  %s7 = inlined_call_operand.vmem [shape: bf16[9,128,128], index: 7, kind: input, shape index: {}]
  %s8 = inlined_call_operand.vmem [shape: f32[2,128], index: 8, kind: input, shape index: {}]
  %s9 = inlined_call_operand.vmem [shape: bf16[50,35], index: 9, kind: input, shape index: {}]
  %s10 = inlined_call_operand.vmem [shape: bf16[4,128,256], index: 10, kind: input, shape index: {}]
  %s11 = inlined_call_operand.vmem [shape: f32[2,256], index: 11, kind: input, shape index: {}]
  %s12 = inlined_call_operand.vmem [shape: bf16[65,42], index: 12, kind: input, shape index: {}]
  %s13 = inlined_call_operand.vmem [shape: bf16[4,256,128], index: 13, kind: input, shape index: {}]
  %s14 = inlined_call_operand.vmem [shape: f32[2,128], index: 14, kind: input, shape index: {}]
  %s15 = inlined_call_operand.vmem [shape: bf16[9,47], index: 15, kind: input, shape index: {}]
  %s16 = inlined_call_operand.vmem [shape: bf16[2,9,128], index: 16, kind: output, shape index: {}]
  %s17 = sld [smem:[#allocation0]]
  $region97: #{alexnet_forward.1} parent=0
    _
  %s19 = ssub.s32 1, %s17
  %s20 = scalar_select 0, %s19, %s17
  loop: start=0, step=1, limit=4
  $region2: #{alexnet_forward.1} parent=0 // loop_pre_header
    _
  $region3: #{alexnet_forward.1} parent=0 // loop_header
    %s22 = sphi 0, %s26
    %p23 = scmp.ge.s32.totalorder %s22, 4
    %s32 = sphi 0, %s34
    %s35 = sphi 0, %s32
    %s36 = sphi 0, %s35
    %s52 = sphi 0, %s36
    %s56 = sphi 0, %s56
    %s58 = sphi 0, %s56
    %s59 = sphi 0, %s58
    %s73 = sphi 0, %s59
    %s77 = sphi 0, %s77
    %s79 = sphi 0, %s77
    %s80 = sphi 0, %s79
    %s94 = sphi 0, %s80
    %s98 = sphi 0, %s98
    %s100 = sphi 0, %s98
    %s101 = sphi 0, %s100
    %s115 = sphi 0, %s101
    %s119 = sphi 0, %s119
    %s121 = sphi 0, %s119
    %s122 = sphi 0, %s121
    %s136 = sphi 0, %s122
    %s140 = sphi 0, %s140
    %s142 = sphi 0, %s140
    %s143 = sphi 0, %s142
    %s157 = sphi 0, %s143
    %s161 = sphi 0, %s161
    %s163 = sphi 0, %s161
    %s164 = sphi 0, %s163
    %s178 = sphi 0, %s164
    %s182 = sphi 0, %s182
    %s184 = sphi 0, %s182
    %s185 = sphi 0, %s184
    %s199 = sphi 0, %s185
    %s203 = sphi 0, %s203
    %s205 = sphi 0, %s203
    %s206 = sphi 0, %s205
    %s220 = sphi 0, %s206
    %s224 = sphi 0, %s224
    %s226 = sphi 0, %s224
    %s227 = sphi 0, %s226
    %s241 = sphi 0, %s227
    %s245 = sphi 0, %s245
    %s247 = sphi 0, %s245
    %s248 = sphi 0, %s247
    %s262 = sphi 0, %s248
    %s266 = sphi 0, %s266
    %s268 = sphi 0, %s266
    %s269 = sphi 0, %s268
    %s283 = sphi 0, %s269
    %s287 = sphi 0, %s287
    %s289 = sphi 0, %s287
    %s290 = sphi 0, %s289
    %s304 = sphi 0, %s290
    %s308 = sphi 0, %s308
    %s310 = sphi 0, %s308
    %s311 = sphi 0, %s310
    %s325 = sphi 0, %s311
    %s329 = sphi 0, %s329
    %s331 = sphi 0, %s329
    %s332 = sphi 0, %s331
    %s346 = sphi 0, %s332
    %s350 = sphi 0, %s350
    %s352 = sphi 0, %s350
    %s353 = sphi 0, %s352
    %s367 = sphi 0, %s353
    %s373 = sphi 0, %s375
    %s376 = sphi 0, %s373
    %s377 = sphi 0, %s376
    %s393 = sphi 0, %s377
  $region4: #{alexnet_forward.1} parent=0 // loop_header_branch
    %25 = sbr.rel (%p23) target = $region8
  $region5: #{alexnet_forward.1} parent=0 // loop_body
    %s27 = ssub.s32 %s22, 1
    %s28 = ssub.s32 %s22, 2
    %s29 = sadd.s32 %s22, 1
    %s30 = ssub.s32 %s22, %s29
    %p31 = scmp.eq.s32.totalorder %s30, 0
    %s33 = sadd.s32 %s32, 1
    %s34 = scalar_select %p31, %s32, %s33
    %p37 = pneg %p31
    %p38 = scmp.eq.s32.totalorder %s22, 1
    %p39 = por %p37, %p38
    %p40 = scmp.ne.s32.totalorder %s32, %s35
    %p41 = scmp.eq.s32.totalorder %s22, 0
    %p42 = por %p40, %p41
    %p43 = scmp.ne.s32.totalorder %s32, %s35
    %p44 = scmp.eq.s32.totalorder %s27, 1
    %p45 = por %p43, %p44
    %p46 = scmp.ne.s32.totalorder %s35, %s36
    %p47 = scmp.eq.s32.totalorder %s27, 0
    %p48 = por %p46, %p47
    %p49 = scmp.ne.s32.totalorder %s35, %s36
    %p50 = scmp.eq.s32.totalorder %s28, 1
    %p51 = por %p49, %p50
    %p53 = scmp.ne.s32.totalorder %s36, %s52
    %p54 = scmp.eq.s32.totalorder %s28, 0
    %p55 = por %p53, %p54
    %s57 = sadd.s32 %s56, 1
    %p60 = scmp.eq.s32.totalorder %s22, 1
    %p61 = scmp.ne.s32.totalorder %s56, %s58
    %p62 = scmp.eq.s32.totalorder %s22, 0
    %p63 = por %p61, %p62
    %p64 = scmp.ne.s32.totalorder %s56, %s58
    %p65 = scmp.eq.s32.totalorder %s27, 1
    %p66 = por %p64, %p65
    %p67 = scmp.ne.s32.totalorder %s58, %s59
    %p68 = scmp.eq.s32.totalorder %s27, 0
    %p69 = por %p67, %p68
    %p70 = scmp.ne.s32.totalorder %s58, %s59
    %p71 = scmp.eq.s32.totalorder %s28, 1
    %p72 = por %p70, %p71
    %p74 = scmp.ne.s32.totalorder %s59, %s73
    %p75 = scmp.eq.s32.totalorder %s28, 0
    %p76 = por %p74, %p75
    %s78 = sadd.s32 %s77, 1
    %p81 = scmp.eq.s32.totalorder %s22, 1
    %p82 = scmp.ne.s32.totalorder %s77, %s79
    %p83 = scmp.eq.s32.totalorder %s22, 0
    %p84 = por %p82, %p83
    %p85 = scmp.ne.s32.totalorder %s77, %s79
    %p86 = scmp.eq.s32.totalorder %s27, 1
    %p87 = por %p85, %p86
    %p88 = scmp.ne.s32.totalorder %s79, %s80
    %p89 = scmp.eq.s32.totalorder %s27, 0
    %p90 = por %p88, %p89
    %p91 = scmp.ne.s32.totalorder %s79, %s80
    %p92 = scmp.eq.s32.totalorder %s28, 1
    %p93 = por %p91, %p92
    %p95 = scmp.ne.s32.totalorder %s80, %s94
    %p96 = scmp.eq.s32.totalorder %s28, 0
    %p97 = por %p95, %p96
    %s99 = sadd.s32 %s98, 1
    %p102 = scmp.eq.s32.totalorder %s22, 1
    %p103 = scmp.ne.s32.totalorder %s98, %s100
    %p104 = scmp.eq.s32.totalorder %s22, 0
    %p105 = por %p103, %p104
    %p106 = scmp.ne.s32.totalorder %s98, %s100
    %p107 = scmp.eq.s32.totalorder %s27, 1
    %p108 = por %p106, %p107
    %p109 = scmp.ne.s32.totalorder %s100, %s101
    %p110 = scmp.eq.s32.totalorder %s27, 0
    %p111 = por %p109, %p110
    %p112 = scmp.ne.s32.totalorder %s100, %s101
    %p113 = scmp.eq.s32.totalorder %s28, 1
    %p114 = por %p112, %p113
    %p116 = scmp.ne.s32.totalorder %s101, %s115
    %p117 = scmp.eq.s32.totalorder %s28, 0
    %p118 = por %p116, %p117
    %s120 = sadd.s32 %s119, 1
    %p123 = scmp.eq.s32.totalorder %s22, 1
    %p124 = scmp.ne.s32.totalorder %s119, %s121
    %p125 = scmp.eq.s32.totalorder %s22, 0
    %p126 = por %p124, %p125
    %p127 = scmp.ne.s32.totalorder %s119, %s121
    %p128 = scmp.eq.s32.totalorder %s27, 1
    %p129 = por %p127, %p128
    %p130 = scmp.ne.s32.totalorder %s121, %s122
    %p131 = scmp.eq.s32.totalorder %s27, 0
    %p132 = por %p130, %p131
    %p133 = scmp.ne.s32.totalorder %s121, %s122
    %p134 = scmp.eq.s32.totalorder %s28, 1
    %p135 = por %p133, %p134
    %p137 = scmp.ne.s32.totalorder %s122, %s136
    %p138 = scmp.eq.s32.totalorder %s28, 0
    %p139 = por %p137, %p138
    %s141 = sadd.s32 %s140, 1
    %p144 = scmp.eq.s32.totalorder %s22, 1
    %p145 = scmp.ne.s32.totalorder %s140, %s142
    %p146 = scmp.eq.s32.totalorder %s22, 0
    %p147 = por %p145, %p146
    %p148 = scmp.ne.s32.totalorder %s140, %s142
    %p149 = scmp.eq.s32.totalorder %s27, 1
    %p150 = por %p148, %p149
    %p151 = scmp.ne.s32.totalorder %s142, %s143
    %p152 = scmp.eq.s32.totalorder %s27, 0
    %p153 = por %p151, %p152
    %p154 = scmp.ne.s32.totalorder %s142, %s143
    %p155 = scmp.eq.s32.totalorder %s28, 1
    %p156 = por %p154, %p155
    %p158 = scmp.ne.s32.totalorder %s143, %s157
    %p159 = scmp.eq.s32.totalorder %s28, 0
    %p160 = por %p158, %p159
    %s162 = sadd.s32 %s161, 1
    %p165 = scmp.eq.s32.totalorder %s22, 1
    %p166 = scmp.ne.s32.totalorder %s161, %s163
    %p167 = scmp.eq.s32.totalorder %s22, 0
    %p168 = por %p166, %p167
    %p169 = scmp.ne.s32.totalorder %s161, %s163
    %p170 = scmp.eq.s32.totalorder %s27, 1
    %p171 = por %p169, %p170
    %p172 = scmp.ne.s32.totalorder %s163, %s164
    %p173 = scmp.eq.s32.totalorder %s27, 0
    %p174 = por %p172, %p173
    %p175 = scmp.ne.s32.totalorder %s163, %s164
    %p176 = scmp.eq.s32.totalorder %s28, 1
    %p177 = por %p175, %p176
    %p179 = scmp.ne.s32.totalorder %s164, %s178
    %p180 = scmp.eq.s32.totalorder %s28, 0
    %p181 = por %p179, %p180
    %s183 = sadd.s32 %s182, 1
    %p186 = scmp.eq.s32.totalorder %s22, 1
    %p187 = scmp.ne.s32.totalorder %s182, %s184
    %p188 = scmp.eq.s32.totalorder %s22, 0
    %p189 = por %p187, %p188
    %p190 = scmp.ne.s32.totalorder %s182, %s184
    %p191 = scmp.eq.s32.totalorder %s27, 1
    %p192 = por %p190, %p191
    %p193 = scmp.ne.s32.totalorder %s184, %s185
    %p194 = scmp.eq.s32.totalorder %s27, 0
    %p195 = por %p193, %p194
    %p196 = scmp.ne.s32.totalorder %s184, %s185
    %p197 = scmp.eq.s32.totalorder %s28, 1
    %p198 = por %p196, %p197
    %p200 = scmp.ne.s32.totalorder %s185, %s199
    %p201 = scmp.eq.s32.totalorder %s28, 0
    %p202 = por %p200, %p201
    %s204 = sadd.s32 %s203, 1
    %p207 = scmp.eq.s32.totalorder %s22, 1
    %p208 = scmp.ne.s32.totalorder %s203, %s205
    %p209 = scmp.eq.s32.totalorder %s22, 0
    %p210 = por %p208, %p209
    %p211 = scmp.ne.s32.totalorder %s203, %s205
    %p212 = scmp.eq.s32.totalorder %s27, 1
    %p213 = por %p211, %p212
    %p214 = scmp.ne.s32.totalorder %s205, %s206
    %p215 = scmp.eq.s32.totalorder %s27, 0
    %p216 = por %p214, %p215
    %p217 = scmp.ne.s32.totalorder %s205, %s206
    %p218 = scmp.eq.s32.totalorder %s28, 1
    %p219 = por %p217, %p218
    %p221 = scmp.ne.s32.totalorder %s206, %s220
    %p222 = scmp.eq.s32.totalorder %s28, 0
    %p223 = por %p221, %p222
    %s225 = sadd.s32 %s224, 1
    %p228 = scmp.eq.s32.totalorder %s22, 1
    %p229 = scmp.ne.s32.totalorder %s224, %s226
    %p230 = scmp.eq.s32.totalorder %s22, 0
    %p231 = por %p229, %p230
    %p232 = scmp.ne.s32.totalorder %s224, %s226
    %p233 = scmp.eq.s32.totalorder %s27, 1
    %p234 = por %p232, %p233
    %p235 = scmp.ne.s32.totalorder %s226, %s227
    %p236 = scmp.eq.s32.totalorder %s27, 0
    %p237 = por %p235, %p236
    %p238 = scmp.ne.s32.totalorder %s226, %s227
    %p239 = scmp.eq.s32.totalorder %s28, 1
    %p240 = por %p238, %p239
    %p242 = scmp.ne.s32.totalorder %s227, %s241
    %p243 = scmp.eq.s32.totalorder %s28, 0
    %p244 = por %p242, %p243
    %s246 = sadd.s32 %s245, 1
    %p249 = scmp.eq.s32.totalorder %s22, 1
    %p250 = scmp.ne.s32.totalorder %s245, %s247
    %p251 = scmp.eq.s32.totalorder %s22, 0
    %p252 = por %p250, %p251
    %p253 = scmp.ne.s32.totalorder %s245, %s247
    %p254 = scmp.eq.s32.totalorder %s27, 1
    %p255 = por %p253, %p254
    %p256 = scmp.ne.s32.totalorder %s247, %s248
    %p257 = scmp.eq.s32.totalorder %s27, 0
    %p258 = por %p256, %p257
    %p259 = scmp.ne.s32.totalorder %s247, %s248
    %p260 = scmp.eq.s32.totalorder %s28, 1
    %p261 = por %p259, %p260
    %p263 = scmp.ne.s32.totalorder %s248, %s262
    %p264 = scmp.eq.s32.totalorder %s28, 0
    %p265 = por %p263, %p264
    %s267 = sadd.s32 %s266, 1
    %p270 = scmp.eq.s32.totalorder %s22, 1
    %p271 = scmp.ne.s32.totalorder %s266, %s268
    %p272 = scmp.eq.s32.totalorder %s22, 0
    %p273 = por %p271, %p272
    %p274 = scmp.ne.s32.totalorder %s266, %s268
    %p275 = scmp.eq.s32.totalorder %s27, 1
    %p276 = por %p274, %p275
    %p277 = scmp.ne.s32.totalorder %s268, %s269
    %p278 = scmp.eq.s32.totalorder %s27, 0
    %p279 = por %p277, %p278
    %p280 = scmp.ne.s32.totalorder %s268, %s269
    %p281 = scmp.eq.s32.totalorder %s28, 1
    %p282 = por %p280, %p281
    %p284 = scmp.ne.s32.totalorder %s269, %s283
    %p285 = scmp.eq.s32.totalorder %s28, 0
    %p286 = por %p284, %p285
    %s288 = sadd.s32 %s287, 1
    %p291 = scmp.eq.s32.totalorder %s22, 1
    %p292 = scmp.ne.s32.totalorder %s287, %s289
    %p293 = scmp.eq.s32.totalorder %s22, 0
    %p294 = por %p292, %p293
    %p295 = scmp.ne.s32.totalorder %s287, %s289
    %p296 = scmp.eq.s32.totalorder %s27, 1
    %p297 = por %p295, %p296
    %p298 = scmp.ne.s32.totalorder %s289, %s290
    %p299 = scmp.eq.s32.totalorder %s27, 0
    %p300 = por %p298, %p299
    %p301 = scmp.ne.s32.totalorder %s289, %s290
    %p302 = scmp.eq.s32.totalorder %s28, 1
    %p303 = por %p301, %p302
    %p305 = scmp.ne.s32.totalorder %s290, %s304
    %p306 = scmp.eq.s32.totalorder %s28, 0
    %p307 = por %p305, %p306
    %s309 = sadd.s32 %s308, 1
    %p312 = scmp.eq.s32.totalorder %s22, 1
    %p313 = scmp.ne.s32.totalorder %s308, %s310
    %p314 = scmp.eq.s32.totalorder %s22, 0
    %p315 = por %p313, %p314
    %p316 = scmp.ne.s32.totalorder %s308, %s310
    %p317 = scmp.eq.s32.totalorder %s27, 1
    %p318 = por %p316, %p317
    %p319 = scmp.ne.s32.totalorder %s310, %s311
    %p320 = scmp.eq.s32.totalorder %s27, 0
    %p321 = por %p319, %p320
    %p322 = scmp.ne.s32.totalorder %s310, %s311
    %p323 = scmp.eq.s32.totalorder %s28, 1
    %p324 = por %p322, %p323
    %p326 = scmp.ne.s32.totalorder %s311, %s325
    %p327 = scmp.eq.s32.totalorder %s28, 0
    %p328 = por %p326, %p327
    %s330 = sadd.s32 %s329, 1
    %p333 = scmp.eq.s32.totalorder %s22, 1
    %p334 = scmp.ne.s32.totalorder %s329, %s331
    %p335 = scmp.eq.s32.totalorder %s22, 0
    %p336 = por %p334, %p335
    %p337 = scmp.ne.s32.totalorder %s329, %s331
    %p338 = scmp.eq.s32.totalorder %s27, 1
    %p339 = por %p337, %p338
    %p340 = scmp.ne.s32.totalorder %s331, %s332
    %p341 = scmp.eq.s32.totalorder %s27, 0
    %p342 = por %p340, %p341
    %p343 = scmp.ne.s32.totalorder %s331, %s332
    %p344 = scmp.eq.s32.totalorder %s28, 1
    %p345 = por %p343, %p344
    %p347 = scmp.ne.s32.totalorder %s332, %s346
    %p348 = scmp.eq.s32.totalorder %s28, 0
    %p349 = por %p347, %p348
    %s351 = sadd.s32 %s350, 1
    %p354 = scmp.eq.s32.totalorder %s22, 1
    %p355 = scmp.ne.s32.totalorder %s350, %s352
    %p356 = scmp.eq.s32.totalorder %s22, 0
    %p357 = por %p355, %p356
    %p358 = scmp.ne.s32.totalorder %s350, %s352
    %p359 = scmp.eq.s32.totalorder %s27, 1
    %p360 = por %p358, %p359
    %p361 = scmp.ne.s32.totalorder %s352, %s353
    %p362 = scmp.eq.s32.totalorder %s27, 0
    %p363 = por %p361, %p362
    %p364 = scmp.ne.s32.totalorder %s352, %s353
    %p365 = scmp.eq.s32.totalorder %s28, 1
    %p366 = por %p364, %p365
    %p368 = scmp.ne.s32.totalorder %s353, %s367
    %p369 = scmp.eq.s32.totalorder %s28, 0
    %p370 = por %p368, %p369
    %s371 = ssub.s32 %s22, %s29
    %p372 = scmp.eq.s32.totalorder %s371, 0
    %s374 = sadd.s32 %s373, 1
    %s375 = scalar_select %p372, %s373, %s374
    %p378 = pneg %p372
    %p379 = scmp.eq.s32.totalorder %s22, 1
    %p380 = por %p378, %p379
    %p381 = scmp.ne.s32.totalorder %s373, %s376
    %p382 = scmp.eq.s32.totalorder %s22, 0
    %p383 = por %p381, %p382
    %p384 = scmp.ne.s32.totalorder %s373, %s376
    %p385 = scmp.eq.s32.totalorder %s27, 1
    %p386 = por %p384, %p385
    %p387 = scmp.ne.s32.totalorder %s376, %s377
    %p388 = scmp.eq.s32.totalorder %s27, 0
    %p389 = por %p387, %p388
    %p390 = scmp.ne.s32.totalorder %s376, %s377
    %p391 = scmp.eq.s32.totalorder %s28, 1
    %p392 = por %p390, %p391
    %p394 = scmp.ne.s32.totalorder %s377, %s393
    %p395 = scmp.eq.s32.totalorder %s28, 0
    %p396 = por %p394, %p395
    %p397 = scmp.le.s32.totalorder 1, %s22
    %p398 = scmp.lt.s32.totalorder %s22, 3
    %p399 = pnand %p397, %p398
    %p400 = pneg %p399
    // Predicated region
    $region9: #{alexnet_forward.1} parent=5 // pred_check
      _
    $region10: #{alexnet_forward.1} parent=5 // pred_check_branch
      %402 = sbr.rel (%p399) target = $region12
    $region11: #{alexnet_forward.1} parent=5 // pred_region
      %s403 = ssub.s32 %s22, 1
      // Predicated region
      $region13: #{alexnet_forward.1} parent=11 // pred_check
        %p404 = pneg %p69
      $region14: #{alexnet_forward.1} parent=11 // pred_check_branch
        %406 = sbr.rel (%p404) target = $region16
      $region15: #{alexnet_forward.1} parent=11 // pred_region
        _
      $region16: #{alexnet_forward.1} parent=11 // pred_fallthru
        _
      // Predicated region
      $region17: #{alexnet_forward.1} parent=11 // pred_check
        %p407 = pneg %p90
      $region18: #{alexnet_forward.1} parent=11 // pred_check_branch
        %409 = sbr.rel (%p407) target = $region20
      $region19: #{alexnet_forward.1} parent=11 // pred_region
        _
      $region20: #{alexnet_forward.1} parent=11 // pred_fallthru
        _
      // Predicated region
      $region21: #{alexnet_forward.1} parent=11 // pred_check
        %p410 = pneg %p111
      $region22: #{alexnet_forward.1} parent=11 // pred_check_branch
        %412 = sbr.rel (%p410) target = $region24
      $region23: #{alexnet_forward.1} parent=11 // pred_region
        _
      $region24: #{alexnet_forward.1} parent=11 // pred_fallthru
        _
      // Predicated region
      $region25: #{alexnet_forward.1} parent=11 // pred_check
        %p413 = pneg %p132
      $region26: #{alexnet_forward.1} parent=11 // pred_check_branch
        %415 = sbr.rel (%p413) target = $region28
      $region27: #{alexnet_forward.1} parent=11 // pred_region
        _
      $region28: #{alexnet_forward.1} parent=11 // pred_fallthru
        _
      // Predicated region
      $region29: #{alexnet_forward.1} parent=11 // pred_check
        %p416 = pneg %p153
      $region30: #{alexnet_forward.1} parent=11 // pred_check_branch
        %418 = sbr.rel (%p416) target = $region32
      $region31: #{alexnet_forward.1} parent=11 // pred_region
        _
      $region32: #{alexnet_forward.1} parent=11 // pred_fallthru
        _
      // Predicated region
      $region33: #{alexnet_forward.1} parent=11 // pred_check
        %p419 = pneg %p174
      $region34: #{alexnet_forward.1} parent=11 // pred_check_branch
        %421 = sbr.rel (%p419) target = $region36
      $region35: #{alexnet_forward.1} parent=11 // pred_region
        _
      $region36: #{alexnet_forward.1} parent=11 // pred_fallthru
        _
      // Predicated region
      $region37: #{alexnet_forward.1} parent=11 // pred_check
        %p422 = pneg %p195
      $region38: #{alexnet_forward.1} parent=11 // pred_check_branch
        %424 = sbr.rel (%p422) target = $region40
      $region39: #{alexnet_forward.1} parent=11 // pred_region
        _
      $region40: #{alexnet_forward.1} parent=11 // pred_fallthru
        _
      // Predicated region
      $region41: #{alexnet_forward.1} parent=11 // pred_check
        %p425 = pneg %p216
      $region42: #{alexnet_forward.1} parent=11 // pred_check_branch
        %427 = sbr.rel (%p425) target = $region44
      $region43: #{alexnet_forward.1} parent=11 // pred_region
        _
      $region44: #{alexnet_forward.1} parent=11 // pred_fallthru
        _
      // Predicated region
      $region45: #{alexnet_forward.1} parent=11 // pred_check
        %p428 = pneg %p237
      $region46: #{alexnet_forward.1} parent=11 // pred_check_branch
        %430 = sbr.rel (%p428) target = $region48
      $region47: #{alexnet_forward.1} parent=11 // pred_region
        _
      $region48: #{alexnet_forward.1} parent=11 // pred_fallthru
        _
      // Predicated region
      $region49: #{alexnet_forward.1} parent=11 // pred_check
        %p431 = pneg %p258
      $region50: #{alexnet_forward.1} parent=11 // pred_check_branch
        %433 = sbr.rel (%p431) target = $region52
      $region51: #{alexnet_forward.1} parent=11 // pred_region
        _
      $region52: #{alexnet_forward.1} parent=11 // pred_fallthru
        _
      // Predicated region
      $region53: #{alexnet_forward.1} parent=11 // pred_check
        %p434 = pneg %p279
      $region54: #{alexnet_forward.1} parent=11 // pred_check_branch
        %436 = sbr.rel (%p434) target = $region56
      $region55: #{alexnet_forward.1} parent=11 // pred_region
        _
      $region56: #{alexnet_forward.1} parent=11 // pred_fallthru
        _
      // Predicated region
      $region57: #{alexnet_forward.1} parent=11 // pred_check
        %p437 = pneg %p300
      $region58: #{alexnet_forward.1} parent=11 // pred_check_branch
        %439 = sbr.rel (%p437) target = $region60
      $region59: #{alexnet_forward.1} parent=11 // pred_region
        _
      $region60: #{alexnet_forward.1} parent=11 // pred_fallthru
        _
      // Predicated region
      $region61: #{alexnet_forward.1} parent=11 // pred_check
        %p440 = pneg %p321
      $region62: #{alexnet_forward.1} parent=11 // pred_check_branch
        %442 = sbr.rel (%p440) target = $region64
      $region63: #{alexnet_forward.1} parent=11 // pred_region
        _
      $region64: #{alexnet_forward.1} parent=11 // pred_fallthru
        _
      // Predicated region
      $region65: #{alexnet_forward.1} parent=11 // pred_check
        %p443 = pneg %p342
      $region66: #{alexnet_forward.1} parent=11 // pred_check_branch
        %445 = sbr.rel (%p443) target = $region68
      $region67: #{alexnet_forward.1} parent=11 // pred_region
        _
      $region68: #{alexnet_forward.1} parent=11 // pred_fallthru
        _
      // Predicated region
      $region69: #{alexnet_forward.1} parent=11 // pred_check
        %p446 = pneg %p363
      $region70: #{alexnet_forward.1} parent=11 // pred_check_branch
        %448 = sbr.rel (%p446) target = $region72
      $region71: #{alexnet_forward.1} parent=11 // pred_region
        _
      $region72: #{alexnet_forward.1} parent=11 // pred_fallthru
        _
    $region12: #{alexnet_forward.1} parent=5 // pred_fallthru
      _
    %p449 = scmp.lt.s32.totalorder %s22, 2
    // Predicated region
    $region73: #{alexnet_forward.1} parent=5 // pred_check
      %p450 = pneg %p449
    $region74: #{alexnet_forward.1} parent=5 // pred_check_branch
      %452 = sbr.rel (%p450) target = $region76
    $region75: #{alexnet_forward.1} parent=5 // pred_region
      // Predicated region
      $region77: #{alexnet_forward.1} parent=75 // pred_check
        %p453 = pneg %p42
      $region78: #{alexnet_forward.1} parent=75 // pred_check_branch
        %455 = sbr.rel (%p453) target = $region80
      $region79: #{alexnet_forward.1} parent=75 // pred_region
        %p456 = scmp.lt.s32.totalorder %s22, 1
        %s457 = scalar_select %p456, %s22, 1
        %s458 = smul.addr %s457, 41
        %s459 = smul.addr %s458, 4
        %s460 = scalar_lea.vmem %s0, %s459
      $region80: #{alexnet_forward.1} parent=75 // pred_fallthru
        _
    $region76: #{alexnet_forward.1} parent=5 // pred_fallthru
      _
    %p461 = scmp.le.s32.totalorder 1, %s22
    %p462 = scmp.lt.s32.totalorder %s22, 3
    %p463 = pnand %p461, %p462
    %p464 = pneg %p463
    // Predicated region
    $region81: #{alexnet_forward.1} parent=5 // pred_check
      _
    $region82: #{alexnet_forward.1} parent=5 // pred_check_branch
      %466 = sbr.rel (%p463) target = $region84
    $region83: #{alexnet_forward.1} parent=5 // pred_region
      %s467 = ssub.s32 %s22, 1
      %p468 = scmp.lt.s32.totalorder %s27, 1
      %s469 = scalar_select %p468, %s27, 1
      %s470 = smul.addr %s469, 41
      %s471 = smul.addr %s470, 4
      %s472 = scalar_lea.vmem %s0, %s471
      %p473 = pneg %p48
      %p474 = pneg %p45
      %p475 = pneg %p69
      %p476 = pneg %p66
      %p477 = pneg %p90
      %p478 = pneg %p87
      %p479 = pneg %p111
      %p480 = pneg %p108
      %p481 = pneg %p132
      %p482 = pneg %p129
      %p483 = pneg %p153
      %p484 = pneg %p150
      %p485 = pneg %p174
      %p486 = pneg %p171
      %p487 = pneg %p195
      %p488 = pneg %p192
      %p489 = pneg %p216
      %p490 = pneg %p213
      %p491 = pneg %p237
      %p492 = pneg %p234
      %p493 = pneg %p258
      %p494 = pneg %p255
      %p495 = pneg %p279
      %p496 = pneg %p276
      %p497 = pneg %p300
      %p498 = pneg %p297
      %p499 = pneg %p321
      %p500 = pneg %p318
      %p501 = pneg %p342
      %p502 = pneg %p339
      %p503 = pneg %p363
      %p504 = pneg %p360
      %p505 = pneg %p389
      %p506 = pneg %p386
      %p507 = scmp.lt.s32.totalorder %s27, 1
      %s508 = scalar_select %p507, %s27, 1
      %s509 = smul.addr %s508, 2
      %s510 = smul.addr %s509, 4
      %s511 = scalar_lea.vmem %s16, %s510
      %p512 = scmp.lt.s32.totalorder %s27, 1
      %s513 = scalar_select %p512, %s27, 1
      %s514 = smul.addr %s513, 41
      %s515 = smul.addr %s514, 4
      %s516 = scalar_lea.vmem %s0, %s515
      %p517 = scmp.lt.s32.totalorder %s27, 1
      %s518 = scalar_select %p517, %s27, 1
      %s519 = smul.addr %s518, 2
      %s520 = smul.addr %s519, 4
      %s521 = scalar_lea.vmem %s16, %s520
      %v523 = vld [vmem:[%s516] sm:$0xf]
      %v524 = vld [vmem:[%s516 + $0x4] sm:$0xf]
      %v525 = vld [vmem:[%s516 + $0x8] sm:$0xf]
      %v526 = vld [vmem:[%s516 + $0xc] sm:$0xf]
      %v527 = vld [vmem:[%s516 + $0x10] sm:$0xf]
      %v528 = vld [vmem:[%s516 + $0x14] sm:$0xf]
      %v529 = vld [vmem:[%s516 + $0x18] sm:$0xf]
      %v530 = vld [vmem:[%s516 + $0x1c] sm:$0xf]
      %v531 = vld [vmem:[%s516 + $0x20] sm:$0xf]
      %v532 = vld [vmem:[%s516 + $0x24] sm:$0xf]
      %v533 = vld [vmem:[%s516 + $0x28] sm:$0xf]
      %v534 = vld [vmem:[%s516 + $0x2c] sm:$0xf]
      %v535 = vld [vmem:[%s516 + $0x30] sm:$0xf]
      %v536 = vld [vmem:[%s516 + $0x34] sm:$0xf]
      %v537 = vld [vmem:[%s516 + $0x38] sm:$0xf]
      %v538 = vld [vmem:[%s516 + $0x3c] sm:$0xf]
      %v539 = vld [vmem:[%s516 + $0x40] sm:$0xf]
      %v540 = vld [vmem:[%s516 + $0x44] sm:$0xf]
      %v541 = vld [vmem:[%s516 + $0x48] sm:$0xf]
      %v542 = vld [vmem:[%s516 + $0x4c] sm:$0xf]
      %v543 = vld [vmem:[%s516 + $0x50] sm:$0xf]
      %v544 = vld [vmem:[%s516 + $0x54] sm:$0xf]
      %v545 = vld [vmem:[%s516 + $0x58] sm:$0xf]
      %v546 = vld [vmem:[%s516 + $0x5c] sm:$0xf]
      %v547 = vld [vmem:[%s516 + $0x60] sm:$0xf]
      %v548 = vld [vmem:[%s516 + $0x64] sm:$0xf]
      %v549 = vld [vmem:[%s516 + $0x68] sm:$0xf]
      %v550 = vld [vmem:[%s516 + $0x6c] sm:$0xf]
      %v551 = vld [vmem:[%s516 + $0x70] sm:$0xf]
      %v552 = vld [vmem:[%s516 + $0x74] sm:$0xf]
      %v553 = vld [vmem:[%s516 + $0x78] sm:$0xf]
      %v554 = vld [vmem:[%s516 + $0x7c] sm:$0xf]
      %v555 = vld [vmem:[%s516 + $0x80] sm:$0xf]
      %v556 = vld [vmem:[%s516 + $0x84] sm:$0xf]
      %v557 = vld [vmem:[%s516 + $0x88] sm:$0xf]
      %v558 = vld [vmem:[%s516 + $0x8c] sm:$0xf]
      %v559 = vld [vmem:[%s516 + $0x90] sm:$0xf]
      %v560 = vld [vmem:[%s516 + $0x94] sm:$0xf]
      %v561 = vld [vmem:[%s516 + $0x98] sm:$0xf]
      %v562 = vld [vmem:[%s516 + $0x9c] sm:$0xf]
      %v563 = vld [vmem:[%s516 + $0xa0] sm:$0x3]
      %v564 = vld [vmem:[%s1] sm:$0xf]
      %v565 = vld [vmem:[%s1 + $0x4] sm:$0xf]
      %v566 = vld [vmem:[%s1 + $0x8] sm:$0xf]
      %v567 = vld [vmem:[%s1 + $0xc] sm:$0xf]
      %v609 = vunpack.c.l.b16 %v523
      %v610 = vunpack.c.l.b16 %v524
      %v611 = vunpack.c.l.b16 %v525
      %v612 = vunpack.c.l.b16 %v526
      %v613 = vunpack.c.l.b16 %v527
      %v614 = vunpack.c.l.b16 %v528
      %v615 = vunpack.c.l.b16 %v529
      %v616 = vunpack.c.l.b16 %v530
      %v617 = vunpack.c.l.b16 %v531
      %v618 = vunpack.c.l.b16 %v532
      %v619 = vunpack.c.l.b16 %v533
      %v620 = vunpack.c.l.b16 %v534
      %v621 = vunpack.c.l.b16 %v535
      %v622 = vunpack.c.l.b16 %v536
      %v623 = vunpack.c.l.b16 %v537
      %v624 = vunpack.c.l.b16 %v538
      %v625 = vunpack.c.l.b16 %v539
      %v626 = vunpack.c.l.b16 %v540
      %v627 = vunpack.c.l.b16 %v541
      %v628 = vunpack.c.l.b16 %v542
      %v629 = vunpack.c.l.b16 %v543
      %v630 = vunpack.c.l.b16 %v544
      %v631 = vunpack.c.l.b16 %v545
      %v632 = vunpack.c.l.b16 %v546
      %v633 = vunpack.c.l.b16 %v547
      %v634 = vunpack.c.l.b16 %v548
      %v635 = vunpack.c.l.b16 %v549
      %v636 = vunpack.c.l.b16 %v550
      %v637 = vunpack.c.l.b16 %v551
      %v638 = vunpack.c.l.b16 %v552
      %v639 = vunpack.c.l.b16 %v553
      %v640 = vunpack.c.l.b16 %v554
      %v641 = vunpack.c.l.b16 %v555
      %v642 = vunpack.c.l.b16 %v556
      %v643 = vunpack.c.l.b16 %v557
      %v644 = vunpack.c.l.b16 %v558
      %v645 = vunpack.c.l.b16 %v559
      %v646 = vunpack.c.l.b16 %v560
      %v647 = vunpack.c.l.b16 %v561
      %v648 = vunpack.c.l.b16 %v562
      %v649 = vunpack.c.l.b16 %v563
      %v650 = vpack.c.b16 %v610, %v609
      %v651 = vpack.c.b16 %v612, %v611
      %v652 = vpack.c.b16 %v614, %v613
      %v653 = vpack.c.b16 %v616, %v615
      %v654 = vpack.c.b16 %v618, %v617
      %v655 = vpack.c.b16 %v620, %v619
      %v656 = vpack.c.b16 %v622, %v621
      %v657 = vpack.c.b16 %v624, %v623
      %v658 = vpack.c.b16 %v626, %v625
      %v659 = vpack.c.b16 %v628, %v627
      %v660 = vpack.c.b16 %v630, %v629
      %v661 = vpack.c.b16 %v632, %v631
      %v662 = vpack.c.b16 %v634, %v633
      %v663 = vpack.c.b16 %v636, %v635
      %v664 = vpack.c.b16 %v638, %v637
      %v665 = vpack.c.b16 %v640, %v639
      %v666 = vpack.c.b16 %v642, %v641
      %v667 = vpack.c.b16 %v644, %v643
      %v668 = vpack.c.b16 %v646, %v645
      %v669 = vpack.c.b16 %v648, %v647
      %v670 = vpack.c.b16 %v649, %v649
      %v675 = vunpack.c.l.b16 %v564
      %v676 = vunpack.c.l.b16 %v565
      %v677 = vunpack.c.l.b16 %v566
      %v678 = vunpack.c.l.b16 %v567
      %v679 = vpack.c.b16 %v676, %v675
      %v680 = vpack.c.b16 %v678, %v677
      %vm683 = vcmask 261120
      %v685 = vsel %vm683, %v650, 0
      %v688 = vsel %vm683, %v651, 0
      %v691 = vsel %vm683, %v652, 0
      %v694 = vsel %vm683, %v653, 0
      %v697 = vsel %vm683, %v654, 0
      %v700 = vsel %vm683, %v655, 0
      %v703 = vsel %vm683, %v656, 0
      %v706 = vsel %vm683, %v657, 0
      %v709 = vsel %vm683, %v658, 0
      %v712 = vsel %vm683, %v659, 0
      %v715 = vsel %vm683, %v660, 0
      %v718 = vsel %vm683, %v661, 0
      %v721 = vsel %vm683, %v662, 0
      %v724 = vsel %vm683, %v663, 0
      %v727 = vsel %vm683, %v664, 0
      %v730 = vsel %vm683, %v665, 0
      %v733 = vsel %vm683, %v666, 0
      %v736 = vsel %vm683, %v667, 0
      %v739 = vsel %vm683, %v668, 0
      %v742 = vsel %vm683, %v669, 0
      %v745 = vsel %vm683, %v670, 0
      %747 = vmatprep.subr.bf16.mxu0 0
      %748 = vmatpush1.bf16.msra.mxu0 %v679
      %749 = vmatprep.subr.bf16.mxu0 0
      %750 = vmatpush1.bf16.msra.mxu0 %v680
      %751 = vmatprep.subr.bf16.mxu0 0
      %752 = vmatpush1.bf16.msra.mxu0 0
      %753 = vmatprep.subr.bf16.mxu0 0
      %754 = vmatpush1.bf16.msra.mxu0 0
      %755 = vmatprep.subr.bf16.mxu0 0
      %756 = vmatpush1.bf16.msra.mxu0 0
      %757 = vmatprep.subr.bf16.mxu0 0
      %758 = vmatpush1.bf16.msra.mxu0 0
      %759 = vmatprep.subr.bf16.mxu0 0
      %760 = vmatpush1.bf16.msra.mxu0 0
      %761 = vmatprep.subr.bf16.mxu0 0
      %762 = vmatpush1.bf16.msra.mxu0 0
      %763 = vmatprep.subr.bf16.mxu0 0
      %764 = vmatpush1.bf16.msra.mxu0 0
      %765 = vmatprep.subr.bf16.mxu0 0
      %766 = vmatpush1.bf16.msra.mxu0 0
      %767 = vmatprep.subr.bf16.mxu0 0
      %768 = vmatpush1.bf16.msra.mxu0 0
      %769 = vmatprep.subr.bf16.mxu0 0
      %770 = vmatpush1.bf16.msra.mxu0 0
      %771 = vmatprep.subr.bf16.mxu0 0
      %772 = vmatpush1.bf16.msra.mxu0 0
      %773 = vmatprep.subr.bf16.mxu0 0
      %774 = vmatpush1.bf16.msra.mxu0 0
      %775 = vmatprep.subr.bf16.mxu0 0
      %776 = vmatpush1.bf16.msra.mxu0 0
      %777 = vmatprep.subr.bf16.mxu0 0
      %778 = vmatpush1.bf16.msra.mxu0 0
      %779 = vmatprep.mubr.bf16.mxu0 0
      %780 = vmatmul.mubr.bf16.gmra.mrb[0].mxu0 %v685
      %v781 = vpop.f32.mrb[0].mxu0
      %v782 = vadd.f32 0.0, %v781
      %v783 = vpop.f32.mrb[0].mxu0
      %v784 = vpop.f32.mrb[0].mxu0
      %v785 = vadd.f32 0.0, %v784
      %v786 = vpop.f32.mrb[0].mxu0
      %787 = vmatprep.mubr.bf16.mxu0 0
      %788 = vmatmul.mubr.bf16.gmra.mrb[0].mxu0 %v688
      %v789 = vpop.f32.mrb[0].mxu0
      %v790 = vadd.f32 0.0, %v789
      %v791 = vpop.f32.mrb[0].mxu0
      %v792 = vpop.f32.mrb[0].mxu0
      %v793 = vadd.f32 0.0, %v792
      %v794 = vpop.f32.mrb[0].mxu0
      %795 = vmatprep.mubr.bf16.mxu0 0
      %796 = vmatmul.mubr.bf16.gmra.mrb[0].mxu0 %v691
      %v797 = vpop.f32.mrb[0].mxu0
      %v798 = vadd.f32 0.0, %v797
      %v799 = vpop.f32.mrb[0].mxu0
      %v800 = vpop.f32.mrb[0].mxu0
      %v801 = vadd.f32 0.0, %v800
      %v802 = vpop.f32.mrb[0].mxu0
      %803 = vmatprep.mubr.bf16.mxu0 0
      %804 = vmatmul.mubr.bf16.gmra.mrb[0].mxu0 %v694
      %v805 = vpop.f32.mrb[0].mxu0
      %v806 = vadd.f32 0.0, %v805
      %v807 = vpop.f32.mrb[0].mxu0
      %v808 = vpop.f32.mrb[0].mxu0
      %v809 = vadd.f32 0.0, %v808
      %v810 = vpop.f32.mrb[0].mxu0
      %811 = vmatprep.mubr.bf16.mxu0 0
      %812 = vmatmul.mubr.bf16.gmra.mrb[0].mxu0 %v697
      %v813 = vpop.f32.mrb[0].mxu0
      %v814 = vadd.f32 0.0, %v813
      %v815 = vpop.f32.mrb[0].mxu0
      %v816 = vpop.f32.mrb[0].mxu0
      %v817 = vadd.f32 0.0, %v816
      %v818 = vpop.f32.mrb[0].mxu0
      %819 = vmatprep.mubr.bf16.mxu0 0
      %820 = vmatmul.mubr.bf16.gmra.mrb[0].mxu0 %v700
      %v821 = vpop.f32.mrb[0].mxu0
      %v822 = vadd.f32 0.0, %v821
      %v823 = vpop.f32.mrb[0].mxu0
      %v824 = vpop.f32.mrb[0].mxu0
      %v825 = vadd.f32 0.0, %v824
      %v826 = vpop.f32.mrb[0].mxu0
      %827 = vmatprep.mubr.bf16.mxu0 0
      %828 = vmatmul.mubr.bf16.gmra.mrb[0].mxu0 %v703
      %v829 = vpop.f32.mrb[0].mxu0
      %v830 = vadd.f32 0.0, %v829
      %v831 = vpop.f32.mrb[0].mxu0
      %v832 = vpop.f32.mrb[0].mxu0
      %v833 = vadd.f32 0.0, %v832
      %v834 = vpop.f32.mrb[0].mxu0
      %835 = vmatprep.mubr.bf16.mxu0 0
      %836 = vmatmul.mubr.bf16.gmra.mrb[0].mxu0 %v706
      %v837 = vpop.f32.mrb[0].mxu0
      %v838 = vadd.f32 0.0, %v837
      %v839 = vpop.f32.mrb[0].mxu0
      %v840 = vpop.f32.mrb[0].mxu0
      %v841 = vadd.f32 0.0, %v840
      %v842 = vpop.f32.mrb[0].mxu0
      %843 = vmatprep.mubr.bf16.mxu0 0
      %844 = vmatmul.mubr.bf16.gmra.mrb[0].mxu0 %v709
      %v845 = vpop.f32.mrb[0].mxu0
      %v846 = vadd.f32 0.0, %v845
      %v847 = vpop.f32.mrb[0].mxu0
      %v848 = vpop.f32.mrb[0].mxu0
      %v849 = vadd.f32 0.0, %v848
      %v850 = vpop.f32.mrb[0].mxu0
      %851 = vmatprep.mubr.bf16.mxu0 0
      %852 = vmatmul.mubr.bf16.gmra.mrb[0].mxu0 %v712
      %v853 = vpop.f32.mrb[0].mxu0
      %v854 = vadd.f32 0.0, %v853
      %v855 = vpop.f32.mrb[0].mxu0
      %v856 = vpop.f32.mrb[0].mxu0
      %v857 = vadd.f32 0.0, %v856
      %v858 = vpop.f32.mrb[0].mxu0
      %859 = vmatprep.mubr.bf16.mxu0 0
      %860 = vmatmul.mubr.bf16.gmra.mrb[0].mxu0 %v715
      %v861 = vpop.f32.mrb[0].mxu0
      %v862 = vadd.f32 0.0, %v861
      %v863 = vpop.f32.mrb[0].mxu0
      %v864 = vpop.f32.mrb[0].mxu0
      %v865 = vadd.f32 0.0, %v864
      %v866 = vpop.f32.mrb[0].mxu0
      %867 = vmatprep.mubr.bf16.mxu0 0
      %868 = vmatmul.mubr.bf16.gmra.mrb[0].mxu0 %v718
      %v869 = vpop.f32.mrb[0].mxu0
      %v870 = vadd.f32 0.0, %v869
      %v871 = vpop.f32.mrb[0].mxu0
      %v872 = vpop.f32.mrb[0].mxu0
      %v873 = vadd.f32 0.0, %v872
      %v874 = vpop.f32.mrb[0].mxu0
      %875 = vmatprep.mubr.bf16.mxu0 0
      %876 = vmatmul.mubr.bf16.gmra.mrb[0].mxu0 %v721
      %v877 = vpop.f32.mrb[0].mxu0
      %v878 = vadd.f32 0.0, %v877
      %v879 = vpop.f32.mrb[0].mxu0
      %v880 = vpop.f32.mrb[0].mxu0
      %v881 = vadd.f32 0.0, %v880
      %v882 = vpop.f32.mrb[0].mxu0
      %883 = vmatprep.mubr.bf16.mxu0 0
      %884 = vmatmul.mubr.bf16.gmra.mrb[0].mxu0 %v724
      %v885 = vpop.f32.mrb[0].mxu0
      %v886 = vadd.f32 0.0, %v885
      %v887 = vpop.f32.mrb[0].mxu0
      %v888 = vpop.f32.mrb[0].mxu0
      %v889 = vadd.f32 0.0, %v888
      %v890 = vpop.f32.mrb[0].mxu0
      %891 = vmatprep.mubr.bf16.mxu0 0
      %892 = vmatmul.mubr.bf16.gmra.mrb[0].mxu0 %v727
      %v893 = vpop.f32.mrb[0].mxu0
      %v894 = vadd.f32 0.0, %v893
      %v895 = vpop.f32.mrb[0].mxu0
      %v896 = vpop.f32.mrb[0].mxu0
      %v897 = vadd.f32 0.0, %v896
      %v898 = vpop.f32.mrb[0].mxu0
      %899 = vmatprep.mubr.bf16.mxu0 0
      %900 = vmatmul.mubr.bf16.gmra.mrb[0].mxu0 %v730
      %v901 = vpop.f32.mrb[0].mxu0
      %v902 = vadd.f32 0.0, %v901
      %v903 = vpop.f32.mrb[0].mxu0
      %v904 = vpop.f32.mrb[0].mxu0
      %v905 = vadd.f32 0.0, %v904
      %v906 = vpop.f32.mrb[0].mxu0
      %907 = vmatprep.mubr.bf16.mxu0 0
      %908 = vmatmul.mubr.bf16.gmra.mrb[0].mxu0 %v733
      %v909 = vpop.f32.mrb[0].mxu0
      %v910 = vadd.f32 0.0, %v909
      %v911 = vpop.f32.mrb[0].mxu0
      %v912 = vpop.f32.mrb[0].mxu0
      %v913 = vadd.f32 0.0, %v912
      %v914 = vpop.f32.mrb[0].mxu0
      %915 = vmatprep.mubr.bf16.mxu0 0
      %916 = vmatmul.mubr.bf16.gmra.mrb[0].mxu0 %v736
      %v917 = vpop.f32.mrb[0].mxu0
      %v918 = vadd.f32 0.0, %v917
      %v919 = vpop.f32.mrb[0].mxu0
      %v920 = vpop.f32.mrb[0].mxu0
      %v921 = vadd.f32 0.0, %v920
      %v922 = vpop.f32.mrb[0].mxu0
      %923 = vmatprep.mubr.bf16.mxu0 0
      %924 = vmatmul.mubr.bf16.gmra.mrb[0].mxu0 %v739
      %v925 = vpop.f32.mrb[0].mxu0
      %v926 = vadd.f32 0.0, %v925
      %v927 = vpop.f32.mrb[0].mxu0
      %v928 = vpop.f32.mrb[0].mxu0
      %v929 = vadd.f32 0.0, %v928
      %v930 = vpop.f32.mrb[0].mxu0
      %931 = vmatprep.mubr.bf16.mxu0 0
      %932 = vmatmul.mubr.bf16.gmra.mrb[0].mxu0 %v742
      %v933 = vpop.f32.mrb[0].mxu0
      %v934 = vadd.f32 0.0, %v933
      %v935 = vpop.f32.mrb[0].mxu0
      %v936 = vpop.f32.mrb[0].mxu0
      %v937 = vadd.f32 0.0, %v936
      %v938 = vpop.f32.mrb[0].mxu0
      %939 = vmatprep.mubr.bf16.mxu0 0
      %940 = vmatmul.mubr.bf16.gmra.mrb[0].mxu0 %v745
      %v941 = vpop.f32.mrb[0].mxu0
      %v942 = vadd.f32 0.0, %v941
      %v943 = vpop.f32.mrb[0].mxu0
      %v944 = vpop.f32.mrb[0].mxu0
      %v945 = vpop.f32.mrb[0].mxu0
      %946 = vdwg.mxu0
      %v947 = vld [vmem:[%s2] sm:$0x1]
      %v948 = vld [vmem:[%s2 + $0x1] sm:$0x1]
      %v949 = vlaneseq
      %v950 = vshrl.u32 %v949, 7
      %v951 = vsub.s32 0, %v950
      %v952 = vrot.slane %v947, %v951
      %v953 = vmul.f32 %v782, %v952
      %v954 = vmul.f32 %v785, %v952
      %v955 = vmul.f32 %v790, %v952
      %v956 = vmul.f32 %v793, %v952
      %v957 = vmul.f32 %v798, %v952
      %v958 = vmul.f32 %v801, %v952
      %v959 = vmul.f32 %v806, %v952
      %v960 = vmul.f32 %v809, %v952
      %v961 = vmul.f32 %v814, %v952
      %v962 = vmul.f32 %v817, %v952
      %v963 = vmul.f32 %v822, %v952
      %v964 = vmul.f32 %v825, %v952
      %v965 = vmul.f32 %v830, %v952
      %v966 = vmul.f32 %v833, %v952
      %v967 = vmul.f32 %v838, %v952
      %v968 = vmul.f32 %v841, %v952
      %v969 = vmul.f32 %v846, %v952
      %v970 = vmul.f32 %v849, %v952
      %v971 = vmul.f32 %v854, %v952
      %v972 = vmul.f32 %v857, %v952
      %v973 = vmul.f32 %v862, %v952
      %v974 = vmul.f32 %v865, %v952
      %v975 = vmul.f32 %v870, %v952
      %v976 = vmul.f32 %v873, %v952
      %v977 = vmul.f32 %v878, %v952
      %v978 = vmul.f32 %v881, %v952
      %v979 = vmul.f32 %v886, %v952
      %v980 = vmul.f32 %v889, %v952
      %v981 = vmul.f32 %v894, %v952
      %v982 = vmul.f32 %v897, %v952
      %v983 = vmul.f32 %v902, %v952
      %v984 = vmul.f32 %v905, %v952
      %v985 = vmul.f32 %v910, %v952
      %v986 = vmul.f32 %v913, %v952
      %v987 = vmul.f32 %v918, %v952
      %v988 = vmul.f32 %v921, %v952
      %v989 = vmul.f32 %v926, %v952
      %v990 = vmul.f32 %v929, %v952
      %v991 = vmul.f32 %v934, %v952
      %v992 = vmul.f32 %v937, %v952
      %v993 = vmul.f32 %v942, %v952
      %v994 = vlaneseq
      %v995 = vshrl.u32 %v994, 7
      %v996 = vsub.s32 0, %v995
      %v997 = vrot.slane %v948, %v996
      %v998 = vadd.f32 %v953, %v997
      %v999 = vadd.f32 %v954, %v997
      %v1000 = vadd.f32 %v955, %v997
      %v1001 = vadd.f32 %v956, %v997
      %v1002 = vadd.f32 %v957, %v997
      %v1003 = vadd.f32 %v958, %v997
      %v1004 = vadd.f32 %v959, %v997
      %v1005 = vadd.f32 %v960, %v997
      %v1006 = vadd.f32 %v961, %v997
      %v1007 = vadd.f32 %v962, %v997
      %v1008 = vadd.f32 %v963, %v997
      %v1009 = vadd.f32 %v964, %v997
      %v1010 = vadd.f32 %v965, %v997
      %v1011 = vadd.f32 %v966, %v997
      %v1012 = vadd.f32 %v967, %v997
      %v1013 = vadd.f32 %v968, %v997
      %v1014 = vadd.f32 %v969, %v997
      %v1015 = vadd.f32 %v970, %v997
      %v1016 = vadd.f32 %v971, %v997
      %v1017 = vadd.f32 %v972, %v997
      %v1018 = vadd.f32 %v973, %v997
      %v1019 = vadd.f32 %v974, %v997
      %v1020 = vadd.f32 %v975, %v997
      %v1021 = vadd.f32 %v976, %v997
      %v1022 = vadd.f32 %v977, %v997
      %v1023 = vadd.f32 %v978, %v997
      %v1024 = vadd.f32 %v979, %v997
      %v1025 = vadd.f32 %v980, %v997
      %v1026 = vadd.f32 %v981, %v997
      %v1027 = vadd.f32 %v982, %v997
      %v1028 = vadd.f32 %v983, %v997
      %v1029 = vadd.f32 %v984, %v997
      %v1030 = vadd.f32 %v985, %v997
      %v1031 = vadd.f32 %v986, %v997
      %v1032 = vadd.f32 %v987, %v997
      %v1033 = vadd.f32 %v988, %v997
      %v1034 = vadd.f32 %v989, %v997
      %v1035 = vadd.f32 %v990, %v997
      %v1036 = vadd.f32 %v991, %v997
      %v1037 = vadd.f32 %v992, %v997
      %v1038 = vadd.f32 %v993, %v997
      %v1039 = vmax.f32 %v998, 0.0
      %v1040 = vmax.f32 %v999, 0.0
      %v1041 = vmax.f32 %v1000, 0.0
      %v1042 = vmax.f32 %v1001, 0.0
      %v1043 = vmax.f32 %v1002, 0.0
      %v1044 = vmax.f32 %v1003, 0.0
      %v1045 = vmax.f32 %v1004, 0.0
      %v1046 = vmax.f32 %v1005, 0.0
      %v1047 = vmax.f32 %v1006, 0.0
      %v1048 = vmax.f32 %v1007, 0.0
      %v1049 = vmax.f32 %v1008, 0.0
      %v1050 = vmax.f32 %v1009, 0.0
      %v1051 = vmax.f32 %v1010, 0.0
      %v1052 = vmax.f32 %v1011, 0.0
      %v1053 = vmax.f32 %v1012, 0.0
      %v1054 = vmax.f32 %v1013, 0.0
      %v1055 = vmax.f32 %v1014, 0.0
      %v1056 = vmax.f32 %v1015, 0.0
      %v1057 = vmax.f32 %v1016, 0.0
      %v1058 = vmax.f32 %v1017, 0.0
      %v1059 = vmax.f32 %v1018, 0.0
      %v1060 = vmax.f32 %v1019, 0.0
      %v1061 = vmax.f32 %v1020, 0.0
      %v1062 = vmax.f32 %v1021, 0.0
      %v1063 = vmax.f32 %v1022, 0.0
      %v1064 = vmax.f32 %v1023, 0.0
      %v1065 = vmax.f32 %v1024, 0.0
      %v1066 = vmax.f32 %v1025, 0.0
      %v1067 = vmax.f32 %v1026, 0.0
      %v1068 = vmax.f32 %v1027, 0.0
      %v1069 = vmax.f32 %v1028, 0.0
      %v1070 = vmax.f32 %v1029, 0.0
      %v1071 = vmax.f32 %v1030, 0.0
      %v1072 = vmax.f32 %v1031, 0.0
      %v1073 = vmax.f32 %v1032, 0.0
      %v1074 = vmax.f32 %v1033, 0.0
      %v1075 = vmax.f32 %v1034, 0.0
      %v1076 = vmax.f32 %v1035, 0.0
      %v1077 = vmax.f32 %v1036, 0.0
      %v1078 = vmax.f32 %v1037, 0.0
      %v1079 = vmax.f32 %v1038, 0.0
      %v1080 = vpack.c.bf16 %v1040, %v1039
      %v1081 = vpack.c.bf16 %v1042, %v1041
      %v1082 = vpack.c.bf16 %v1044, %v1043
      %v1083 = vpack.c.bf16 %v1046, %v1045
      %v1084 = vpack.c.bf16 %v1048, %v1047
      %v1085 = vpack.c.bf16 %v1050, %v1049
      %v1086 = vpack.c.bf16 %v1052, %v1051
      %v1087 = vpack.c.bf16 %v1054, %v1053
      %v1088 = vpack.c.bf16 %v1056, %v1055
      %v1089 = vpack.c.bf16 %v1058, %v1057
      %v1090 = vpack.c.bf16 %v1060, %v1059
      %v1091 = vpack.c.bf16 %v1062, %v1061
      %v1092 = vpack.c.bf16 %v1064, %v1063
      %v1093 = vpack.c.bf16 %v1066, %v1065
      %v1094 = vpack.c.bf16 %v1068, %v1067
      %v1095 = vpack.c.bf16 %v1070, %v1069
      %v1096 = vpack.c.bf16 %v1072, %v1071
      %v1097 = vpack.c.bf16 %v1074, %v1073
      %v1098 = vpack.c.bf16 %v1076, %v1075
      %v1099 = vpack.c.bf16 %v1078, %v1077
      %v1100 = vpack.c.bf16 %v1079, %v1079
      %vm1101 = vsmask.f32 7424
      %v1103 = vshrl.u32 %v1080, 16
      %v1105 = vshll.u32 %v1080, 16
      %v1107 = vrot.slane %v1105, 1
      %v1108 = vor.u32 %v1103, %v1107
      %v1110 = vshll.u32 %v1081, 16
      %v1112 = vrot.slane %v1110, 1
      %v1113 = vsel %vm1101, %v1108, %v1112
      %v1114 = vshrl.u32 %v1081, 16
      %v1116 = vor.u32 %v1114, %v1112
      %v1118 = vshll.u32 %v1082, 16
      %v1120 = vrot.slane %v1118, 1
      %v1121 = vsel %vm1101, %v1116, %v1120
      %v1122 = vshrl.u32 %v1082, 16
      %v1124 = vor.u32 %v1122, %v1120
      %v1126 = vshll.u32 %v1083, 16
      %v1128 = vrot.slane %v1126, 1
      %v1129 = vsel %vm1101, %v1124, %v1128
      %v1130 = vshrl.u32 %v1083, 16
      %v1132 = vor.u32 %v1130, %v1128
      %v1134 = vshll.u32 %v1084, 16
      %v1136 = vrot.slane %v1134, 1
      %v1137 = vsel %vm1101, %v1132, %v1136
      %v1138 = vshrl.u32 %v1084, 16
      %v1140 = vor.u32 %v1138, %v1136
      %v1142 = vshll.u32 %v1085, 16
      %v1144 = vrot.slane %v1142, 1
      %v1145 = vsel %vm1101, %v1140, %v1144
      %v1146 = vshrl.u32 %v1085, 16
      %v1148 = vor.u32 %v1146, %v1144
      %v1150 = vshll.u32 %v1086, 16
      %v1152 = vrot.slane %v1150, 1
      %v1153 = vsel %vm1101, %v1148, %v1152
      %v1154 = vshrl.u32 %v1086, 16
      %v1156 = vor.u32 %v1154, %v1152
      %v1158 = vshll.u32 %v1087, 16
      %v1160 = vrot.slane %v1158, 1
      %v1161 = vsel %vm1101, %v1156, %v1160
      %v1162 = vshrl.u32 %v1087, 16
      %v1164 = vor.u32 %v1162, %v1160
      %v1166 = vshll.u32 %v1088, 16
      %v1168 = vrot.slane %v1166, 1
      %v1169 = vsel %vm1101, %v1164, %v1168
      %v1170 = vshrl.u32 %v1088, 16
      %v1172 = vor.u32 %v1170, %v1168
      %v1174 = vshll.u32 %v1089, 16
      %v1176 = vrot.slane %v1174, 1
      %v1177 = vsel %vm1101, %v1172, %v1176
      %v1178 = vshrl.u32 %v1089, 16
      %v1180 = vor.u32 %v1178, %v1176
      %v1182 = vshll.u32 %v1090, 16
      %v1184 = vrot.slane %v1182, 1
      %v1185 = vsel %vm1101, %v1180, %v1184
      %v1186 = vshrl.u32 %v1090, 16
      %v1188 = vor.u32 %v1186, %v1184
      %v1190 = vshll.u32 %v1091, 16
      %v1192 = vrot.slane %v1190, 1
      %v1193 = vsel %vm1101, %v1188, %v1192
      %v1194 = vshrl.u32 %v1091, 16
      %v1196 = vor.u32 %v1194, %v1192
      %v1198 = vshll.u32 %v1092, 16
      %v1200 = vrot.slane %v1198, 1
      %v1201 = vsel %vm1101, %v1196, %v1200
      %v1202 = vshrl.u32 %v1092, 16
      %v1204 = vor.u32 %v1202, %v1200
      %v1206 = vshll.u32 %v1093, 16
      %v1208 = vrot.slane %v1206, 1
      %v1209 = vsel %vm1101, %v1204, %v1208
      %v1210 = vshrl.u32 %v1093, 16
      %v1212 = vor.u32 %v1210, %v1208
      %v1214 = vshll.u32 %v1094, 16
      %v1216 = vrot.slane %v1214, 1
      %v1217 = vsel %vm1101, %v1212, %v1216
      %v1218 = vshrl.u32 %v1094, 16
      %v1220 = vor.u32 %v1218, %v1216
      %v1222 = vshll.u32 %v1095, 16
      %v1224 = vrot.slane %v1222, 1
      %v1225 = vsel %vm1101, %v1220, %v1224
      %v1226 = vshrl.u32 %v1095, 16
      %v1228 = vor.u32 %v1226, %v1224
      %v1230 = vshll.u32 %v1096, 16
      %v1232 = vrot.slane %v1230, 1
      %v1233 = vsel %vm1101, %v1228, %v1232
      %v1234 = vshrl.u32 %v1096, 16
      %v1236 = vor.u32 %v1234, %v1232
      %v1238 = vshll.u32 %v1097, 16
      %v1240 = vrot.slane %v1238, 1
      %v1241 = vsel %vm1101, %v1236, %v1240
      %v1242 = vshrl.u32 %v1097, 16
      %v1244 = vor.u32 %v1242, %v1240
      %v1246 = vshll.u32 %v1098, 16
      %v1248 = vrot.slane %v1246, 1
      %v1249 = vsel %vm1101, %v1244, %v1248
      %v1250 = vshrl.u32 %v1098, 16
      %v1252 = vor.u32 %v1250, %v1248
      %v1254 = vshll.u32 %v1099, 16
      %v1256 = vrot.slane %v1254, 1
      %v1257 = vsel %vm1101, %v1252, %v1256
      %v1258 = vshrl.u32 %v1099, 16
      %v1260 = vor.u32 %v1258, %v1256
      %v1262 = vshll.u32 %v1100, 16
      %v1264 = vrot.slane %v1262, 1
      %v1265 = vsel %vm1101, %v1260, %v1264
      %v1266 = vshrl.u32 %v1100, 16
      %v1268 = vor.u32 %v1266, %v1264
      %v1290 = vmax.bf16 %v1080, %v1113
      %v1291 = vmax.bf16 %v1081, %v1121
      %v1292 = vmax.bf16 %v1082, %v1129
      %v1293 = vmax.bf16 %v1083, %v1137
      %v1294 = vmax.bf16 %v1084, %v1145
      %v1295 = vmax.bf16 %v1085, %v1153
      %v1296 = vmax.bf16 %v1086, %v1161
      %v1297 = vmax.bf16 %v1087, %v1169
      %v1298 = vmax.bf16 %v1088, %v1177
      %v1299 = vmax.bf16 %v1089, %v1185
      %v1300 = vmax.bf16 %v1090, %v1193
      %v1301 = vmax.bf16 %v1091, %v1201
      %v1302 = vmax.bf16 %v1092, %v1209
      %v1303 = vmax.bf16 %v1093, %v1217
      %v1304 = vmax.bf16 %v1094, %v1225
      %v1305 = vmax.bf16 %v1095, %v1233
      %v1306 = vmax.bf16 %v1096, %v1241
      %v1307 = vmax.bf16 %v1097, %v1249
      %v1308 = vmax.bf16 %v1098, %v1257
      %v1309 = vmax.bf16 %v1099, %v1265
      %v1310 = vmax.bf16 %v1100, %v1268
      %vm1331 = vcmask 1046528
      %v1332 = vrot.slane %v1291, 1
      %v1333 = vrot.slane %v1292, 1
      %v1334 = vsel %vm1331, %v1332, %v1333
      %v1335 = vrot.slane %v1293, 1
      %v1336 = vsel %vm1331, %v1333, %v1335
      %v1337 = vrot.slane %v1294, 1
      %v1338 = vsel %vm1331, %v1335, %v1337
      %v1339 = vrot.slane %v1295, 1
      %v1340 = vsel %vm1331, %v1337, %v1339
      %v1341 = vrot.slane %v1296, 1
      %v1342 = vsel %vm1331, %v1339, %v1341
      %v1343 = vrot.slane %v1297, 1
      %v1344 = vsel %vm1331, %v1341, %v1343
      %v1345 = vrot.slane %v1298, 1
      %v1346 = vsel %vm1331, %v1343, %v1345
      %v1347 = vrot.slane %v1299, 1
      %v1348 = vsel %vm1331, %v1345, %v1347
      %v1349 = vrot.slane %v1300, 1
      %v1350 = vsel %vm1331, %v1347, %v1349
      %v1351 = vrot.slane %v1301, 1
      %v1352 = vsel %vm1331, %v1349, %v1351
      %v1353 = vrot.slane %v1302, 1
      %v1354 = vsel %vm1331, %v1351, %v1353
      %v1355 = vrot.slane %v1303, 1
      %v1356 = vsel %vm1331, %v1353, %v1355
      %v1357 = vrot.slane %v1304, 1
      %v1358 = vsel %vm1331, %v1355, %v1357
      %v1359 = vrot.slane %v1305, 1
      %v1360 = vsel %vm1331, %v1357, %v1359
      %v1361 = vrot.slane %v1306, 1
      %v1362 = vsel %vm1331, %v1359, %v1361
      %v1363 = vrot.slane %v1307, 1
      %v1364 = vsel %vm1331, %v1361, %v1363
      %v1365 = vrot.slane %v1308, 1
      %v1366 = vsel %vm1331, %v1363, %v1365
      %v1367 = vrot.slane %v1309, 1
      %v1368 = vsel %vm1331, %v1365, %v1367
      %v1369 = vrot.slane %v1310, 1
      %v1370 = vsel %vm1331, %v1367, %v1369
      %v1391 = vmax.bf16 %v1290, %v1334
      %v1392 = vmax.bf16 %v1291, %v1336
      %v1393 = vmax.bf16 %v1292, %v1338
      %v1394 = vmax.bf16 %v1293, %v1340
      %v1395 = vmax.bf16 %v1294, %v1342
      %v1396 = vmax.bf16 %v1295, %v1344
      %v1397 = vmax.bf16 %v1296, %v1346
      %v1398 = vmax.bf16 %v1297, %v1348
      %v1399 = vmax.bf16 %v1298, %v1350
      %v1400 = vmax.bf16 %v1299, %v1352
      %v1401 = vmax.bf16 %v1300, %v1354
      %v1402 = vmax.bf16 %v1301, %v1356
      %v1403 = vmax.bf16 %v1302, %v1358
      %v1404 = vmax.bf16 %v1303, %v1360
      %v1405 = vmax.bf16 %v1304, %v1362
      %v1406 = vmax.bf16 %v1305, %v1364
      %v1407 = vmax.bf16 %v1306, %v1366
      %v1408 = vmax.bf16 %v1307, %v1368
      %v1409 = vmax.bf16 %v1308, %v1370
      %v1410 = vmax.bf16 %v1309, %v1369
      %v1411 = vld [vmem:[%s3] sm:$0xff]
      %v1412 = vld [vmem:[%s3 + $0x8] sm:$0xf]
      %v1413 = vld [vmem:[%s3 + $0xc] sm:$0xff]
      %v1414 = vld [vmem:[%s3 + $0x14] sm:$0xf]
      %v1415 = vld [vmem:[%s3 + $0x18] sm:$0xff]
      %v1416 = vld [vmem:[%s3 + $0x20] sm:$0xf]
      %v1417 = vld [vmem:[%s3 + $0x24] sm:$0xff]
      %v1418 = vld [vmem:[%s3 + $0x2c] sm:$0xf]
      %v1419 = vld [vmem:[%s3 + $0x30] sm:$0xff]
      %v1420 = vld [vmem:[%s3 + $0x38] sm:$0xf]
      %v1421 = vld [vmem:[%s3 + $0x3c] sm:$0xff]
      %v1422 = vld [vmem:[%s3 + $0x44] sm:$0xf]
      %v1423 = vld [vmem:[%s3 + $0x48] sm:$0xff]
      %v1424 = vld [vmem:[%s3 + $0x50] sm:$0xf]
      %v1425 = vld [vmem:[%s3 + $0x54] sm:$0xff]
      %v1426 = vld [vmem:[%s3 + $0x5c] sm:$0xf]
      %v1427 = vld [vmem:[%s3 + $0x60] sm:$0xff]
      %v1428 = vld [vmem:[%s3 + $0x68] sm:$0xf]
      %v1429 = vld [vmem:[%s3 + $0x6c] sm:$0xff]
      %v1430 = vld [vmem:[%s3 + $0x74] sm:$0xf]
      %v1431 = vld [vmem:[%s3 + $0x78] sm:$0xff]
      %v1432 = vld [vmem:[%s3 + $0x80] sm:$0xf]
      %v1433 = vld [vmem:[%s3 + $0x84] sm:$0xff]
      %v1434 = vld [vmem:[%s3 + $0x8c] sm:$0xf]
      %v1435 = vld [vmem:[%s3 + $0x90] sm:$0xff]
      %v1436 = vld [vmem:[%s3 + $0x98] sm:$0xf]
      %v1437 = vld [vmem:[%s3 + $0x9c] sm:$0xff]
      %v1438 = vld [vmem:[%s3 + $0xa4] sm:$0xf]
      %v1439 = vld [vmem:[%s3 + $0xa8] sm:$0xff]
      %v1440 = vld [vmem:[%s3 + $0xb0] sm:$0xf]
      %v1441 = vld [vmem:[%s3 + $0xb4] sm:$0xff]
      %v1442 = vld [vmem:[%s3 + $0xbc] sm:$0xf]
      %v1443 = vld [vmem:[%s3 + $0xc0] sm:$0xff]
      %v1444 = vld [vmem:[%s3 + $0xc8] sm:$0xf]
      %v1445 = vld [vmem:[%s3 + $0xcc] sm:$0xff]
      %v1446 = vld [vmem:[%s3 + $0xd4] sm:$0xf]
      %v1447 = vld [vmem:[%s3 + $0xd8] sm:$0xff]
      %v1448 = vld [vmem:[%s3 + $0xe0] sm:$0xf]
      %v1449 = vld [vmem:[%s3 + $0xe4] sm:$0xff]
      %v1450 = vld [vmem:[%s3 + $0xec] sm:$0xf]
      %v1451 = vld [vmem:[%s3 + $0xf0] sm:$0xff]
      %v1452 = vld [vmem:[%s3 + $0xf8] sm:$0xf]
      %v1453 = vld [vmem:[%s3 + $0xfc] sm:$0x33]
      %v1454 = vld [vmem:[%s3 + $0x104] sm:$0x3]
      %v1499 = vunpack.c.l.b16 %v1411
      %v1500 = vunpack.c.h.b16 %v1411
      %v1501 = vunpack.c.l.b16 %v1412
      %v1502 = vunpack.c.l.b16 %v1413
      %v1503 = vunpack.c.h.b16 %v1413
      %v1504 = vunpack.c.l.b16 %v1414
      %v1505 = vunpack.c.l.b16 %v1415
      %v1506 = vunpack.c.h.b16 %v1415
      %v1507 = vunpack.c.l.b16 %v1416
      %v1508 = vunpack.c.l.b16 %v1417
      %v1509 = vunpack.c.h.b16 %v1417
      %v1510 = vunpack.c.l.b16 %v1418
      %v1511 = vunpack.c.l.b16 %v1419
      %v1512 = vunpack.c.h.b16 %v1419
      %v1513 = vunpack.c.l.b16 %v1420
      %v1514 = vunpack.c.l.b16 %v1421
      %v1515 = vunpack.c.h.b16 %v1421
      %v1516 = vunpack.c.l.b16 %v1422
      %v1517 = vunpack.c.l.b16 %v1423
      %v1518 = vunpack.c.h.b16 %v1423
      %v1519 = vunpack.c.l.b16 %v1424
      %v1520 = vunpack.c.l.b16 %v1425
      %v1521 = vunpack.c.h.b16 %v1425
      %v1522 = vunpack.c.l.b16 %v1426
      %v1523 = vunpack.c.l.b16 %v1427
      %v1524 = vunpack.c.h.b16 %v1427
      %v1525 = vunpack.c.l.b16 %v1428
      %v1526 = vunpack.c.l.b16 %v1429
      %v1527 = vunpack.c.h.b16 %v1429
      %v1528 = vunpack.c.l.b16 %v1430
      %v1529 = vunpack.c.l.b16 %v1431
      %v1530 = vunpack.c.h.b16 %v1431
      %v1531 = vunpack.c.l.b16 %v1432
      %v1532 = vunpack.c.l.b16 %v1433
      %v1533 = vunpack.c.h.b16 %v1433
      %v1534 = vunpack.c.l.b16 %v1434
      %v1535 = vunpack.c.l.b16 %v1435
      %v1536 = vunpack.c.h.b16 %v1435
      %v1537 = vunpack.c.l.b16 %v1436
      %v1538 = vunpack.c.l.b16 %v1437
      %v1539 = vunpack.c.h.b16 %v1437
      %v1540 = vunpack.c.l.b16 %v1438
      %v1541 = vunpack.c.l.b16 %v1439
      %v1542 = vunpack.c.h.b16 %v1439
      %v1543 = vunpack.c.l.b16 %v1440
      %v1544 = vunpack.c.l.b16 %v1441
      %v1545 = vunpack.c.h.b16 %v1441
      %v1546 = vunpack.c.l.b16 %v1442
      %v1547 = vunpack.c.l.b16 %v1443
      %v1548 = vunpack.c.h.b16 %v1443
      %v1549 = vunpack.c.l.b16 %v1444
      %v1550 = vunpack.c.l.b16 %v1445
      %v1551 = vunpack.c.h.b16 %v1445
      %v1552 = vunpack.c.l.b16 %v1446
      %v1553 = vunpack.c.l.b16 %v1447
      %v1554 = vunpack.c.h.b16 %v1447
      %v1555 = vunpack.c.l.b16 %v1448
      %v1556 = vunpack.c.l.b16 %v1449
      %v1557 = vunpack.c.h.b16 %v1449
      %v1558 = vunpack.c.l.b16 %v1450
      %v1559 = vunpack.c.l.b16 %v1451
      %v1560 = vunpack.c.h.b16 %v1451
      %v1561 = vunpack.c.l.b16 %v1452
      %v1562 = vunpack.c.l.b16 %v1453
      %v1563 = vunpack.c.h.b16 %v1453
      %v1564 = vunpack.c.l.b16 %v1454
      %v1565 = vpack.c.b16 %v1502, %v1499
      %v1566 = vpack.c.b16 %v1503, %v1500
      %v1567 = vpack.c.b16 %v1504, %v1501
      %v1568 = vpack.c.b16 %v1508, %v1505
      %v1569 = vpack.c.b16 %v1509, %v1506
      %v1570 = vpack.c.b16 %v1510, %v1507
      %v1571 = vpack.c.b16 %v1514, %v1511
      %v1572 = vpack.c.b16 %v1515, %v1512
      %v1573 = vpack.c.b16 %v1516, %v1513
      %v1574 = vpack.c.b16 %v1520, %v1517
      %v1575 = vpack.c.b16 %v1521, %v1518
      %v1576 = vpack.c.b16 %v1522, %v1519
      %v1577 = vpack.c.b16 %v1526, %v1523
      %v1578 = vpack.c.b16 %v1527, %v1524
      %v1579 = vpack.c.b16 %v1528, %v1525
      %v1580 = vpack.c.b16 %v1532, %v1529
      %v1581 = vpack.c.b16 %v1533, %v1530
      %v1582 = vpack.c.b16 %v1534, %v1531
      %v1583 = vpack.c.b16 %v1538, %v1535
      %v1584 = vpack.c.b16 %v1539, %v1536
      %v1585 = vpack.c.b16 %v1540, %v1537
      %v1586 = vpack.c.b16 %v1544, %v1541
      %v1587 = vpack.c.b16 %v1545, %v1542
      %v1588 = vpack.c.b16 %v1546, %v1543
      %v1589 = vpack.c.b16 %v1550, %v1547
      %v1590 = vpack.c.b16 %v1551, %v1548
      %v1591 = vpack.c.b16 %v1552, %v1549
      %v1592 = vpack.c.b16 %v1556, %v1553
      %v1593 = vpack.c.b16 %v1557, %v1554
      %v1594 = vpack.c.b16 %v1558, %v1555
      %v1595 = vpack.c.b16 %v1562, %v1559
      %v1596 = vpack.c.b16 %v1563, %v1560
      %v1597 = vpack.c.b16 %v1564, %v1561
      %vm1620 = vcmask 400384
      %v1622 = vsel %vm1620, %v1567, 0
      %v1625 = vsel %vm1620, %v1570, 0
      %v1628 = vsel %vm1620, %v1573, 0
      %v1631 = vsel %vm1620, %v1576, 0
      %v1634 = vsel %vm1620, %v1579, 0
      %v1637 = vsel %vm1620, %v1582, 0
      %v1640 = vsel %vm1620, %v1585, 0
      %v1643 = vsel %vm1620, %v1588, 0
      %v1646 = vsel %vm1620, %v1591, 0
      %v1649 = vsel %vm1620, %v1594, 0
      %v1652 = vsel %vm1620, %v1597, 0
      %vm1654 = vcmask 1040384
      %v1655 = vsel 0, 4294967295, 65535
      %v1656 = vsel %vm1654, %v1655, 0
      %v1658 = vand.u32 %v1410, %v1656
      %1660 = vmatprep.subr.bf16.mxu0 0
      %1661 = vmatpush1.bf16.msra.mxu0 %v1391
      %1662 = vmatprep.subr.bf16.mxu0 0
      %1663 = vmatpush1.bf16.msra.mxu0 %v1392
      %1664 = vmatprep.subr.bf16.mxu0 0
      %1665 = vmatpush1.bf16.msra.mxu0 %v1393
      %1666 = vmatprep.subr.bf16.mxu0 0
      %1667 = vmatpush1.bf16.msra.mxu0 %v1394
      %1668 = vmatprep.subr.bf16.mxu0 0
      %1669 = vmatpush1.bf16.msra.mxu0 %v1395
      %1670 = vmatprep.subr.bf16.mxu0 0
      %1671 = vmatpush1.bf16.msra.mxu0 %v1396
      %1672 = vmatprep.subr.bf16.mxu0 0
      %1673 = vmatpush1.bf16.msra.mxu0 %v1397
      %1674 = vmatprep.subr.bf16.mxu0 0
      %1675 = vmatpush1.bf16.msra.mxu0 %v1398
      %1676 = vmatprep.subr.bf16.mxu0 0
      %1677 = vmatpush1.bf16.msra.mxu0 %v1399
      %1678 = vmatprep.subr.bf16.mxu0 0
      %1679 = vmatpush1.bf16.msra.mxu0 %v1400
      %1680 = vmatprep.subr.bf16.mxu0 0
      %1681 = vmatpush1.bf16.msra.mxu0 %v1401
      %1682 = vmatprep.subr.bf16.mxu0 0
      %1683 = vmatpush1.bf16.msra.mxu0 %v1402
      %1684 = vmatprep.subr.bf16.mxu0 0
      %1685 = vmatpush1.bf16.msra.mxu0 %v1403
      %1686 = vmatprep.subr.bf16.mxu0 0
      %1687 = vmatpush1.bf16.msra.mxu0 %v1404
      %1688 = vmatprep.subr.bf16.mxu0 0
      %1689 = vmatpush1.bf16.msra.mxu0 %v1405
      %1690 = vmatprep.subr.bf16.mxu0 0
      %1691 = vmatpush1.bf16.msra.mxu0 %v1406
      %1692 = vmatprep.mubr.bf16.mxu0 %v1566
      %1693 = vmatmul.mubr.bf16.gmra.mrb[0].mxu0 %v1565
      %v1694 = vpop.f32.mrb[0].mxu0
      %v1695 = vadd.f32 0.0, %v1694
      %v1696 = vpop.f32.mrb[0].mxu0
      %v1697 = vpop.f32.mrb[0].mxu0
      %v1698 = vadd.f32 0.0, %v1697
      %v1699 = vpop.f32.mrb[0].mxu0
      %1700 = vmatprep.mubr.bf16.mxu0 %v1569
      %1701 = vmatmul.mubr.bf16.gmra.mrb[0].mxu0 %v1568
      %v1702 = vpop.f32.mrb[0].mxu0
      %v1703 = vadd.f32 0.0, %v1702
      %v1704 = vpop.f32.mrb[0].mxu0
      %v1705 = vpop.f32.mrb[0].mxu0
      %v1706 = vadd.f32 0.0, %v1705
      %v1707 = vpop.f32.mrb[0].mxu0
      %1708 = vmatprep.mubr.bf16.mxu0 %v1572
      %1709 = vmatmul.mubr.bf16.gmra.mrb[0].mxu0 %v1571
      %v1710 = vpop.f32.mrb[0].mxu0
      %v1711 = vadd.f32 0.0, %v1710
      %v1712 = vpop.f32.mrb[0].mxu0
      %v1713 = vpop.f32.mrb[0].mxu0
      %v1714 = vadd.f32 0.0, %v1713
      %v1715 = vpop.f32.mrb[0].mxu0
      %1716 = vmatprep.mubr.bf16.mxu0 %v1575
      %1717 = vmatmul.mubr.bf16.gmra.mrb[0].mxu0 %v1574
      %v1718 = vpop.f32.mrb[0].mxu0
      %v1719 = vadd.f32 0.0, %v1718
      %v1720 = vpop.f32.mrb[0].mxu0
      %v1721 = vpop.f32.mrb[0].mxu0
      %v1722 = vadd.f32 0.0, %v1721
      %v1723 = vpop.f32.mrb[0].mxu0
      %1724 = vmatprep.mubr.bf16.mxu0 %v1578
      %1725 = vmatmul.mubr.bf16.gmra.mrb[0].mxu0 %v1577
      %v1726 = vpop.f32.mrb[0].mxu0
      %v1727 = vadd.f32 0.0, %v1726
      %v1728 = vpop.f32.mrb[0].mxu0
      %v1729 = vpop.f32.mrb[0].mxu0
      %v1730 = vadd.f32 0.0, %v1729
      %v1731 = vpop.f32.mrb[0].mxu0
      %1732 = vmatprep.mubr.bf16.mxu0 %v1581
      %1733 = vmatmul.mubr.bf16.gmra.mrb[0].mxu0 %v1580
      %v1734 = vpop.f32.mrb[0].mxu0
      %v1735 = vadd.f32 0.0, %v1734
      %v1736 = vpop.f32.mrb[0].mxu0
      %v1737 = vpop.f32.mrb[0].mxu0
      %v1738 = vadd.f32 0.0, %v1737
      %v1739 = vpop.f32.mrb[0].mxu0
      %1740 = vmatprep.mubr.bf16.mxu0 %v1584
      %1741 = vmatmul.mubr.bf16.gmra.mrb[0].mxu0 %v1583
      %v1742 = vpop.f32.mrb[0].mxu0
      %v1743 = vadd.f32 0.0, %v1742
      %v1744 = vpop.f32.mrb[0].mxu0
      %v1745 = vpop.f32.mrb[0].mxu0
      %v1746 = vadd.f32 0.0, %v1745
      %v1747 = vpop.f32.mrb[0].mxu0
      %1748 = vmatprep.mubr.bf16.mxu0 %v1587
      %1749 = vmatmul.mubr.bf16.gmra.mrb[0].mxu0 %v1586
      %v1750 = vpop.f32.mrb[0].mxu0
      %v1751 = vadd.f32 0.0, %v1750
      %v1752 = vpop.f32.mrb[0].mxu0
      %v1753 = vpop.f32.mrb[0].mxu0
      %v1754 = vadd.f32 0.0, %v1753
      %v1755 = vpop.f32.mrb[0].mxu0
      %1756 = vmatprep.mubr.bf16.mxu0 %v1590
      %1757 = vmatmul.mubr.bf16.gmra.mrb[0].mxu0 %v1589
      %v1758 = vpop.f32.mrb[0].mxu0
      %v1759 = vadd.f32 0.0, %v1758
      %v1760 = vpop.f32.mrb[0].mxu0
      %v1761 = vpop.f32.mrb[0].mxu0
      %v1762 = vadd.f32 0.0, %v1761
      %v1763 = vpop.f32.mrb[0].mxu0
      %1764 = vmatprep.mubr.bf16.mxu0 %v1593
      %1765 = vmatmul.mubr.bf16.gmra.mrb[0].mxu0 %v1592
      %v1766 = vpop.f32.mrb[0].mxu0
      %v1767 = vadd.f32 0.0, %v1766
      %v1768 = vpop.f32.mrb[0].mxu0
      %v1769 = vpop.f32.mrb[0].mxu0
      %v1770 = vadd.f32 0.0, %v1769
      %v1771 = vpop.f32.mrb[0].mxu0
      %1772 = vmatprep.mubr.bf16.mxu0 %v1596
      %1773 = vmatmul.mubr.bf16.gmra.mrb[0].mxu0 %v1595
      %v1774 = vpop.f32.mrb[0].mxu0
      %v1775 = vadd.f32 0.0, %v1774
      %v1776 = vpop.f32.mrb[0].mxu0
      %v1777 = vpop.f32.mrb[0].mxu0
      %v1778 = vadd.f32 0.0, %v1777
      %v1779 = vpop.f32.mrb[0].mxu0
      %1780 = vdwg.mxu0
      %1781 = vmatprep.subr.bf16.mxu0 0
      %1782 = vmatpush1.bf16.msra.mxu0 %v1407
      %1783 = vmatprep.subr.bf16.mxu0 0
      %1784 = vmatpush1.bf16.msra.mxu0 %v1408
      %1785 = vmatprep.subr.bf16.mxu0 0
      %1786 = vmatpush1.bf16.msra.mxu0 %v1409
      %1787 = vmatprep.subr.bf16.mxu0 0
      %1788 = vmatpush1.bf16.msra.mxu0 %v1658
      %1789 = vmatprep.subr.bf16.mxu0 0
      %1790 = vmatpush1.bf16.msra.mxu0 0
      %1791 = vmatprep.subr.bf16.mxu0 0
      %1792 = vmatpush1.bf16.msra.mxu0 0
      %1793 = vmatprep.subr.bf16.mxu0 0
      %1794 = vmatpush1.bf16.msra.mxu0 0
      %1795 = vmatprep.subr.bf16.mxu0 0
      %1796 = vmatpush1.bf16.msra.mxu0 0
      %1797 = vmatprep.subr.bf16.mxu0 0
      %1798 = vmatpush1.bf16.msra.mxu0 0
      %1799 = vmatprep.subr.bf16.mxu0 0
      %1800 = vmatpush1.bf16.msra.mxu0 0
      %1801 = vmatprep.subr.bf16.mxu0 0
      %1802 = vmatpush1.bf16.msra.mxu0 0
      %1803 = vmatprep.subr.bf16.mxu0 0
      %1804 = vmatpush1.bf16.msra.mxu0 0
      %1805 = vmatprep.subr.bf16.mxu0 0
      %1806 = vmatpush1.bf16.msra.mxu0 0
      %1807 = vmatprep.subr.bf16.mxu0 0
      %1808 = vmatpush1.bf16.msra.mxu0 0
      %1809 = vmatprep.subr.bf16.mxu0 0
      %1810 = vmatpush1.bf16.msra.mxu0 0
      %1811 = vmatprep.subr.bf16.mxu0 0
      %1812 = vmatpush1.bf16.msra.mxu0 0
      %1813 = vmatprep.mubr.bf16.mxu0 0
      %1814 = vmatmul.mubr.bf16.gmra.mrb[0].mxu0 %v1622
      %v1815 = vpop.f32.mrb[0].mxu0
      %v1816 = vadd.f32 %v1695, %v1815
      %v1817 = vpop.f32.mrb[0].mxu0
      %v1818 = vpop.f32.mrb[0].mxu0
      %v1819 = vadd.f32 %v1698, %v1818
      %v1820 = vpop.f32.mrb[0].mxu0
      %1821 = vmatprep.mubr.bf16.mxu0 0
      %1822 = vmatmul.mubr.bf16.gmra.mrb[0].mxu0 %v1625
      %v1823 = vpop.f32.mrb[0].mxu0
      %v1824 = vadd.f32 %v1703, %v1823
      %v1825 = vpop.f32.mrb[0].mxu0
      %v1826 = vpop.f32.mrb[0].mxu0
      %v1827 = vadd.f32 %v1706, %v1826
      %v1828 = vpop.f32.mrb[0].mxu0
      %1829 = vmatprep.mubr.bf16.mxu0 0
      %1830 = vmatmul.mubr.bf16.gmra.mrb[0].mxu0 %v1628
      %v1831 = vpop.f32.mrb[0].mxu0
      %v1832 = vadd.f32 %v1711, %v1831
      %v1833 = vpop.f32.mrb[0].mxu0
      %v1834 = vpop.f32.mrb[0].mxu0
      %v1835 = vadd.f32 %v1714, %v1834
      %v1836 = vpop.f32.mrb[0].mxu0
      %1837 = vmatprep.mubr.bf16.mxu0 0
      %1838 = vmatmul.mubr.bf16.gmra.mrb[0].mxu0 %v1631
      %v1839 = vpop.f32.mrb[0].mxu0
      %v1840 = vadd.f32 %v1719, %v1839
      %v1841 = vpop.f32.mrb[0].mxu0
      %v1842 = vpop.f32.mrb[0].mxu0
      %v1843 = vadd.f32 %v1722, %v1842
      %v1844 = vpop.f32.mrb[0].mxu0
      %1845 = vmatprep.mubr.bf16.mxu0 0
      %1846 = vmatmul.mubr.bf16.gmra.mrb[0].mxu0 %v1634
      %v1847 = vpop.f32.mrb[0].mxu0
      %v1848 = vadd.f32 %v1727, %v1847
      %v1849 = vpop.f32.mrb[0].mxu0
      %v1850 = vpop.f32.mrb[0].mxu0
      %v1851 = vadd.f32 %v1730, %v1850
      %v1852 = vpop.f32.mrb[0].mxu0
      %1853 = vmatprep.mubr.bf16.mxu0 0
      %1854 = vmatmul.mubr.bf16.gmra.mrb[0].mxu0 %v1637
      %v1855 = vpop.f32.mrb[0].mxu0
      %v1856 = vadd.f32 %v1735, %v1855
      %v1857 = vpop.f32.mrb[0].mxu0
      %v1858 = vpop.f32.mrb[0].mxu0
      %v1859 = vadd.f32 %v1738, %v1858
      %v1860 = vpop.f32.mrb[0].mxu0
      %1861 = vmatprep.mubr.bf16.mxu0 0
      %1862 = vmatmul.mubr.bf16.gmra.mrb[0].mxu0 %v1640
      %v1863 = vpop.f32.mrb[0].mxu0
      %v1864 = vadd.f32 %v1743, %v1863
      %v1865 = vpop.f32.mrb[0].mxu0
      %v1866 = vpop.f32.mrb[0].mxu0
      %v1867 = vadd.f32 %v1746, %v1866
      %v1868 = vpop.f32.mrb[0].mxu0
      %1869 = vmatprep.mubr.bf16.mxu0 0
      %1870 = vmatmul.mubr.bf16.gmra.mrb[0].mxu0 %v1643
      %v1871 = vpop.f32.mrb[0].mxu0
      %v1872 = vadd.f32 %v1751, %v1871
      %v1873 = vpop.f32.mrb[0].mxu0
      %v1874 = vpop.f32.mrb[0].mxu0
      %v1875 = vadd.f32 %v1754, %v1874
      %v1876 = vpop.f32.mrb[0].mxu0
      %1877 = vmatprep.mubr.bf16.mxu0 0
      %1878 = vmatmul.mubr.bf16.gmra.mrb[0].mxu0 %v1646
      %v1879 = vpop.f32.mrb[0].mxu0
      %v1880 = vadd.f32 %v1759, %v1879
      %v1881 = vpop.f32.mrb[0].mxu0
      %v1882 = vpop.f32.mrb[0].mxu0
      %v1883 = vadd.f32 %v1762, %v1882
      %v1884 = vpop.f32.mrb[0].mxu0
      %1885 = vmatprep.mubr.bf16.mxu0 0
      %1886 = vmatmul.mubr.bf16.gmra.mrb[0].mxu0 %v1649
      %v1887 = vpop.f32.mrb[0].mxu0
      %v1888 = vadd.f32 %v1767, %v1887
      %v1889 = vpop.f32.mrb[0].mxu0
      %v1890 = vpop.f32.mrb[0].mxu0
      %v1891 = vadd.f32 %v1770, %v1890
      %v1892 = vpop.f32.mrb[0].mxu0
      %1893 = vmatprep.mubr.bf16.mxu0 0
      %1894 = vmatmul.mubr.bf16.gmra.mrb[0].mxu0 %v1652
      %v1895 = vpop.f32.mrb[0].mxu0
      %v1896 = vadd.f32 %v1775, %v1895
      %v1897 = vpop.f32.mrb[0].mxu0
      %v1898 = vpop.f32.mrb[0].mxu0
      %v1899 = vadd.f32 %v1778, %v1898
      %v1900 = vpop.f32.mrb[0].mxu0
      %1901 = vdwg.mxu0
      %v1902 = vpack.c.bf16 %v1819, %v1816
      %v1903 = vpack.c.bf16 %v1827, %v1824
      %v1904 = vpack.c.bf16 %v1835, %v1832
      %v1905 = vpack.c.bf16 %v1843, %v1840
      %v1906 = vpack.c.bf16 %v1851, %v1848
      %v1907 = vpack.c.bf16 %v1859, %v1856
      %v1908 = vpack.c.bf16 %v1867, %v1864
      %v1909 = vpack.c.bf16 %v1875, %v1872
      %v1910 = vpack.c.bf16 %v1883, %v1880
      %v1911 = vpack.c.bf16 %v1891, %v1888
      %v1912 = vpack.c.bf16 %v1899, %v1896
      %v1913 = vld [vmem:[%s4] sm:$0xf]
      %v1914 = vld [vmem:[%s4 + $0x4] sm:$0xf]
      %v1915 = vld [vmem:[%s4 + $0x8] sm:$0xf]
      %v1916 = vld [vmem:[%s4 + $0xc] sm:$0xf]
      %v1917 = vld [vmem:[%s4 + $0x10] sm:$0xf]
      %v1918 = vld [vmem:[%s4 + $0x14] sm:$0xf]
      %v1919 = vld [vmem:[%s4 + $0x18] sm:$0xf]
      %v1920 = vld [vmem:[%s4 + $0x1c] sm:$0xf]
      %v1921 = vld [vmem:[%s4 + $0x20] sm:$0xf]
      %v1922 = vld [vmem:[%s4 + $0x24] sm:$0xf]
      %v1923 = vld [vmem:[%s4 + $0x28] sm:$0xf]
      %v1924 = vld [vmem:[%s4 + $0x2c] sm:$0xf]
      %v1925 = vld [vmem:[%s4 + $0x30] sm:$0xf]
      %v1926 = vld [vmem:[%s4 + $0x34] sm:$0xf]
      %v1927 = vld [vmem:[%s4 + $0x38] sm:$0xf]
      %v1928 = vld [vmem:[%s4 + $0x3c] sm:$0xf]
      %s1929 = scalar_lea.vmem %s4, 64
      %v1930 = vld [vmem:[%s1929] sm:$0xf]
      %v1931 = vld [vmem:[%s1929 + $0x4] sm:$0xf]
      %v1932 = vld [vmem:[%s1929 + $0x8] sm:$0xf]
      %v1933 = vld [vmem:[%s1929 + $0xc] sm:$0xf]
      %v1934 = vld [vmem:[%s1929 + $0x10] sm:$0xf]
      %v1935 = vld [vmem:[%s1929 + $0x14] sm:$0xf]
      %v1936 = vld [vmem:[%s1929 + $0x18] sm:$0xf]
      %v1937 = vld [vmem:[%s1929 + $0x1c] sm:$0xf]
      %v1938 = vld [vmem:[%s1929 + $0x20] sm:$0xf]
      %v1939 = vld [vmem:[%s1929 + $0x24] sm:$0xf]
      %v1940 = vld [vmem:[%s1929 + $0x28] sm:$0xf]
      %v1941 = vld [vmem:[%s1929 + $0x2c] sm:$0xf]
      %v1942 = vld [vmem:[%s1929 + $0x30] sm:$0xf]
      %v1943 = vld [vmem:[%s1929 + $0x34] sm:$0xf]
      %v1944 = vld [vmem:[%s1929 + $0x38] sm:$0xf]
      %v1945 = vld [vmem:[%s1929 + $0x3c] sm:$0xf]
      %v1947 = vshrl.u32 %v1902, 16
      %v1949 = vshll.u32 %v1902, 16
      %v1951 = vrot.slane %v1949, 1
      %v1952 = vor.u32 %v1947, %v1951
      %v1954 = vshll.u32 %v1903, 16
      %v1956 = vrot.slane %v1954, 1
      %v1957 = vsel %vm1101, %v1952, %v1956
      %v1958 = vshrl.u32 %v1903, 16
      %v1960 = vor.u32 %v1958, %v1956
      %v1962 = vshll.u32 %v1904, 16
      %v1964 = vrot.slane %v1962, 1
      %v1965 = vsel %vm1101, %v1960, %v1964
      %v1966 = vshrl.u32 %v1904, 16
      %v1968 = vor.u32 %v1966, %v1964
      %v1970 = vshll.u32 %v1905, 16
      %v1972 = vrot.slane %v1970, 1
      %v1973 = vsel %vm1101, %v1968, %v1972
      %v1974 = vshrl.u32 %v1905, 16
      %v1976 = vor.u32 %v1974, %v1972
      %v1978 = vshll.u32 %v1906, 16
      %v1980 = vrot.slane %v1978, 1
      %v1981 = vsel %vm1101, %v1976, %v1980
      %v1982 = vshrl.u32 %v1906, 16
      %v1984 = vor.u32 %v1982, %v1980
      %v1986 = vshll.u32 %v1907, 16
      %v1988 = vrot.slane %v1986, 1
      %v1989 = vsel %vm1101, %v1984, %v1988
      %v1990 = vshrl.u32 %v1907, 16
      %v1992 = vor.u32 %v1990, %v1988
      %v1994 = vshll.u32 %v1908, 16
      %v1996 = vrot.slane %v1994, 1
      %v1997 = vsel %vm1101, %v1992, %v1996
      %v1998 = vshrl.u32 %v1908, 16
      %v2000 = vor.u32 %v1998, %v1996
      %v2002 = vshll.u32 %v1909, 16
      %v2004 = vrot.slane %v2002, 1
      %v2005 = vsel %vm1101, %v2000, %v2004
      %v2006 = vshrl.u32 %v1909, 16
      %v2008 = vor.u32 %v2006, %v2004
      %v2010 = vshll.u32 %v1910, 16
      %v2012 = vrot.slane %v2010, 1
      %v2013 = vsel %vm1101, %v2008, %v2012
      %v2014 = vshrl.u32 %v1910, 16
      %v2016 = vor.u32 %v2014, %v2012
      %v2042 = vunpack.c.l.b16 %v1930
      %v2043 = vunpack.c.l.b16 %v1931
      %v2044 = vunpack.c.l.b16 %v1932
      %v2045 = vunpack.c.l.b16 %v1933
      %v2046 = vunpack.c.l.b16 %v1934
      %v2047 = vunpack.c.l.b16 %v1935
      %v2048 = vunpack.c.l.b16 %v1936
      %v2049 = vunpack.c.l.b16 %v1937
      %v2050 = vunpack.c.l.b16 %v1938
      %v2051 = vunpack.c.l.b16 %v1939
      %v2052 = vunpack.c.l.b16 %v1940
      %v2053 = vunpack.c.l.b16 %v1941
      %v2054 = vunpack.c.l.b16 %v1942
      %v2055 = vunpack.c.l.b16 %v1943
      %v2056 = vunpack.c.l.b16 %v1944
      %v2057 = vunpack.c.l.b16 %v1945
      %v2058 = vpack.c.b16 %v2043, %v2042
      %v2059 = vpack.c.b16 %v2045, %v2044
      %v2060 = vpack.c.b16 %v2047, %v2046
      %v2061 = vpack.c.b16 %v2049, %v2048
      %v2062 = vpack.c.b16 %v2051, %v2050
      %v2063 = vpack.c.b16 %v2053, %v2052
      %v2064 = vpack.c.b16 %v2055, %v2054
      %v2065 = vpack.c.b16 %v2057, %v2056
      %2074 = vmatprep.subr.bf16.mxu0 0
      %2075 = vmatpush1.bf16.msra.mxu0 %v2058
      %2076 = vmatprep.subr.bf16.mxu0 0
      %2077 = vmatpush1.bf16.msra.mxu0 %v2059
      %2078 = vmatprep.subr.bf16.mxu0 0
      %2079 = vmatpush1.bf16.msra.mxu0 %v2060
      %2080 = vmatprep.subr.bf16.mxu0 0
      %2081 = vmatpush1.bf16.msra.mxu0 %v2061
      %2082 = vmatprep.subr.bf16.mxu0 0
      %2083 = vmatpush1.bf16.msra.mxu0 %v2062
      %2084 = vmatprep.subr.bf16.mxu0 0
      %2085 = vmatpush1.bf16.msra.mxu0 %v2063
      %2086 = vmatprep.subr.bf16.mxu0 0
      %2087 = vmatpush1.bf16.msra.mxu0 %v2064
      %2088 = vmatprep.subr.bf16.mxu0 0
      %2089 = vmatpush1.bf16.msra.mxu0 %v2065
      %2090 = vmatprep.subr.bf16.mxu0 0
      %2091 = vmatpush1.bf16.msra.mxu0 0
      %2092 = vmatprep.subr.bf16.mxu0 0
      %2093 = vmatpush1.bf16.msra.mxu0 0
      %2094 = vmatprep.subr.bf16.mxu0 0
      %2095 = vmatpush1.bf16.msra.mxu0 0
      %2096 = vmatprep.subr.bf16.mxu0 0
      %2097 = vmatpush1.bf16.msra.mxu0 0
      %2098 = vmatprep.subr.bf16.mxu0 0
      %2099 = vmatpush1.bf16.msra.mxu0 0
      %2100 = vmatprep.subr.bf16.mxu0 0
      %2101 = vmatpush1.bf16.msra.mxu0 0
      %2102 = vmatprep.subr.bf16.mxu0 0
      %2103 = vmatpush1.bf16.msra.mxu0 0
      %2104 = vmatprep.subr.bf16.mxu0 0
      %2105 = vmatpush1.bf16.msra.mxu0 0
      %2106 = vmatprep.mubr.bf16.mxu0 0
      %2107 = vmatmul.mubr.bf16.gmra.mrb[0].mxu0 %v1957
      %v2108 = vpop.f32.mrb[0].mxu0
      %v2109 = vadd.f32 0.0, %v2108
      %v2110 = vpop.f32.mrb[0].mxu0
      %v2111 = vpop.f32.mrb[0].mxu0
      %v2112 = vadd.f32 0.0, %v2111
      %v2113 = vpop.f32.mrb[0].mxu0
      %2114 = vmatprep.mubr.bf16.mxu0 0
      %2115 = vmatmul.mubr.bf16.gmra.mrb[0].mxu0 %v1965
      %v2116 = vpop.f32.mrb[0].mxu0
      %v2117 = vadd.f32 0.0, %v2116
      %v2118 = vpop.f32.mrb[0].mxu0
      %v2119 = vpop.f32.mrb[0].mxu0
      %v2120 = vadd.f32 0.0, %v2119
      %v2121 = vpop.f32.mrb[0].mxu0
      %2122 = vmatprep.mubr.bf16.mxu0 0
      %2123 = vmatmul.mubr.bf16.gmra.mrb[0].mxu0 %v1973
      %v2124 = vpop.f32.mrb[0].mxu0
      %v2125 = vadd.f32 0.0, %v2124
      %v2126 = vpop.f32.mrb[0].mxu0
      %v2127 = vpop.f32.mrb[0].mxu0
      %v2128 = vadd.f32 0.0, %v2127
      %v2129 = vpop.f32.mrb[0].mxu0
      %2130 = vmatprep.mubr.bf16.mxu0 0
      %2131 = vmatmul.mubr.bf16.gmra.mrb[0].mxu0 %v1981
      %v2132 = vpop.f32.mrb[0].mxu0
      %v2133 = vadd.f32 0.0, %v2132
      %v2134 = vpop.f32.mrb[0].mxu0
      %v2135 = vpop.f32.mrb[0].mxu0
      %v2136 = vadd.f32 0.0, %v2135
      %v2137 = vpop.f32.mrb[0].mxu0
      %2138 = vmatprep.mubr.bf16.mxu0 0
      %2139 = vmatmul.mubr.bf16.gmra.mrb[0].mxu0 %v1989
      %v2140 = vpop.f32.mrb[0].mxu0
      %v2141 = vadd.f32 0.0, %v2140
      %v2142 = vpop.f32.mrb[0].mxu0
      %v2143 = vpop.f32.mrb[0].mxu0
      %v2144 = vadd.f32 0.0, %v2143
      %v2145 = vpop.f32.mrb[0].mxu0
      %2146 = vmatprep.mubr.bf16.mxu0 0
      %2147 = vmatmul.mubr.bf16.gmra.mrb[0].mxu0 %v1997
      %v2148 = vpop.f32.mrb[0].mxu0
      %v2149 = vadd.f32 0.0, %v2148
      %v2150 = vpop.f32.mrb[0].mxu0
      %v2151 = vpop.f32.mrb[0].mxu0
      %v2152 = vadd.f32 0.0, %v2151
      %v2153 = vpop.f32.mrb[0].mxu0
      %2154 = vmatprep.mubr.bf16.mxu0 0
      %2155 = vmatmul.mubr.bf16.gmra.mrb[0].mxu0 %v2005
      %v2156 = vpop.f32.mrb[0].mxu0
      %v2157 = vadd.f32 0.0, %v2156
      %v2158 = vpop.f32.mrb[0].mxu0
      %v2159 = vpop.f32.mrb[0].mxu0
      %v2160 = vadd.f32 0.0, %v2159
      %v2161 = vpop.f32.mrb[0].mxu0
      %2162 = vmatprep.mubr.bf16.mxu0 0
      %2163 = vmatmul.mubr.bf16.gmra.mrb[0].mxu0 %v2013
      %v2164 = vpop.f32.mrb[0].mxu0
      %v2165 = vadd.f32 0.0, %v2164
      %v2166 = vpop.f32.mrb[0].mxu0
      %v2167 = vpop.f32.mrb[0].mxu0
      %v2168 = vadd.f32 0.0, %v2167
      %v2169 = vpop.f32.mrb[0].mxu0
      %2170 = vmatprep.mubr.bf16.mxu0 0
      %2171 = vmatmul.mubr.bf16.gmra.mrb[0].mxu0 %v2016
      %v2172 = vpop.f32.mrb[0].mxu0
      %v2173 = vadd.f32 0.0, %v2172
      %v2174 = vpop.f32.mrb[0].mxu0
      %v2175 = vpop.f32.mrb[0].mxu0
      %v2176 = vadd.f32 0.0, %v2175
      %v2177 = vpop.f32.mrb[0].mxu0
      %2178 = vdwg.mxu0
      %v2195 = vunpack.c.l.b16 %v1913
      %v2196 = vunpack.c.l.b16 %v1914
      %v2197 = vunpack.c.l.b16 %v1915
      %v2198 = vunpack.c.l.b16 %v1916
      %v2199 = vunpack.c.l.b16 %v1917
      %v2200 = vunpack.c.l.b16 %v1918
      %v2201 = vunpack.c.l.b16 %v1919
      %v2202 = vunpack.c.l.b16 %v1920
      %v2203 = vunpack.c.l.b16 %v1921
      %v2204 = vunpack.c.l.b16 %v1922
      %v2205 = vunpack.c.l.b16 %v1923
      %v2206 = vunpack.c.l.b16 %v1924
      %v2207 = vunpack.c.l.b16 %v1925
      %v2208 = vunpack.c.l.b16 %v1926
      %v2209 = vunpack.c.l.b16 %v1927
      %v2210 = vunpack.c.l.b16 %v1928
      %v2211 = vpack.c.b16 %v2196, %v2195
      %v2212 = vpack.c.b16 %v2198, %v2197
      %v2213 = vpack.c.b16 %v2200, %v2199
      %v2214 = vpack.c.b16 %v2202, %v2201
      %v2215 = vpack.c.b16 %v2204, %v2203
      %v2216 = vpack.c.b16 %v2206, %v2205
      %v2217 = vpack.c.b16 %v2208, %v2207
      %v2218 = vpack.c.b16 %v2210, %v2209
      %2227 = vmatprep.subr.bf16.mxu0 0
      %2228 = vmatpush1.bf16.msra.mxu0 %v2211
      %2229 = vmatprep.subr.bf16.mxu0 0
      %2230 = vmatpush1.bf16.msra.mxu0 %v2212
      %2231 = vmatprep.subr.bf16.mxu0 0
      %2232 = vmatpush1.bf16.msra.mxu0 %v2213
      %2233 = vmatprep.subr.bf16.mxu0 0
      %2234 = vmatpush1.bf16.msra.mxu0 %v2214
      %2235 = vmatprep.subr.bf16.mxu0 0
      %2236 = vmatpush1.bf16.msra.mxu0 %v2215
      %2237 = vmatprep.subr.bf16.mxu0 0
      %2238 = vmatpush1.bf16.msra.mxu0 %v2216
      %2239 = vmatprep.subr.bf16.mxu0 0
      %2240 = vmatpush1.bf16.msra.mxu0 %v2217
      %2241 = vmatprep.subr.bf16.mxu0 0
      %2242 = vmatpush1.bf16.msra.mxu0 %v2218
      %2243 = vmatprep.subr.bf16.mxu0 0
      %2244 = vmatpush1.bf16.msra.mxu0 0
      %2245 = vmatprep.subr.bf16.mxu0 0
      %2246 = vmatpush1.bf16.msra.mxu0 0
      %2247 = vmatprep.subr.bf16.mxu0 0
      %2248 = vmatpush1.bf16.msra.mxu0 0
      %2249 = vmatprep.subr.bf16.mxu0 0
      %2250 = vmatpush1.bf16.msra.mxu0 0
      %2251 = vmatprep.subr.bf16.mxu0 0
      %2252 = vmatpush1.bf16.msra.mxu0 0
      %2253 = vmatprep.subr.bf16.mxu0 0
      %2254 = vmatpush1.bf16.msra.mxu0 0
      %2255 = vmatprep.subr.bf16.mxu0 0
      %2256 = vmatpush1.bf16.msra.mxu0 0
      %2257 = vmatprep.subr.bf16.mxu0 0
      %2258 = vmatpush1.bf16.msra.mxu0 0
      %2259 = vmatprep.mubr.bf16.mxu0 0
      %2260 = vmatmul.mubr.bf16.gmra.mrb[0].mxu0 %v1902
      %v2261 = vpop.f32.mrb[0].mxu0
      %v2262 = vadd.f32 %v2109, %v2261
      %v2263 = vpop.f32.mrb[0].mxu0
      %v2264 = vpop.f32.mrb[0].mxu0
      %v2265 = vadd.f32 %v2112, %v2264
      %v2266 = vpop.f32.mrb[0].mxu0
      %2267 = vmatprep.mubr.bf16.mxu0 0
      %2268 = vmatmul.mubr.bf16.gmra.mrb[0].mxu0 %v1903
      %v2269 = vpop.f32.mrb[0].mxu0
      %v2270 = vadd.f32 %v2117, %v2269
      %v2271 = vpop.f32.mrb[0].mxu0
      %v2272 = vpop.f32.mrb[0].mxu0
      %v2273 = vadd.f32 %v2120, %v2272
      %v2274 = vpop.f32.mrb[0].mxu0
      %2275 = vmatprep.mubr.bf16.mxu0 0
      %2276 = vmatmul.mubr.bf16.gmra.mrb[0].mxu0 %v1904
      %v2277 = vpop.f32.mrb[0].mxu0
      %v2278 = vadd.f32 %v2125, %v2277
      %v2279 = vpop.f32.mrb[0].mxu0
      %v2280 = vpop.f32.mrb[0].mxu0
      %v2281 = vadd.f32 %v2128, %v2280
      %v2282 = vpop.f32.mrb[0].mxu0
      %2283 = vmatprep.mubr.bf16.mxu0 0
      %2284 = vmatmul.mubr.bf16.gmra.mrb[0].mxu0 %v1905
      %v2285 = vpop.f32.mrb[0].mxu0
      %v2286 = vadd.f32 %v2133, %v2285
      %v2287 = vpop.f32.mrb[0].mxu0
      %v2288 = vpop.f32.mrb[0].mxu0
      %v2289 = vadd.f32 %v2136, %v2288
      %v2290 = vpop.f32.mrb[0].mxu0
      %2291 = vmatprep.mubr.bf16.mxu0 0
      %2292 = vmatmul.mubr.bf16.gmra.mrb[0].mxu0 %v1906
      %v2293 = vpop.f32.mrb[0].mxu0
      %v2294 = vadd.f32 %v2141, %v2293
      %v2295 = vpop.f32.mrb[0].mxu0
      %v2296 = vpop.f32.mrb[0].mxu0
      %v2297 = vadd.f32 %v2144, %v2296
      %v2298 = vpop.f32.mrb[0].mxu0
      %2299 = vmatprep.mubr.bf16.mxu0 0
      %2300 = vmatmul.mubr.bf16.gmra.mrb[0].mxu0 %v1907
      %v2301 = vpop.f32.mrb[0].mxu0
      %v2302 = vadd.f32 %v2149, %v2301
      %v2303 = vpop.f32.mrb[0].mxu0
      %v2304 = vpop.f32.mrb[0].mxu0
      %v2305 = vadd.f32 %v2152, %v2304
      %v2306 = vpop.f32.mrb[0].mxu0
      %2307 = vmatprep.mubr.bf16.mxu0 0
      %2308 = vmatmul.mubr.bf16.gmra.mrb[0].mxu0 %v1908
      %v2309 = vpop.f32.mrb[0].mxu0
      %v2310 = vadd.f32 %v2157, %v2309
      %v2311 = vpop.f32.mrb[0].mxu0
      %v2312 = vpop.f32.mrb[0].mxu0
      %v2313 = vadd.f32 %v2160, %v2312
      %v2314 = vpop.f32.mrb[0].mxu0
      %2315 = vmatprep.mubr.bf16.mxu0 0
      %2316 = vmatmul.mubr.bf16.gmra.mrb[0].mxu0 %v1909
      %v2317 = vpop.f32.mrb[0].mxu0
      %v2318 = vadd.f32 %v2165, %v2317
      %v2319 = vpop.f32.mrb[0].mxu0
      %v2320 = vpop.f32.mrb[0].mxu0
      %v2321 = vadd.f32 %v2168, %v2320
      %v2322 = vpop.f32.mrb[0].mxu0
      %2323 = vmatprep.mubr.bf16.mxu0 0
      %2324 = vmatmul.mubr.bf16.gmra.mrb[0].mxu0 %v1910
      %v2325 = vpop.f32.mrb[0].mxu0
      %v2326 = vadd.f32 %v2173, %v2325
      %v2327 = vpop.f32.mrb[0].mxu0
      %v2328 = vpop.f32.mrb[0].mxu0
      %v2329 = vadd.f32 %v2176, %v2328
      %v2330 = vpop.f32.mrb[0].mxu0
      %2331 = vdwg.mxu0
      %s2332 = scalar_lea.vmem %s4, 128
      %v2333 = vld [vmem:[%s2332] sm:$0xf]
      %v2334 = vld [vmem:[%s2332 + $0x4] sm:$0xf]
      %v2335 = vld [vmem:[%s2332 + $0x8] sm:$0xf]
      %v2336 = vld [vmem:[%s2332 + $0xc] sm:$0xf]
      %v2337 = vld [vmem:[%s2332 + $0x10] sm:$0xf]
      %v2338 = vld [vmem:[%s2332 + $0x14] sm:$0xf]
      %v2339 = vld [vmem:[%s2332 + $0x18] sm:$0xf]
      %v2340 = vld [vmem:[%s2332 + $0x1c] sm:$0xf]
      %v2341 = vld [vmem:[%s2332 + $0x20] sm:$0xf]
      %v2342 = vld [vmem:[%s2332 + $0x24] sm:$0xf]
      %v2343 = vld [vmem:[%s2332 + $0x28] sm:$0xf]
      %v2344 = vld [vmem:[%s2332 + $0x2c] sm:$0xf]
      %v2345 = vld [vmem:[%s2332 + $0x30] sm:$0xf]
      %v2346 = vld [vmem:[%s2332 + $0x34] sm:$0xf]
      %v2347 = vld [vmem:[%s2332 + $0x38] sm:$0xf]
      %v2348 = vld [vmem:[%s2332 + $0x3c] sm:$0xf]
      %v2359 = vrot.slane %v1902, 1
      %v2360 = vrot.slane %v1903, 1
      %v2361 = vsel %vm1331, %v2359, %v2360
      %v2362 = vrot.slane %v1904, 1
      %v2363 = vsel %vm1331, %v2360, %v2362
      %v2364 = vrot.slane %v1905, 1
      %v2365 = vsel %vm1331, %v2362, %v2364
      %v2366 = vrot.slane %v1906, 1
      %v2367 = vsel %vm1331, %v2364, %v2366
      %v2368 = vrot.slane %v1907, 1
      %v2369 = vsel %vm1331, %v2366, %v2368
      %v2370 = vrot.slane %v1908, 1
      %v2371 = vsel %vm1331, %v2368, %v2370
      %v2372 = vrot.slane %v1909, 1
      %v2373 = vsel %vm1331, %v2370, %v2372
      %v2374 = vrot.slane %v1910, 1
      %v2375 = vsel %vm1331, %v2372, %v2374
      %v2376 = vrot.slane %v1911, 1
      %v2377 = vsel %vm1331, %v2374, %v2376
      %v2403 = vunpack.c.l.b16 %v2333
      %v2404 = vunpack.c.l.b16 %v2334
      %v2405 = vunpack.c.l.b16 %v2335
      %v2406 = vunpack.c.l.b16 %v2336
      %v2407 = vunpack.c.l.b16 %v2337
      %v2408 = vunpack.c.l.b16 %v2338
      %v2409 = vunpack.c.l.b16 %v2339
      %v2410 = vunpack.c.l.b16 %v2340
      %v2411 = vunpack.c.l.b16 %v2341
      %v2412 = vunpack.c.l.b16 %v2342
      %v2413 = vunpack.c.l.b16 %v2343
      %v2414 = vunpack.c.l.b16 %v2344
      %v2415 = vunpack.c.l.b16 %v2345
      %v2416 = vunpack.c.l.b16 %v2346
      %v2417 = vunpack.c.l.b16 %v2347
      %v2418 = vunpack.c.l.b16 %v2348
      %v2419 = vpack.c.b16 %v2404, %v2403
      %v2420 = vpack.c.b16 %v2406, %v2405
      %v2421 = vpack.c.b16 %v2408, %v2407
      %v2422 = vpack.c.b16 %v2410, %v2409
      %v2423 = vpack.c.b16 %v2412, %v2411
      %v2424 = vpack.c.b16 %v2414, %v2413
      %v2425 = vpack.c.b16 %v2416, %v2415
      %v2426 = vpack.c.b16 %v2418, %v2417
      %2435 = vmatprep.subr.bf16.mxu0 0
      %2436 = vmatpush1.bf16.msra.mxu0 %v2419
      %2437 = vmatprep.subr.bf16.mxu0 0
      %2438 = vmatpush1.bf16.msra.mxu0 %v2420
      %2439 = vmatprep.subr.bf16.mxu0 0
      %2440 = vmatpush1.bf16.msra.mxu0 %v2421
      %2441 = vmatprep.subr.bf16.mxu0 0
      %2442 = vmatpush1.bf16.msra.mxu0 %v2422
      %2443 = vmatprep.subr.bf16.mxu0 0
      %2444 = vmatpush1.bf16.msra.mxu0 %v2423
      %2445 = vmatprep.subr.bf16.mxu0 0
      %2446 = vmatpush1.bf16.msra.mxu0 %v2424
      %2447 = vmatprep.subr.bf16.mxu0 0
      %2448 = vmatpush1.bf16.msra.mxu0 %v2425
      %2449 = vmatprep.subr.bf16.mxu0 0
      %2450 = vmatpush1.bf16.msra.mxu0 %v2426
      %2451 = vmatprep.subr.bf16.mxu0 0
      %2452 = vmatpush1.bf16.msra.mxu0 0
      %2453 = vmatprep.subr.bf16.mxu0 0
      %2454 = vmatpush1.bf16.msra.mxu0 0
      %2455 = vmatprep.subr.bf16.mxu0 0
      %2456 = vmatpush1.bf16.msra.mxu0 0
      %2457 = vmatprep.subr.bf16.mxu0 0
      %2458 = vmatpush1.bf16.msra.mxu0 0
      %2459 = vmatprep.subr.bf16.mxu0 0
      %2460 = vmatpush1.bf16.msra.mxu0 0
      %2461 = vmatprep.subr.bf16.mxu0 0
      %2462 = vmatpush1.bf16.msra.mxu0 0
      %2463 = vmatprep.subr.bf16.mxu0 0
      %2464 = vmatpush1.bf16.msra.mxu0 0
      %2465 = vmatprep.subr.bf16.mxu0 0
      %2466 = vmatpush1.bf16.msra.mxu0 0
      %2467 = vmatprep.mubr.bf16.mxu0 0
      %2468 = vmatmul.mubr.bf16.gmra.mrb[0].mxu0 %v2361
      %v2469 = vpop.f32.mrb[0].mxu0
      %v2470 = vadd.f32 0.0, %v2469
      %v2471 = vpop.f32.mrb[0].mxu0
      %v2472 = vpop.f32.mrb[0].mxu0
      %v2473 = vadd.f32 0.0, %v2472
      %v2474 = vpop.f32.mrb[0].mxu0
      %2475 = vmatprep.mubr.bf16.mxu0 0
      %2476 = vmatmul.mubr.bf16.gmra.mrb[0].mxu0 %v2363
      %v2477 = vpop.f32.mrb[0].mxu0
      %v2478 = vadd.f32 0.0, %v2477
      %v2479 = vpop.f32.mrb[0].mxu0
      %v2480 = vpop.f32.mrb[0].mxu0
      %v2481 = vadd.f32 0.0, %v2480
      %v2482 = vpop.f32.mrb[0].mxu0
      %2483 = vmatprep.mubr.bf16.mxu0 0
      %2484 = vmatmul.mubr.bf16.gmra.mrb[0].mxu0 %v2365
      %v2485 = vpop.f32.mrb[0].mxu0
      %v2486 = vadd.f32 0.0, %v2485
      %v2487 = vpop.f32.mrb[0].mxu0
      %v2488 = vpop.f32.mrb[0].mxu0
      %v2489 = vadd.f32 0.0, %v2488
      %v2490 = vpop.f32.mrb[0].mxu0
      %2491 = vmatprep.mubr.bf16.mxu0 0
      %2492 = vmatmul.mubr.bf16.gmra.mrb[0].mxu0 %v2367
      %v2493 = vpop.f32.mrb[0].mxu0
      %v2494 = vadd.f32 0.0, %v2493
      %v2495 = vpop.f32.mrb[0].mxu0
      %v2496 = vpop.f32.mrb[0].mxu0
      %v2497 = vadd.f32 0.0, %v2496
      %v2498 = vpop.f32.mrb[0].mxu0
      %2499 = vmatprep.mubr.bf16.mxu0 0
      %2500 = vmatmul.mubr.bf16.gmra.mrb[0].mxu0 %v2369
      %v2501 = vpop.f32.mrb[0].mxu0
      %v2502 = vadd.f32 0.0, %v2501
      %v2503 = vpop.f32.mrb[0].mxu0
      %v2504 = vpop.f32.mrb[0].mxu0
      %v2505 = vadd.f32 0.0, %v2504
      %v2506 = vpop.f32.mrb[0].mxu0
      %2507 = vmatprep.mubr.bf16.mxu0 0
      %2508 = vmatmul.mubr.bf16.gmra.mrb[0].mxu0 %v2371
      %v2509 = vpop.f32.mrb[0].mxu0
      %v2510 = vadd.f32 0.0, %v2509
      %v2511 = vpop.f32.mrb[0].mxu0
      %v2512 = vpop.f32.mrb[0].mxu0
      %v2513 = vadd.f32 0.0, %v2512
      %v2514 = vpop.f32.mrb[0].mxu0
      %2515 = vmatprep.mubr.bf16.mxu0 0
      %2516 = vmatmul.mubr.bf16.gmra.mrb[0].mxu0 %v2373
      %v2517 = vpop.f32.mrb[0].mxu0
      %v2518 = vadd.f32 0.0, %v2517
      %v2519 = vpop.f32.mrb[0].mxu0
      %v2520 = vpop.f32.mrb[0].mxu0
      %v2521 = vadd.f32 0.0, %v2520
      %v2522 = vpop.f32.mrb[0].mxu0
      %2523 = vmatprep.mubr.bf16.mxu0 0
      %2524 = vmatmul.mubr.bf16.gmra.mrb[0].mxu0 %v2375
      %v2525 = vpop.f32.mrb[0].mxu0
      %v2526 = vadd.f32 0.0, %v2525
      %v2527 = vpop.f32.mrb[0].mxu0
      %v2528 = vpop.f32.mrb[0].mxu0
      %v2529 = vadd.f32 0.0, %v2528
      %v2530 = vpop.f32.mrb[0].mxu0
      %2531 = vmatprep.mubr.bf16.mxu0 0
      %2532 = vmatmul.mubr.bf16.gmra.mrb[0].mxu0 %v2377
      %v2533 = vpop.f32.mrb[0].mxu0
      %v2534 = vadd.f32 0.0, %v2533
      %v2535 = vpop.f32.mrb[0].mxu0
      %v2536 = vpop.f32.mrb[0].mxu0
      %v2537 = vadd.f32 0.0, %v2536
      %v2538 = vpop.f32.mrb[0].mxu0
      %2539 = vdwg.mxu0
      %v2540 = vadd.f32 %v2262, %v2470
      %v2541 = vadd.f32 %v2265, %v2473
      %v2542 = vadd.f32 %v2270, %v2478
      %v2543 = vadd.f32 %v2273, %v2481
      %v2544 = vadd.f32 %v2278, %v2486
      %v2545 = vadd.f32 %v2281, %v2489
      %v2546 = vadd.f32 %v2286, %v2494
      %v2547 = vadd.f32 %v2289, %v2497
      %v2548 = vadd.f32 %v2294, %v2502
      %v2549 = vadd.f32 %v2297, %v2505
      %v2550 = vadd.f32 %v2302, %v2510
      %v2551 = vadd.f32 %v2305, %v2513
      %v2552 = vadd.f32 %v2310, %v2518
      %v2553 = vadd.f32 %v2313, %v2521
      %v2554 = vadd.f32 %v2318, %v2526
      %v2555 = vadd.f32 %v2321, %v2529
      %v2556 = vadd.f32 %v2326, %v2534
      %v2557 = vadd.f32 %v2329, %v2537
      %s2558 = scalar_lea.vmem %s4, 192
      %v2559 = vld [vmem:[%s2558] sm:$0xf]
      %v2560 = vld [vmem:[%s2558 + $0x4] sm:$0xf]
      %v2561 = vld [vmem:[%s2558 + $0x8] sm:$0xf]
      %v2562 = vld [vmem:[%s2558 + $0xc] sm:$0xf]
      %v2563 = vld [vmem:[%s2558 + $0x10] sm:$0xf]
      %v2564 = vld [vmem:[%s2558 + $0x14] sm:$0xf]
      %v2565 = vld [vmem:[%s2558 + $0x18] sm:$0xf]
      %v2566 = vld [vmem:[%s2558 + $0x1c] sm:$0xf]
      %v2567 = vld [vmem:[%s2558 + $0x20] sm:$0xf]
      %v2568 = vld [vmem:[%s2558 + $0x24] sm:$0xf]
      %v2569 = vld [vmem:[%s2558 + $0x28] sm:$0xf]
      %v2570 = vld [vmem:[%s2558 + $0x2c] sm:$0xf]
      %v2571 = vld [vmem:[%s2558 + $0x30] sm:$0xf]
      %v2572 = vld [vmem:[%s2558 + $0x34] sm:$0xf]
      %v2573 = vld [vmem:[%s2558 + $0x38] sm:$0xf]
      %v2574 = vld [vmem:[%s2558 + $0x3c] sm:$0xf]
      %vm2575 = vsmask.f32 1280
      %v2576 = vrot.slane %v1947, 6
      %v2577 = vrot.slane %v1949, 7
      %v2578 = vor.u32 %v2576, %v2577
      %v2579 = vrot.slane %v1958, 6
      %v2580 = vrot.slane %v1954, 7
      %v2581 = vor.u32 %v2579, %v2580
      %v2582 = vsel %vm2575, %v2578, %v2581
      %v2583 = vrot.slane %v1966, 6
      %v2584 = vrot.slane %v1962, 7
      %v2585 = vor.u32 %v2583, %v2584
      %v2586 = vsel %vm2575, %v2581, %v2585
      %v2587 = vrot.slane %v1974, 6
      %v2588 = vrot.slane %v1970, 7
      %v2589 = vor.u32 %v2587, %v2588
      %v2590 = vsel %vm2575, %v2585, %v2589
      %v2591 = vrot.slane %v1982, 6
      %v2592 = vrot.slane %v1978, 7
      %v2593 = vor.u32 %v2591, %v2592
      %v2594 = vsel %vm2575, %v2589, %v2593
      %v2595 = vrot.slane %v1990, 6
      %v2596 = vrot.slane %v1986, 7
      %v2597 = vor.u32 %v2595, %v2596
      %v2598 = vsel %vm2575, %v2593, %v2597
      %v2599 = vrot.slane %v1998, 6
      %v2600 = vrot.slane %v1994, 7
      %v2601 = vor.u32 %v2599, %v2600
      %v2602 = vsel %vm2575, %v2597, %v2601
      %v2603 = vrot.slane %v2006, 6
      %v2604 = vrot.slane %v2002, 7
      %v2605 = vor.u32 %v2603, %v2604
      %v2606 = vsel %vm2575, %v2601, %v2605
      %v2607 = vrot.slane %v2014, 6
      %v2608 = vrot.slane %v2010, 7
      %v2609 = vor.u32 %v2607, %v2608
      %v2610 = vsel %vm2575, %v2605, %v2609
      %v2612 = vshrl.u32 %v1911, 16
      %v2614 = vrot.slane %v2612, 6
      %v2615 = vshll.u32 %v1911, 16
      %v2617 = vrot.slane %v2615, 7
      %v2618 = vor.u32 %v2614, %v2617
      %v2619 = vsel %vm2575, %v2609, %v2618
      %v2645 = vunpack.c.l.b16 %v2559
      %v2646 = vunpack.c.l.b16 %v2560
      %v2647 = vunpack.c.l.b16 %v2561
      %v2648 = vunpack.c.l.b16 %v2562
      %v2649 = vunpack.c.l.b16 %v2563
      %v2650 = vunpack.c.l.b16 %v2564
      %v2651 = vunpack.c.l.b16 %v2565
      %v2652 = vunpack.c.l.b16 %v2566
      %v2653 = vunpack.c.l.b16 %v2567
      %v2654 = vunpack.c.l.b16 %v2568
      %v2655 = vunpack.c.l.b16 %v2569
      %v2656 = vunpack.c.l.b16 %v2570
      %v2657 = vunpack.c.l.b16 %v2571
      %v2658 = vunpack.c.l.b16 %v2572
      %v2659 = vunpack.c.l.b16 %v2573
      %v2660 = vunpack.c.l.b16 %v2574
      %v2661 = vpack.c.b16 %v2646, %v2645
      %v2662 = vpack.c.b16 %v2648, %v2647
      %v2663 = vpack.c.b16 %v2650, %v2649
      %v2664 = vpack.c.b16 %v2652, %v2651
      %v2665 = vpack.c.b16 %v2654, %v2653
      %v2666 = vpack.c.b16 %v2656, %v2655
      %v2667 = vpack.c.b16 %v2658, %v2657
      %v2668 = vpack.c.b16 %v2660, %v2659
      %2677 = vmatprep.subr.bf16.mxu0 0
      %2678 = vmatpush1.bf16.msra.mxu0 %v2661
      %2679 = vmatprep.subr.bf16.mxu0 0
      %2680 = vmatpush1.bf16.msra.mxu0 %v2662
      %2681 = vmatprep.subr.bf16.mxu0 0
      %2682 = vmatpush1.bf16.msra.mxu0 %v2663
      %2683 = vmatprep.subr.bf16.mxu0 0
      %2684 = vmatpush1.bf16.msra.mxu0 %v2664
      %2685 = vmatprep.subr.bf16.mxu0 0
      %2686 = vmatpush1.bf16.msra.mxu0 %v2665
      %2687 = vmatprep.subr.bf16.mxu0 0
      %2688 = vmatpush1.bf16.msra.mxu0 %v2666
      %2689 = vmatprep.subr.bf16.mxu0 0
      %2690 = vmatpush1.bf16.msra.mxu0 %v2667
      %2691 = vmatprep.subr.bf16.mxu0 0
      %2692 = vmatpush1.bf16.msra.mxu0 %v2668
      %2693 = vmatprep.subr.bf16.mxu0 0
      %2694 = vmatpush1.bf16.msra.mxu0 0
      %2695 = vmatprep.subr.bf16.mxu0 0
      %2696 = vmatpush1.bf16.msra.mxu0 0
      %2697 = vmatprep.subr.bf16.mxu0 0
      %2698 = vmatpush1.bf16.msra.mxu0 0
      %2699 = vmatprep.subr.bf16.mxu0 0
      %2700 = vmatpush1.bf16.msra.mxu0 0
      %2701 = vmatprep.subr.bf16.mxu0 0
      %2702 = vmatpush1.bf16.msra.mxu0 0
      %2703 = vmatprep.subr.bf16.mxu0 0
      %2704 = vmatpush1.bf16.msra.mxu0 0
      %2705 = vmatprep.subr.bf16.mxu0 0
      %2706 = vmatpush1.bf16.msra.mxu0 0
      %2707 = vmatprep.subr.bf16.mxu0 0
      %2708 = vmatpush1.bf16.msra.mxu0 0
      %2709 = vmatprep.mubr.bf16.mxu0 0
      %2710 = vmatmul.mubr.bf16.gmra.mrb[0].mxu0 %v2582
      %v2711 = vpop.f32.mrb[0].mxu0
      %v2712 = vadd.f32 0.0, %v2711
      %v2713 = vpop.f32.mrb[0].mxu0
      %v2714 = vpop.f32.mrb[0].mxu0
      %v2715 = vadd.f32 0.0, %v2714
      %v2716 = vpop.f32.mrb[0].mxu0
      %2717 = vmatprep.mubr.bf16.mxu0 0
      %2718 = vmatmul.mubr.bf16.gmra.mrb[0].mxu0 %v2586
      %v2719 = vpop.f32.mrb[0].mxu0
      %v2720 = vadd.f32 0.0, %v2719
      %v2721 = vpop.f32.mrb[0].mxu0
      %v2722 = vpop.f32.mrb[0].mxu0
      %v2723 = vadd.f32 0.0, %v2722
      %v2724 = vpop.f32.mrb[0].mxu0
      %2725 = vmatprep.mubr.bf16.mxu0 0
      %2726 = vmatmul.mubr.bf16.gmra.mrb[0].mxu0 %v2590
      %v2727 = vpop.f32.mrb[0].mxu0
      %v2728 = vadd.f32 0.0, %v2727
      %v2729 = vpop.f32.mrb[0].mxu0
      %v2730 = vpop.f32.mrb[0].mxu0
      %v2731 = vadd.f32 0.0, %v2730
      %v2732 = vpop.f32.mrb[0].mxu0
      %2733 = vmatprep.mubr.bf16.mxu0 0
      %2734 = vmatmul.mubr.bf16.gmra.mrb[0].mxu0 %v2594
      %v2735 = vpop.f32.mrb[0].mxu0
      %v2736 = vadd.f32 0.0, %v2735
      %v2737 = vpop.f32.mrb[0].mxu0
      %v2738 = vpop.f32.mrb[0].mxu0
      %v2739 = vadd.f32 0.0, %v2738
      %v2740 = vpop.f32.mrb[0].mxu0
      %2741 = vmatprep.mubr.bf16.mxu0 0
      %2742 = vmatmul.mubr.bf16.gmra.mrb[0].mxu0 %v2598
      %v2743 = vpop.f32.mrb[0].mxu0
      %v2744 = vadd.f32 0.0, %v2743
      %v2745 = vpop.f32.mrb[0].mxu0
      %v2746 = vpop.f32.mrb[0].mxu0
      %v2747 = vadd.f32 0.0, %v2746
      %v2748 = vpop.f32.mrb[0].mxu0
      %2749 = vmatprep.mubr.bf16.mxu0 0
      %2750 = vmatmul.mubr.bf16.gmra.mrb[0].mxu0 %v2602
      %v2751 = vpop.f32.mrb[0].mxu0
      %v2752 = vadd.f32 0.0, %v2751
      %v2753 = vpop.f32.mrb[0].mxu0
      %v2754 = vpop.f32.mrb[0].mxu0
      %v2755 = vadd.f32 0.0, %v2754
      %v2756 = vpop.f32.mrb[0].mxu0
      %2757 = vmatprep.mubr.bf16.mxu0 0
      %2758 = vmatmul.mubr.bf16.gmra.mrb[0].mxu0 %v2606
      %v2759 = vpop.f32.mrb[0].mxu0
      %v2760 = vadd.f32 0.0, %v2759
      %v2761 = vpop.f32.mrb[0].mxu0
      %v2762 = vpop.f32.mrb[0].mxu0
      %v2763 = vadd.f32 0.0, %v2762
      %v2764 = vpop.f32.mrb[0].mxu0
      %2765 = vmatprep.mubr.bf16.mxu0 0
      %2766 = vmatmul.mubr.bf16.gmra.mrb[0].mxu0 %v2610
      %v2767 = vpop.f32.mrb[0].mxu0
      %v2768 = vadd.f32 0.0, %v2767
      %v2769 = vpop.f32.mrb[0].mxu0
      %v2770 = vpop.f32.mrb[0].mxu0
      %v2771 = vadd.f32 0.0, %v2770
      %v2772 = vpop.f32.mrb[0].mxu0
      %2773 = vmatprep.mubr.bf16.mxu0 0
      %2774 = vmatmul.mubr.bf16.gmra.mrb[0].mxu0 %v2619
      %v2775 = vpop.f32.mrb[0].mxu0
      %v2776 = vadd.f32 0.0, %v2775
      %v2777 = vpop.f32.mrb[0].mxu0
      %v2778 = vpop.f32.mrb[0].mxu0
      %v2779 = vadd.f32 0.0, %v2778
      %v2780 = vpop.f32.mrb[0].mxu0
      %2781 = vdwg.mxu0
      %v2782 = vadd.f32 %v2540, %v2712
      %v2783 = vadd.f32 %v2541, %v2715
      %v2784 = vadd.f32 %v2542, %v2720
      %v2785 = vadd.f32 %v2543, %v2723
      %v2786 = vadd.f32 %v2544, %v2728
      %v2787 = vadd.f32 %v2545, %v2731
      %v2788 = vadd.f32 %v2546, %v2736
      %v2789 = vadd.f32 %v2547, %v2739
      %v2790 = vadd.f32 %v2548, %v2744
      %v2791 = vadd.f32 %v2549, %v2747
      %v2792 = vadd.f32 %v2550, %v2752
      %v2793 = vadd.f32 %v2551, %v2755
      %v2794 = vadd.f32 %v2552, %v2760
      %v2795 = vadd.f32 %v2553, %v2763
      %v2796 = vadd.f32 %v2554, %v2768
      %v2797 = vadd.f32 %v2555, %v2771
      %v2798 = vadd.f32 %v2556, %v2776
      %v2799 = vadd.f32 %v2557, %v2779
      %s2800 = scalar_lea.vmem %s4, 256
      %v2801 = vld [vmem:[%s2800] sm:$0xf]
      %v2802 = vld [vmem:[%s2800 + $0x4] sm:$0xf]
      %v2803 = vld [vmem:[%s2800 + $0x8] sm:$0xf]
      %v2804 = vld [vmem:[%s2800 + $0xc] sm:$0xf]
      %v2805 = vld [vmem:[%s2800 + $0x10] sm:$0xf]
      %v2806 = vld [vmem:[%s2800 + $0x14] sm:$0xf]
      %v2807 = vld [vmem:[%s2800 + $0x18] sm:$0xf]
      %v2808 = vld [vmem:[%s2800 + $0x1c] sm:$0xf]
      %v2809 = vld [vmem:[%s2800 + $0x20] sm:$0xf]
      %v2810 = vld [vmem:[%s2800 + $0x24] sm:$0xf]
      %v2811 = vld [vmem:[%s2800 + $0x28] sm:$0xf]
      %v2812 = vld [vmem:[%s2800 + $0x2c] sm:$0xf]
      %v2813 = vld [vmem:[%s2800 + $0x30] sm:$0xf]
      %v2814 = vld [vmem:[%s2800 + $0x34] sm:$0xf]
      %v2815 = vld [vmem:[%s2800 + $0x38] sm:$0xf]
      %v2816 = vld [vmem:[%s2800 + $0x3c] sm:$0xf]
      %vm2817 = vcmask 1040384
      %v2818 = vrot.slane %v1902, 7
      %v2819 = vrot.slane %v1903, 7
      %v2820 = vsel %vm2817, %v2818, %v2819
      %v2821 = vrot.slane %v1904, 7
      %v2822 = vsel %vm2817, %v2819, %v2821
      %v2823 = vrot.slane %v1905, 7
      %v2824 = vsel %vm2817, %v2821, %v2823
      %v2825 = vrot.slane %v1906, 7
      %v2826 = vsel %vm2817, %v2823, %v2825
      %v2827 = vrot.slane %v1907, 7
      %v2828 = vsel %vm2817, %v2825, %v2827
      %v2829 = vrot.slane %v1908, 7
      %v2830 = vsel %vm2817, %v2827, %v2829
      %v2831 = vrot.slane %v1909, 7
      %v2832 = vsel %vm2817, %v2829, %v2831
      %v2833 = vrot.slane %v1910, 7
      %v2834 = vsel %vm2817, %v2831, %v2833
      %v2835 = vrot.slane %v1911, 7
      %v2836 = vsel %vm2817, %v2833, %v2835
      %v2862 = vunpack.c.l.b16 %v2801
      %v2863 = vunpack.c.l.b16 %v2802
      %v2864 = vunpack.c.l.b16 %v2803
      %v2865 = vunpack.c.l.b16 %v2804
      %v2866 = vunpack.c.l.b16 %v2805
      %v2867 = vunpack.c.l.b16 %v2806
      %v2868 = vunpack.c.l.b16 %v2807
      %v2869 = vunpack.c.l.b16 %v2808
      %v2870 = vunpack.c.l.b16 %v2809
      %v2871 = vunpack.c.l.b16 %v2810
      %v2872 = vunpack.c.l.b16 %v2811
      %v2873 = vunpack.c.l.b16 %v2812
      %v2874 = vunpack.c.l.b16 %v2813
      %v2875 = vunpack.c.l.b16 %v2814
      %v2876 = vunpack.c.l.b16 %v2815
      %v2877 = vunpack.c.l.b16 %v2816
      %v2878 = vpack.c.b16 %v2863, %v2862
      %v2879 = vpack.c.b16 %v2865, %v2864
      %v2880 = vpack.c.b16 %v2867, %v2866
      %v2881 = vpack.c.b16 %v2869, %v2868
      %v2882 = vpack.c.b16 %v2871, %v2870
      %v2883 = vpack.c.b16 %v2873, %v2872
      %v2884 = vpack.c.b16 %v2875, %v2874
      %v2885 = vpack.c.b16 %v2877, %v2876
      %2894 = vmatprep.subr.bf16.mxu0 0
      %2895 = vmatpush1.bf16.msra.mxu0 %v2878
      %2896 = vmatprep.subr.bf16.mxu0 0
      %2897 = vmatpush1.bf16.msra.mxu0 %v2879
      %2898 = vmatprep.subr.bf16.mxu0 0
      %2899 = vmatpush1.bf16.msra.mxu0 %v2880
      %2900 = vmatprep.subr.bf16.mxu0 0
      %2901 = vmatpush1.bf16.msra.mxu0 %v2881
      %2902 = vmatprep.subr.bf16.mxu0 0
      %2903 = vmatpush1.bf16.msra.mxu0 %v2882
      %2904 = vmatprep.subr.bf16.mxu0 0
      %2905 = vmatpush1.bf16.msra.mxu0 %v2883
      %2906 = vmatprep.subr.bf16.mxu0 0
      %2907 = vmatpush1.bf16.msra.mxu0 %v2884
      %2908 = vmatprep.subr.bf16.mxu0 0
      %2909 = vmatpush1.bf16.msra.mxu0 %v2885
      %2910 = vmatprep.subr.bf16.mxu0 0
      %2911 = vmatpush1.bf16.msra.mxu0 0
      %2912 = vmatprep.subr.bf16.mxu0 0
      %2913 = vmatpush1.bf16.msra.mxu0 0
      %2914 = vmatprep.subr.bf16.mxu0 0
      %2915 = vmatpush1.bf16.msra.mxu0 0
      %2916 = vmatprep.subr.bf16.mxu0 0
      %2917 = vmatpush1.bf16.msra.mxu0 0
      %2918 = vmatprep.subr.bf16.mxu0 0
      %2919 = vmatpush1.bf16.msra.mxu0 0
      %2920 = vmatprep.subr.bf16.mxu0 0
      %2921 = vmatpush1.bf16.msra.mxu0 0
      %2922 = vmatprep.subr.bf16.mxu0 0
      %2923 = vmatpush1.bf16.msra.mxu0 0
      %2924 = vmatprep.subr.bf16.mxu0 0
      %2925 = vmatpush1.bf16.msra.mxu0 0
      %2926 = vmatprep.mubr.bf16.mxu0 0
      %2927 = vmatmul.mubr.bf16.gmra.mrb[0].mxu0 %v2820
      %v2928 = vpop.f32.mrb[0].mxu0
      %v2929 = vadd.f32 0.0, %v2928
      %v2930 = vpop.f32.mrb[0].mxu0
      %v2931 = vpop.f32.mrb[0].mxu0
      %v2932 = vadd.f32 0.0, %v2931
      %v2933 = vpop.f32.mrb[0].mxu0
      %2934 = vmatprep.mubr.bf16.mxu0 0
      %2935 = vmatmul.mubr.bf16.gmra.mrb[0].mxu0 %v2822
      %v2936 = vpop.f32.mrb[0].mxu0
      %v2937 = vadd.f32 0.0, %v2936
      %v2938 = vpop.f32.mrb[0].mxu0
      %v2939 = vpop.f32.mrb[0].mxu0
      %v2940 = vadd.f32 0.0, %v2939
      %v2941 = vpop.f32.mrb[0].mxu0
      %2942 = vmatprep.mubr.bf16.mxu0 0
      %2943 = vmatmul.mubr.bf16.gmra.mrb[0].mxu0 %v2824
      %v2944 = vpop.f32.mrb[0].mxu0
      %v2945 = vadd.f32 0.0, %v2944
      %v2946 = vpop.f32.mrb[0].mxu0
      %v2947 = vpop.f32.mrb[0].mxu0
      %v2948 = vadd.f32 0.0, %v2947
      %v2949 = vpop.f32.mrb[0].mxu0
      %2950 = vmatprep.mubr.bf16.mxu0 0
      %2951 = vmatmul.mubr.bf16.gmra.mrb[0].mxu0 %v2826
      %v2952 = vpop.f32.mrb[0].mxu0
      %v2953 = vadd.f32 0.0, %v2952
      %v2954 = vpop.f32.mrb[0].mxu0
      %v2955 = vpop.f32.mrb[0].mxu0
      %v2956 = vadd.f32 0.0, %v2955
      %v2957 = vpop.f32.mrb[0].mxu0
      %2958 = vmatprep.mubr.bf16.mxu0 0
      %2959 = vmatmul.mubr.bf16.gmra.mrb[0].mxu0 %v2828
      %v2960 = vpop.f32.mrb[0].mxu0
      %v2961 = vadd.f32 0.0, %v2960
      %v2962 = vpop.f32.mrb[0].mxu0
      %v2963 = vpop.f32.mrb[0].mxu0
      %v2964 = vadd.f32 0.0, %v2963
      %v2965 = vpop.f32.mrb[0].mxu0
      %2966 = vmatprep.mubr.bf16.mxu0 0
      %2967 = vmatmul.mubr.bf16.gmra.mrb[0].mxu0 %v2830
      %v2968 = vpop.f32.mrb[0].mxu0
      %v2969 = vadd.f32 0.0, %v2968
      %v2970 = vpop.f32.mrb[0].mxu0
      %v2971 = vpop.f32.mrb[0].mxu0
      %v2972 = vadd.f32 0.0, %v2971
      %v2973 = vpop.f32.mrb[0].mxu0
      %2974 = vmatprep.mubr.bf16.mxu0 0
      %2975 = vmatmul.mubr.bf16.gmra.mrb[0].mxu0 %v2832
      %v2976 = vpop.f32.mrb[0].mxu0
      %v2977 = vadd.f32 0.0, %v2976
      %v2978 = vpop.f32.mrb[0].mxu0
      %v2979 = vpop.f32.mrb[0].mxu0
      %v2980 = vadd.f32 0.0, %v2979
      %v2981 = vpop.f32.mrb[0].mxu0
      %2982 = vmatprep.mubr.bf16.mxu0 0
      %2983 = vmatmul.mubr.bf16.gmra.mrb[0].mxu0 %v2834
      %v2984 = vpop.f32.mrb[0].mxu0
      %v2985 = vadd.f32 0.0, %v2984
      %v2986 = vpop.f32.mrb[0].mxu0
      %v2987 = vpop.f32.mrb[0].mxu0
      %v2988 = vadd.f32 0.0, %v2987
      %v2989 = vpop.f32.mrb[0].mxu0
      %2990 = vmatprep.mubr.bf16.mxu0 0
      %2991 = vmatmul.mubr.bf16.gmra.mrb[0].mxu0 %v2836
      %v2992 = vpop.f32.mrb[0].mxu0
      %v2993 = vadd.f32 0.0, %v2992
      %v2994 = vpop.f32.mrb[0].mxu0
      %v2995 = vpop.f32.mrb[0].mxu0
      %v2996 = vadd.f32 0.0, %v2995
      %v2997 = vpop.f32.mrb[0].mxu0
      %2998 = vdwg.mxu0
      %v2999 = vadd.f32 %v2782, %v2929
      %v3000 = vadd.f32 %v2783, %v2932
      %v3001 = vadd.f32 %v2784, %v2937
      %v3002 = vadd.f32 %v2785, %v2940
      %v3003 = vadd.f32 %v2786, %v2945
      %v3004 = vadd.f32 %v2787, %v2948
      %v3005 = vadd.f32 %v2788, %v2953
      %v3006 = vadd.f32 %v2789, %v2956
      %v3007 = vadd.f32 %v2790, %v2961
      %v3008 = vadd.f32 %v2791, %v2964
      %v3009 = vadd.f32 %v2792, %v2969
      %v3010 = vadd.f32 %v2793, %v2972
      %v3011 = vadd.f32 %v2794, %v2977
      %v3012 = vadd.f32 %v2795, %v2980
      %v3013 = vadd.f32 %v2796, %v2985
      %v3014 = vadd.f32 %v2797, %v2988
      %v3015 = vadd.f32 %v2798, %v2993
      %v3016 = vadd.f32 %v2799, %v2996
      %s3017 = scalar_lea.vmem %s4, 320
      %v3018 = vld [vmem:[%s3017] sm:$0xf]
      %v3019 = vld [vmem:[%s3017 + $0x4] sm:$0xf]
      %v3020 = vld [vmem:[%s3017 + $0x8] sm:$0xf]
      %v3021 = vld [vmem:[%s3017 + $0xc] sm:$0xf]
      %v3022 = vld [vmem:[%s3017 + $0x10] sm:$0xf]
      %v3023 = vld [vmem:[%s3017 + $0x14] sm:$0xf]
      %v3024 = vld [vmem:[%s3017 + $0x18] sm:$0xf]
      %v3025 = vld [vmem:[%s3017 + $0x1c] sm:$0xf]
      %v3026 = vld [vmem:[%s3017 + $0x20] sm:$0xf]
      %v3027 = vld [vmem:[%s3017 + $0x24] sm:$0xf]
      %v3028 = vld [vmem:[%s3017 + $0x28] sm:$0xf]
      %v3029 = vld [vmem:[%s3017 + $0x2c] sm:$0xf]
      %v3030 = vld [vmem:[%s3017 + $0x30] sm:$0xf]
      %v3031 = vld [vmem:[%s3017 + $0x34] sm:$0xf]
      %v3032 = vld [vmem:[%s3017 + $0x38] sm:$0xf]
      %v3033 = vld [vmem:[%s3017 + $0x3c] sm:$0xf]
      %vm3034 = vsmask.f32 256
      %v3035 = vrot.slane %v1947, 7
      %v3036 = vrot.slane %v1958, 7
      %v3037 = vor.u32 %v3036, %v1954
      %v3038 = vsel %vm3034, %v3035, %v3037
      %v3039 = vrot.slane %v1966, 7
      %v3040 = vor.u32 %v3039, %v1962
      %v3041 = vsel %vm3034, %v3036, %v3040
      %v3042 = vrot.slane %v1974, 7
      %v3043 = vor.u32 %v3042, %v1970
      %v3044 = vsel %vm3034, %v3039, %v3043
      %v3045 = vrot.slane %v1982, 7
      %v3046 = vor.u32 %v3045, %v1978
      %v3047 = vsel %vm3034, %v3042, %v3046
      %v3048 = vrot.slane %v1990, 7
      %v3049 = vor.u32 %v3048, %v1986
      %v3050 = vsel %vm3034, %v3045, %v3049
      %v3051 = vrot.slane %v1998, 7
      %v3052 = vor.u32 %v3051, %v1994
      %v3053 = vsel %vm3034, %v3048, %v3052
      %v3054 = vrot.slane %v2006, 7
      %v3055 = vor.u32 %v3054, %v2002
      %v3056 = vsel %vm3034, %v3051, %v3055
      %v3057 = vrot.slane %v2014, 7
      %v3058 = vor.u32 %v3057, %v2010
      %v3059 = vsel %vm3034, %v3054, %v3058
      %v3060 = vrot.slane %v2612, 7
      %v3061 = vor.u32 %v3060, %v2615
      %v3062 = vsel %vm3034, %v3057, %v3061
      %v3088 = vunpack.c.l.b16 %v3018
      %v3089 = vunpack.c.l.b16 %v3019
      %v3090 = vunpack.c.l.b16 %v3020
      %v3091 = vunpack.c.l.b16 %v3021
      %v3092 = vunpack.c.l.b16 %v3022
      %v3093 = vunpack.c.l.b16 %v3023
      %v3094 = vunpack.c.l.b16 %v3024
      %v3095 = vunpack.c.l.b16 %v3025
      %v3096 = vunpack.c.l.b16 %v3026
      %v3097 = vunpack.c.l.b16 %v3027
      %v3098 = vunpack.c.l.b16 %v3028
      %v3099 = vunpack.c.l.b16 %v3029
      %v3100 = vunpack.c.l.b16 %v3030
      %v3101 = vunpack.c.l.b16 %v3031
      %v3102 = vunpack.c.l.b16 %v3032
      %v3103 = vunpack.c.l.b16 %v3033
      %v3104 = vpack.c.b16 %v3089, %v3088
      %v3105 = vpack.c.b16 %v3091, %v3090
      %v3106 = vpack.c.b16 %v3093, %v3092
      %v3107 = vpack.c.b16 %v3095, %v3094
      %v3108 = vpack.c.b16 %v3097, %v3096
      %v3109 = vpack.c.b16 %v3099, %v3098
      %v3110 = vpack.c.b16 %v3101, %v3100
      %v3111 = vpack.c.b16 %v3103, %v3102
      %3120 = vmatprep.subr.bf16.mxu0 0
      %3121 = vmatpush1.bf16.msra.mxu0 %v3104
      %3122 = vmatprep.subr.bf16.mxu0 0
      %3123 = vmatpush1.bf16.msra.mxu0 %v3105
      %3124 = vmatprep.subr.bf16.mxu0 0
      %3125 = vmatpush1.bf16.msra.mxu0 %v3106
      %3126 = vmatprep.subr.bf16.mxu0 0
      %3127 = vmatpush1.bf16.msra.mxu0 %v3107
      %3128 = vmatprep.subr.bf16.mxu0 0
      %3129 = vmatpush1.bf16.msra.mxu0 %v3108
      %3130 = vmatprep.subr.bf16.mxu0 0
      %3131 = vmatpush1.bf16.msra.mxu0 %v3109
      %3132 = vmatprep.subr.bf16.mxu0 0
      %3133 = vmatpush1.bf16.msra.mxu0 %v3110
      %3134 = vmatprep.subr.bf16.mxu0 0
      %3135 = vmatpush1.bf16.msra.mxu0 %v3111
      %3136 = vmatprep.subr.bf16.mxu0 0
      %3137 = vmatpush1.bf16.msra.mxu0 0
      %3138 = vmatprep.subr.bf16.mxu0 0
      %3139 = vmatpush1.bf16.msra.mxu0 0
      %3140 = vmatprep.subr.bf16.mxu0 0
      %3141 = vmatpush1.bf16.msra.mxu0 0
      %3142 = vmatprep.subr.bf16.mxu0 0
      %3143 = vmatpush1.bf16.msra.mxu0 0
      %3144 = vmatprep.subr.bf16.mxu0 0
      %3145 = vmatpush1.bf16.msra.mxu0 0
      %3146 = vmatprep.subr.bf16.mxu0 0
      %3147 = vmatpush1.bf16.msra.mxu0 0
      %3148 = vmatprep.subr.bf16.mxu0 0
      %3149 = vmatpush1.bf16.msra.mxu0 0
      %3150 = vmatprep.subr.bf16.mxu0 0
      %3151 = vmatpush1.bf16.msra.mxu0 0
      %3152 = vmatprep.mubr.bf16.mxu0 0
      %3153 = vmatmul.mubr.bf16.gmra.mrb[0].mxu0 %v3038
      %v3154 = vpop.f32.mrb[0].mxu0
      %v3155 = vadd.f32 0.0, %v3154
      %v3156 = vpop.f32.mrb[0].mxu0
      %v3157 = vpop.f32.mrb[0].mxu0
      %v3158 = vadd.f32 0.0, %v3157
      %v3159 = vpop.f32.mrb[0].mxu0
      %3160 = vmatprep.mubr.bf16.mxu0 0
      %3161 = vmatmul.mubr.bf16.gmra.mrb[0].mxu0 %v3041
      %v3162 = vpop.f32.mrb[0].mxu0
      %v3163 = vadd.f32 0.0, %v3162
      %v3164 = vpop.f32.mrb[0].mxu0
      %v3165 = vpop.f32.mrb[0].mxu0
      %v3166 = vadd.f32 0.0, %v3165
      %v3167 = vpop.f32.mrb[0].mxu0
      %3168 = vmatprep.mubr.bf16.mxu0 0
      %3169 = vmatmul.mubr.bf16.gmra.mrb[0].mxu0 %v3044
      %v3170 = vpop.f32.mrb[0].mxu0
      %v3171 = vadd.f32 0.0, %v3170
      %v3172 = vpop.f32.mrb[0].mxu0
      %v3173 = vpop.f32.mrb[0].mxu0
      %v3174 = vadd.f32 0.0, %v3173
      %v3175 = vpop.f32.mrb[0].mxu0
      %3176 = vmatprep.mubr.bf16.mxu0 0
      %3177 = vmatmul.mubr.bf16.gmra.mrb[0].mxu0 %v3047
      %v3178 = vpop.f32.mrb[0].mxu0
      %v3179 = vadd.f32 0.0, %v3178
      %v3180 = vpop.f32.mrb[0].mxu0
      %v3181 = vpop.f32.mrb[0].mxu0
      %v3182 = vadd.f32 0.0, %v3181
      %v3183 = vpop.f32.mrb[0].mxu0
      %3184 = vmatprep.mubr.bf16.mxu0 0
      %3185 = vmatmul.mubr.bf16.gmra.mrb[0].mxu0 %v3050
      %v3186 = vpop.f32.mrb[0].mxu0
      %v3187 = vadd.f32 0.0, %v3186
      %v3188 = vpop.f32.mrb[0].mxu0
      %v3189 = vpop.f32.mrb[0].mxu0
      %v3190 = vadd.f32 0.0, %v3189
      %v3191 = vpop.f32.mrb[0].mxu0
      %3192 = vmatprep.mubr.bf16.mxu0 0
      %3193 = vmatmul.mubr.bf16.gmra.mrb[0].mxu0 %v3053
      %v3194 = vpop.f32.mrb[0].mxu0
      %v3195 = vadd.f32 0.0, %v3194
      %v3196 = vpop.f32.mrb[0].mxu0
      %v3197 = vpop.f32.mrb[0].mxu0
      %v3198 = vadd.f32 0.0, %v3197
      %v3199 = vpop.f32.mrb[0].mxu0
      %3200 = vmatprep.mubr.bf16.mxu0 0
      %3201 = vmatmul.mubr.bf16.gmra.mrb[0].mxu0 %v3056
      %v3202 = vpop.f32.mrb[0].mxu0
      %v3203 = vadd.f32 0.0, %v3202
      %v3204 = vpop.f32.mrb[0].mxu0
      %v3205 = vpop.f32.mrb[0].mxu0
      %v3206 = vadd.f32 0.0, %v3205
      %v3207 = vpop.f32.mrb[0].mxu0
      %3208 = vmatprep.mubr.bf16.mxu0 0
      %3209 = vmatmul.mubr.bf16.gmra.mrb[0].mxu0 %v3059
      %v3210 = vpop.f32.mrb[0].mxu0
      %v3211 = vadd.f32 0.0, %v3210
      %v3212 = vpop.f32.mrb[0].mxu0
      %v3213 = vpop.f32.mrb[0].mxu0
      %v3214 = vadd.f32 0.0, %v3213
      %v3215 = vpop.f32.mrb[0].mxu0
      %3216 = vmatprep.mubr.bf16.mxu0 0
      %3217 = vmatmul.mubr.bf16.gmra.mrb[0].mxu0 %v3062
      %v3218 = vpop.f32.mrb[0].mxu0
      %v3219 = vadd.f32 0.0, %v3218
      %v3220 = vpop.f32.mrb[0].mxu0
      %v3221 = vpop.f32.mrb[0].mxu0
      %v3222 = vadd.f32 0.0, %v3221
      %v3223 = vpop.f32.mrb[0].mxu0
      %3224 = vdwg.mxu0
      %v3225 = vadd.f32 %v2999, %v3155
      %v3226 = vadd.f32 %v3000, %v3158
      %v3227 = vadd.f32 %v3001, %v3163
      %v3228 = vadd.f32 %v3002, %v3166
      %v3229 = vadd.f32 %v3003, %v3171
      %v3230 = vadd.f32 %v3004, %v3174
      %v3231 = vadd.f32 %v3005, %v3179
      %v3232 = vadd.f32 %v3006, %v3182
      %v3233 = vadd.f32 %v3007, %v3187
      %v3234 = vadd.f32 %v3008, %v3190
      %v3235 = vadd.f32 %v3009, %v3195
      %v3236 = vadd.f32 %v3010, %v3198
      %v3237 = vadd.f32 %v3011, %v3203
      %v3238 = vadd.f32 %v3012, %v3206
      %v3239 = vadd.f32 %v3013, %v3211
      %v3240 = vadd.f32 %v3014, %v3214
      %v3241 = vadd.f32 %v3015, %v3219
      %v3242 = vadd.f32 %v3016, %v3222
      %s3243 = scalar_lea.vmem %s4, 384
      %v3244 = vld [vmem:[%s3243] sm:$0xf]
      %v3245 = vld [vmem:[%s3243 + $0x4] sm:$0xf]
      %v3246 = vld [vmem:[%s3243 + $0x8] sm:$0xf]
      %v3247 = vld [vmem:[%s3243 + $0xc] sm:$0xf]
      %v3248 = vld [vmem:[%s3243 + $0x10] sm:$0xf]
      %v3249 = vld [vmem:[%s3243 + $0x14] sm:$0xf]
      %v3250 = vld [vmem:[%s3243 + $0x18] sm:$0xf]
      %v3251 = vld [vmem:[%s3243 + $0x1c] sm:$0xf]
      %v3252 = vld [vmem:[%s3243 + $0x20] sm:$0xf]
      %v3253 = vld [vmem:[%s3243 + $0x24] sm:$0xf]
      %v3254 = vld [vmem:[%s3243 + $0x28] sm:$0xf]
      %v3255 = vld [vmem:[%s3243 + $0x2c] sm:$0xf]
      %v3256 = vld [vmem:[%s3243 + $0x30] sm:$0xf]
      %v3257 = vld [vmem:[%s3243 + $0x34] sm:$0xf]
      %v3258 = vld [vmem:[%s3243 + $0x38] sm:$0xf]
      %v3259 = vld [vmem:[%s3243 + $0x3c] sm:$0xf]
      %vm3261 = vcmask 1042432
      %v3262 = vrot.slane %v1903, 5
      %v3263 = vrot.slane %v1904, 5
      %v3264 = vsel %vm3261, %v3262, %v3263
      %v3265 = vrot.slane %v1905, 5
      %v3266 = vsel %vm3261, %v3263, %v3265
      %v3267 = vrot.slane %v1906, 5
      %v3268 = vsel %vm3261, %v3265, %v3267
      %v3269 = vrot.slane %v1907, 5
      %v3270 = vsel %vm3261, %v3267, %v3269
      %v3271 = vrot.slane %v1908, 5
      %v3272 = vsel %vm3261, %v3269, %v3271
      %v3273 = vrot.slane %v1909, 5
      %v3274 = vsel %vm3261, %v3271, %v3273
      %v3275 = vrot.slane %v1910, 5
      %v3276 = vsel %vm3261, %v3273, %v3275
      %v3277 = vrot.slane %v1911, 5
      %v3278 = vsel %vm3261, %v3275, %v3277
      %v3279 = vrot.slane %v1912, 5
      %v3280 = vsel %vm3261, %v3277, %v3279
      %v3306 = vunpack.c.l.b16 %v3244
      %v3307 = vunpack.c.l.b16 %v3245
      %v3308 = vunpack.c.l.b16 %v3246
      %v3309 = vunpack.c.l.b16 %v3247
      %v3310 = vunpack.c.l.b16 %v3248
      %v3311 = vunpack.c.l.b16 %v3249
      %v3312 = vunpack.c.l.b16 %v3250
      %v3313 = vunpack.c.l.b16 %v3251
      %v3314 = vunpack.c.l.b16 %v3252
      %v3315 = vunpack.c.l.b16 %v3253
      %v3316 = vunpack.c.l.b16 %v3254
      %v3317 = vunpack.c.l.b16 %v3255
      %v3318 = vunpack.c.l.b16 %v3256
      %v3319 = vunpack.c.l.b16 %v3257
      %v3320 = vunpack.c.l.b16 %v3258
      %v3321 = vunpack.c.l.b16 %v3259
      %v3322 = vpack.c.b16 %v3307, %v3306
      %v3323 = vpack.c.b16 %v3309, %v3308
      %v3324 = vpack.c.b16 %v3311, %v3310
      %v3325 = vpack.c.b16 %v3313, %v3312
      %v3326 = vpack.c.b16 %v3315, %v3314
      %v3327 = vpack.c.b16 %v3317, %v3316
      %v3328 = vpack.c.b16 %v3319, %v3318
      %v3329 = vpack.c.b16 %v3321, %v3320
      %3338 = vmatprep.subr.bf16.mxu0 0
      %3339 = vmatpush1.bf16.msra.mxu0 %v3322
      %3340 = vmatprep.subr.bf16.mxu0 0
      %3341 = vmatpush1.bf16.msra.mxu0 %v3323
      %3342 = vmatprep.subr.bf16.mxu0 0
      %3343 = vmatpush1.bf16.msra.mxu0 %v3324
      %3344 = vmatprep.subr.bf16.mxu0 0
      %3345 = vmatpush1.bf16.msra.mxu0 %v3325
      %3346 = vmatprep.subr.bf16.mxu0 0
      %3347 = vmatpush1.bf16.msra.mxu0 %v3326
      %3348 = vmatprep.subr.bf16.mxu0 0
      %3349 = vmatpush1.bf16.msra.mxu0 %v3327
      %3350 = vmatprep.subr.bf16.mxu0 0
      %3351 = vmatpush1.bf16.msra.mxu0 %v3328
      %3352 = vmatprep.subr.bf16.mxu0 0
      %3353 = vmatpush1.bf16.msra.mxu0 %v3329
      %3354 = vmatprep.subr.bf16.mxu0 0
      %3355 = vmatpush1.bf16.msra.mxu0 0
      %3356 = vmatprep.subr.bf16.mxu0 0
      %3357 = vmatpush1.bf16.msra.mxu0 0
      %3358 = vmatprep.subr.bf16.mxu0 0
      %3359 = vmatpush1.bf16.msra.mxu0 0
      %3360 = vmatprep.subr.bf16.mxu0 0
      %3361 = vmatpush1.bf16.msra.mxu0 0
      %3362 = vmatprep.subr.bf16.mxu0 0
      %3363 = vmatpush1.bf16.msra.mxu0 0
      %3364 = vmatprep.subr.bf16.mxu0 0
      %3365 = vmatpush1.bf16.msra.mxu0 0
      %3366 = vmatprep.subr.bf16.mxu0 0
      %3367 = vmatpush1.bf16.msra.mxu0 0
      %3368 = vmatprep.subr.bf16.mxu0 0
      %3369 = vmatpush1.bf16.msra.mxu0 0
      %3370 = vmatprep.mubr.bf16.mxu0 0
      %3371 = vmatmul.mubr.bf16.gmra.mrb[0].mxu0 %v3264
      %v3372 = vpop.f32.mrb[0].mxu0
      %v3373 = vadd.f32 0.0, %v3372
      %v3374 = vpop.f32.mrb[0].mxu0
      %v3375 = vpop.f32.mrb[0].mxu0
      %v3376 = vadd.f32 0.0, %v3375
      %v3377 = vpop.f32.mrb[0].mxu0
      %3378 = vmatprep.mubr.bf16.mxu0 0
      %3379 = vmatmul.mubr.bf16.gmra.mrb[0].mxu0 %v3266
      %v3380 = vpop.f32.mrb[0].mxu0
      %v3381 = vadd.f32 0.0, %v3380
      %v3382 = vpop.f32.mrb[0].mxu0
      %v3383 = vpop.f32.mrb[0].mxu0
      %v3384 = vadd.f32 0.0, %v3383
      %v3385 = vpop.f32.mrb[0].mxu0
      %3386 = vmatprep.mubr.bf16.mxu0 0
      %3387 = vmatmul.mubr.bf16.gmra.mrb[0].mxu0 %v3268
      %v3388 = vpop.f32.mrb[0].mxu0
      %v3389 = vadd.f32 0.0, %v3388
      %v3390 = vpop.f32.mrb[0].mxu0
      %v3391 = vpop.f32.mrb[0].mxu0
      %v3392 = vadd.f32 0.0, %v3391
      %v3393 = vpop.f32.mrb[0].mxu0
      %3394 = vmatprep.mubr.bf16.mxu0 0
      %3395 = vmatmul.mubr.bf16.gmra.mrb[0].mxu0 %v3270
      %v3396 = vpop.f32.mrb[0].mxu0
      %v3397 = vadd.f32 0.0, %v3396
      %v3398 = vpop.f32.mrb[0].mxu0
      %v3399 = vpop.f32.mrb[0].mxu0
      %v3400 = vadd.f32 0.0, %v3399
      %v3401 = vpop.f32.mrb[0].mxu0
      %3402 = vmatprep.mubr.bf16.mxu0 0
      %3403 = vmatmul.mubr.bf16.gmra.mrb[0].mxu0 %v3272
      %v3404 = vpop.f32.mrb[0].mxu0
      %v3405 = vadd.f32 0.0, %v3404
      %v3406 = vpop.f32.mrb[0].mxu0
      %v3407 = vpop.f32.mrb[0].mxu0
      %v3408 = vadd.f32 0.0, %v3407
      %v3409 = vpop.f32.mrb[0].mxu0
      %3410 = vmatprep.mubr.bf16.mxu0 0
      %3411 = vmatmul.mubr.bf16.gmra.mrb[0].mxu0 %v3274
      %v3412 = vpop.f32.mrb[0].mxu0
      %v3413 = vadd.f32 0.0, %v3412
      %v3414 = vpop.f32.mrb[0].mxu0
      %v3415 = vpop.f32.mrb[0].mxu0
      %v3416 = vadd.f32 0.0, %v3415
      %v3417 = vpop.f32.mrb[0].mxu0
      %3418 = vmatprep.mubr.bf16.mxu0 0
      %3419 = vmatmul.mubr.bf16.gmra.mrb[0].mxu0 %v3276
      %v3420 = vpop.f32.mrb[0].mxu0
      %v3421 = vadd.f32 0.0, %v3420
      %v3422 = vpop.f32.mrb[0].mxu0
      %v3423 = vpop.f32.mrb[0].mxu0
      %v3424 = vadd.f32 0.0, %v3423
      %v3425 = vpop.f32.mrb[0].mxu0
      %3426 = vmatprep.mubr.bf16.mxu0 0
      %3427 = vmatmul.mubr.bf16.gmra.mrb[0].mxu0 %v3278
      %v3428 = vpop.f32.mrb[0].mxu0
      %v3429 = vadd.f32 0.0, %v3428
      %v3430 = vpop.f32.mrb[0].mxu0
      %v3431 = vpop.f32.mrb[0].mxu0
      %v3432 = vadd.f32 0.0, %v3431
      %v3433 = vpop.f32.mrb[0].mxu0
      %3434 = vmatprep.mubr.bf16.mxu0 0
      %3435 = vmatmul.mubr.bf16.gmra.mrb[0].mxu0 %v3280
      %v3436 = vpop.f32.mrb[0].mxu0
      %v3437 = vadd.f32 0.0, %v3436
      %v3438 = vpop.f32.mrb[0].mxu0
      %v3439 = vpop.f32.mrb[0].mxu0
      %v3440 = vadd.f32 0.0, %v3439
      %v3441 = vpop.f32.mrb[0].mxu0
      %3442 = vdwg.mxu0
      %v3443 = vadd.f32 %v3225, %v3373
      %v3444 = vadd.f32 %v3226, %v3376
      %v3445 = vadd.f32 %v3227, %v3381
      %v3446 = vadd.f32 %v3228, %v3384
      %v3447 = vadd.f32 %v3229, %v3389
      %v3448 = vadd.f32 %v3230, %v3392
      %v3449 = vadd.f32 %v3231, %v3397
      %v3450 = vadd.f32 %v3232, %v3400
      %v3451 = vadd.f32 %v3233, %v3405
      %v3452 = vadd.f32 %v3234, %v3408
      %v3453 = vadd.f32 %v3235, %v3413
      %v3454 = vadd.f32 %v3236, %v3416
      %v3455 = vadd.f32 %v3237, %v3421
      %v3456 = vadd.f32 %v3238, %v3424
      %v3457 = vadd.f32 %v3239, %v3429
      %v3458 = vadd.f32 %v3240, %v3432
      %v3459 = vadd.f32 %v3241, %v3437
      %v3460 = vadd.f32 %v3242, %v3440
      %s3461 = scalar_lea.vmem %s4, 448
      %v3462 = vld [vmem:[%s3461] sm:$0xf]
      %v3463 = vld [vmem:[%s3461 + $0x4] sm:$0xf]
      %v3464 = vld [vmem:[%s3461 + $0x8] sm:$0xf]
      %v3465 = vld [vmem:[%s3461 + $0xc] sm:$0xf]
      %v3466 = vld [vmem:[%s3461 + $0x10] sm:$0xf]
      %v3467 = vld [vmem:[%s3461 + $0x14] sm:$0xf]
      %v3468 = vld [vmem:[%s3461 + $0x18] sm:$0xf]
      %v3469 = vld [vmem:[%s3461 + $0x1c] sm:$0xf]
      %v3470 = vld [vmem:[%s3461 + $0x20] sm:$0xf]
      %v3471 = vld [vmem:[%s3461 + $0x24] sm:$0xf]
      %v3472 = vld [vmem:[%s3461 + $0x28] sm:$0xf]
      %v3473 = vld [vmem:[%s3461 + $0x2c] sm:$0xf]
      %v3474 = vld [vmem:[%s3461 + $0x30] sm:$0xf]
      %v3475 = vld [vmem:[%s3461 + $0x34] sm:$0xf]
      %v3476 = vld [vmem:[%s3461 + $0x38] sm:$0xf]
      %v3477 = vld [vmem:[%s3461 + $0x3c] sm:$0xf]
      %vm3478 = vsmask.f32 2304
      %v3479 = vrot.slane %v1958, 5
      %v3480 = vrot.slane %v1954, 6
      %v3481 = vor.u32 %v3479, %v3480
      %v3482 = vrot.slane %v1966, 5
      %v3483 = vrot.slane %v1962, 6
      %v3484 = vor.u32 %v3482, %v3483
      %v3485 = vsel %vm3478, %v3481, %v3484
      %v3486 = vrot.slane %v1974, 5
      %v3487 = vrot.slane %v1970, 6
      %v3488 = vor.u32 %v3486, %v3487
      %v3489 = vsel %vm3478, %v3484, %v3488
      %v3490 = vrot.slane %v1982, 5
      %v3491 = vrot.slane %v1978, 6
      %v3492 = vor.u32 %v3490, %v3491
      %v3493 = vsel %vm3478, %v3488, %v3492
      %v3494 = vrot.slane %v1990, 5
      %v3495 = vrot.slane %v1986, 6
      %v3496 = vor.u32 %v3494, %v3495
      %v3497 = vsel %vm3478, %v3492, %v3496
      %v3498 = vrot.slane %v1998, 5
      %v3499 = vrot.slane %v1994, 6
      %v3500 = vor.u32 %v3498, %v3499
      %v3501 = vsel %vm3478, %v3496, %v3500
      %v3502 = vrot.slane %v2006, 5
      %v3503 = vrot.slane %v2002, 6
      %v3504 = vor.u32 %v3502, %v3503
      %v3505 = vsel %vm3478, %v3500, %v3504
      %v3506 = vrot.slane %v2014, 5
      %v3507 = vrot.slane %v2010, 6
      %v3508 = vor.u32 %v3506, %v3507
      %v3509 = vsel %vm3478, %v3504, %v3508
      %v3510 = vrot.slane %v2612, 5
      %v3511 = vrot.slane %v2615, 6
      %v3512 = vor.u32 %v3510, %v3511
      %v3513 = vsel %vm3478, %v3508, %v3512
      %v3515 = vshrl.u32 %v1912, 16
      %v3517 = vrot.slane %v3515, 5
      %v3518 = vshll.u32 %v1912, 16
      %v3520 = vrot.slane %v3518, 6
      %v3521 = vor.u32 %v3517, %v3520
      %v3522 = vsel %vm3478, %v3512, %v3521
      %v3548 = vunpack.c.l.b16 %v3462
      %v3549 = vunpack.c.l.b16 %v3463
      %v3550 = vunpack.c.l.b16 %v3464
      %v3551 = vunpack.c.l.b16 %v3465
      %v3552 = vunpack.c.l.b16 %v3466
      %v3553 = vunpack.c.l.b16 %v3467
      %v3554 = vunpack.c.l.b16 %v3468
      %v3555 = vunpack.c.l.b16 %v3469
      %v3556 = vunpack.c.l.b16 %v3470
      %v3557 = vunpack.c.l.b16 %v3471
      %v3558 = vunpack.c.l.b16 %v3472
      %v3559 = vunpack.c.l.b16 %v3473
      %v3560 = vunpack.c.l.b16 %v3474
      %v3561 = vunpack.c.l.b16 %v3475
      %v3562 = vunpack.c.l.b16 %v3476
      %v3563 = vunpack.c.l.b16 %v3477
      %v3564 = vpack.c.b16 %v3549, %v3548
      %v3565 = vpack.c.b16 %v3551, %v3550
      %v3566 = vpack.c.b16 %v3553, %v3552
      %v3567 = vpack.c.b16 %v3555, %v3554
      %v3568 = vpack.c.b16 %v3557, %v3556
      %v3569 = vpack.c.b16 %v3559, %v3558
      %v3570 = vpack.c.b16 %v3561, %v3560
      %v3571 = vpack.c.b16 %v3563, %v3562
      %3580 = vmatprep.subr.bf16.mxu0 0
      %3581 = vmatpush1.bf16.msra.mxu0 %v3564
      %3582 = vmatprep.subr.bf16.mxu0 0
      %3583 = vmatpush1.bf16.msra.mxu0 %v3565
      %3584 = vmatprep.subr.bf16.mxu0 0
      %3585 = vmatpush1.bf16.msra.mxu0 %v3566
      %3586 = vmatprep.subr.bf16.mxu0 0
      %3587 = vmatpush1.bf16.msra.mxu0 %v3567
      %3588 = vmatprep.subr.bf16.mxu0 0
      %3589 = vmatpush1.bf16.msra.mxu0 %v3568
      %3590 = vmatprep.subr.bf16.mxu0 0
      %3591 = vmatpush1.bf16.msra.mxu0 %v3569
      %3592 = vmatprep.subr.bf16.mxu0 0
      %3593 = vmatpush1.bf16.msra.mxu0 %v3570
      %3594 = vmatprep.subr.bf16.mxu0 0
      %3595 = vmatpush1.bf16.msra.mxu0 %v3571
      %3596 = vmatprep.subr.bf16.mxu0 0
      %3597 = vmatpush1.bf16.msra.mxu0 0
      %3598 = vmatprep.subr.bf16.mxu0 0
      %3599 = vmatpush1.bf16.msra.mxu0 0
      %3600 = vmatprep.subr.bf16.mxu0 0
      %3601 = vmatpush1.bf16.msra.mxu0 0
      %3602 = vmatprep.subr.bf16.mxu0 0
      %3603 = vmatpush1.bf16.msra.mxu0 0
      %3604 = vmatprep.subr.bf16.mxu0 0
      %3605 = vmatpush1.bf16.msra.mxu0 0
      %3606 = vmatprep.subr.bf16.mxu0 0
      %3607 = vmatpush1.bf16.msra.mxu0 0
      %3608 = vmatprep.subr.bf16.mxu0 0
      %3609 = vmatpush1.bf16.msra.mxu0 0
      %3610 = vmatprep.subr.bf16.mxu0 0
      %3611 = vmatpush1.bf16.msra.mxu0 0
      %3612 = vmatprep.mubr.bf16.mxu0 0
      %3613 = vmatmul.mubr.bf16.gmra.mrb[0].mxu0 %v3485
      %v3614 = vpop.f32.mrb[0].mxu0
      %v3615 = vadd.f32 0.0, %v3614
      %v3616 = vpop.f32.mrb[0].mxu0
      %v3617 = vpop.f32.mrb[0].mxu0
      %v3618 = vadd.f32 0.0, %v3617
      %v3619 = vpop.f32.mrb[0].mxu0
      %3620 = vmatprep.mubr.bf16.mxu0 0
      %3621 = vmatmul.mubr.bf16.gmra.mrb[0].mxu0 %v3489
      %v3622 = vpop.f32.mrb[0].mxu0
      %v3623 = vadd.f32 0.0, %v3622
      %v3624 = vpop.f32.mrb[0].mxu0
      %v3625 = vpop.f32.mrb[0].mxu0
      %v3626 = vadd.f32 0.0, %v3625
      %v3627 = vpop.f32.mrb[0].mxu0
      %3628 = vmatprep.mubr.bf16.mxu0 0
      %3629 = vmatmul.mubr.bf16.gmra.mrb[0].mxu0 %v3493
      %v3630 = vpop.f32.mrb[0].mxu0
      %v3631 = vadd.f32 0.0, %v3630
      %v3632 = vpop.f32.mrb[0].mxu0
      %v3633 = vpop.f32.mrb[0].mxu0
      %v3634 = vadd.f32 0.0, %v3633
      %v3635 = vpop.f32.mrb[0].mxu0
      %3636 = vmatprep.mubr.bf16.mxu0 0
      %3637 = vmatmul.mubr.bf16.gmra.mrb[0].mxu0 %v3497
      %v3638 = vpop.f32.mrb[0].mxu0
      %v3639 = vadd.f32 0.0, %v3638
      %v3640 = vpop.f32.mrb[0].mxu0
      %v3641 = vpop.f32.mrb[0].mxu0
      %v3642 = vadd.f32 0.0, %v3641
      %v3643 = vpop.f32.mrb[0].mxu0
      %3644 = vmatprep.mubr.bf16.mxu0 0
      %3645 = vmatmul.mubr.bf16.gmra.mrb[0].mxu0 %v3501
      %v3646 = vpop.f32.mrb[0].mxu0
      %v3647 = vadd.f32 0.0, %v3646
      %v3648 = vpop.f32.mrb[0].mxu0
      %v3649 = vpop.f32.mrb[0].mxu0
      %v3650 = vadd.f32 0.0, %v3649
      %v3651 = vpop.f32.mrb[0].mxu0
      %3652 = vmatprep.mubr.bf16.mxu0 0
      %3653 = vmatmul.mubr.bf16.gmra.mrb[0].mxu0 %v3505
      %v3654 = vpop.f32.mrb[0].mxu0
      %v3655 = vadd.f32 0.0, %v3654
      %v3656 = vpop.f32.mrb[0].mxu0
      %v3657 = vpop.f32.mrb[0].mxu0
      %v3658 = vadd.f32 0.0, %v3657
      %v3659 = vpop.f32.mrb[0].mxu0
      %3660 = vmatprep.mubr.bf16.mxu0 0
      %3661 = vmatmul.mubr.bf16.gmra.mrb[0].mxu0 %v3509
      %v3662 = vpop.f32.mrb[0].mxu0
      %v3663 = vadd.f32 0.0, %v3662
      %v3664 = vpop.f32.mrb[0].mxu0
      %v3665 = vpop.f32.mrb[0].mxu0
      %v3666 = vadd.f32 0.0, %v3665
      %v3667 = vpop.f32.mrb[0].mxu0
      %3668 = vmatprep.mubr.bf16.mxu0 0
      %3669 = vmatmul.mubr.bf16.gmra.mrb[0].mxu0 %v3513
      %v3670 = vpop.f32.mrb[0].mxu0
      %v3671 = vadd.f32 0.0, %v3670
      %v3672 = vpop.f32.mrb[0].mxu0
      %v3673 = vpop.f32.mrb[0].mxu0
      %v3674 = vadd.f32 0.0, %v3673
      %v3675 = vpop.f32.mrb[0].mxu0
      %3676 = vmatprep.mubr.bf16.mxu0 0
      %3677 = vmatmul.mubr.bf16.gmra.mrb[0].mxu0 %v3522
      %v3678 = vpop.f32.mrb[0].mxu0
      %v3679 = vadd.f32 0.0, %v3678
      %v3680 = vpop.f32.mrb[0].mxu0
      %v3681 = vpop.f32.mrb[0].mxu0
      %v3682 = vadd.f32 0.0, %v3681
      %v3683 = vpop.f32.mrb[0].mxu0
      %3684 = vdwg.mxu0
      %v3685 = vadd.f32 %v3443, %v3615
      %v3686 = vadd.f32 %v3444, %v3618
      %v3687 = vadd.f32 %v3445, %v3623
      %v3688 = vadd.f32 %v3446, %v3626
      %v3689 = vadd.f32 %v3447, %v3631
      %v3690 = vadd.f32 %v3448, %v3634
      %v3691 = vadd.f32 %v3449, %v3639
      %v3692 = vadd.f32 %v3450, %v3642
      %v3693 = vadd.f32 %v3451, %v3647
      %v3694 = vadd.f32 %v3452, %v3650
      %v3695 = vadd.f32 %v3453, %v3655
      %v3696 = vadd.f32 %v3454, %v3658
      %v3697 = vadd.f32 %v3455, %v3663
      %v3698 = vadd.f32 %v3456, %v3666
      %v3699 = vadd.f32 %v3457, %v3671
      %v3700 = vadd.f32 %v3458, %v3674
      %v3701 = vadd.f32 %v3459, %v3679
      %v3702 = vadd.f32 %v3460, %v3682
      %s3703 = scalar_lea.vmem %s4, 512
      %v3704 = vld [vmem:[%s3703] sm:$0xf]
      %v3705 = vld [vmem:[%s3703 + $0x4] sm:$0xf]
      %v3706 = vld [vmem:[%s3703 + $0x8] sm:$0xf]
      %v3707 = vld [vmem:[%s3703 + $0xc] sm:$0xf]
      %v3708 = vld [vmem:[%s3703 + $0x10] sm:$0xf]
      %v3709 = vld [vmem:[%s3703 + $0x14] sm:$0xf]
      %v3710 = vld [vmem:[%s3703 + $0x18] sm:$0xf]
      %v3711 = vld [vmem:[%s3703 + $0x1c] sm:$0xf]
      %v3712 = vld [vmem:[%s3703 + $0x20] sm:$0xf]
      %v3713 = vld [vmem:[%s3703 + $0x24] sm:$0xf]
      %v3714 = vld [vmem:[%s3703 + $0x28] sm:$0xf]
      %v3715 = vld [vmem:[%s3703 + $0x2c] sm:$0xf]
      %v3716 = vld [vmem:[%s3703 + $0x30] sm:$0xf]
      %v3717 = vld [vmem:[%s3703 + $0x34] sm:$0xf]
      %v3718 = vld [vmem:[%s3703 + $0x38] sm:$0xf]
      %v3719 = vld [vmem:[%s3703 + $0x3c] sm:$0xf]
      %vm3720 = vcmask 1041408
      %v3721 = vrot.slane %v1903, 6
      %v3722 = vrot.slane %v1904, 6
      %v3723 = vsel %vm3720, %v3721, %v3722
      %v3724 = vrot.slane %v1905, 6
      %v3725 = vsel %vm3720, %v3722, %v3724
      %v3726 = vrot.slane %v1906, 6
      %v3727 = vsel %vm3720, %v3724, %v3726
      %v3728 = vrot.slane %v1907, 6
      %v3729 = vsel %vm3720, %v3726, %v3728
      %v3730 = vrot.slane %v1908, 6
      %v3731 = vsel %vm3720, %v3728, %v3730
      %v3732 = vrot.slane %v1909, 6
      %v3733 = vsel %vm3720, %v3730, %v3732
      %v3734 = vrot.slane %v1910, 6
      %v3735 = vsel %vm3720, %v3732, %v3734
      %v3736 = vrot.slane %v1911, 6
      %v3737 = vsel %vm3720, %v3734, %v3736
      %v3738 = vrot.slane %v1912, 6
      %v3739 = vsel %vm3720, %v3736, %v3738
      %v3765 = vunpack.c.l.b16 %v3704
      %v3766 = vunpack.c.l.b16 %v3705
      %v3767 = vunpack.c.l.b16 %v3706
      %v3768 = vunpack.c.l.b16 %v3707
      %v3769 = vunpack.c.l.b16 %v3708
      %v3770 = vunpack.c.l.b16 %v3709
      %v3771 = vunpack.c.l.b16 %v3710
      %v3772 = vunpack.c.l.b16 %v3711
      %v3773 = vunpack.c.l.b16 %v3712
      %v3774 = vunpack.c.l.b16 %v3713
      %v3775 = vunpack.c.l.b16 %v3714
      %v3776 = vunpack.c.l.b16 %v3715
      %v3777 = vunpack.c.l.b16 %v3716
      %v3778 = vunpack.c.l.b16 %v3717
      %v3779 = vunpack.c.l.b16 %v3718
      %v3780 = vunpack.c.l.b16 %v3719
      %v3781 = vpack.c.b16 %v3766, %v3765
      %v3782 = vpack.c.b16 %v3768, %v3767
      %v3783 = vpack.c.b16 %v3770, %v3769
      %v3784 = vpack.c.b16 %v3772, %v3771
      %v3785 = vpack.c.b16 %v3774, %v3773
      %v3786 = vpack.c.b16 %v3776, %v3775
      %v3787 = vpack.c.b16 %v3778, %v3777
      %v3788 = vpack.c.b16 %v3780, %v3779
      %3797 = vmatprep.subr.bf16.mxu0 0
      %3798 = vmatpush1.bf16.msra.mxu0 %v3781
      %3799 = vmatprep.subr.bf16.mxu0 0
      %3800 = vmatpush1.bf16.msra.mxu0 %v3782
      %3801 = vmatprep.subr.bf16.mxu0 0
      %3802 = vmatpush1.bf16.msra.mxu0 %v3783
      %3803 = vmatprep.subr.bf16.mxu0 0
      %3804 = vmatpush1.bf16.msra.mxu0 %v3784
      %3805 = vmatprep.subr.bf16.mxu0 0
      %3806 = vmatpush1.bf16.msra.mxu0 %v3785
      %3807 = vmatprep.subr.bf16.mxu0 0
      %3808 = vmatpush1.bf16.msra.mxu0 %v3786
      %3809 = vmatprep.subr.bf16.mxu0 0
      %3810 = vmatpush1.bf16.msra.mxu0 %v3787
      %3811 = vmatprep.subr.bf16.mxu0 0
      %3812 = vmatpush1.bf16.msra.mxu0 %v3788
      %3813 = vmatprep.subr.bf16.mxu0 0
      %3814 = vmatpush1.bf16.msra.mxu0 0
      %3815 = vmatprep.subr.bf16.mxu0 0
      %3816 = vmatpush1.bf16.msra.mxu0 0
      %3817 = vmatprep.subr.bf16.mxu0 0
      %3818 = vmatpush1.bf16.msra.mxu0 0
      %3819 = vmatprep.subr.bf16.mxu0 0
      %3820 = vmatpush1.bf16.msra.mxu0 0
      %3821 = vmatprep.subr.bf16.mxu0 0
      %3822 = vmatpush1.bf16.msra.mxu0 0
      %3823 = vmatprep.subr.bf16.mxu0 0
      %3824 = vmatpush1.bf16.msra.mxu0 0
      %3825 = vmatprep.subr.bf16.mxu0 0
      %3826 = vmatpush1.bf16.msra.mxu0 0
      %3827 = vmatprep.subr.bf16.mxu0 0
      %3828 = vmatpush1.bf16.msra.mxu0 0
      %3829 = vmatprep.mubr.bf16.mxu0 0
      %3830 = vmatmul.mubr.bf16.gmra.mrb[0].mxu0 %v3723
      %v3831 = vpop.f32.mrb[0].mxu0
      %v3832 = vadd.f32 0.0, %v3831
      %v3833 = vpop.f32.mrb[0].mxu0
      %v3834 = vpop.f32.mrb[0].mxu0
      %v3835 = vadd.f32 0.0, %v3834
      %v3836 = vpop.f32.mrb[0].mxu0
      %3837 = vmatprep.mubr.bf16.mxu0 0
      %3838 = vmatmul.mubr.bf16.gmra.mrb[0].mxu0 %v3725
      %v3839 = vpop.f32.mrb[0].mxu0
      %v3840 = vadd.f32 0.0, %v3839
      %v3841 = vpop.f32.mrb[0].mxu0
      %v3842 = vpop.f32.mrb[0].mxu0
      %v3843 = vadd.f32 0.0, %v3842
      %v3844 = vpop.f32.mrb[0].mxu0
      %3845 = vmatprep.mubr.bf16.mxu0 0
      %3846 = vmatmul.mubr.bf16.gmra.mrb[0].mxu0 %v3727
      %v3847 = vpop.f32.mrb[0].mxu0
      %v3848 = vadd.f32 0.0, %v3847
      %v3849 = vpop.f32.mrb[0].mxu0
      %v3850 = vpop.f32.mrb[0].mxu0
      %v3851 = vadd.f32 0.0, %v3850
      %v3852 = vpop.f32.mrb[0].mxu0
      %3853 = vmatprep.mubr.bf16.mxu0 0
      %3854 = vmatmul.mubr.bf16.gmra.mrb[0].mxu0 %v3729
      %v3855 = vpop.f32.mrb[0].mxu0
      %v3856 = vadd.f32 0.0, %v3855
      %v3857 = vpop.f32.mrb[0].mxu0
      %v3858 = vpop.f32.mrb[0].mxu0
      %v3859 = vadd.f32 0.0, %v3858
      %v3860 = vpop.f32.mrb[0].mxu0
      %3861 = vmatprep.mubr.bf16.mxu0 0
      %3862 = vmatmul.mubr.bf16.gmra.mrb[0].mxu0 %v3731
      %v3863 = vpop.f32.mrb[0].mxu0
      %v3864 = vadd.f32 0.0, %v3863
      %v3865 = vpop.f32.mrb[0].mxu0
      %v3866 = vpop.f32.mrb[0].mxu0
      %v3867 = vadd.f32 0.0, %v3866
      %v3868 = vpop.f32.mrb[0].mxu0
      %3869 = vmatprep.mubr.bf16.mxu0 0
      %3870 = vmatmul.mubr.bf16.gmra.mrb[0].mxu0 %v3733
      %v3871 = vpop.f32.mrb[0].mxu0
      %v3872 = vadd.f32 0.0, %v3871
      %v3873 = vpop.f32.mrb[0].mxu0
      %v3874 = vpop.f32.mrb[0].mxu0
      %v3875 = vadd.f32 0.0, %v3874
      %v3876 = vpop.f32.mrb[0].mxu0
      %3877 = vmatprep.mubr.bf16.mxu0 0
      %3878 = vmatmul.mubr.bf16.gmra.mrb[0].mxu0 %v3735
      %v3879 = vpop.f32.mrb[0].mxu0
      %v3880 = vadd.f32 0.0, %v3879
      %v3881 = vpop.f32.mrb[0].mxu0
      %v3882 = vpop.f32.mrb[0].mxu0
      %v3883 = vadd.f32 0.0, %v3882
      %v3884 = vpop.f32.mrb[0].mxu0
      %3885 = vmatprep.mubr.bf16.mxu0 0
      %3886 = vmatmul.mubr.bf16.gmra.mrb[0].mxu0 %v3737
      %v3887 = vpop.f32.mrb[0].mxu0
      %v3888 = vadd.f32 0.0, %v3887
      %v3889 = vpop.f32.mrb[0].mxu0
      %v3890 = vpop.f32.mrb[0].mxu0
      %v3891 = vadd.f32 0.0, %v3890
      %v3892 = vpop.f32.mrb[0].mxu0
      %3893 = vmatprep.mubr.bf16.mxu0 0
      %3894 = vmatmul.mubr.bf16.gmra.mrb[0].mxu0 %v3739
      %v3895 = vpop.f32.mrb[0].mxu0
      %v3896 = vadd.f32 0.0, %v3895
      %v3897 = vpop.f32.mrb[0].mxu0
      %v3898 = vpop.f32.mrb[0].mxu0
      %v3899 = vadd.f32 0.0, %v3898
      %v3900 = vpop.f32.mrb[0].mxu0
      %3901 = vdwg.mxu0
      %v3902 = vadd.f32 %v3685, %v3832
      %v3903 = vadd.f32 %v3686, %v3835
      %v3904 = vadd.f32 %v3687, %v3840
      %v3905 = vadd.f32 %v3688, %v3843
      %v3906 = vadd.f32 %v3689, %v3848
      %v3907 = vadd.f32 %v3690, %v3851
      %v3908 = vadd.f32 %v3691, %v3856
      %v3909 = vadd.f32 %v3692, %v3859
      %v3910 = vadd.f32 %v3693, %v3864
      %v3911 = vadd.f32 %v3694, %v3867
      %v3912 = vadd.f32 %v3695, %v3872
      %v3913 = vadd.f32 %v3696, %v3875
      %v3914 = vadd.f32 %v3697, %v3880
      %v3915 = vadd.f32 %v3698, %v3883
      %v3916 = vadd.f32 %v3699, %v3888
      %v3917 = vadd.f32 %v3700, %v3891
      %v3918 = vadd.f32 %v3701, %v3896
      %v3919 = vadd.f32 %v3702, %v3899
      %v3920 = vld [vmem:[%s5] sm:$0x1]
      %v3921 = vld [vmem:[%s5 + $0x1] sm:$0x1]
      %v3922 = vlaneseq
      %v3923 = vshrl.u32 %v3922, 7
      %v3924 = vsub.s32 0, %v3923
      %v3925 = vrot.slane %v3920, %v3924
      %v3926 = vmul.f32 %v3902, %v3925
      %v3927 = vmul.f32 %v3903, %v3925
      %v3928 = vmul.f32 %v3904, %v3925
      %v3929 = vmul.f32 %v3905, %v3925
      %v3930 = vmul.f32 %v3906, %v3925
      %v3931 = vmul.f32 %v3907, %v3925
      %v3932 = vmul.f32 %v3908, %v3925
      %v3933 = vmul.f32 %v3909, %v3925
      %v3934 = vmul.f32 %v3910, %v3925
      %v3935 = vmul.f32 %v3911, %v3925
      %v3936 = vmul.f32 %v3912, %v3925
      %v3937 = vmul.f32 %v3913, %v3925
      %v3938 = vmul.f32 %v3914, %v3925
      %v3939 = vmul.f32 %v3915, %v3925
      %v3940 = vmul.f32 %v3916, %v3925
      %v3941 = vmul.f32 %v3917, %v3925
      %v3942 = vmul.f32 %v3918, %v3925
      %v3943 = vmul.f32 %v3919, %v3925
      %v3944 = vlaneseq
      %v3945 = vshrl.u32 %v3944, 7
      %v3946 = vsub.s32 0, %v3945
      %v3947 = vrot.slane %v3921, %v3946
      %v3948 = vadd.f32 %v3926, %v3947
      %v3949 = vadd.f32 %v3927, %v3947
      %v3950 = vadd.f32 %v3928, %v3947
      %v3951 = vadd.f32 %v3929, %v3947
      %v3952 = vadd.f32 %v3930, %v3947
      %v3953 = vadd.f32 %v3931, %v3947
      %v3954 = vadd.f32 %v3932, %v3947
      %v3955 = vadd.f32 %v3933, %v3947
      %v3956 = vadd.f32 %v3934, %v3947
      %v3957 = vadd.f32 %v3935, %v3947
      %v3958 = vadd.f32 %v3936, %v3947
      %v3959 = vadd.f32 %v3937, %v3947
      %v3960 = vadd.f32 %v3938, %v3947
      %v3961 = vadd.f32 %v3939, %v3947
      %v3962 = vadd.f32 %v3940, %v3947
      %v3963 = vadd.f32 %v3941, %v3947
      %v3964 = vadd.f32 %v3942, %v3947
      %v3965 = vadd.f32 %v3943, %v3947
      %v3966 = vmax.f32 %v3948, 0.0
      %v3967 = vmax.f32 %v3949, 0.0
      %v3968 = vmax.f32 %v3950, 0.0
      %v3969 = vmax.f32 %v3951, 0.0
      %v3970 = vmax.f32 %v3952, 0.0
      %v3971 = vmax.f32 %v3953, 0.0
      %v3972 = vmax.f32 %v3954, 0.0
      %v3973 = vmax.f32 %v3955, 0.0
      %v3974 = vmax.f32 %v3956, 0.0
      %v3975 = vmax.f32 %v3957, 0.0
      %v3976 = vmax.f32 %v3958, 0.0
      %v3977 = vmax.f32 %v3959, 0.0
      %v3978 = vmax.f32 %v3960, 0.0
      %v3979 = vmax.f32 %v3961, 0.0
      %v3980 = vmax.f32 %v3962, 0.0
      %v3981 = vmax.f32 %v3963, 0.0
      %v3982 = vmax.f32 %v3964, 0.0
      %v3983 = vmax.f32 %v3965, 0.0
      %v3984 = vpack.c.bf16 %v3967, %v3966
      %v3985 = vpack.c.bf16 %v3969, %v3968
      %v3986 = vpack.c.bf16 %v3971, %v3970
      %v3987 = vpack.c.bf16 %v3973, %v3972
      %v3988 = vpack.c.bf16 %v3975, %v3974
      %v3989 = vpack.c.bf16 %v3977, %v3976
      %v3990 = vpack.c.bf16 %v3979, %v3978
      %v3991 = vpack.c.bf16 %v3981, %v3980
      %v3992 = vpack.c.bf16 %v3983, %v3982
      %v3994 = vshrl.u32 %v3984, 16
      %v3996 = vshll.u32 %v3984, 16
      %v3998 = vrot.slane %v3996, 1
      %v3999 = vor.u32 %v3994, %v3998
      %v4001 = vshll.u32 %v3985, 16
      %v4003 = vrot.slane %v4001, 1
      %v4004 = vsel %vm1101, %v3999, %v4003
      %v4005 = vshrl.u32 %v3985, 16
      %v4007 = vor.u32 %v4005, %v4003
      %v4009 = vshll.u32 %v3986, 16
      %v4011 = vrot.slane %v4009, 1
      %v4012 = vsel %vm1101, %v4007, %v4011
      %v4013 = vshrl.u32 %v3986, 16
      %v4015 = vor.u32 %v4013, %v4011
      %v4017 = vshll.u32 %v3987, 16
      %v4019 = vrot.slane %v4017, 1
      %v4020 = vsel %vm1101, %v4015, %v4019
      %v4021 = vshrl.u32 %v3987, 16
      %v4023 = vor.u32 %v4021, %v4019
      %v4025 = vshll.u32 %v3988, 16
      %v4027 = vrot.slane %v4025, 1
      %v4028 = vsel %vm1101, %v4023, %v4027
      %v4029 = vshrl.u32 %v3988, 16
      %v4031 = vor.u32 %v4029, %v4027
      %v4033 = vshll.u32 %v3989, 16
      %v4035 = vrot.slane %v4033, 1
      %v4036 = vsel %vm1101, %v4031, %v4035
      %v4037 = vshrl.u32 %v3989, 16
      %v4039 = vor.u32 %v4037, %v4035
      %v4041 = vshll.u32 %v3990, 16
      %v4043 = vrot.slane %v4041, 1
      %v4044 = vsel %vm1101, %v4039, %v4043
      %v4045 = vshrl.u32 %v3990, 16
      %v4047 = vor.u32 %v4045, %v4043
      %v4049 = vshll.u32 %v3991, 16
      %v4051 = vrot.slane %v4049, 1
      %v4052 = vsel %vm1101, %v4047, %v4051
      %v4053 = vshrl.u32 %v3991, 16
      %v4055 = vor.u32 %v4053, %v4051
      %v4057 = vshll.u32 %v3992, 16
      %v4059 = vrot.slane %v4057, 1
      %v4060 = vsel %vm1101, %v4055, %v4059
      %v4061 = vshrl.u32 %v3992, 16
      %v4063 = vor.u32 %v4061, %v4059
      %v4073 = vmax.bf16 %v3984, %v4004
      %v4074 = vmax.bf16 %v3985, %v4012
      %v4075 = vmax.bf16 %v3986, %v4020
      %v4076 = vmax.bf16 %v3987, %v4028
      %v4077 = vmax.bf16 %v3988, %v4036
      %v4078 = vmax.bf16 %v3989, %v4044
      %v4079 = vmax.bf16 %v3990, %v4052
      %v4080 = vmax.bf16 %v3991, %v4060
      %v4081 = vmax.bf16 %v3992, %v4063
      %v4083 = vshrl.u32 %v4073, 16
      %v4085 = vrot.slane %v4083, 6
      %v4086 = vshll.u32 %v4073, 16
      %v4088 = vrot.slane %v4086, 7
      %v4089 = vor.u32 %v4085, %v4088
      %v4091 = vshrl.u32 %v4074, 16
      %v4093 = vrot.slane %v4091, 6
      %v4094 = vshll.u32 %v4074, 16
      %v4096 = vrot.slane %v4094, 7
      %v4097 = vor.u32 %v4093, %v4096
      %v4098 = vsel %vm2575, %v4089, %v4097
      %v4100 = vshrl.u32 %v4075, 16
      %v4102 = vrot.slane %v4100, 6
      %v4103 = vshll.u32 %v4075, 16
      %v4105 = vrot.slane %v4103, 7
      %v4106 = vor.u32 %v4102, %v4105
      %v4107 = vsel %vm2575, %v4097, %v4106
      %v4109 = vshrl.u32 %v4076, 16
      %v4111 = vrot.slane %v4109, 6
      %v4112 = vshll.u32 %v4076, 16
      %v4114 = vrot.slane %v4112, 7
      %v4115 = vor.u32 %v4111, %v4114
      %v4116 = vsel %vm2575, %v4106, %v4115
      %v4118 = vshrl.u32 %v4077, 16
      %v4120 = vrot.slane %v4118, 6
      %v4121 = vshll.u32 %v4077, 16
      %v4123 = vrot.slane %v4121, 7
      %v4124 = vor.u32 %v4120, %v4123
      %v4125 = vsel %vm2575, %v4115, %v4124
      %v4127 = vshrl.u32 %v4078, 16
      %v4129 = vrot.slane %v4127, 6
      %v4130 = vshll.u32 %v4078, 16
      %v4132 = vrot.slane %v4130, 7
      %v4133 = vor.u32 %v4129, %v4132
      %v4134 = vsel %vm2575, %v4124, %v4133
      %v4136 = vshrl.u32 %v4079, 16
      %v4138 = vrot.slane %v4136, 6
      %v4139 = vshll.u32 %v4079, 16
      %v4141 = vrot.slane %v4139, 7
      %v4142 = vor.u32 %v4138, %v4141
      %v4143 = vsel %vm2575, %v4133, %v4142
      %v4145 = vshrl.u32 %v4080, 16
      %v4147 = vrot.slane %v4145, 6
      %v4148 = vshll.u32 %v4080, 16
      %v4150 = vrot.slane %v4148, 7
      %v4151 = vor.u32 %v4147, %v4150
      %v4152 = vsel %vm2575, %v4142, %v4151
      %v4154 = vshrl.u32 %v4081, 16
      %v4156 = vrot.slane %v4154, 6
      %v4157 = vshll.u32 %v4081, 16
      %v4159 = vrot.slane %v4157, 7
      %v4160 = vor.u32 %v4156, %v4159
      %v4161 = vsel %vm2575, %v4151, %v4160
      %v4171 = vmax.bf16 %v4073, %v4098
      %v4172 = vmax.bf16 %v4074, %v4107
      %v4173 = vmax.bf16 %v4075, %v4116
      %v4174 = vmax.bf16 %v4076, %v4125
      %v4175 = vmax.bf16 %v4077, %v4134
      %v4176 = vmax.bf16 %v4078, %v4143
      %v4177 = vmax.bf16 %v4079, %v4152
      %v4178 = vmax.bf16 %v4080, %v4161
      %v4179 = vmax.bf16 %v4081, %v4156
      %v4180 = vld [vmem:[%s6] sm:$0xff]
      %v4181 = vld [vmem:[%s6 + $0x8] sm:$0xff]
      %v4182 = vld [vmem:[%s6 + $0x10] sm:$0xff]
      %v4183 = vld [vmem:[%s6 + $0x18] sm:$0xff]
      %v4184 = vld [vmem:[%s6 + $0x20] sm:$0xff]
      %v4185 = vld [vmem:[%s6 + $0x28] sm:$0xff]
      %v4186 = vld [vmem:[%s6 + $0x30] sm:$0x33]
      %v4194 = vunpack.c.l.b16 %v4180
      %v4195 = vunpack.c.h.b16 %v4180
      %v4196 = vunpack.c.l.b16 %v4181
      %v4197 = vunpack.c.h.b16 %v4181
      %v4198 = vunpack.c.l.b16 %v4182
      %v4199 = vunpack.c.h.b16 %v4182
      %v4200 = vunpack.c.l.b16 %v4183
      %v4201 = vunpack.c.h.b16 %v4183
      %v4202 = vunpack.c.l.b16 %v4184
      %v4203 = vunpack.c.h.b16 %v4184
      %v4204 = vunpack.c.l.b16 %v4185
      %v4205 = vunpack.c.h.b16 %v4185
      %v4206 = vunpack.c.l.b16 %v4186
      %v4207 = vunpack.c.h.b16 %v4186
      %v4208 = vpack.c.b16 %v4196, %v4194
      %v4209 = vpack.c.b16 %v4197, %v4195
      %v4210 = vpack.c.b16 %v4200, %v4198
      %v4211 = vpack.c.b16 %v4201, %v4199
      %v4212 = vpack.c.b16 %v4204, %v4202
      %v4213 = vpack.c.b16 %v4205, %v4203
      %v4214 = vpack.c.b16 %v4206, %v4206
      %v4215 = vpack.c.b16 %v4207, %v4207
      %vm4220 = vcmask 7168
      %v4222 = vsel %vm4220, %v4209, 0
      %v4225 = vsel %vm4220, %v4211, 0
      %v4228 = vsel %vm4220, %v4213, 0
      %v4231 = vsel %vm4220, %v4215, 0
      %v4234 = vand.u32 %v4179, %v1656
      %4236 = vmatprep.subr.bf16.mxu0 0
      %4237 = vmatpush1.bf16.msra.mxu0 %v4171
      %4238 = vmatprep.subr.bf16.mxu0 0
      %4239 = vmatpush1.bf16.msra.mxu0 %v4172
      %4240 = vmatprep.subr.bf16.mxu0 0
      %4241 = vmatpush1.bf16.msra.mxu0 %v4173
      %4242 = vmatprep.subr.bf16.mxu0 0
      %4243 = vmatpush1.bf16.msra.mxu0 %v4174
      %4244 = vmatprep.subr.bf16.mxu0 0
      %4245 = vmatpush1.bf16.msra.mxu0 %v4175
      %4246 = vmatprep.subr.bf16.mxu0 0
      %4247 = vmatpush1.bf16.msra.mxu0 %v4176
      %4248 = vmatprep.subr.bf16.mxu0 0
      %4249 = vmatpush1.bf16.msra.mxu0 %v4177
      %4250 = vmatprep.subr.bf16.mxu0 0
      %4251 = vmatpush1.bf16.msra.mxu0 %v4178
      %4252 = vmatprep.subr.bf16.mxu0 0
      %4253 = vmatpush1.bf16.msra.mxu0 %v4234
      %4254 = vmatprep.subr.bf16.mxu0 0
      %4255 = vmatpush1.bf16.msra.mxu0 0
      %4256 = vmatprep.subr.bf16.mxu0 0
      %4257 = vmatpush1.bf16.msra.mxu0 0
      %4258 = vmatprep.subr.bf16.mxu0 0
      %4259 = vmatpush1.bf16.msra.mxu0 0
      %4260 = vmatprep.subr.bf16.mxu0 0
      %4261 = vmatpush1.bf16.msra.mxu0 0
      %4262 = vmatprep.subr.bf16.mxu0 0
      %4263 = vmatpush1.bf16.msra.mxu0 0
      %4264 = vmatprep.subr.bf16.mxu0 0
      %4265 = vmatpush1.bf16.msra.mxu0 0
      %4266 = vmatprep.subr.bf16.mxu0 0
      %4267 = vmatpush1.bf16.msra.mxu0 0
      %4268 = vmatprep.mubr.bf16.mxu0 %v4222
      %4269 = vmatmul.mubr.bf16.gmra.mrb[0].mxu0 %v4208
      %v4270 = vpop.f32.mrb[0].mxu0
      %v4271 = vadd.f32 0.0, %v4270
      %v4272 = vpop.f32.mrb[0].mxu0
      %v4273 = vpop.f32.mrb[0].mxu0
      %v4274 = vadd.f32 0.0, %v4273
      %v4275 = vpop.f32.mrb[0].mxu0
      %4276 = vmatprep.mubr.bf16.mxu0 %v4225
      %4277 = vmatmul.mubr.bf16.gmra.mrb[0].mxu0 %v4210
      %v4278 = vpop.f32.mrb[0].mxu0
      %v4279 = vadd.f32 0.0, %v4278
      %v4280 = vpop.f32.mrb[0].mxu0
      %v4281 = vpop.f32.mrb[0].mxu0
      %v4282 = vadd.f32 0.0, %v4281
      %v4283 = vpop.f32.mrb[0].mxu0
      %4284 = vmatprep.mubr.bf16.mxu0 %v4228
      %4285 = vmatmul.mubr.bf16.gmra.mrb[0].mxu0 %v4212
      %v4286 = vpop.f32.mrb[0].mxu0
      %v4287 = vadd.f32 0.0, %v4286
      %v4288 = vpop.f32.mrb[0].mxu0
      %v4289 = vpop.f32.mrb[0].mxu0
      %v4290 = vadd.f32 0.0, %v4289
      %v4291 = vpop.f32.mrb[0].mxu0
      %4292 = vmatprep.mubr.bf16.mxu0 %v4231
      %4293 = vmatmul.mubr.bf16.gmra.mrb[0].mxu0 %v4214
      %v4294 = vpop.f32.mrb[0].mxu0
      %v4295 = vadd.f32 0.0, %v4294
      %v4296 = vpop.f32.mrb[0].mxu0
      %v4297 = vpop.f32.mrb[0].mxu0
      %v4298 = vpop.f32.mrb[0].mxu0
      %4299 = vdwg.mxu0
      %v4300 = vpack.c.bf16 %v4274, %v4271
      %v4301 = vpack.c.bf16 %v4282, %v4279
      %v4302 = vpack.c.bf16 %v4290, %v4287
      %v4303 = vpack.c.bf16 %v4295, %v4295
      %v4304 = vld [vmem:[%s7] sm:$0xf]
      %v4305 = vld [vmem:[%s7 + $0x4] sm:$0xf]
      %v4306 = vld [vmem:[%s7 + $0x8] sm:$0xf]
      %v4307 = vld [vmem:[%s7 + $0xc] sm:$0xf]
      %v4308 = vld [vmem:[%s7 + $0x10] sm:$0xf]
      %v4309 = vld [vmem:[%s7 + $0x14] sm:$0xf]
      %v4310 = vld [vmem:[%s7 + $0x18] sm:$0xf]
      %v4311 = vld [vmem:[%s7 + $0x1c] sm:$0xf]
      %v4312 = vld [vmem:[%s7 + $0x20] sm:$0xf]
      %v4313 = vld [vmem:[%s7 + $0x24] sm:$0xf]
      %v4314 = vld [vmem:[%s7 + $0x28] sm:$0xf]
      %v4315 = vld [vmem:[%s7 + $0x2c] sm:$0xf]
      %v4316 = vld [vmem:[%s7 + $0x30] sm:$0xf]
      %v4317 = vld [vmem:[%s7 + $0x34] sm:$0xf]
      %v4318 = vld [vmem:[%s7 + $0x38] sm:$0xf]
      %v4319 = vld [vmem:[%s7 + $0x3c] sm:$0xf]
      %s4320 = scalar_lea.vmem %s7, 64
      %v4321 = vld [vmem:[%s4320] sm:$0xf]
      %v4322 = vld [vmem:[%s4320 + $0x4] sm:$0xf]
      %v4323 = vld [vmem:[%s4320 + $0x8] sm:$0xf]
      %v4324 = vld [vmem:[%s4320 + $0xc] sm:$0xf]
      %v4325 = vld [vmem:[%s4320 + $0x10] sm:$0xf]
      %v4326 = vld [vmem:[%s4320 + $0x14] sm:$0xf]
      %v4327 = vld [vmem:[%s4320 + $0x18] sm:$0xf]
      %v4328 = vld [vmem:[%s4320 + $0x1c] sm:$0xf]
      %v4329 = vld [vmem:[%s4320 + $0x20] sm:$0xf]
      %v4330 = vld [vmem:[%s4320 + $0x24] sm:$0xf]
      %v4331 = vld [vmem:[%s4320 + $0x28] sm:$0xf]
      %v4332 = vld [vmem:[%s4320 + $0x2c] sm:$0xf]
      %v4333 = vld [vmem:[%s4320 + $0x30] sm:$0xf]
      %v4334 = vld [vmem:[%s4320 + $0x34] sm:$0xf]
      %v4335 = vld [vmem:[%s4320 + $0x38] sm:$0xf]
      %v4336 = vld [vmem:[%s4320 + $0x3c] sm:$0xf]
      %v4338 = vshrl.u32 %v4300, 16
      %v4340 = vshll.u32 %v4300, 16
      %v4342 = vrot.slane %v4340, 1
      %v4343 = vor.u32 %v4338, %v4342
      %v4345 = vshll.u32 %v4301, 16
      %v4347 = vrot.slane %v4345, 1
      %v4348 = vsel %vm1101, %v4343, %v4347
      %v4349 = vshrl.u32 %v4301, 16
      %v4351 = vor.u32 %v4349, %v4347
      %v4353 = vshll.u32 %v4302, 16
      %v4355 = vrot.slane %v4353, 1
      %v4356 = vsel %vm1101, %v4351, %v4355
      %v4357 = vshrl.u32 %v4302, 16
      %v4359 = vor.u32 %v4357, %v4355
      %v4379 = vunpack.c.l.b16 %v4321
      %v4380 = vunpack.c.l.b16 %v4322
      %v4381 = vunpack.c.l.b16 %v4323
      %v4382 = vunpack.c.l.b16 %v4324
      %v4383 = vunpack.c.l.b16 %v4325
      %v4384 = vunpack.c.l.b16 %v4326
      %v4385 = vunpack.c.l.b16 %v4327
      %v4386 = vunpack.c.l.b16 %v4328
      %v4387 = vunpack.c.l.b16 %v4329
      %v4388 = vunpack.c.l.b16 %v4330
      %v4389 = vunpack.c.l.b16 %v4331
      %v4390 = vunpack.c.l.b16 %v4332
      %v4391 = vunpack.c.l.b16 %v4333
      %v4392 = vunpack.c.l.b16 %v4334
      %v4393 = vunpack.c.l.b16 %v4335
      %v4394 = vunpack.c.l.b16 %v4336
      %v4395 = vpack.c.b16 %v4380, %v4379
      %v4396 = vpack.c.b16 %v4382, %v4381
      %v4397 = vpack.c.b16 %v4384, %v4383
      %v4398 = vpack.c.b16 %v4386, %v4385
      %v4399 = vpack.c.b16 %v4388, %v4387
      %v4400 = vpack.c.b16 %v4390, %v4389
      %v4401 = vpack.c.b16 %v4392, %v4391
      %v4402 = vpack.c.b16 %v4394, %v4393
      %4411 = vmatprep.subr.bf16.mxu0 0
      %4412 = vmatpush1.bf16.msra.mxu0 %v4395
      %4413 = vmatprep.subr.bf16.mxu0 0
      %4414 = vmatpush1.bf16.msra.mxu0 %v4396
      %4415 = vmatprep.subr.bf16.mxu0 0
      %4416 = vmatpush1.bf16.msra.mxu0 %v4397
      %4417 = vmatprep.subr.bf16.mxu0 0
      %4418 = vmatpush1.bf16.msra.mxu0 %v4398
      %4419 = vmatprep.subr.bf16.mxu0 0
      %4420 = vmatpush1.bf16.msra.mxu0 %v4399
      %4421 = vmatprep.subr.bf16.mxu0 0
      %4422 = vmatpush1.bf16.msra.mxu0 %v4400
      %4423 = vmatprep.subr.bf16.mxu0 0
      %4424 = vmatpush1.bf16.msra.mxu0 %v4401
      %4425 = vmatprep.subr.bf16.mxu0 0
      %4426 = vmatpush1.bf16.msra.mxu0 %v4402
      %4427 = vmatprep.subr.bf16.mxu0 0
      %4428 = vmatpush1.bf16.msra.mxu0 0
      %4429 = vmatprep.subr.bf16.mxu0 0
      %4430 = vmatpush1.bf16.msra.mxu0 0
      %4431 = vmatprep.subr.bf16.mxu0 0
      %4432 = vmatpush1.bf16.msra.mxu0 0
      %4433 = vmatprep.subr.bf16.mxu0 0
      %4434 = vmatpush1.bf16.msra.mxu0 0
      %4435 = vmatprep.subr.bf16.mxu0 0
      %4436 = vmatpush1.bf16.msra.mxu0 0
      %4437 = vmatprep.subr.bf16.mxu0 0
      %4438 = vmatpush1.bf16.msra.mxu0 0
      %4439 = vmatprep.subr.bf16.mxu0 0
      %4440 = vmatpush1.bf16.msra.mxu0 0
      %4441 = vmatprep.subr.bf16.mxu0 0
      %4442 = vmatpush1.bf16.msra.mxu0 0
      %4443 = vmatprep.mubr.bf16.mxu0 0
      %4444 = vmatmul.mubr.bf16.gmra.mrb[0].mxu0 %v4348
      %v4445 = vpop.f32.mrb[0].mxu0
      %v4446 = vadd.f32 0.0, %v4445
      %v4447 = vpop.f32.mrb[0].mxu0
      %v4448 = vpop.f32.mrb[0].mxu0
      %v4449 = vadd.f32 0.0, %v4448
      %v4450 = vpop.f32.mrb[0].mxu0
      %4451 = vmatprep.mubr.bf16.mxu0 0
      %4452 = vmatmul.mubr.bf16.gmra.mrb[0].mxu0 %v4356
      %v4453 = vpop.f32.mrb[0].mxu0
      %v4454 = vadd.f32 0.0, %v4453
      %v4455 = vpop.f32.mrb[0].mxu0
      %v4456 = vpop.f32.mrb[0].mxu0
      %v4457 = vadd.f32 0.0, %v4456
      %v4458 = vpop.f32.mrb[0].mxu0
      %4459 = vmatprep.mubr.bf16.mxu0 0
      %4460 = vmatmul.mubr.bf16.gmra.mrb[0].mxu0 %v4359
      %v4461 = vpop.f32.mrb[0].mxu0
      %v4462 = vadd.f32 0.0, %v4461
      %v4463 = vpop.f32.mrb[0].mxu0
      %v4464 = vpop.f32.mrb[0].mxu0
      %v4465 = vpop.f32.mrb[0].mxu0
      %4466 = vdwg.mxu0
      %v4483 = vunpack.c.l.b16 %v4304
      %v4484 = vunpack.c.l.b16 %v4305
      %v4485 = vunpack.c.l.b16 %v4306
      %v4486 = vunpack.c.l.b16 %v4307
      %v4487 = vunpack.c.l.b16 %v4308
      %v4488 = vunpack.c.l.b16 %v4309
      %v4489 = vunpack.c.l.b16 %v4310
      %v4490 = vunpack.c.l.b16 %v4311
      %v4491 = vunpack.c.l.b16 %v4312
      %v4492 = vunpack.c.l.b16 %v4313
      %v4493 = vunpack.c.l.b16 %v4314
      %v4494 = vunpack.c.l.b16 %v4315
      %v4495 = vunpack.c.l.b16 %v4316
      %v4496 = vunpack.c.l.b16 %v4317
      %v4497 = vunpack.c.l.b16 %v4318
      %v4498 = vunpack.c.l.b16 %v4319
      %v4499 = vpack.c.b16 %v4484, %v4483
      %v4500 = vpack.c.b16 %v4486, %v4485
      %v4501 = vpack.c.b16 %v4488, %v4487
      %v4502 = vpack.c.b16 %v4490, %v4489
      %v4503 = vpack.c.b16 %v4492, %v4491
      %v4504 = vpack.c.b16 %v4494, %v4493
      %v4505 = vpack.c.b16 %v4496, %v4495
      %v4506 = vpack.c.b16 %v4498, %v4497
      %4515 = vmatprep.subr.bf16.mxu0 0
      %4516 = vmatpush1.bf16.msra.mxu0 %v4499
      %4517 = vmatprep.subr.bf16.mxu0 0
      %4518 = vmatpush1.bf16.msra.mxu0 %v4500
      %4519 = vmatprep.subr.bf16.mxu0 0
      %4520 = vmatpush1.bf16.msra.mxu0 %v4501
      %4521 = vmatprep.subr.bf16.mxu0 0
      %4522 = vmatpush1.bf16.msra.mxu0 %v4502
      %4523 = vmatprep.subr.bf16.mxu0 0
      %4524 = vmatpush1.bf16.msra.mxu0 %v4503
      %4525 = vmatprep.subr.bf16.mxu0 0
      %4526 = vmatpush1.bf16.msra.mxu0 %v4504
      %4527 = vmatprep.subr.bf16.mxu0 0
      %4528 = vmatpush1.bf16.msra.mxu0 %v4505
      %4529 = vmatprep.subr.bf16.mxu0 0
      %4530 = vmatpush1.bf16.msra.mxu0 %v4506
      %4531 = vmatprep.subr.bf16.mxu0 0
      %4532 = vmatpush1.bf16.msra.mxu0 0
      %4533 = vmatprep.subr.bf16.mxu0 0
      %4534 = vmatpush1.bf16.msra.mxu0 0
      %4535 = vmatprep.subr.bf16.mxu0 0
      %4536 = vmatpush1.bf16.msra.mxu0 0
      %4537 = vmatprep.subr.bf16.mxu0 0
      %4538 = vmatpush1.bf16.msra.mxu0 0
      %4539 = vmatprep.subr.bf16.mxu0 0
      %4540 = vmatpush1.bf16.msra.mxu0 0
      %4541 = vmatprep.subr.bf16.mxu0 0
      %4542 = vmatpush1.bf16.msra.mxu0 0
      %4543 = vmatprep.subr.bf16.mxu0 0
      %4544 = vmatpush1.bf16.msra.mxu0 0
      %4545 = vmatprep.subr.bf16.mxu0 0
      %4546 = vmatpush1.bf16.msra.mxu0 0
      %4547 = vmatprep.mubr.bf16.mxu0 0
      %4548 = vmatmul.mubr.bf16.gmra.mrb[0].mxu0 %v4300
      %v4549 = vpop.f32.mrb[0].mxu0
      %v4550 = vadd.f32 %v4446, %v4549
      %v4551 = vpop.f32.mrb[0].mxu0
      %v4552 = vpop.f32.mrb[0].mxu0
      %v4553 = vadd.f32 %v4449, %v4552
      %v4554 = vpop.f32.mrb[0].mxu0
      %4555 = vmatprep.mubr.bf16.mxu0 0
      %4556 = vmatmul.mubr.bf16.gmra.mrb[0].mxu0 %v4301
      %v4557 = vpop.f32.mrb[0].mxu0
      %v4558 = vadd.f32 %v4454, %v4557
      %v4559 = vpop.f32.mrb[0].mxu0
      %v4560 = vpop.f32.mrb[0].mxu0
      %v4561 = vadd.f32 %v4457, %v4560
      %v4562 = vpop.f32.mrb[0].mxu0
      %4563 = vmatprep.mubr.bf16.mxu0 0
      %4564 = vmatmul.mubr.bf16.gmra.mrb[0].mxu0 %v4302
      %v4565 = vpop.f32.mrb[0].mxu0
      %v4566 = vadd.f32 %v4462, %v4565
      %v4567 = vpop.f32.mrb[0].mxu0
      %v4568 = vpop.f32.mrb[0].mxu0
      %v4569 = vpop.f32.mrb[0].mxu0
      %4570 = vdwg.mxu0
      %s4571 = scalar_lea.vmem %s7, 128
      %v4572 = vld [vmem:[%s4571] sm:$0xf]
      %v4573 = vld [vmem:[%s4571 + $0x4] sm:$0xf]
      %v4574 = vld [vmem:[%s4571 + $0x8] sm:$0xf]
      %v4575 = vld [vmem:[%s4571 + $0xc] sm:$0xf]
      %v4576 = vld [vmem:[%s4571 + $0x10] sm:$0xf]
      %v4577 = vld [vmem:[%s4571 + $0x14] sm:$0xf]
      %v4578 = vld [vmem:[%s4571 + $0x18] sm:$0xf]
      %v4579 = vld [vmem:[%s4571 + $0x1c] sm:$0xf]
      %v4580 = vld [vmem:[%s4571 + $0x20] sm:$0xf]
      %v4581 = vld [vmem:[%s4571 + $0x24] sm:$0xf]
      %v4582 = vld [vmem:[%s4571 + $0x28] sm:$0xf]
      %v4583 = vld [vmem:[%s4571 + $0x2c] sm:$0xf]
      %v4584 = vld [vmem:[%s4571 + $0x30] sm:$0xf]
      %v4585 = vld [vmem:[%s4571 + $0x34] sm:$0xf]
      %v4586 = vld [vmem:[%s4571 + $0x38] sm:$0xf]
      %v4587 = vld [vmem:[%s4571 + $0x3c] sm:$0xf]
      %v4591 = vrot.slane %v4300, 1
      %v4592 = vrot.slane %v4301, 1
      %v4593 = vsel %vm1331, %v4591, %v4592
      %v4594 = vrot.slane %v4302, 1
      %v4595 = vsel %vm1331, %v4592, %v4594
      %v4615 = vunpack.c.l.b16 %v4572
      %v4616 = vunpack.c.l.b16 %v4573
      %v4617 = vunpack.c.l.b16 %v4574
      %v4618 = vunpack.c.l.b16 %v4575
      %v4619 = vunpack.c.l.b16 %v4576
      %v4620 = vunpack.c.l.b16 %v4577
      %v4621 = vunpack.c.l.b16 %v4578
      %v4622 = vunpack.c.l.b16 %v4579
      %v4623 = vunpack.c.l.b16 %v4580
      %v4624 = vunpack.c.l.b16 %v4581
      %v4625 = vunpack.c.l.b16 %v4582
      %v4626 = vunpack.c.l.b16 %v4583
      %v4627 = vunpack.c.l.b16 %v4584
      %v4628 = vunpack.c.l.b16 %v4585
      %v4629 = vunpack.c.l.b16 %v4586
      %v4630 = vunpack.c.l.b16 %v4587
      %v4631 = vpack.c.b16 %v4616, %v4615
      %v4632 = vpack.c.b16 %v4618, %v4617
      %v4633 = vpack.c.b16 %v4620, %v4619
      %v4634 = vpack.c.b16 %v4622, %v4621
      %v4635 = vpack.c.b16 %v4624, %v4623
      %v4636 = vpack.c.b16 %v4626, %v4625
      %v4637 = vpack.c.b16 %v4628, %v4627
      %v4638 = vpack.c.b16 %v4630, %v4629
      %4647 = vmatprep.subr.bf16.mxu0 0
      %4648 = vmatpush1.bf16.msra.mxu0 %v4631
      %4649 = vmatprep.subr.bf16.mxu0 0
      %4650 = vmatpush1.bf16.msra.mxu0 %v4632
      %4651 = vmatprep.subr.bf16.mxu0 0
      %4652 = vmatpush1.bf16.msra.mxu0 %v4633
      %4653 = vmatprep.subr.bf16.mxu0 0
      %4654 = vmatpush1.bf16.msra.mxu0 %v4634
      %4655 = vmatprep.subr.bf16.mxu0 0
      %4656 = vmatpush1.bf16.msra.mxu0 %v4635
      %4657 = vmatprep.subr.bf16.mxu0 0
      %4658 = vmatpush1.bf16.msra.mxu0 %v4636
      %4659 = vmatprep.subr.bf16.mxu0 0
      %4660 = vmatpush1.bf16.msra.mxu0 %v4637
      %4661 = vmatprep.subr.bf16.mxu0 0
      %4662 = vmatpush1.bf16.msra.mxu0 %v4638
      %4663 = vmatprep.subr.bf16.mxu0 0
      %4664 = vmatpush1.bf16.msra.mxu0 0
      %4665 = vmatprep.subr.bf16.mxu0 0
      %4666 = vmatpush1.bf16.msra.mxu0 0
      %4667 = vmatprep.subr.bf16.mxu0 0
      %4668 = vmatpush1.bf16.msra.mxu0 0
      %4669 = vmatprep.subr.bf16.mxu0 0
      %4670 = vmatpush1.bf16.msra.mxu0 0
      %4671 = vmatprep.subr.bf16.mxu0 0
      %4672 = vmatpush1.bf16.msra.mxu0 0
      %4673 = vmatprep.subr.bf16.mxu0 0
      %4674 = vmatpush1.bf16.msra.mxu0 0
      %4675 = vmatprep.subr.bf16.mxu0 0
      %4676 = vmatpush1.bf16.msra.mxu0 0
      %4677 = vmatprep.subr.bf16.mxu0 0
      %4678 = vmatpush1.bf16.msra.mxu0 0
      %4679 = vmatprep.mubr.bf16.mxu0 0
      %4680 = vmatmul.mubr.bf16.gmra.mrb[0].mxu0 %v4593
      %v4681 = vpop.f32.mrb[0].mxu0
      %v4682 = vadd.f32 0.0, %v4681
      %v4683 = vpop.f32.mrb[0].mxu0
      %v4684 = vpop.f32.mrb[0].mxu0
      %v4685 = vadd.f32 0.0, %v4684
      %v4686 = vpop.f32.mrb[0].mxu0
      %4687 = vmatprep.mubr.bf16.mxu0 0
      %4688 = vmatmul.mubr.bf16.gmra.mrb[0].mxu0 %v4595
      %v4689 = vpop.f32.mrb[0].mxu0
      %v4690 = vadd.f32 0.0, %v4689
      %v4691 = vpop.f32.mrb[0].mxu0
      %v4692 = vpop.f32.mrb[0].mxu0
      %v4693 = vadd.f32 0.0, %v4692
      %v4694 = vpop.f32.mrb[0].mxu0
      %4695 = vmatprep.mubr.bf16.mxu0 0
      %4696 = vmatmul.mubr.bf16.gmra.mrb[0].mxu0 %v4594
      %v4697 = vpop.f32.mrb[0].mxu0
      %v4698 = vadd.f32 0.0, %v4697
      %v4699 = vpop.f32.mrb[0].mxu0
      %v4700 = vpop.f32.mrb[0].mxu0
      %v4701 = vpop.f32.mrb[0].mxu0
      %4702 = vdwg.mxu0
      %v4703 = vadd.f32 %v4550, %v4682
      %v4704 = vadd.f32 %v4553, %v4685
      %v4705 = vadd.f32 %v4558, %v4690
      %v4706 = vadd.f32 %v4561, %v4693
      %v4707 = vadd.f32 %v4566, %v4698
      %s4708 = scalar_lea.vmem %s7, 192
      %v4709 = vld [vmem:[%s4708] sm:$0xf]
      %v4710 = vld [vmem:[%s4708 + $0x4] sm:$0xf]
      %v4711 = vld [vmem:[%s4708 + $0x8] sm:$0xf]
      %v4712 = vld [vmem:[%s4708 + $0xc] sm:$0xf]
      %v4713 = vld [vmem:[%s4708 + $0x10] sm:$0xf]
      %v4714 = vld [vmem:[%s4708 + $0x14] sm:$0xf]
      %v4715 = vld [vmem:[%s4708 + $0x18] sm:$0xf]
      %v4716 = vld [vmem:[%s4708 + $0x1c] sm:$0xf]
      %v4717 = vld [vmem:[%s4708 + $0x20] sm:$0xf]
      %v4718 = vld [vmem:[%s4708 + $0x24] sm:$0xf]
      %v4719 = vld [vmem:[%s4708 + $0x28] sm:$0xf]
      %v4720 = vld [vmem:[%s4708 + $0x2c] sm:$0xf]
      %v4721 = vld [vmem:[%s4708 + $0x30] sm:$0xf]
      %v4722 = vld [vmem:[%s4708 + $0x34] sm:$0xf]
      %v4723 = vld [vmem:[%s4708 + $0x38] sm:$0xf]
      %v4724 = vld [vmem:[%s4708 + $0x3c] sm:$0xf]
      %vm4725 = vsmask.f32 4352
      %v4726 = vrot.slane %v4338, 3
      %v4727 = vrot.slane %v4340, 4
      %v4728 = vor.u32 %v4726, %v4727
      %v4729 = vrot.slane %v4349, 3
      %v4730 = vrot.slane %v4345, 4
      %v4731 = vor.u32 %v4729, %v4730
      %v4732 = vsel %vm4725, %v4728, %v4731
      %v4733 = vrot.slane %v4357, 3
      %v4734 = vrot.slane %v4353, 4
      %v4735 = vor.u32 %v4733, %v4734
      %v4736 = vsel %vm4725, %v4731, %v4735
      %v4756 = vunpack.c.l.b16 %v4709
      %v4757 = vunpack.c.l.b16 %v4710
      %v4758 = vunpack.c.l.b16 %v4711
      %v4759 = vunpack.c.l.b16 %v4712
      %v4760 = vunpack.c.l.b16 %v4713
      %v4761 = vunpack.c.l.b16 %v4714
      %v4762 = vunpack.c.l.b16 %v4715
      %v4763 = vunpack.c.l.b16 %v4716
      %v4764 = vunpack.c.l.b16 %v4717
      %v4765 = vunpack.c.l.b16 %v4718
      %v4766 = vunpack.c.l.b16 %v4719
      %v4767 = vunpack.c.l.b16 %v4720
      %v4768 = vunpack.c.l.b16 %v4721
      %v4769 = vunpack.c.l.b16 %v4722
      %v4770 = vunpack.c.l.b16 %v4723
      %v4771 = vunpack.c.l.b16 %v4724
      %v4772 = vpack.c.b16 %v4757, %v4756
      %v4773 = vpack.c.b16 %v4759, %v4758
      %v4774 = vpack.c.b16 %v4761, %v4760
      %v4775 = vpack.c.b16 %v4763, %v4762
      %v4776 = vpack.c.b16 %v4765, %v4764
      %v4777 = vpack.c.b16 %v4767, %v4766
      %v4778 = vpack.c.b16 %v4769, %v4768
      %v4779 = vpack.c.b16 %v4771, %v4770
      %4788 = vmatprep.subr.bf16.mxu0 0
      %4789 = vmatpush1.bf16.msra.mxu0 %v4772
      %4790 = vmatprep.subr.bf16.mxu0 0
      %4791 = vmatpush1.bf16.msra.mxu0 %v4773
      %4792 = vmatprep.subr.bf16.mxu0 0
      %4793 = vmatpush1.bf16.msra.mxu0 %v4774
      %4794 = vmatprep.subr.bf16.mxu0 0
      %4795 = vmatpush1.bf16.msra.mxu0 %v4775
      %4796 = vmatprep.subr.bf16.mxu0 0
      %4797 = vmatpush1.bf16.msra.mxu0 %v4776
      %4798 = vmatprep.subr.bf16.mxu0 0
      %4799 = vmatpush1.bf16.msra.mxu0 %v4777
      %4800 = vmatprep.subr.bf16.mxu0 0
      %4801 = vmatpush1.bf16.msra.mxu0 %v4778
      %4802 = vmatprep.subr.bf16.mxu0 0
      %4803 = vmatpush1.bf16.msra.mxu0 %v4779
      %4804 = vmatprep.subr.bf16.mxu0 0
      %4805 = vmatpush1.bf16.msra.mxu0 0
      %4806 = vmatprep.subr.bf16.mxu0 0
      %4807 = vmatpush1.bf16.msra.mxu0 0
      %4808 = vmatprep.subr.bf16.mxu0 0
      %4809 = vmatpush1.bf16.msra.mxu0 0
      %4810 = vmatprep.subr.bf16.mxu0 0
      %4811 = vmatpush1.bf16.msra.mxu0 0
      %4812 = vmatprep.subr.bf16.mxu0 0
      %4813 = vmatpush1.bf16.msra.mxu0 0
      %4814 = vmatprep.subr.bf16.mxu0 0
      %4815 = vmatpush1.bf16.msra.mxu0 0
      %4816 = vmatprep.subr.bf16.mxu0 0
      %4817 = vmatpush1.bf16.msra.mxu0 0
      %4818 = vmatprep.subr.bf16.mxu0 0
      %4819 = vmatpush1.bf16.msra.mxu0 0
      %4820 = vmatprep.mubr.bf16.mxu0 0
      %4821 = vmatmul.mubr.bf16.gmra.mrb[0].mxu0 %v4732
      %v4822 = vpop.f32.mrb[0].mxu0
      %v4823 = vadd.f32 0.0, %v4822
      %v4824 = vpop.f32.mrb[0].mxu0
      %v4825 = vpop.f32.mrb[0].mxu0
      %v4826 = vadd.f32 0.0, %v4825
      %v4827 = vpop.f32.mrb[0].mxu0
      %4828 = vmatprep.mubr.bf16.mxu0 0
      %4829 = vmatmul.mubr.bf16.gmra.mrb[0].mxu0 %v4736
      %v4830 = vpop.f32.mrb[0].mxu0
      %v4831 = vadd.f32 0.0, %v4830
      %v4832 = vpop.f32.mrb[0].mxu0
      %v4833 = vpop.f32.mrb[0].mxu0
      %v4834 = vadd.f32 0.0, %v4833
      %v4835 = vpop.f32.mrb[0].mxu0
      %4836 = vmatprep.mubr.bf16.mxu0 0
      %4837 = vmatmul.mubr.bf16.gmra.mrb[0].mxu0 %v4735
      %v4838 = vpop.f32.mrb[0].mxu0
      %v4839 = vadd.f32 0.0, %v4838
      %v4840 = vpop.f32.mrb[0].mxu0
      %v4841 = vpop.f32.mrb[0].mxu0
      %v4842 = vpop.f32.mrb[0].mxu0
      %4843 = vdwg.mxu0
      %v4844 = vadd.f32 %v4703, %v4823
      %v4845 = vadd.f32 %v4704, %v4826
      %v4846 = vadd.f32 %v4705, %v4831
      %v4847 = vadd.f32 %v4706, %v4834
      %v4848 = vadd.f32 %v4707, %v4839
      %s4849 = scalar_lea.vmem %s7, 256
      %v4850 = vld [vmem:[%s4849] sm:$0xf]
      %v4851 = vld [vmem:[%s4849 + $0x4] sm:$0xf]
      %v4852 = vld [vmem:[%s4849 + $0x8] sm:$0xf]
      %v4853 = vld [vmem:[%s4849 + $0xc] sm:$0xf]
      %v4854 = vld [vmem:[%s4849 + $0x10] sm:$0xf]
      %v4855 = vld [vmem:[%s4849 + $0x14] sm:$0xf]
      %v4856 = vld [vmem:[%s4849 + $0x18] sm:$0xf]
      %v4857 = vld [vmem:[%s4849 + $0x1c] sm:$0xf]
      %v4858 = vld [vmem:[%s4849 + $0x20] sm:$0xf]
      %v4859 = vld [vmem:[%s4849 + $0x24] sm:$0xf]
      %v4860 = vld [vmem:[%s4849 + $0x28] sm:$0xf]
      %v4861 = vld [vmem:[%s4849 + $0x2c] sm:$0xf]
      %v4862 = vld [vmem:[%s4849 + $0x30] sm:$0xf]
      %v4863 = vld [vmem:[%s4849 + $0x34] sm:$0xf]
      %v4864 = vld [vmem:[%s4849 + $0x38] sm:$0xf]
      %v4865 = vld [vmem:[%s4849 + $0x3c] sm:$0xf]
      %vm4866 = vcmask 1043456
      %v4867 = vrot.slane %v4300, 4
      %v4868 = vrot.slane %v4301, 4
      %v4869 = vsel %vm4866, %v4867, %v4868
      %v4870 = vrot.slane %v4302, 4
      %v4871 = vsel %vm4866, %v4868, %v4870
      %v4891 = vunpack.c.l.b16 %v4850
      %v4892 = vunpack.c.l.b16 %v4851
      %v4893 = vunpack.c.l.b16 %v4852
      %v4894 = vunpack.c.l.b16 %v4853
      %v4895 = vunpack.c.l.b16 %v4854
      %v4896 = vunpack.c.l.b16 %v4855
      %v4897 = vunpack.c.l.b16 %v4856
      %v4898 = vunpack.c.l.b16 %v4857
      %v4899 = vunpack.c.l.b16 %v4858
      %v4900 = vunpack.c.l.b16 %v4859
      %v4901 = vunpack.c.l.b16 %v4860
      %v4902 = vunpack.c.l.b16 %v4861
      %v4903 = vunpack.c.l.b16 %v4862
      %v4904 = vunpack.c.l.b16 %v4863
      %v4905 = vunpack.c.l.b16 %v4864
      %v4906 = vunpack.c.l.b16 %v4865
      %v4907 = vpack.c.b16 %v4892, %v4891
      %v4908 = vpack.c.b16 %v4894, %v4893
      %v4909 = vpack.c.b16 %v4896, %v4895
      %v4910 = vpack.c.b16 %v4898, %v4897
      %v4911 = vpack.c.b16 %v4900, %v4899
      %v4912 = vpack.c.b16 %v4902, %v4901
      %v4913 = vpack.c.b16 %v4904, %v4903
      %v4914 = vpack.c.b16 %v4906, %v4905
      %4923 = vmatprep.subr.bf16.mxu0 0
      %4924 = vmatpush1.bf16.msra.mxu0 %v4907
      %4925 = vmatprep.subr.bf16.mxu0 0
      %4926 = vmatpush1.bf16.msra.mxu0 %v4908
      %4927 = vmatprep.subr.bf16.mxu0 0
      %4928 = vmatpush1.bf16.msra.mxu0 %v4909
      %4929 = vmatprep.subr.bf16.mxu0 0
      %4930 = vmatpush1.bf16.msra.mxu0 %v4910
      %4931 = vmatprep.subr.bf16.mxu0 0
      %4932 = vmatpush1.bf16.msra.mxu0 %v4911
      %4933 = vmatprep.subr.bf16.mxu0 0
      %4934 = vmatpush1.bf16.msra.mxu0 %v4912
      %4935 = vmatprep.subr.bf16.mxu0 0
      %4936 = vmatpush1.bf16.msra.mxu0 %v4913
      %4937 = vmatprep.subr.bf16.mxu0 0
      %4938 = vmatpush1.bf16.msra.mxu0 %v4914
      %4939 = vmatprep.subr.bf16.mxu0 0
      %4940 = vmatpush1.bf16.msra.mxu0 0
      %4941 = vmatprep.subr.bf16.mxu0 0
      %4942 = vmatpush1.bf16.msra.mxu0 0
      %4943 = vmatprep.subr.bf16.mxu0 0
      %4944 = vmatpush1.bf16.msra.mxu0 0
      %4945 = vmatprep.subr.bf16.mxu0 0
      %4946 = vmatpush1.bf16.msra.mxu0 0
      %4947 = vmatprep.subr.bf16.mxu0 0
      %4948 = vmatpush1.bf16.msra.mxu0 0
      %4949 = vmatprep.subr.bf16.mxu0 0
      %4950 = vmatpush1.bf16.msra.mxu0 0
      %4951 = vmatprep.subr.bf16.mxu0 0
      %4952 = vmatpush1.bf16.msra.mxu0 0
      %4953 = vmatprep.subr.bf16.mxu0 0
      %4954 = vmatpush1.bf16.msra.mxu0 0
      %4955 = vmatprep.mubr.bf16.mxu0 0
      %4956 = vmatmul.mubr.bf16.gmra.mrb[0].mxu0 %v4869
      %v4957 = vpop.f32.mrb[0].mxu0
      %v4958 = vadd.f32 0.0, %v4957
      %v4959 = vpop.f32.mrb[0].mxu0
      %v4960 = vpop.f32.mrb[0].mxu0
      %v4961 = vadd.f32 0.0, %v4960
      %v4962 = vpop.f32.mrb[0].mxu0
      %4963 = vmatprep.mubr.bf16.mxu0 0
      %4964 = vmatmul.mubr.bf16.gmra.mrb[0].mxu0 %v4871
      %v4965 = vpop.f32.mrb[0].mxu0
      %v4966 = vadd.f32 0.0, %v4965
      %v4967 = vpop.f32.mrb[0].mxu0
      %v4968 = vpop.f32.mrb[0].mxu0
      %v4969 = vadd.f32 0.0, %v4968
      %v4970 = vpop.f32.mrb[0].mxu0
      %4971 = vmatprep.mubr.bf16.mxu0 0
      %4972 = vmatmul.mubr.bf16.gmra.mrb[0].mxu0 %v4870
      %v4973 = vpop.f32.mrb[0].mxu0
      %v4974 = vadd.f32 0.0, %v4973
      %v4975 = vpop.f32.mrb[0].mxu0
      %v4976 = vpop.f32.mrb[0].mxu0
      %v4977 = vpop.f32.mrb[0].mxu0
      %4978 = vdwg.mxu0
      %v4979 = vadd.f32 %v4844, %v4958
      %v4980 = vadd.f32 %v4845, %v4961
      %v4981 = vadd.f32 %v4846, %v4966
      %v4982 = vadd.f32 %v4847, %v4969
      %v4983 = vadd.f32 %v4848, %v4974
      %s4984 = scalar_lea.vmem %s7, 320
      %v4985 = vld [vmem:[%s4984] sm:$0xf]
      %v4986 = vld [vmem:[%s4984 + $0x4] sm:$0xf]
      %v4987 = vld [vmem:[%s4984 + $0x8] sm:$0xf]
      %v4988 = vld [vmem:[%s4984 + $0xc] sm:$0xf]
      %v4989 = vld [vmem:[%s4984 + $0x10] sm:$0xf]
      %v4990 = vld [vmem:[%s4984 + $0x14] sm:$0xf]
      %v4991 = vld [vmem:[%s4984 + $0x18] sm:$0xf]
      %v4992 = vld [vmem:[%s4984 + $0x1c] sm:$0xf]
      %v4993 = vld [vmem:[%s4984 + $0x20] sm:$0xf]
      %v4994 = vld [vmem:[%s4984 + $0x24] sm:$0xf]
      %v4995 = vld [vmem:[%s4984 + $0x28] sm:$0xf]
      %v4996 = vld [vmem:[%s4984 + $0x2c] sm:$0xf]
      %v4997 = vld [vmem:[%s4984 + $0x30] sm:$0xf]
      %v4998 = vld [vmem:[%s4984 + $0x34] sm:$0xf]
      %v4999 = vld [vmem:[%s4984 + $0x38] sm:$0xf]
      %v5000 = vld [vmem:[%s4984 + $0x3c] sm:$0xf]
      %vm5001 = vsmask.f32 3328
      %v5002 = vrot.slane %v4338, 4
      %v5003 = vrot.slane %v4340, 5
      %v5004 = vor.u32 %v5002, %v5003
      %v5005 = vrot.slane %v4349, 4
      %v5006 = vrot.slane %v4345, 5
      %v5007 = vor.u32 %v5005, %v5006
      %v5008 = vsel %vm5001, %v5004, %v5007
      %v5009 = vrot.slane %v4357, 4
      %v5010 = vrot.slane %v4353, 5
      %v5011 = vor.u32 %v5009, %v5010
      %v5012 = vsel %vm5001, %v5007, %v5011
      %v5032 = vunpack.c.l.b16 %v4985
      %v5033 = vunpack.c.l.b16 %v4986
      %v5034 = vunpack.c.l.b16 %v4987
      %v5035 = vunpack.c.l.b16 %v4988
      %v5036 = vunpack.c.l.b16 %v4989
      %v5037 = vunpack.c.l.b16 %v4990
      %v5038 = vunpack.c.l.b16 %v4991
      %v5039 = vunpack.c.l.b16 %v4992
      %v5040 = vunpack.c.l.b16 %v4993
      %v5041 = vunpack.c.l.b16 %v4994
      %v5042 = vunpack.c.l.b16 %v4995
      %v5043 = vunpack.c.l.b16 %v4996
      %v5044 = vunpack.c.l.b16 %v4997
      %v5045 = vunpack.c.l.b16 %v4998
      %v5046 = vunpack.c.l.b16 %v4999
      %v5047 = vunpack.c.l.b16 %v5000
      %v5048 = vpack.c.b16 %v5033, %v5032
      %v5049 = vpack.c.b16 %v5035, %v5034
      %v5050 = vpack.c.b16 %v5037, %v5036
      %v5051 = vpack.c.b16 %v5039, %v5038
      %v5052 = vpack.c.b16 %v5041, %v5040
      %v5053 = vpack.c.b16 %v5043, %v5042
      %v5054 = vpack.c.b16 %v5045, %v5044
      %v5055 = vpack.c.b16 %v5047, %v5046
      %5064 = vmatprep.subr.bf16.mxu0 0
      %5065 = vmatpush1.bf16.msra.mxu0 %v5048
      %5066 = vmatprep.subr.bf16.mxu0 0
      %5067 = vmatpush1.bf16.msra.mxu0 %v5049
      %5068 = vmatprep.subr.bf16.mxu0 0
      %5069 = vmatpush1.bf16.msra.mxu0 %v5050
      %5070 = vmatprep.subr.bf16.mxu0 0
      %5071 = vmatpush1.bf16.msra.mxu0 %v5051
      %5072 = vmatprep.subr.bf16.mxu0 0
      %5073 = vmatpush1.bf16.msra.mxu0 %v5052
      %5074 = vmatprep.subr.bf16.mxu0 0
      %5075 = vmatpush1.bf16.msra.mxu0 %v5053
      %5076 = vmatprep.subr.bf16.mxu0 0
      %5077 = vmatpush1.bf16.msra.mxu0 %v5054
      %5078 = vmatprep.subr.bf16.mxu0 0
      %5079 = vmatpush1.bf16.msra.mxu0 %v5055
      %5080 = vmatprep.subr.bf16.mxu0 0
      %5081 = vmatpush1.bf16.msra.mxu0 0
      %5082 = vmatprep.subr.bf16.mxu0 0
      %5083 = vmatpush1.bf16.msra.mxu0 0
      %5084 = vmatprep.subr.bf16.mxu0 0
      %5085 = vmatpush1.bf16.msra.mxu0 0
      %5086 = vmatprep.subr.bf16.mxu0 0
      %5087 = vmatpush1.bf16.msra.mxu0 0
      %5088 = vmatprep.subr.bf16.mxu0 0
      %5089 = vmatpush1.bf16.msra.mxu0 0
      %5090 = vmatprep.subr.bf16.mxu0 0
      %5091 = vmatpush1.bf16.msra.mxu0 0
      %5092 = vmatprep.subr.bf16.mxu0 0
      %5093 = vmatpush1.bf16.msra.mxu0 0
      %5094 = vmatprep.subr.bf16.mxu0 0
      %5095 = vmatpush1.bf16.msra.mxu0 0
      %5096 = vmatprep.mubr.bf16.mxu0 0
      %5097 = vmatmul.mubr.bf16.gmra.mrb[0].mxu0 %v5008
      %v5098 = vpop.f32.mrb[0].mxu0
      %v5099 = vadd.f32 0.0, %v5098
      %v5100 = vpop.f32.mrb[0].mxu0
      %v5101 = vpop.f32.mrb[0].mxu0
      %v5102 = vadd.f32 0.0, %v5101
      %v5103 = vpop.f32.mrb[0].mxu0
      %5104 = vmatprep.mubr.bf16.mxu0 0
      %5105 = vmatmul.mubr.bf16.gmra.mrb[0].mxu0 %v5012
      %v5106 = vpop.f32.mrb[0].mxu0
      %v5107 = vadd.f32 0.0, %v5106
      %v5108 = vpop.f32.mrb[0].mxu0
      %v5109 = vpop.f32.mrb[0].mxu0
      %v5110 = vadd.f32 0.0, %v5109
      %v5111 = vpop.f32.mrb[0].mxu0
      %5112 = vmatprep.mubr.bf16.mxu0 0
      %5113 = vmatmul.mubr.bf16.gmra.mrb[0].mxu0 %v5011
      %v5114 = vpop.f32.mrb[0].mxu0
      %v5115 = vadd.f32 0.0, %v5114
      %v5116 = vpop.f32.mrb[0].mxu0
      %v5117 = vpop.f32.mrb[0].mxu0
      %v5118 = vpop.f32.mrb[0].mxu0
      %5119 = vdwg.mxu0
      %v5120 = vadd.f32 %v4979, %v5099
      %v5121 = vadd.f32 %v4980, %v5102
      %v5122 = vadd.f32 %v4981, %v5107
      %v5123 = vadd.f32 %v4982, %v5110
      %v5124 = vadd.f32 %v4983, %v5115
      %s5125 = scalar_lea.vmem %s7, 384
      %v5126 = vld [vmem:[%s5125] sm:$0xf]
      %v5127 = vld [vmem:[%s5125 + $0x4] sm:$0xf]
      %v5128 = vld [vmem:[%s5125 + $0x8] sm:$0xf]
      %v5129 = vld [vmem:[%s5125 + $0xc] sm:$0xf]
      %v5130 = vld [vmem:[%s5125 + $0x10] sm:$0xf]
      %v5131 = vld [vmem:[%s5125 + $0x14] sm:$0xf]
      %v5132 = vld [vmem:[%s5125 + $0x18] sm:$0xf]
      %v5133 = vld [vmem:[%s5125 + $0x1c] sm:$0xf]
      %v5134 = vld [vmem:[%s5125 + $0x20] sm:$0xf]
      %v5135 = vld [vmem:[%s5125 + $0x24] sm:$0xf]
      %v5136 = vld [vmem:[%s5125 + $0x28] sm:$0xf]
      %v5137 = vld [vmem:[%s5125 + $0x2c] sm:$0xf]
      %v5138 = vld [vmem:[%s5125 + $0x30] sm:$0xf]
      %v5139 = vld [vmem:[%s5125 + $0x34] sm:$0xf]
      %v5140 = vld [vmem:[%s5125 + $0x38] sm:$0xf]
      %v5141 = vld [vmem:[%s5125 + $0x3c] sm:$0xf]
      %v5143 = vrot.slane %v4300, 7
      %v5144 = vrot.slane %v4301, 7
      %v5145 = vsel %vm2817, %v5143, %v5144
      %v5146 = vrot.slane %v4302, 7
      %v5147 = vsel %vm2817, %v5144, %v5146
      %v5148 = vrot.slane %v4303, 7
      %v5149 = vsel %vm2817, %v5146, %v5148
      %v5169 = vunpack.c.l.b16 %v5126
      %v5170 = vunpack.c.l.b16 %v5127
      %v5171 = vunpack.c.l.b16 %v5128
      %v5172 = vunpack.c.l.b16 %v5129
      %v5173 = vunpack.c.l.b16 %v5130
      %v5174 = vunpack.c.l.b16 %v5131
      %v5175 = vunpack.c.l.b16 %v5132
      %v5176 = vunpack.c.l.b16 %v5133
      %v5177 = vunpack.c.l.b16 %v5134
      %v5178 = vunpack.c.l.b16 %v5135
      %v5179 = vunpack.c.l.b16 %v5136
      %v5180 = vunpack.c.l.b16 %v5137
      %v5181 = vunpack.c.l.b16 %v5138
      %v5182 = vunpack.c.l.b16 %v5139
      %v5183 = vunpack.c.l.b16 %v5140
      %v5184 = vunpack.c.l.b16 %v5141
      %v5185 = vpack.c.b16 %v5170, %v5169
      %v5186 = vpack.c.b16 %v5172, %v5171
      %v5187 = vpack.c.b16 %v5174, %v5173
      %v5188 = vpack.c.b16 %v5176, %v5175
      %v5189 = vpack.c.b16 %v5178, %v5177
      %v5190 = vpack.c.b16 %v5180, %v5179
      %v5191 = vpack.c.b16 %v5182, %v5181
      %v5192 = vpack.c.b16 %v5184, %v5183
      %5201 = vmatprep.subr.bf16.mxu0 0
      %5202 = vmatpush1.bf16.msra.mxu0 %v5185
      %5203 = vmatprep.subr.bf16.mxu0 0
      %5204 = vmatpush1.bf16.msra.mxu0 %v5186
      %5205 = vmatprep.subr.bf16.mxu0 0
      %5206 = vmatpush1.bf16.msra.mxu0 %v5187
      %5207 = vmatprep.subr.bf16.mxu0 0
      %5208 = vmatpush1.bf16.msra.mxu0 %v5188
      %5209 = vmatprep.subr.bf16.mxu0 0
      %5210 = vmatpush1.bf16.msra.mxu0 %v5189
      %5211 = vmatprep.subr.bf16.mxu0 0
      %5212 = vmatpush1.bf16.msra.mxu0 %v5190
      %5213 = vmatprep.subr.bf16.mxu0 0
      %5214 = vmatpush1.bf16.msra.mxu0 %v5191
      %5215 = vmatprep.subr.bf16.mxu0 0
      %5216 = vmatpush1.bf16.msra.mxu0 %v5192
      %5217 = vmatprep.subr.bf16.mxu0 0
      %5218 = vmatpush1.bf16.msra.mxu0 0
      %5219 = vmatprep.subr.bf16.mxu0 0
      %5220 = vmatpush1.bf16.msra.mxu0 0
      %5221 = vmatprep.subr.bf16.mxu0 0
      %5222 = vmatpush1.bf16.msra.mxu0 0
      %5223 = vmatprep.subr.bf16.mxu0 0
      %5224 = vmatpush1.bf16.msra.mxu0 0
      %5225 = vmatprep.subr.bf16.mxu0 0
      %5226 = vmatpush1.bf16.msra.mxu0 0
      %5227 = vmatprep.subr.bf16.mxu0 0
      %5228 = vmatpush1.bf16.msra.mxu0 0
      %5229 = vmatprep.subr.bf16.mxu0 0
      %5230 = vmatpush1.bf16.msra.mxu0 0
      %5231 = vmatprep.subr.bf16.mxu0 0
      %5232 = vmatpush1.bf16.msra.mxu0 0
      %5233 = vmatprep.mubr.bf16.mxu0 0
      %5234 = vmatmul.mubr.bf16.gmra.mrb[0].mxu0 %v5145
      %v5235 = vpop.f32.mrb[0].mxu0
      %v5236 = vadd.f32 0.0, %v5235
      %v5237 = vpop.f32.mrb[0].mxu0
      %v5238 = vpop.f32.mrb[0].mxu0
      %v5239 = vadd.f32 0.0, %v5238
      %v5240 = vpop.f32.mrb[0].mxu0
      %5241 = vmatprep.mubr.bf16.mxu0 0
      %5242 = vmatmul.mubr.bf16.gmra.mrb[0].mxu0 %v5147
      %v5243 = vpop.f32.mrb[0].mxu0
      %v5244 = vadd.f32 0.0, %v5243
      %v5245 = vpop.f32.mrb[0].mxu0
      %v5246 = vpop.f32.mrb[0].mxu0
      %v5247 = vadd.f32 0.0, %v5246
      %v5248 = vpop.f32.mrb[0].mxu0
      %5249 = vmatprep.mubr.bf16.mxu0 0
      %5250 = vmatmul.mubr.bf16.gmra.mrb[0].mxu0 %v5149
      %v5251 = vpop.f32.mrb[0].mxu0
      %v5252 = vadd.f32 0.0, %v5251
      %v5253 = vpop.f32.mrb[0].mxu0
      %v5254 = vpop.f32.mrb[0].mxu0
      %v5255 = vpop.f32.mrb[0].mxu0
      %5256 = vdwg.mxu0
      %v5257 = vadd.f32 %v5120, %v5236
      %v5258 = vadd.f32 %v5121, %v5239
      %v5259 = vadd.f32 %v5122, %v5244
      %v5260 = vadd.f32 %v5123, %v5247
      %v5261 = vadd.f32 %v5124, %v5252
      %s5262 = scalar_lea.vmem %s7, 448
      %v5263 = vld [vmem:[%s5262] sm:$0xf]
      %v5264 = vld [vmem:[%s5262 + $0x4] sm:$0xf]
      %v5265 = vld [vmem:[%s5262 + $0x8] sm:$0xf]
      %v5266 = vld [vmem:[%s5262 + $0xc] sm:$0xf]
      %v5267 = vld [vmem:[%s5262 + $0x10] sm:$0xf]
      %v5268 = vld [vmem:[%s5262 + $0x14] sm:$0xf]
      %v5269 = vld [vmem:[%s5262 + $0x18] sm:$0xf]
      %v5270 = vld [vmem:[%s5262 + $0x1c] sm:$0xf]
      %v5271 = vld [vmem:[%s5262 + $0x20] sm:$0xf]
      %v5272 = vld [vmem:[%s5262 + $0x24] sm:$0xf]
      %v5273 = vld [vmem:[%s5262 + $0x28] sm:$0xf]
      %v5274 = vld [vmem:[%s5262 + $0x2c] sm:$0xf]
      %v5275 = vld [vmem:[%s5262 + $0x30] sm:$0xf]
      %v5276 = vld [vmem:[%s5262 + $0x34] sm:$0xf]
      %v5277 = vld [vmem:[%s5262 + $0x38] sm:$0xf]
      %v5278 = vld [vmem:[%s5262 + $0x3c] sm:$0xf]
      %v5279 = vrot.slane %v4338, 7
      %v5280 = vrot.slane %v4349, 7
      %v5281 = vor.u32 %v5280, %v4345
      %v5282 = vsel %vm3034, %v5279, %v5281
      %v5283 = vrot.slane %v4357, 7
      %v5284 = vor.u32 %v5283, %v4353
      %v5285 = vsel %vm3034, %v5280, %v5284
      %v5287 = vshrl.u32 %v4303, 16
      %v5289 = vrot.slane %v5287, 7
      %v5290 = vshll.u32 %v4303, 16
      %v5292 = vor.u32 %v5289, %v5290
      %v5293 = vsel %vm3034, %v5283, %v5292
      %v5313 = vunpack.c.l.b16 %v5263
      %v5314 = vunpack.c.l.b16 %v5264
      %v5315 = vunpack.c.l.b16 %v5265
      %v5316 = vunpack.c.l.b16 %v5266
      %v5317 = vunpack.c.l.b16 %v5267
      %v5318 = vunpack.c.l.b16 %v5268
      %v5319 = vunpack.c.l.b16 %v5269
      %v5320 = vunpack.c.l.b16 %v5270
      %v5321 = vunpack.c.l.b16 %v5271
      %v5322 = vunpack.c.l.b16 %v5272
      %v5323 = vunpack.c.l.b16 %v5273
      %v5324 = vunpack.c.l.b16 %v5274
      %v5325 = vunpack.c.l.b16 %v5275
      %v5326 = vunpack.c.l.b16 %v5276
      %v5327 = vunpack.c.l.b16 %v5277
      %v5328 = vunpack.c.l.b16 %v5278
      %v5329 = vpack.c.b16 %v5314, %v5313
      %v5330 = vpack.c.b16 %v5316, %v5315
      %v5331 = vpack.c.b16 %v5318, %v5317
      %v5332 = vpack.c.b16 %v5320, %v5319
      %v5333 = vpack.c.b16 %v5322, %v5321
      %v5334 = vpack.c.b16 %v5324, %v5323
      %v5335 = vpack.c.b16 %v5326, %v5325
      %v5336 = vpack.c.b16 %v5328, %v5327
      %5345 = vmatprep.subr.bf16.mxu0 0
      %5346 = vmatpush1.bf16.msra.mxu0 %v5329
      %5347 = vmatprep.subr.bf16.mxu0 0
      %5348 = vmatpush1.bf16.msra.mxu0 %v5330
      %5349 = vmatprep.subr.bf16.mxu0 0
      %5350 = vmatpush1.bf16.msra.mxu0 %v5331
      %5351 = vmatprep.subr.bf16.mxu0 0
      %5352 = vmatpush1.bf16.msra.mxu0 %v5332
      %5353 = vmatprep.subr.bf16.mxu0 0
      %5354 = vmatpush1.bf16.msra.mxu0 %v5333
      %5355 = vmatprep.subr.bf16.mxu0 0
      %5356 = vmatpush1.bf16.msra.mxu0 %v5334
      %5357 = vmatprep.subr.bf16.mxu0 0
      %5358 = vmatpush1.bf16.msra.mxu0 %v5335
      %5359 = vmatprep.subr.bf16.mxu0 0
      %5360 = vmatpush1.bf16.msra.mxu0 %v5336
      %5361 = vmatprep.subr.bf16.mxu0 0
      %5362 = vmatpush1.bf16.msra.mxu0 0
      %5363 = vmatprep.subr.bf16.mxu0 0
      %5364 = vmatpush1.bf16.msra.mxu0 0
      %5365 = vmatprep.subr.bf16.mxu0 0
      %5366 = vmatpush1.bf16.msra.mxu0 0
      %5367 = vmatprep.subr.bf16.mxu0 0
      %5368 = vmatpush1.bf16.msra.mxu0 0
      %5369 = vmatprep.subr.bf16.mxu0 0
      %5370 = vmatpush1.bf16.msra.mxu0 0
      %5371 = vmatprep.subr.bf16.mxu0 0
      %5372 = vmatpush1.bf16.msra.mxu0 0
      %5373 = vmatprep.subr.bf16.mxu0 0
      %5374 = vmatpush1.bf16.msra.mxu0 0
      %5375 = vmatprep.subr.bf16.mxu0 0
      %5376 = vmatpush1.bf16.msra.mxu0 0
      %5377 = vmatprep.mubr.bf16.mxu0 0
      %5378 = vmatmul.mubr.bf16.gmra.mrb[0].mxu0 %v5282
      %v5379 = vpop.f32.mrb[0].mxu0
      %v5380 = vadd.f32 0.0, %v5379
      %v5381 = vpop.f32.mrb[0].mxu0
      %v5382 = vpop.f32.mrb[0].mxu0
      %v5383 = vadd.f32 0.0, %v5382
      %v5384 = vpop.f32.mrb[0].mxu0
      %5385 = vmatprep.mubr.bf16.mxu0 0
      %5386 = vmatmul.mubr.bf16.gmra.mrb[0].mxu0 %v5285
      %v5387 = vpop.f32.mrb[0].mxu0
      %v5388 = vadd.f32 0.0, %v5387
      %v5389 = vpop.f32.mrb[0].mxu0
      %v5390 = vpop.f32.mrb[0].mxu0
      %v5391 = vadd.f32 0.0, %v5390
      %v5392 = vpop.f32.mrb[0].mxu0
      %5393 = vmatprep.mubr.bf16.mxu0 0
      %5394 = vmatmul.mubr.bf16.gmra.mrb[0].mxu0 %v5293
      %v5395 = vpop.f32.mrb[0].mxu0
      %v5396 = vadd.f32 0.0, %v5395
      %v5397 = vpop.f32.mrb[0].mxu0
      %v5398 = vpop.f32.mrb[0].mxu0
      %v5399 = vpop.f32.mrb[0].mxu0
      %5400 = vdwg.mxu0
      %v5401 = vadd.f32 %v5257, %v5380
      %v5402 = vadd.f32 %v5258, %v5383
      %v5403 = vadd.f32 %v5259, %v5388
      %v5404 = vadd.f32 %v5260, %v5391
      %v5405 = vadd.f32 %v5261, %v5396
      %s5406 = scalar_lea.vmem %s7, 512
      %v5407 = vld [vmem:[%s5406] sm:$0xf]
      %v5408 = vld [vmem:[%s5406 + $0x4] sm:$0xf]
      %v5409 = vld [vmem:[%s5406 + $0x8] sm:$0xf]
      %v5410 = vld [vmem:[%s5406 + $0xc] sm:$0xf]
      %v5411 = vld [vmem:[%s5406 + $0x10] sm:$0xf]
      %v5412 = vld [vmem:[%s5406 + $0x14] sm:$0xf]
      %v5413 = vld [vmem:[%s5406 + $0x18] sm:$0xf]
      %v5414 = vld [vmem:[%s5406 + $0x1c] sm:$0xf]
      %v5415 = vld [vmem:[%s5406 + $0x20] sm:$0xf]
      %v5416 = vld [vmem:[%s5406 + $0x24] sm:$0xf]
      %v5417 = vld [vmem:[%s5406 + $0x28] sm:$0xf]
      %v5418 = vld [vmem:[%s5406 + $0x2c] sm:$0xf]
      %v5419 = vld [vmem:[%s5406 + $0x30] sm:$0xf]
      %v5420 = vld [vmem:[%s5406 + $0x34] sm:$0xf]
      %v5421 = vld [vmem:[%s5406 + $0x38] sm:$0xf]
      %v5422 = vld [vmem:[%s5406 + $0x3c] sm:$0xf]
      %v5439 = vunpack.c.l.b16 %v5407
      %v5440 = vunpack.c.l.b16 %v5408
      %v5441 = vunpack.c.l.b16 %v5409
      %v5442 = vunpack.c.l.b16 %v5410
      %v5443 = vunpack.c.l.b16 %v5411
      %v5444 = vunpack.c.l.b16 %v5412
      %v5445 = vunpack.c.l.b16 %v5413
      %v5446 = vunpack.c.l.b16 %v5414
      %v5447 = vunpack.c.l.b16 %v5415
      %v5448 = vunpack.c.l.b16 %v5416
      %v5449 = vunpack.c.l.b16 %v5417
      %v5450 = vunpack.c.l.b16 %v5418
      %v5451 = vunpack.c.l.b16 %v5419
      %v5452 = vunpack.c.l.b16 %v5420
      %v5453 = vunpack.c.l.b16 %v5421
      %v5454 = vunpack.c.l.b16 %v5422
      %v5455 = vpack.c.b16 %v5440, %v5439
      %v5456 = vpack.c.b16 %v5442, %v5441
      %v5457 = vpack.c.b16 %v5444, %v5443
      %v5458 = vpack.c.b16 %v5446, %v5445
      %v5459 = vpack.c.b16 %v5448, %v5447
      %v5460 = vpack.c.b16 %v5450, %v5449
      %v5461 = vpack.c.b16 %v5452, %v5451
      %v5462 = vpack.c.b16 %v5454, %v5453
      %5471 = vmatprep.subr.bf16.mxu0 0
      %5472 = vmatpush1.bf16.msra.mxu0 %v5455
      %5473 = vmatprep.subr.bf16.mxu0 0
      %5474 = vmatpush1.bf16.msra.mxu0 %v5456
      %5475 = vmatprep.subr.bf16.mxu0 0
      %5476 = vmatpush1.bf16.msra.mxu0 %v5457
      %5477 = vmatprep.subr.bf16.mxu0 0
      %5478 = vmatpush1.bf16.msra.mxu0 %v5458
      %5479 = vmatprep.subr.bf16.mxu0 0
      %5480 = vmatpush1.bf16.msra.mxu0 %v5459
      %5481 = vmatprep.subr.bf16.mxu0 0
      %5482 = vmatpush1.bf16.msra.mxu0 %v5460
      %5483 = vmatprep.subr.bf16.mxu0 0
      %5484 = vmatpush1.bf16.msra.mxu0 %v5461
      %5485 = vmatprep.subr.bf16.mxu0 0
      %5486 = vmatpush1.bf16.msra.mxu0 %v5462
      %5487 = vmatprep.subr.bf16.mxu0 0
      %5488 = vmatpush1.bf16.msra.mxu0 0
      %5489 = vmatprep.subr.bf16.mxu0 0
      %5490 = vmatpush1.bf16.msra.mxu0 0
      %5491 = vmatprep.subr.bf16.mxu0 0
      %5492 = vmatpush1.bf16.msra.mxu0 0
      %5493 = vmatprep.subr.bf16.mxu0 0
      %5494 = vmatpush1.bf16.msra.mxu0 0
      %5495 = vmatprep.subr.bf16.mxu0 0
      %5496 = vmatpush1.bf16.msra.mxu0 0
      %5497 = vmatprep.subr.bf16.mxu0 0
      %5498 = vmatpush1.bf16.msra.mxu0 0
      %5499 = vmatprep.subr.bf16.mxu0 0
      %5500 = vmatpush1.bf16.msra.mxu0 0
      %5501 = vmatprep.subr.bf16.mxu0 0
      %5502 = vmatpush1.bf16.msra.mxu0 0
      %5503 = vmatprep.mubr.bf16.mxu0 0
      %5504 = vmatmul.mubr.bf16.gmra.mrb[0].mxu0 %v4301
      %v5505 = vpop.f32.mrb[0].mxu0
      %v5506 = vadd.f32 0.0, %v5505
      %v5507 = vpop.f32.mrb[0].mxu0
      %v5508 = vpop.f32.mrb[0].mxu0
      %v5509 = vadd.f32 0.0, %v5508
      %v5510 = vpop.f32.mrb[0].mxu0
      %5511 = vmatprep.mubr.bf16.mxu0 0
      %5512 = vmatmul.mubr.bf16.gmra.mrb[0].mxu0 %v4302
      %v5513 = vpop.f32.mrb[0].mxu0
      %v5514 = vadd.f32 0.0, %v5513
      %v5515 = vpop.f32.mrb[0].mxu0
      %v5516 = vpop.f32.mrb[0].mxu0
      %v5517 = vadd.f32 0.0, %v5516
      %v5518 = vpop.f32.mrb[0].mxu0
      %5519 = vmatprep.mubr.bf16.mxu0 0
      %5520 = vmatmul.mubr.bf16.gmra.mrb[0].mxu0 %v4303
      %v5521 = vpop.f32.mrb[0].mxu0
      %v5522 = vadd.f32 0.0, %v5521
      %v5523 = vpop.f32.mrb[0].mxu0
      %v5524 = vpop.f32.mrb[0].mxu0
      %v5525 = vpop.f32.mrb[0].mxu0
      %5526 = vdwg.mxu0
      %v5527 = vadd.f32 %v5401, %v5506
      %v5528 = vadd.f32 %v5402, %v5509
      %v5529 = vadd.f32 %v5403, %v5514
      %v5530 = vadd.f32 %v5404, %v5517
      %v5531 = vadd.f32 %v5405, %v5522
      %v5532 = vld [vmem:[%s8] sm:$0x1]
      %v5533 = vld [vmem:[%s8 + $0x1] sm:$0x1]
      %v5534 = vlaneseq
      %v5535 = vshrl.u32 %v5534, 7
      %v5536 = vsub.s32 0, %v5535
      %v5537 = vrot.slane %v5532, %v5536
      %v5538 = vmul.f32 %v5527, %v5537
      %v5539 = vmul.f32 %v5528, %v5537
      %v5540 = vmul.f32 %v5529, %v5537
      %v5541 = vmul.f32 %v5530, %v5537
      %v5542 = vmul.f32 %v5531, %v5537
      %v5543 = vlaneseq
      %v5544 = vshrl.u32 %v5543, 7
      %v5545 = vsub.s32 0, %v5544
      %v5546 = vrot.slane %v5533, %v5545
      %v5547 = vadd.f32 %v5538, %v5546
      %v5548 = vadd.f32 %v5539, %v5546
      %v5549 = vadd.f32 %v5540, %v5546
      %v5550 = vadd.f32 %v5541, %v5546
      %v5551 = vadd.f32 %v5542, %v5546
      %v5552 = vmax.f32 %v5547, 0.0
      %v5553 = vmax.f32 %v5548, 0.0
      %v5554 = vmax.f32 %v5549, 0.0
      %v5555 = vmax.f32 %v5550, 0.0
      %v5556 = vmax.f32 %v5551, 0.0
      %v5557 = vpack.c.bf16 %v5553, %v5552
      %v5558 = vpack.c.bf16 %v5555, %v5554
      %v5559 = vpack.c.bf16 %v5556, %v5556
      %v5560 = vld [vmem:[%s9] sm:$0xf]
      %v5561 = vld [vmem:[%s9 + $0x4] sm:$0xf]
      %v5562 = vld [vmem:[%s9 + $0x8] sm:$0xf]
      %v5563 = vld [vmem:[%s9 + $0xc] sm:$0xf]
      %v5564 = vld [vmem:[%s9 + $0x10] sm:$0xf]
      %v5565 = vld [vmem:[%s9 + $0x14] sm:$0xf]
      %v5566 = vld [vmem:[%s9 + $0x18] sm:$0x1]
      %v5574 = vunpack.c.l.b16 %v5560
      %v5575 = vunpack.c.l.b16 %v5561
      %v5576 = vunpack.c.l.b16 %v5562
      %v5577 = vunpack.c.l.b16 %v5563
      %v5578 = vunpack.c.l.b16 %v5564
      %v5579 = vunpack.c.l.b16 %v5565
      %v5580 = vunpack.c.l.b16 %v5566
      %v5581 = vpack.c.b16 %v5575, %v5574
      %v5582 = vpack.c.b16 %v5577, %v5576
      %v5583 = vpack.c.b16 %v5579, %v5578
      %v5584 = vpack.c.b16 %v5580, %v5580
      %vm5585 = vcmask 285696
      %v5587 = vsel %vm5585, %v5581, 0
      %v5590 = vsel %vm5585, %v5582, 0
      %v5593 = vsel %vm5585, %v5583, 0
      %v5596 = vsel %vm5585, %v5584, 0
      %vm5598 = vcmask 1041408
      %v5599 = vsel %vm1654, 4294967295, 65535
      %v5600 = vsel %vm5598, %v5599, 0
      %v5602 = vand.u32 %v5559, %v5600
      %5604 = vmatprep.subr.bf16.mxu0 0
      %5605 = vmatpush1.bf16.msra.mxu0 %v5557
      %5606 = vmatprep.subr.bf16.mxu0 0
      %5607 = vmatpush1.bf16.msra.mxu0 %v5558
      %5608 = vmatprep.subr.bf16.mxu0 0
      %5609 = vmatpush1.bf16.msra.mxu0 %v5602
      %5610 = vmatprep.subr.bf16.mxu0 0
      %5611 = vmatpush1.bf16.msra.mxu0 0
      %5612 = vmatprep.subr.bf16.mxu0 0
      %5613 = vmatpush1.bf16.msra.mxu0 0
      %5614 = vmatprep.subr.bf16.mxu0 0
      %5615 = vmatpush1.bf16.msra.mxu0 0
      %5616 = vmatprep.subr.bf16.mxu0 0
      %5617 = vmatpush1.bf16.msra.mxu0 0
      %5618 = vmatprep.subr.bf16.mxu0 0
      %5619 = vmatpush1.bf16.msra.mxu0 0
      %5620 = vmatprep.subr.bf16.mxu0 0
      %5621 = vmatpush1.bf16.msra.mxu0 0
      %5622 = vmatprep.subr.bf16.mxu0 0
      %5623 = vmatpush1.bf16.msra.mxu0 0
      %5624 = vmatprep.subr.bf16.mxu0 0
      %5625 = vmatpush1.bf16.msra.mxu0 0
      %5626 = vmatprep.subr.bf16.mxu0 0
      %5627 = vmatpush1.bf16.msra.mxu0 0
      %5628 = vmatprep.subr.bf16.mxu0 0
      %5629 = vmatpush1.bf16.msra.mxu0 0
      %5630 = vmatprep.subr.bf16.mxu0 0
      %5631 = vmatpush1.bf16.msra.mxu0 0
      %5632 = vmatprep.subr.bf16.mxu0 0
      %5633 = vmatpush1.bf16.msra.mxu0 0
      %5634 = vmatprep.subr.bf16.mxu0 0
      %5635 = vmatpush1.bf16.msra.mxu0 0
      %5636 = vmatprep.mubr.bf16.mxu0 0
      %5637 = vmatmul.mubr.bf16.gmra.mrb[0].mxu0 %v5587
      %v5638 = vpop.f32.mrb[0].mxu0
      %v5639 = vadd.f32 0.0, %v5638
      %v5640 = vpop.f32.mrb[0].mxu0
      %v5641 = vpop.f32.mrb[0].mxu0
      %v5642 = vadd.f32 0.0, %v5641
      %v5643 = vpop.f32.mrb[0].mxu0
      %5644 = vmatprep.mubr.bf16.mxu0 0
      %5645 = vmatmul.mubr.bf16.gmra.mrb[0].mxu0 %v5590
      %v5646 = vpop.f32.mrb[0].mxu0
      %v5647 = vadd.f32 0.0, %v5646
      %v5648 = vpop.f32.mrb[0].mxu0
      %v5649 = vpop.f32.mrb[0].mxu0
      %v5650 = vadd.f32 0.0, %v5649
      %v5651 = vpop.f32.mrb[0].mxu0
      %5652 = vmatprep.mubr.bf16.mxu0 0
      %5653 = vmatmul.mubr.bf16.gmra.mrb[0].mxu0 %v5593
      %v5654 = vpop.f32.mrb[0].mxu0
      %v5655 = vadd.f32 0.0, %v5654
      %v5656 = vpop.f32.mrb[0].mxu0
      %v5657 = vpop.f32.mrb[0].mxu0
      %v5658 = vadd.f32 0.0, %v5657
      %v5659 = vpop.f32.mrb[0].mxu0
      %5660 = vmatprep.mubr.bf16.mxu0 0
      %5661 = vmatmul.mubr.bf16.gmra.mrb[0].mxu0 %v5596
      %v5662 = vpop.f32.mrb[0].mxu0
      %v5663 = vadd.f32 0.0, %v5662
      %v5664 = vpop.f32.mrb[0].mxu0
      %v5665 = vpop.f32.mrb[0].mxu0
      %v5666 = vpop.f32.mrb[0].mxu0
      %5667 = vdwg.mxu0
      %v5668 = vpack.c.bf16 %v5642, %v5639
      %v5669 = vpack.c.bf16 %v5650, %v5647
      %v5670 = vpack.c.bf16 %v5658, %v5655
      %v5671 = vpack.c.bf16 %v5663, %v5663
      %v5672 = vld [vmem:[%s10] sm:$0xff]
      %v5673 = vld [vmem:[%s10 + $0x8] sm:$0xff]
      %v5674 = vld [vmem:[%s10 + $0x10] sm:$0xff]
      %v5675 = vld [vmem:[%s10 + $0x18] sm:$0xff]
      %v5676 = vld [vmem:[%s10 + $0x20] sm:$0xff]
      %v5677 = vld [vmem:[%s10 + $0x28] sm:$0xff]
      %v5678 = vld [vmem:[%s10 + $0x30] sm:$0xff]
      %v5679 = vld [vmem:[%s10 + $0x38] sm:$0xff]
      %v5680 = vld [vmem:[%s10 + $0x40] sm:$0xff]
      %v5681 = vld [vmem:[%s10 + $0x48] sm:$0xff]
      %v5682 = vld [vmem:[%s10 + $0x50] sm:$0xff]
      %v5683 = vld [vmem:[%s10 + $0x58] sm:$0xff]
      %v5684 = vld [vmem:[%s10 + $0x60] sm:$0xff]
      %v5685 = vld [vmem:[%s10 + $0x68] sm:$0xff]
      %v5686 = vld [vmem:[%s10 + $0x70] sm:$0xff]
      %v5687 = vld [vmem:[%s10 + $0x78] sm:$0xff]
      %s5688 = scalar_lea.vmem %s10, 128
      %v5689 = vld [vmem:[%s5688] sm:$0xff]
      %v5690 = vld [vmem:[%s5688 + $0x8] sm:$0xff]
      %v5691 = vld [vmem:[%s5688 + $0x10] sm:$0xff]
      %v5692 = vld [vmem:[%s5688 + $0x18] sm:$0xff]
      %v5693 = vld [vmem:[%s5688 + $0x20] sm:$0xff]
      %v5694 = vld [vmem:[%s5688 + $0x28] sm:$0xff]
      %v5695 = vld [vmem:[%s5688 + $0x30] sm:$0xff]
      %v5696 = vld [vmem:[%s5688 + $0x38] sm:$0xff]
      %v5697 = vld [vmem:[%s5688 + $0x40] sm:$0xff]
      %v5698 = vld [vmem:[%s5688 + $0x48] sm:$0xff]
      %v5699 = vld [vmem:[%s5688 + $0x50] sm:$0xff]
      %v5700 = vld [vmem:[%s5688 + $0x58] sm:$0xff]
      %v5701 = vld [vmem:[%s5688 + $0x60] sm:$0xff]
      %v5702 = vld [vmem:[%s5688 + $0x68] sm:$0xff]
      %v5703 = vld [vmem:[%s5688 + $0x70] sm:$0xff]
      %v5704 = vld [vmem:[%s5688 + $0x78] sm:$0xff]
      %v5706 = vshrl.u32 %v5668, 16
      %v5708 = vshll.u32 %v5668, 16
      %v5710 = vrot.slane %v5708, 1
      %v5711 = vor.u32 %v5706, %v5710
      %v5713 = vshll.u32 %v5669, 16
      %v5715 = vrot.slane %v5713, 1
      %v5716 = vsel %vm1101, %v5711, %v5715
      %v5717 = vshrl.u32 %v5669, 16
      %v5719 = vor.u32 %v5717, %v5715
      %v5721 = vshll.u32 %v5670, 16
      %v5723 = vrot.slane %v5721, 1
      %v5724 = vsel %vm1101, %v5719, %v5723
      %v5725 = vshrl.u32 %v5670, 16
      %v5727 = vor.u32 %v5725, %v5723
      %v5747 = vunpack.c.l.b16 %v5689
      %v5748 = vunpack.c.h.b16 %v5689
      %v5749 = vunpack.c.l.b16 %v5690
      %v5750 = vunpack.c.h.b16 %v5690
      %v5751 = vunpack.c.l.b16 %v5691
      %v5752 = vunpack.c.h.b16 %v5691
      %v5753 = vunpack.c.l.b16 %v5692
      %v5754 = vunpack.c.h.b16 %v5692
      %v5755 = vunpack.c.l.b16 %v5693
      %v5756 = vunpack.c.h.b16 %v5693
      %v5757 = vunpack.c.l.b16 %v5694
      %v5758 = vunpack.c.h.b16 %v5694
      %v5759 = vunpack.c.l.b16 %v5695
      %v5760 = vunpack.c.h.b16 %v5695
      %v5761 = vunpack.c.l.b16 %v5696
      %v5762 = vunpack.c.h.b16 %v5696
      %v5763 = vunpack.c.l.b16 %v5697
      %v5764 = vunpack.c.h.b16 %v5697
      %v5765 = vunpack.c.l.b16 %v5698
      %v5766 = vunpack.c.h.b16 %v5698
      %v5767 = vunpack.c.l.b16 %v5699
      %v5768 = vunpack.c.h.b16 %v5699
      %v5769 = vunpack.c.l.b16 %v5700
      %v5770 = vunpack.c.h.b16 %v5700
      %v5771 = vunpack.c.l.b16 %v5701
      %v5772 = vunpack.c.h.b16 %v5701
      %v5773 = vunpack.c.l.b16 %v5702
      %v5774 = vunpack.c.h.b16 %v5702
      %v5775 = vunpack.c.l.b16 %v5703
      %v5776 = vunpack.c.h.b16 %v5703
      %v5777 = vunpack.c.l.b16 %v5704
      %v5778 = vunpack.c.h.b16 %v5704
      %v5779 = vpack.c.b16 %v5749, %v5747
      %v5780 = vpack.c.b16 %v5750, %v5748
      %v5781 = vpack.c.b16 %v5753, %v5751
      %v5782 = vpack.c.b16 %v5754, %v5752
      %v5783 = vpack.c.b16 %v5757, %v5755
      %v5784 = vpack.c.b16 %v5758, %v5756
      %v5785 = vpack.c.b16 %v5761, %v5759
      %v5786 = vpack.c.b16 %v5762, %v5760
      %v5787 = vpack.c.b16 %v5765, %v5763
      %v5788 = vpack.c.b16 %v5766, %v5764
      %v5789 = vpack.c.b16 %v5769, %v5767
      %v5790 = vpack.c.b16 %v5770, %v5768
      %v5791 = vpack.c.b16 %v5773, %v5771
      %v5792 = vpack.c.b16 %v5774, %v5772
      %v5793 = vpack.c.b16 %v5777, %v5775
      %v5794 = vpack.c.b16 %v5778, %v5776
      %5811 = vmatprep.subr.bf16.mxu0 %v5780
      %5812 = vmatpush1.bf16.msra.mxu0 %v5779
      %5813 = vmatprep.subr.bf16.mxu0 %v5782
      %5814 = vmatpush1.bf16.msra.mxu0 %v5781
      %5815 = vmatprep.subr.bf16.mxu0 %v5784
      %5816 = vmatpush1.bf16.msra.mxu0 %v5783
      %5817 = vmatprep.subr.bf16.mxu0 %v5786
      %5818 = vmatpush1.bf16.msra.mxu0 %v5785
      %5819 = vmatprep.subr.bf16.mxu0 %v5788
      %5820 = vmatpush1.bf16.msra.mxu0 %v5787
      %5821 = vmatprep.subr.bf16.mxu0 %v5790
      %5822 = vmatpush1.bf16.msra.mxu0 %v5789
      %5823 = vmatprep.subr.bf16.mxu0 %v5792
      %5824 = vmatpush1.bf16.msra.mxu0 %v5791
      %5825 = vmatprep.subr.bf16.mxu0 %v5794
      %5826 = vmatpush1.bf16.msra.mxu0 %v5793
      %5827 = vmatprep.subr.bf16.mxu0 0
      %5828 = vmatpush1.bf16.msra.mxu0 0
      %5829 = vmatprep.subr.bf16.mxu0 0
      %5830 = vmatpush1.bf16.msra.mxu0 0
      %5831 = vmatprep.subr.bf16.mxu0 0
      %5832 = vmatpush1.bf16.msra.mxu0 0
      %5833 = vmatprep.subr.bf16.mxu0 0
      %5834 = vmatpush1.bf16.msra.mxu0 0
      %5835 = vmatprep.subr.bf16.mxu0 0
      %5836 = vmatpush1.bf16.msra.mxu0 0
      %5837 = vmatprep.subr.bf16.mxu0 0
      %5838 = vmatpush1.bf16.msra.mxu0 0
      %5839 = vmatprep.subr.bf16.mxu0 0
      %5840 = vmatpush1.bf16.msra.mxu0 0
      %5841 = vmatprep.subr.bf16.mxu0 0
      %5842 = vmatpush1.bf16.msra.mxu0 0
      %5843 = vmatprep.mubr.bf16.mxu0 0
      %5844 = vmatmul.mubr.bf16.gmra.mrb[0].mxu0 %v5716
      %v5845 = vpop.f32.mrb[0].mxu0
      %v5846 = vadd.f32 0.0, %v5845
      %v5847 = vpop.f32.mrb[0].mxu0
      %v5848 = vadd.f32 0.0, %v5847
      %v5849 = vpop.f32.mrb[0].mxu0
      %v5850 = vadd.f32 0.0, %v5849
      %v5851 = vpop.f32.mrb[0].mxu0
      %v5852 = vadd.f32 0.0, %v5851
      %5853 = vmatprep.mubr.bf16.mxu0 0
      %5854 = vmatmul.mubr.bf16.gmra.mrb[0].mxu0 %v5724
      %v5855 = vpop.f32.mrb[0].mxu0
      %v5856 = vadd.f32 0.0, %v5855
      %v5857 = vpop.f32.mrb[0].mxu0
      %v5858 = vadd.f32 0.0, %v5857
      %v5859 = vpop.f32.mrb[0].mxu0
      %v5860 = vadd.f32 0.0, %v5859
      %v5861 = vpop.f32.mrb[0].mxu0
      %v5862 = vadd.f32 0.0, %v5861
      %5863 = vmatprep.mubr.bf16.mxu0 0
      %5864 = vmatmul.mubr.bf16.gmra.mrb[0].mxu0 %v5727
      %v5865 = vpop.f32.mrb[0].mxu0
      %v5866 = vadd.f32 0.0, %v5865
      %v5867 = vpop.f32.mrb[0].mxu0
      %v5868 = vadd.f32 0.0, %v5867
      %v5869 = vpop.f32.mrb[0].mxu0
      %v5870 = vadd.f32 0.0, %v5869
      %v5871 = vpop.f32.mrb[0].mxu0
      %v5872 = vadd.f32 0.0, %v5871
      %5873 = vdwg.mxu0
      %v5890 = vunpack.c.l.b16 %v5672
      %v5891 = vunpack.c.h.b16 %v5672
      %v5892 = vunpack.c.l.b16 %v5673
      %v5893 = vunpack.c.h.b16 %v5673
      %v5894 = vunpack.c.l.b16 %v5674
      %v5895 = vunpack.c.h.b16 %v5674
      %v5896 = vunpack.c.l.b16 %v5675
      %v5897 = vunpack.c.h.b16 %v5675
      %v5898 = vunpack.c.l.b16 %v5676
      %v5899 = vunpack.c.h.b16 %v5676
      %v5900 = vunpack.c.l.b16 %v5677
      %v5901 = vunpack.c.h.b16 %v5677
      %v5902 = vunpack.c.l.b16 %v5678
      %v5903 = vunpack.c.h.b16 %v5678
      %v5904 = vunpack.c.l.b16 %v5679
      %v5905 = vunpack.c.h.b16 %v5679
      %v5906 = vunpack.c.l.b16 %v5680
      %v5907 = vunpack.c.h.b16 %v5680
      %v5908 = vunpack.c.l.b16 %v5681
      %v5909 = vunpack.c.h.b16 %v5681
      %v5910 = vunpack.c.l.b16 %v5682
      %v5911 = vunpack.c.h.b16 %v5682
      %v5912 = vunpack.c.l.b16 %v5683
      %v5913 = vunpack.c.h.b16 %v5683
      %v5914 = vunpack.c.l.b16 %v5684
      %v5915 = vunpack.c.h.b16 %v5684
      %v5916 = vunpack.c.l.b16 %v5685
      %v5917 = vunpack.c.h.b16 %v5685
      %v5918 = vunpack.c.l.b16 %v5686
      %v5919 = vunpack.c.h.b16 %v5686
      %v5920 = vunpack.c.l.b16 %v5687
      %v5921 = vunpack.c.h.b16 %v5687
      %v5922 = vpack.c.b16 %v5892, %v5890
      %v5923 = vpack.c.b16 %v5893, %v5891
      %v5924 = vpack.c.b16 %v5896, %v5894
      %v5925 = vpack.c.b16 %v5897, %v5895
      %v5926 = vpack.c.b16 %v5900, %v5898
      %v5927 = vpack.c.b16 %v5901, %v5899
      %v5928 = vpack.c.b16 %v5904, %v5902
      %v5929 = vpack.c.b16 %v5905, %v5903
      %v5930 = vpack.c.b16 %v5908, %v5906
      %v5931 = vpack.c.b16 %v5909, %v5907
      %v5932 = vpack.c.b16 %v5912, %v5910
      %v5933 = vpack.c.b16 %v5913, %v5911
      %v5934 = vpack.c.b16 %v5916, %v5914
      %v5935 = vpack.c.b16 %v5917, %v5915
      %v5936 = vpack.c.b16 %v5920, %v5918
      %v5937 = vpack.c.b16 %v5921, %v5919
      %5954 = vmatprep.subr.bf16.mxu0 %v5923
      %5955 = vmatpush1.bf16.msra.mxu0 %v5922
      %5956 = vmatprep.subr.bf16.mxu0 %v5925
      %5957 = vmatpush1.bf16.msra.mxu0 %v5924
      %5958 = vmatprep.subr.bf16.mxu0 %v5927
      %5959 = vmatpush1.bf16.msra.mxu0 %v5926
      %5960 = vmatprep.subr.bf16.mxu0 %v5929
      %5961 = vmatpush1.bf16.msra.mxu0 %v5928
      %5962 = vmatprep.subr.bf16.mxu0 %v5931
      %5963 = vmatpush1.bf16.msra.mxu0 %v5930
      %5964 = vmatprep.subr.bf16.mxu0 %v5933
      %5965 = vmatpush1.bf16.msra.mxu0 %v5932
      %5966 = vmatprep.subr.bf16.mxu0 %v5935
      %5967 = vmatpush1.bf16.msra.mxu0 %v5934
      %5968 = vmatprep.subr.bf16.mxu0 %v5937
      %5969 = vmatpush1.bf16.msra.mxu0 %v5936
      %5970 = vmatprep.subr.bf16.mxu0 0
      %5971 = vmatpush1.bf16.msra.mxu0 0
      %5972 = vmatprep.subr.bf16.mxu0 0
      %5973 = vmatpush1.bf16.msra.mxu0 0
      %5974 = vmatprep.subr.bf16.mxu0 0
      %5975 = vmatpush1.bf16.msra.mxu0 0
      %5976 = vmatprep.subr.bf16.mxu0 0
      %5977 = vmatpush1.bf16.msra.mxu0 0
      %5978 = vmatprep.subr.bf16.mxu0 0
      %5979 = vmatpush1.bf16.msra.mxu0 0
      %5980 = vmatprep.subr.bf16.mxu0 0
      %5981 = vmatpush1.bf16.msra.mxu0 0
      %5982 = vmatprep.subr.bf16.mxu0 0
      %5983 = vmatpush1.bf16.msra.mxu0 0
      %5984 = vmatprep.subr.bf16.mxu0 0
      %5985 = vmatpush1.bf16.msra.mxu0 0
      %5986 = vmatprep.mubr.bf16.mxu0 0
      %5987 = vmatmul.mubr.bf16.gmra.mrb[0].mxu0 %v5668
      %v5988 = vpop.f32.mrb[0].mxu0
      %v5989 = vadd.f32 %v5846, %v5988
      %v5990 = vpop.f32.mrb[0].mxu0
      %v5991 = vadd.f32 %v5848, %v5990
      %v5992 = vpop.f32.mrb[0].mxu0
      %v5993 = vadd.f32 %v5850, %v5992
      %v5994 = vpop.f32.mrb[0].mxu0
      %v5995 = vadd.f32 %v5852, %v5994
      %5996 = vmatprep.mubr.bf16.mxu0 0
      %5997 = vmatmul.mubr.bf16.gmra.mrb[0].mxu0 %v5669
      %v5998 = vpop.f32.mrb[0].mxu0
      %v5999 = vadd.f32 %v5856, %v5998
      %v6000 = vpop.f32.mrb[0].mxu0
      %v6001 = vadd.f32 %v5858, %v6000
      %v6002 = vpop.f32.mrb[0].mxu0
      %v6003 = vadd.f32 %v5860, %v6002
      %v6004 = vpop.f32.mrb[0].mxu0
      %v6005 = vadd.f32 %v5862, %v6004
      %6006 = vmatprep.mubr.bf16.mxu0 0
      %6007 = vmatmul.mubr.bf16.gmra.mrb[0].mxu0 %v5670
      %v6008 = vpop.f32.mrb[0].mxu0
      %v6009 = vadd.f32 %v5866, %v6008
      %v6010 = vpop.f32.mrb[0].mxu0
      %v6011 = vadd.f32 %v5868, %v6010
      %v6012 = vpop.f32.mrb[0].mxu0
      %v6013 = vadd.f32 %v5870, %v6012
      %v6014 = vpop.f32.mrb[0].mxu0
      %v6015 = vadd.f32 %v5872, %v6014
      %6016 = vdwg.mxu0
      %s6017 = scalar_lea.vmem %s10, 256
      %v6018 = vld [vmem:[%s6017] sm:$0xff]
      %v6019 = vld [vmem:[%s6017 + $0x8] sm:$0xff]
      %v6020 = vld [vmem:[%s6017 + $0x10] sm:$0xff]
      %v6021 = vld [vmem:[%s6017 + $0x18] sm:$0xff]
      %v6022 = vld [vmem:[%s6017 + $0x20] sm:$0xff]
      %v6023 = vld [vmem:[%s6017 + $0x28] sm:$0xff]
      %v6024 = vld [vmem:[%s6017 + $0x30] sm:$0xff]
      %v6025 = vld [vmem:[%s6017 + $0x38] sm:$0xff]
      %v6026 = vld [vmem:[%s6017 + $0x40] sm:$0xff]
      %v6027 = vld [vmem:[%s6017 + $0x48] sm:$0xff]
      %v6028 = vld [vmem:[%s6017 + $0x50] sm:$0xff]
      %v6029 = vld [vmem:[%s6017 + $0x58] sm:$0xff]
      %v6030 = vld [vmem:[%s6017 + $0x60] sm:$0xff]
      %v6031 = vld [vmem:[%s6017 + $0x68] sm:$0xff]
      %v6032 = vld [vmem:[%s6017 + $0x70] sm:$0xff]
      %v6033 = vld [vmem:[%s6017 + $0x78] sm:$0xff]
      %v6034 = vrot.slane %v5706, 3
      %v6035 = vrot.slane %v5708, 4
      %v6036 = vor.u32 %v6034, %v6035
      %v6037 = vrot.slane %v5717, 3
      %v6038 = vrot.slane %v5713, 4
      %v6039 = vor.u32 %v6037, %v6038
      %v6040 = vsel %vm4725, %v6036, %v6039
      %v6041 = vrot.slane %v5725, 3
      %v6042 = vrot.slane %v5721, 4
      %v6043 = vor.u32 %v6041, %v6042
      %v6044 = vsel %vm4725, %v6039, %v6043
      %v6046 = vshll.u32 %v5671, 16
      %v6048 = vrot.slane %v6046, 4
      %v6049 = vsel %vm4725, %v6043, %v6048
      %v6069 = vunpack.c.l.b16 %v6018
      %v6070 = vunpack.c.h.b16 %v6018
      %v6071 = vunpack.c.l.b16 %v6019
      %v6072 = vunpack.c.h.b16 %v6019
      %v6073 = vunpack.c.l.b16 %v6020
      %v6074 = vunpack.c.h.b16 %v6020
      %v6075 = vunpack.c.l.b16 %v6021
      %v6076 = vunpack.c.h.b16 %v6021
      %v6077 = vunpack.c.l.b16 %v6022
      %v6078 = vunpack.c.h.b16 %v6022
      %v6079 = vunpack.c.l.b16 %v6023
      %v6080 = vunpack.c.h.b16 %v6023
      %v6081 = vunpack.c.l.b16 %v6024
      %v6082 = vunpack.c.h.b16 %v6024
      %v6083 = vunpack.c.l.b16 %v6025
      %v6084 = vunpack.c.h.b16 %v6025
      %v6085 = vunpack.c.l.b16 %v6026
      %v6086 = vunpack.c.h.b16 %v6026
      %v6087 = vunpack.c.l.b16 %v6027
      %v6088 = vunpack.c.h.b16 %v6027
      %v6089 = vunpack.c.l.b16 %v6028
      %v6090 = vunpack.c.h.b16 %v6028
      %v6091 = vunpack.c.l.b16 %v6029
      %v6092 = vunpack.c.h.b16 %v6029
      %v6093 = vunpack.c.l.b16 %v6030
      %v6094 = vunpack.c.h.b16 %v6030
      %v6095 = vunpack.c.l.b16 %v6031
      %v6096 = vunpack.c.h.b16 %v6031
      %v6097 = vunpack.c.l.b16 %v6032
      %v6098 = vunpack.c.h.b16 %v6032
      %v6099 = vunpack.c.l.b16 %v6033
      %v6100 = vunpack.c.h.b16 %v6033
      %v6101 = vpack.c.b16 %v6071, %v6069
      %v6102 = vpack.c.b16 %v6072, %v6070
      %v6103 = vpack.c.b16 %v6075, %v6073
      %v6104 = vpack.c.b16 %v6076, %v6074
      %v6105 = vpack.c.b16 %v6079, %v6077
      %v6106 = vpack.c.b16 %v6080, %v6078
      %v6107 = vpack.c.b16 %v6083, %v6081
      %v6108 = vpack.c.b16 %v6084, %v6082
      %v6109 = vpack.c.b16 %v6087, %v6085
      %v6110 = vpack.c.b16 %v6088, %v6086
      %v6111 = vpack.c.b16 %v6091, %v6089
      %v6112 = vpack.c.b16 %v6092, %v6090
      %v6113 = vpack.c.b16 %v6095, %v6093
      %v6114 = vpack.c.b16 %v6096, %v6094
      %v6115 = vpack.c.b16 %v6099, %v6097
      %v6116 = vpack.c.b16 %v6100, %v6098
      %6133 = vmatprep.subr.bf16.mxu0 %v6102
      %6134 = vmatpush1.bf16.msra.mxu0 %v6101
      %6135 = vmatprep.subr.bf16.mxu0 %v6104
      %6136 = vmatpush1.bf16.msra.mxu0 %v6103
      %6137 = vmatprep.subr.bf16.mxu0 %v6106
      %6138 = vmatpush1.bf16.msra.mxu0 %v6105
      %6139 = vmatprep.subr.bf16.mxu0 %v6108
      %6140 = vmatpush1.bf16.msra.mxu0 %v6107
      %6141 = vmatprep.subr.bf16.mxu0 %v6110
      %6142 = vmatpush1.bf16.msra.mxu0 %v6109
      %6143 = vmatprep.subr.bf16.mxu0 %v6112
      %6144 = vmatpush1.bf16.msra.mxu0 %v6111
      %6145 = vmatprep.subr.bf16.mxu0 %v6114
      %6146 = vmatpush1.bf16.msra.mxu0 %v6113
      %6147 = vmatprep.subr.bf16.mxu0 %v6116
      %6148 = vmatpush1.bf16.msra.mxu0 %v6115
      %6149 = vmatprep.subr.bf16.mxu0 0
      %6150 = vmatpush1.bf16.msra.mxu0 0
      %6151 = vmatprep.subr.bf16.mxu0 0
      %6152 = vmatpush1.bf16.msra.mxu0 0
      %6153 = vmatprep.subr.bf16.mxu0 0
      %6154 = vmatpush1.bf16.msra.mxu0 0
      %6155 = vmatprep.subr.bf16.mxu0 0
      %6156 = vmatpush1.bf16.msra.mxu0 0
      %6157 = vmatprep.subr.bf16.mxu0 0
      %6158 = vmatpush1.bf16.msra.mxu0 0
      %6159 = vmatprep.subr.bf16.mxu0 0
      %6160 = vmatpush1.bf16.msra.mxu0 0
      %6161 = vmatprep.subr.bf16.mxu0 0
      %6162 = vmatpush1.bf16.msra.mxu0 0
      %6163 = vmatprep.subr.bf16.mxu0 0
      %6164 = vmatpush1.bf16.msra.mxu0 0
      %6165 = vmatprep.mubr.bf16.mxu0 0
      %6166 = vmatmul.mubr.bf16.gmra.mrb[0].mxu0 %v6040
      %v6167 = vpop.f32.mrb[0].mxu0
      %v6168 = vadd.f32 0.0, %v6167
      %v6169 = vpop.f32.mrb[0].mxu0
      %v6170 = vadd.f32 0.0, %v6169
      %v6171 = vpop.f32.mrb[0].mxu0
      %v6172 = vadd.f32 0.0, %v6171
      %v6173 = vpop.f32.mrb[0].mxu0
      %v6174 = vadd.f32 0.0, %v6173
      %6175 = vmatprep.mubr.bf16.mxu0 0
      %6176 = vmatmul.mubr.bf16.gmra.mrb[0].mxu0 %v6044
      %v6177 = vpop.f32.mrb[0].mxu0
      %v6178 = vadd.f32 0.0, %v6177
      %v6179 = vpop.f32.mrb[0].mxu0
      %v6180 = vadd.f32 0.0, %v6179
      %v6181 = vpop.f32.mrb[0].mxu0
      %v6182 = vadd.f32 0.0, %v6181
      %v6183 = vpop.f32.mrb[0].mxu0
      %v6184 = vadd.f32 0.0, %v6183
      %6185 = vmatprep.mubr.bf16.mxu0 0
      %6186 = vmatmul.mubr.bf16.gmra.mrb[0].mxu0 %v6049
      %v6187 = vpop.f32.mrb[0].mxu0
      %v6188 = vadd.f32 0.0, %v6187
      %v6189 = vpop.f32.mrb[0].mxu0
      %v6190 = vadd.f32 0.0, %v6189
      %v6191 = vpop.f32.mrb[0].mxu0
      %v6192 = vadd.f32 0.0, %v6191
      %v6193 = vpop.f32.mrb[0].mxu0
      %v6194 = vadd.f32 0.0, %v6193
      %6195 = vdwg.mxu0
      %v6196 = vadd.f32 %v5989, %v6168
      %v6197 = vadd.f32 %v5991, %v6170
      %v6198 = vadd.f32 %v5993, %v6172
      %v6199 = vadd.f32 %v5995, %v6174
      %v6200 = vadd.f32 %v5999, %v6178
      %v6201 = vadd.f32 %v6001, %v6180
      %v6202 = vadd.f32 %v6003, %v6182
      %v6203 = vadd.f32 %v6005, %v6184
      %v6204 = vadd.f32 %v6009, %v6188
      %v6205 = vadd.f32 %v6011, %v6190
      %v6206 = vadd.f32 %v6013, %v6192
      %v6207 = vadd.f32 %v6015, %v6194
      %s6208 = scalar_lea.vmem %s10, 384
      %v6209 = vld [vmem:[%s6208] sm:$0xff]
      %v6210 = vld [vmem:[%s6208 + $0x8] sm:$0xff]
      %v6211 = vld [vmem:[%s6208 + $0x10] sm:$0xff]
      %v6212 = vld [vmem:[%s6208 + $0x18] sm:$0xff]
      %v6213 = vld [vmem:[%s6208 + $0x20] sm:$0xff]
      %v6214 = vld [vmem:[%s6208 + $0x28] sm:$0xff]
      %v6215 = vld [vmem:[%s6208 + $0x30] sm:$0xff]
      %v6216 = vld [vmem:[%s6208 + $0x38] sm:$0xff]
      %v6217 = vld [vmem:[%s6208 + $0x40] sm:$0xff]
      %v6218 = vld [vmem:[%s6208 + $0x48] sm:$0xff]
      %v6219 = vld [vmem:[%s6208 + $0x50] sm:$0xff]
      %v6220 = vld [vmem:[%s6208 + $0x58] sm:$0xff]
      %v6221 = vld [vmem:[%s6208 + $0x60] sm:$0xff]
      %v6222 = vld [vmem:[%s6208 + $0x68] sm:$0xff]
      %v6223 = vld [vmem:[%s6208 + $0x70] sm:$0xff]
      %v6224 = vld [vmem:[%s6208 + $0x78] sm:$0xff]
      %v6229 = vrot.slane %v5668, 4
      %v6230 = vrot.slane %v5669, 4
      %v6231 = vsel %vm4866, %v6229, %v6230
      %v6232 = vrot.slane %v5670, 4
      %v6233 = vsel %vm4866, %v6230, %v6232
      %v6234 = vrot.slane %v5671, 4
      %v6235 = vsel %vm4866, %v6232, %v6234
      %v6255 = vunpack.c.l.b16 %v6209
      %v6256 = vunpack.c.h.b16 %v6209
      %v6257 = vunpack.c.l.b16 %v6210
      %v6258 = vunpack.c.h.b16 %v6210
      %v6259 = vunpack.c.l.b16 %v6211
      %v6260 = vunpack.c.h.b16 %v6211
      %v6261 = vunpack.c.l.b16 %v6212
      %v6262 = vunpack.c.h.b16 %v6212
      %v6263 = vunpack.c.l.b16 %v6213
      %v6264 = vunpack.c.h.b16 %v6213
      %v6265 = vunpack.c.l.b16 %v6214
      %v6266 = vunpack.c.h.b16 %v6214
      %v6267 = vunpack.c.l.b16 %v6215
      %v6268 = vunpack.c.h.b16 %v6215
      %v6269 = vunpack.c.l.b16 %v6216
      %v6270 = vunpack.c.h.b16 %v6216
      %v6271 = vunpack.c.l.b16 %v6217
      %v6272 = vunpack.c.h.b16 %v6217
      %v6273 = vunpack.c.l.b16 %v6218
      %v6274 = vunpack.c.h.b16 %v6218
      %v6275 = vunpack.c.l.b16 %v6219
      %v6276 = vunpack.c.h.b16 %v6219
      %v6277 = vunpack.c.l.b16 %v6220
      %v6278 = vunpack.c.h.b16 %v6220
      %v6279 = vunpack.c.l.b16 %v6221
      %v6280 = vunpack.c.h.b16 %v6221
      %v6281 = vunpack.c.l.b16 %v6222
      %v6282 = vunpack.c.h.b16 %v6222
      %v6283 = vunpack.c.l.b16 %v6223
      %v6284 = vunpack.c.h.b16 %v6223
      %v6285 = vunpack.c.l.b16 %v6224
      %v6286 = vunpack.c.h.b16 %v6224
      %v6287 = vpack.c.b16 %v6257, %v6255
      %v6288 = vpack.c.b16 %v6258, %v6256
      %v6289 = vpack.c.b16 %v6261, %v6259
      %v6290 = vpack.c.b16 %v6262, %v6260
      %v6291 = vpack.c.b16 %v6265, %v6263
      %v6292 = vpack.c.b16 %v6266, %v6264
      %v6293 = vpack.c.b16 %v6269, %v6267
      %v6294 = vpack.c.b16 %v6270, %v6268
      %v6295 = vpack.c.b16 %v6273, %v6271
      %v6296 = vpack.c.b16 %v6274, %v6272
      %v6297 = vpack.c.b16 %v6277, %v6275
      %v6298 = vpack.c.b16 %v6278, %v6276
      %v6299 = vpack.c.b16 %v6281, %v6279
      %v6300 = vpack.c.b16 %v6282, %v6280
      %v6301 = vpack.c.b16 %v6285, %v6283
      %v6302 = vpack.c.b16 %v6286, %v6284
      %6319 = vmatprep.subr.bf16.mxu0 %v6288
      %6320 = vmatpush1.bf16.msra.mxu0 %v6287
      %6321 = vmatprep.subr.bf16.mxu0 %v6290
      %6322 = vmatpush1.bf16.msra.mxu0 %v6289
      %6323 = vmatprep.subr.bf16.mxu0 %v6292
      %6324 = vmatpush1.bf16.msra.mxu0 %v6291
      %6325 = vmatprep.subr.bf16.mxu0 %v6294
      %6326 = vmatpush1.bf16.msra.mxu0 %v6293
      %6327 = vmatprep.subr.bf16.mxu0 %v6296
      %6328 = vmatpush1.bf16.msra.mxu0 %v6295
      %6329 = vmatprep.subr.bf16.mxu0 %v6298
      %6330 = vmatpush1.bf16.msra.mxu0 %v6297
      %6331 = vmatprep.subr.bf16.mxu0 %v6300
      %6332 = vmatpush1.bf16.msra.mxu0 %v6299
      %6333 = vmatprep.subr.bf16.mxu0 %v6302
      %6334 = vmatpush1.bf16.msra.mxu0 %v6301
      %6335 = vmatprep.subr.bf16.mxu0 0
      %6336 = vmatpush1.bf16.msra.mxu0 0
      %6337 = vmatprep.subr.bf16.mxu0 0
      %6338 = vmatpush1.bf16.msra.mxu0 0
      %6339 = vmatprep.subr.bf16.mxu0 0
      %6340 = vmatpush1.bf16.msra.mxu0 0
      %6341 = vmatprep.subr.bf16.mxu0 0
      %6342 = vmatpush1.bf16.msra.mxu0 0
      %6343 = vmatprep.subr.bf16.mxu0 0
      %6344 = vmatpush1.bf16.msra.mxu0 0
      %6345 = vmatprep.subr.bf16.mxu0 0
      %6346 = vmatpush1.bf16.msra.mxu0 0
      %6347 = vmatprep.subr.bf16.mxu0 0
      %6348 = vmatpush1.bf16.msra.mxu0 0
      %6349 = vmatprep.subr.bf16.mxu0 0
      %6350 = vmatpush1.bf16.msra.mxu0 0
      %6351 = vmatprep.mubr.bf16.mxu0 0
      %6352 = vmatmul.mubr.bf16.gmra.mrb[0].mxu0 %v6231
      %v6353 = vpop.f32.mrb[0].mxu0
      %v6354 = vadd.f32 0.0, %v6353
      %v6355 = vpop.f32.mrb[0].mxu0
      %v6356 = vadd.f32 0.0, %v6355
      %v6357 = vpop.f32.mrb[0].mxu0
      %v6358 = vadd.f32 0.0, %v6357
      %v6359 = vpop.f32.mrb[0].mxu0
      %v6360 = vadd.f32 0.0, %v6359
      %6361 = vmatprep.mubr.bf16.mxu0 0
      %6362 = vmatmul.mubr.bf16.gmra.mrb[0].mxu0 %v6233
      %v6363 = vpop.f32.mrb[0].mxu0
      %v6364 = vadd.f32 0.0, %v6363
      %v6365 = vpop.f32.mrb[0].mxu0
      %v6366 = vadd.f32 0.0, %v6365
      %v6367 = vpop.f32.mrb[0].mxu0
      %v6368 = vadd.f32 0.0, %v6367
      %v6369 = vpop.f32.mrb[0].mxu0
      %v6370 = vadd.f32 0.0, %v6369
      %6371 = vmatprep.mubr.bf16.mxu0 0
      %6372 = vmatmul.mubr.bf16.gmra.mrb[0].mxu0 %v6235
      %v6373 = vpop.f32.mrb[0].mxu0
      %v6374 = vadd.f32 0.0, %v6373
      %v6375 = vpop.f32.mrb[0].mxu0
      %v6376 = vadd.f32 0.0, %v6375
      %v6377 = vpop.f32.mrb[0].mxu0
      %v6378 = vadd.f32 0.0, %v6377
      %v6379 = vpop.f32.mrb[0].mxu0
      %v6380 = vadd.f32 0.0, %v6379
      %6381 = vdwg.mxu0
      %v6382 = vadd.f32 %v6196, %v6354
      %v6383 = vadd.f32 %v6197, %v6356
      %v6384 = vadd.f32 %v6198, %v6358
      %v6385 = vadd.f32 %v6199, %v6360
      %v6386 = vadd.f32 %v6200, %v6364
      %v6387 = vadd.f32 %v6201, %v6366
      %v6388 = vadd.f32 %v6202, %v6368
      %v6389 = vadd.f32 %v6203, %v6370
      %v6390 = vadd.f32 %v6204, %v6374
      %v6391 = vadd.f32 %v6205, %v6376
      %v6392 = vadd.f32 %v6206, %v6378
      %v6393 = vadd.f32 %v6207, %v6380
      %v6394 = vld [vmem:[%s11] ss:$2 sm:$0x3]
      %s6395 = scalar_lea.vmem %s11, 1
      %v6396 = vld [vmem:[%s6395] ss:$2 sm:$0x3]
      %v6398 = vlaneseq
      %v6399 = vshrl.u32 %v6398, 7
      %v6400 = vsub.s32 0, %v6399
      %v6401 = vrot.slane %v6394, %v6400
      %v6402 = vlaneseq
      %v6403 = vshrl.u32 %v6402, 7
      %v6404 = vsub.s32 1, %v6403
      %v6405 = vrot.slane %v6394, %v6404
      %v6408 = vmul.f32 %v6382, %v6401
      %v6409 = vmul.f32 %v6383, %v6405
      %v6410 = vmul.f32 %v6384, %v6401
      %v6411 = vmul.f32 %v6385, %v6405
      %v6412 = vmul.f32 %v6386, %v6401
      %v6413 = vmul.f32 %v6387, %v6405
      %v6414 = vmul.f32 %v6388, %v6401
      %v6415 = vmul.f32 %v6389, %v6405
      %v6416 = vmul.f32 %v6390, %v6401
      %v6417 = vmul.f32 %v6391, %v6405
      %v6418 = vmul.f32 %v6392, %v6401
      %v6419 = vmul.f32 %v6393, %v6405
      %v6421 = vlaneseq
      %v6422 = vshrl.u32 %v6421, 7
      %v6423 = vsub.s32 0, %v6422
      %v6424 = vrot.slane %v6396, %v6423
      %v6425 = vlaneseq
      %v6426 = vshrl.u32 %v6425, 7
      %v6427 = vsub.s32 1, %v6426
      %v6428 = vrot.slane %v6396, %v6427
      %v6431 = vadd.f32 %v6408, %v6424
      %v6432 = vadd.f32 %v6409, %v6428
      %v6433 = vadd.f32 %v6410, %v6424
      %v6434 = vadd.f32 %v6411, %v6428
      %v6435 = vadd.f32 %v6412, %v6424
      %v6436 = vadd.f32 %v6413, %v6428
      %v6437 = vadd.f32 %v6414, %v6424
      %v6438 = vadd.f32 %v6415, %v6428
      %v6439 = vadd.f32 %v6416, %v6424
      %v6440 = vadd.f32 %v6417, %v6428
      %v6441 = vadd.f32 %v6418, %v6424
      %v6442 = vadd.f32 %v6419, %v6428
      %v6443 = vmax.f32 %v6431, 0.0
      %v6444 = vmax.f32 %v6432, 0.0
      %v6445 = vmax.f32 %v6433, 0.0
      %v6446 = vmax.f32 %v6434, 0.0
      %v6447 = vmax.f32 %v6435, 0.0
      %v6448 = vmax.f32 %v6436, 0.0
      %v6449 = vmax.f32 %v6437, 0.0
      %v6450 = vmax.f32 %v6438, 0.0
      %v6451 = vmax.f32 %v6439, 0.0
      %v6452 = vmax.f32 %v6440, 0.0
      %v6453 = vmax.f32 %v6441, 0.0
      %v6454 = vmax.f32 %v6442, 0.0
      %v6455 = vpack.c.bf16 %v6445, %v6443
      %v6456 = vpack.c.bf16 %v6446, %v6444
      %v6457 = vpack.c.bf16 %v6449, %v6447
      %v6458 = vpack.c.bf16 %v6450, %v6448
      %v6459 = vpack.c.bf16 %v6453, %v6451
      %v6460 = vpack.c.bf16 %v6454, %v6452
      %v6461 = vld [vmem:[%s12] sm:$0xf]
      %v6462 = vld [vmem:[%s12 + $0x4] sm:$0xf]
      %v6463 = vld [vmem:[%s12 + $0x8] sm:$0xf]
      %v6464 = vld [vmem:[%s12 + $0xc] sm:$0xf]
      %v6465 = vld [vmem:[%s12 + $0x10] sm:$0xf]
      %v6466 = vld [vmem:[%s12 + $0x14] sm:$0xf]
      %v6467 = vld [vmem:[%s12 + $0x18] sm:$0xf]
      %v6468 = vld [vmem:[%s12 + $0x1c] sm:$0xf]
      %v6469 = vld [vmem:[%s12 + $0x20] sm:$0x1]
      %v6479 = vunpack.c.l.b16 %v6461
      %v6480 = vunpack.c.l.b16 %v6462
      %v6481 = vunpack.c.l.b16 %v6463
      %v6482 = vunpack.c.l.b16 %v6464
      %v6483 = vunpack.c.l.b16 %v6465
      %v6484 = vunpack.c.l.b16 %v6466
      %v6485 = vunpack.c.l.b16 %v6467
      %v6486 = vunpack.c.l.b16 %v6468
      %v6487 = vunpack.c.l.b16 %v6469
      %v6488 = vpack.c.b16 %v6480, %v6479
      %v6489 = vpack.c.b16 %v6482, %v6481
      %v6490 = vpack.c.b16 %v6484, %v6483
      %v6491 = vpack.c.b16 %v6486, %v6485
      %v6492 = vpack.c.b16 %v6487, %v6487
      %vm6493 = vcmask 343040
      %v6495 = vsel %vm6493, %v6488, 0
      %v6498 = vsel %vm6493, %v6489, 0
      %v6501 = vsel %vm6493, %v6490, 0
      %v6504 = vsel %vm6493, %v6491, 0
      %v6507 = vsel %vm6493, %v6492, 0
      %vm6509 = vcmask 1044480
      %v6511 = vsel %vm6509, %v6459, 0
      %v6514 = vsel %vm6509, %v6460, 0
      %6516 = vmatprep.subr.bf16.mxu0 %v6456
      %6517 = vmatpush1.bf16.msra.mxu0 %v6455
      %6518 = vmatprep.subr.bf16.mxu0 %v6458
      %6519 = vmatpush1.bf16.msra.mxu0 %v6457
      %6520 = vmatprep.subr.bf16.mxu0 %v6514
      %6521 = vmatpush1.bf16.msra.mxu0 %v6511
      %6522 = vmatprep.subr.bf16.mxu0 0
      %6523 = vmatpush1.bf16.msra.mxu0 0
      %6524 = vmatprep.subr.bf16.mxu0 0
      %6525 = vmatpush1.bf16.msra.mxu0 0
      %6526 = vmatprep.subr.bf16.mxu0 0
      %6527 = vmatpush1.bf16.msra.mxu0 0
      %6528 = vmatprep.subr.bf16.mxu0 0
      %6529 = vmatpush1.bf16.msra.mxu0 0
      %6530 = vmatprep.subr.bf16.mxu0 0
      %6531 = vmatpush1.bf16.msra.mxu0 0
      %6532 = vmatprep.subr.bf16.mxu0 0
      %6533 = vmatpush1.bf16.msra.mxu0 0
      %6534 = vmatprep.subr.bf16.mxu0 0
      %6535 = vmatpush1.bf16.msra.mxu0 0
      %6536 = vmatprep.subr.bf16.mxu0 0
      %6537 = vmatpush1.bf16.msra.mxu0 0
      %6538 = vmatprep.subr.bf16.mxu0 0
      %6539 = vmatpush1.bf16.msra.mxu0 0
      %6540 = vmatprep.subr.bf16.mxu0 0
      %6541 = vmatpush1.bf16.msra.mxu0 0
      %6542 = vmatprep.subr.bf16.mxu0 0
      %6543 = vmatpush1.bf16.msra.mxu0 0
      %6544 = vmatprep.subr.bf16.mxu0 0
      %6545 = vmatpush1.bf16.msra.mxu0 0
      %6546 = vmatprep.subr.bf16.mxu0 0
      %6547 = vmatpush1.bf16.msra.mxu0 0
      %6548 = vmatprep.mubr.bf16.mxu0 0
      %6549 = vmatmul.mubr.bf16.gmra.mrb[0].mxu0 %v6495
      %v6550 = vpop.f32.mrb[0].mxu0
      %v6551 = vadd.f32 0.0, %v6550
      %v6552 = vpop.f32.mrb[0].mxu0
      %v6553 = vadd.f32 0.0, %v6552
      %v6554 = vpop.f32.mrb[0].mxu0
      %v6555 = vadd.f32 0.0, %v6554
      %v6556 = vpop.f32.mrb[0].mxu0
      %v6557 = vadd.f32 0.0, %v6556
      %6558 = vmatprep.mubr.bf16.mxu0 0
      %6559 = vmatmul.mubr.bf16.gmra.mrb[0].mxu0 %v6498
      %v6560 = vpop.f32.mrb[0].mxu0
      %v6561 = vadd.f32 0.0, %v6560
      %v6562 = vpop.f32.mrb[0].mxu0
      %v6563 = vadd.f32 0.0, %v6562
      %v6564 = vpop.f32.mrb[0].mxu0
      %v6565 = vadd.f32 0.0, %v6564
      %v6566 = vpop.f32.mrb[0].mxu0
      %v6567 = vadd.f32 0.0, %v6566
      %6568 = vmatprep.mubr.bf16.mxu0 0
      %6569 = vmatmul.mubr.bf16.gmra.mrb[0].mxu0 %v6501
      %v6570 = vpop.f32.mrb[0].mxu0
      %v6571 = vadd.f32 0.0, %v6570
      %v6572 = vpop.f32.mrb[0].mxu0
      %v6573 = vadd.f32 0.0, %v6572
      %v6574 = vpop.f32.mrb[0].mxu0
      %v6575 = vadd.f32 0.0, %v6574
      %v6576 = vpop.f32.mrb[0].mxu0
      %v6577 = vadd.f32 0.0, %v6576
      %6578 = vmatprep.mubr.bf16.mxu0 0
      %6579 = vmatmul.mubr.bf16.gmra.mrb[0].mxu0 %v6504
      %v6580 = vpop.f32.mrb[0].mxu0
      %v6581 = vadd.f32 0.0, %v6580
      %v6582 = vpop.f32.mrb[0].mxu0
      %v6583 = vadd.f32 0.0, %v6582
      %v6584 = vpop.f32.mrb[0].mxu0
      %v6585 = vadd.f32 0.0, %v6584
      %v6586 = vpop.f32.mrb[0].mxu0
      %v6587 = vadd.f32 0.0, %v6586
      %6588 = vmatprep.mubr.bf16.mxu0 0
      %6589 = vmatmul.mubr.bf16.gmra.mrb[0].mxu0 %v6507
      %v6590 = vpop.f32.mrb[0].mxu0
      %v6591 = vadd.f32 0.0, %v6590
      %v6592 = vpop.f32.mrb[0].mxu0
      %v6593 = vadd.f32 0.0, %v6592
      %v6594 = vpop.f32.mrb[0].mxu0
      %v6595 = vpop.f32.mrb[0].mxu0
      %6596 = vdwg.mxu0
      %v6597 = vpack.c.bf16 %v6555, %v6551
      %v6598 = vpack.c.bf16 %v6557, %v6553
      %v6599 = vpack.c.bf16 %v6565, %v6561
      %v6600 = vpack.c.bf16 %v6567, %v6563
      %v6601 = vpack.c.bf16 %v6575, %v6571
      %v6602 = vpack.c.bf16 %v6577, %v6573
      %v6603 = vpack.c.bf16 %v6585, %v6581
      %v6604 = vpack.c.bf16 %v6587, %v6583
      %v6605 = vpack.c.bf16 %v6591, %v6591
      %v6606 = vpack.c.bf16 %v6593, %v6593
      %v6607 = vld [vmem:[%s13] sm:$0xf]
      %v6608 = vld [vmem:[%s13 + $0x4] sm:$0xf]
      %v6609 = vld [vmem:[%s13 + $0x8] sm:$0xf]
      %v6610 = vld [vmem:[%s13 + $0xc] sm:$0xf]
      %v6611 = vld [vmem:[%s13 + $0x10] sm:$0xf]
      %v6612 = vld [vmem:[%s13 + $0x14] sm:$0xf]
      %v6613 = vld [vmem:[%s13 + $0x18] sm:$0xf]
      %v6614 = vld [vmem:[%s13 + $0x1c] sm:$0xf]
      %v6615 = vld [vmem:[%s13 + $0x20] sm:$0xf]
      %v6616 = vld [vmem:[%s13 + $0x24] sm:$0xf]
      %v6617 = vld [vmem:[%s13 + $0x28] sm:$0xf]
      %v6618 = vld [vmem:[%s13 + $0x2c] sm:$0xf]
      %v6619 = vld [vmem:[%s13 + $0x30] sm:$0xf]
      %v6620 = vld [vmem:[%s13 + $0x34] sm:$0xf]
      %v6621 = vld [vmem:[%s13 + $0x38] sm:$0xf]
      %v6622 = vld [vmem:[%s13 + $0x3c] sm:$0xf]
      %v6623 = vld [vmem:[%s13 + $0x40] sm:$0xf]
      %v6624 = vld [vmem:[%s13 + $0x44] sm:$0xf]
      %v6625 = vld [vmem:[%s13 + $0x48] sm:$0xf]
      %v6626 = vld [vmem:[%s13 + $0x4c] sm:$0xf]
      %v6627 = vld [vmem:[%s13 + $0x50] sm:$0xf]
      %v6628 = vld [vmem:[%s13 + $0x54] sm:$0xf]
      %v6629 = vld [vmem:[%s13 + $0x58] sm:$0xf]
      %v6630 = vld [vmem:[%s13 + $0x5c] sm:$0xf]
      %v6631 = vld [vmem:[%s13 + $0x60] sm:$0xf]
      %v6632 = vld [vmem:[%s13 + $0x64] sm:$0xf]
      %v6633 = vld [vmem:[%s13 + $0x68] sm:$0xf]
      %v6634 = vld [vmem:[%s13 + $0x6c] sm:$0xf]
      %v6635 = vld [vmem:[%s13 + $0x70] sm:$0xf]
      %v6636 = vld [vmem:[%s13 + $0x74] sm:$0xf]
      %v6637 = vld [vmem:[%s13 + $0x78] sm:$0xf]
      %v6638 = vld [vmem:[%s13 + $0x7c] sm:$0xf]
      %s6639 = scalar_lea.vmem %s13, 128
      %v6640 = vld [vmem:[%s6639] sm:$0xf]
      %v6641 = vld [vmem:[%s6639 + $0x4] sm:$0xf]
      %v6642 = vld [vmem:[%s6639 + $0x8] sm:$0xf]
      %v6643 = vld [vmem:[%s6639 + $0xc] sm:$0xf]
      %v6644 = vld [vmem:[%s6639 + $0x10] sm:$0xf]
      %v6645 = vld [vmem:[%s6639 + $0x14] sm:$0xf]
      %v6646 = vld [vmem:[%s6639 + $0x18] sm:$0xf]
      %v6647 = vld [vmem:[%s6639 + $0x1c] sm:$0xf]
      %v6648 = vld [vmem:[%s6639 + $0x20] sm:$0xf]
      %v6649 = vld [vmem:[%s6639 + $0x24] sm:$0xf]
      %v6650 = vld [vmem:[%s6639 + $0x28] sm:$0xf]
      %v6651 = vld [vmem:[%s6639 + $0x2c] sm:$0xf]
      %v6652 = vld [vmem:[%s6639 + $0x30] sm:$0xf]
      %v6653 = vld [vmem:[%s6639 + $0x34] sm:$0xf]
      %v6654 = vld [vmem:[%s6639 + $0x38] sm:$0xf]
      %v6655 = vld [vmem:[%s6639 + $0x3c] sm:$0xf]
      %v6656 = vld [vmem:[%s6639 + $0x40] sm:$0xf]
      %v6657 = vld [vmem:[%s6639 + $0x44] sm:$0xf]
      %v6658 = vld [vmem:[%s6639 + $0x48] sm:$0xf]
      %v6659 = vld [vmem:[%s6639 + $0x4c] sm:$0xf]
      %v6660 = vld [vmem:[%s6639 + $0x50] sm:$0xf]
      %v6661 = vld [vmem:[%s6639 + $0x54] sm:$0xf]
      %v6662 = vld [vmem:[%s6639 + $0x58] sm:$0xf]
      %v6663 = vld [vmem:[%s6639 + $0x5c] sm:$0xf]
      %v6664 = vld [vmem:[%s6639 + $0x60] sm:$0xf]
      %v6665 = vld [vmem:[%s6639 + $0x64] sm:$0xf]
      %v6666 = vld [vmem:[%s6639 + $0x68] sm:$0xf]
      %v6667 = vld [vmem:[%s6639 + $0x6c] sm:$0xf]
      %v6668 = vld [vmem:[%s6639 + $0x70] sm:$0xf]
      %v6669 = vld [vmem:[%s6639 + $0x74] sm:$0xf]
      %v6670 = vld [vmem:[%s6639 + $0x78] sm:$0xf]
      %v6671 = vld [vmem:[%s6639 + $0x7c] sm:$0xf]
      %v6673 = vshrl.u32 %v6597, 16
      %v6675 = vshll.u32 %v6597, 16
      %v6677 = vrot.slane %v6675, 1
      %v6678 = vor.u32 %v6673, %v6677
      %v6680 = vshll.u32 %v6599, 16
      %v6682 = vrot.slane %v6680, 1
      %v6683 = vsel %vm1101, %v6678, %v6682
      %v6685 = vshrl.u32 %v6598, 16
      %v6687 = vshll.u32 %v6598, 16
      %v6689 = vrot.slane %v6687, 1
      %v6690 = vor.u32 %v6685, %v6689
      %v6692 = vshll.u32 %v6600, 16
      %v6694 = vrot.slane %v6692, 1
      %v6695 = vsel %vm1101, %v6690, %v6694
      %v6696 = vshrl.u32 %v6599, 16
      %v6698 = vor.u32 %v6696, %v6682
      %v6700 = vshll.u32 %v6601, 16
      %v6702 = vrot.slane %v6700, 1
      %v6703 = vsel %vm1101, %v6698, %v6702
      %v6704 = vshrl.u32 %v6600, 16
      %v6706 = vor.u32 %v6704, %v6694
      %v6708 = vshll.u32 %v6602, 16
      %v6710 = vrot.slane %v6708, 1
      %v6711 = vsel %vm1101, %v6706, %v6710
      %v6712 = vshrl.u32 %v6601, 16
      %v6714 = vor.u32 %v6712, %v6702
      %v6716 = vshll.u32 %v6603, 16
      %v6718 = vrot.slane %v6716, 1
      %v6719 = vsel %vm1101, %v6714, %v6718
      %v6720 = vshrl.u32 %v6602, 16
      %v6722 = vor.u32 %v6720, %v6710
      %v6724 = vshll.u32 %v6604, 16
      %v6726 = vrot.slane %v6724, 1
      %v6727 = vsel %vm1101, %v6722, %v6726
      %v6728 = vshrl.u32 %v6603, 16
      %v6730 = vor.u32 %v6728, %v6718
      %v6731 = vshrl.u32 %v6604, 16
      %v6733 = vor.u32 %v6731, %v6726
      %v6774 = vunpack.c.l.b16 %v6640
      %v6775 = vunpack.c.l.b16 %v6641
      %v6776 = vunpack.c.l.b16 %v6642
      %v6777 = vunpack.c.l.b16 %v6643
      %v6778 = vunpack.c.l.b16 %v6644
      %v6779 = vunpack.c.l.b16 %v6645
      %v6780 = vunpack.c.l.b16 %v6646
      %v6781 = vunpack.c.l.b16 %v6647
      %v6782 = vunpack.c.l.b16 %v6648
      %v6783 = vunpack.c.l.b16 %v6649
      %v6784 = vunpack.c.l.b16 %v6650
      %v6785 = vunpack.c.l.b16 %v6651
      %v6786 = vunpack.c.l.b16 %v6652
      %v6787 = vunpack.c.l.b16 %v6653
      %v6788 = vunpack.c.l.b16 %v6654
      %v6789 = vunpack.c.l.b16 %v6655
      %v6790 = vunpack.c.l.b16 %v6656
      %v6791 = vunpack.c.l.b16 %v6657
      %v6792 = vunpack.c.l.b16 %v6658
      %v6793 = vunpack.c.l.b16 %v6659
      %v6794 = vunpack.c.l.b16 %v6660
      %v6795 = vunpack.c.l.b16 %v6661
      %v6796 = vunpack.c.l.b16 %v6662
      %v6797 = vunpack.c.l.b16 %v6663
      %v6798 = vunpack.c.l.b16 %v6664
      %v6799 = vunpack.c.l.b16 %v6665
      %v6800 = vunpack.c.l.b16 %v6666
      %v6801 = vunpack.c.l.b16 %v6667
      %v6802 = vunpack.c.l.b16 %v6668
      %v6803 = vunpack.c.l.b16 %v6669
      %v6804 = vunpack.c.l.b16 %v6670
      %v6805 = vunpack.c.l.b16 %v6671
      %v6806 = vpack.c.b16 %v6775, %v6774
      %v6807 = vpack.c.b16 %v6777, %v6776
      %v6808 = vpack.c.b16 %v6779, %v6778
      %v6809 = vpack.c.b16 %v6781, %v6780
      %v6810 = vpack.c.b16 %v6783, %v6782
      %v6811 = vpack.c.b16 %v6785, %v6784
      %v6812 = vpack.c.b16 %v6787, %v6786
      %v6813 = vpack.c.b16 %v6789, %v6788
      %v6814 = vpack.c.b16 %v6791, %v6790
      %v6815 = vpack.c.b16 %v6793, %v6792
      %v6816 = vpack.c.b16 %v6795, %v6794
      %v6817 = vpack.c.b16 %v6797, %v6796
      %v6818 = vpack.c.b16 %v6799, %v6798
      %v6819 = vpack.c.b16 %v6801, %v6800
      %v6820 = vpack.c.b16 %v6803, %v6802
      %v6821 = vpack.c.b16 %v6805, %v6804
      %6838 = vmatprep.subr.bf16.mxu0 0
      %6839 = vmatpush1.bf16.msra.mxu0 %v6806
      %6840 = vmatprep.subr.bf16.mxu0 0
      %6841 = vmatpush1.bf16.msra.mxu0 %v6807
      %6842 = vmatprep.subr.bf16.mxu0 0
      %6843 = vmatpush1.bf16.msra.mxu0 %v6808
      %6844 = vmatprep.subr.bf16.mxu0 0
      %6845 = vmatpush1.bf16.msra.mxu0 %v6809
      %6846 = vmatprep.subr.bf16.mxu0 0
      %6847 = vmatpush1.bf16.msra.mxu0 %v6810
      %6848 = vmatprep.subr.bf16.mxu0 0
      %6849 = vmatpush1.bf16.msra.mxu0 %v6811
      %6850 = vmatprep.subr.bf16.mxu0 0
      %6851 = vmatpush1.bf16.msra.mxu0 %v6812
      %6852 = vmatprep.subr.bf16.mxu0 0
      %6853 = vmatpush1.bf16.msra.mxu0 %v6813
      %6854 = vmatprep.subr.bf16.mxu0 0
      %6855 = vmatpush1.bf16.msra.mxu0 %v6814
      %6856 = vmatprep.subr.bf16.mxu0 0
      %6857 = vmatpush1.bf16.msra.mxu0 %v6815
      %6858 = vmatprep.subr.bf16.mxu0 0
      %6859 = vmatpush1.bf16.msra.mxu0 %v6816
      %6860 = vmatprep.subr.bf16.mxu0 0
      %6861 = vmatpush1.bf16.msra.mxu0 %v6817
      %6862 = vmatprep.subr.bf16.mxu0 0
      %6863 = vmatpush1.bf16.msra.mxu0 %v6818
      %6864 = vmatprep.subr.bf16.mxu0 0
      %6865 = vmatpush1.bf16.msra.mxu0 %v6819
      %6866 = vmatprep.subr.bf16.mxu0 0
      %6867 = vmatpush1.bf16.msra.mxu0 %v6820
      %6868 = vmatprep.subr.bf16.mxu0 0
      %6869 = vmatpush1.bf16.msra.mxu0 %v6821
      %6870 = vmatprep.mubr.bf16.mxu0 %v6695
      %6871 = vmatmul.mubr.bf16.gmra.mrb[0].mxu0 %v6683
      %v6872 = vpop.f32.mrb[0].mxu0
      %v6873 = vadd.f32 0.0, %v6872
      %v6874 = vpop.f32.mrb[0].mxu0
      %v6875 = vpop.f32.mrb[0].mxu0
      %v6876 = vadd.f32 0.0, %v6875
      %v6877 = vpop.f32.mrb[0].mxu0
      %6878 = vmatprep.mubr.bf16.mxu0 %v6711
      %6879 = vmatmul.mubr.bf16.gmra.mrb[0].mxu0 %v6703
      %v6880 = vpop.f32.mrb[0].mxu0
      %v6881 = vadd.f32 0.0, %v6880
      %v6882 = vpop.f32.mrb[0].mxu0
      %v6883 = vpop.f32.mrb[0].mxu0
      %v6884 = vadd.f32 0.0, %v6883
      %v6885 = vpop.f32.mrb[0].mxu0
      %6886 = vmatprep.mubr.bf16.mxu0 %v6727
      %6887 = vmatmul.mubr.bf16.gmra.mrb[0].mxu0 %v6719
      %v6888 = vpop.f32.mrb[0].mxu0
      %v6889 = vadd.f32 0.0, %v6888
      %v6890 = vpop.f32.mrb[0].mxu0
      %v6891 = vpop.f32.mrb[0].mxu0
      %v6892 = vadd.f32 0.0, %v6891
      %v6893 = vpop.f32.mrb[0].mxu0
      %6894 = vmatprep.mubr.bf16.mxu0 %v6733
      %6895 = vmatmul.mubr.bf16.gmra.mrb[0].mxu0 %v6730
      %v6896 = vpop.f32.mrb[0].mxu0
      %v6897 = vadd.f32 0.0, %v6896
      %v6898 = vpop.f32.mrb[0].mxu0
      %v6899 = vpop.f32.mrb[0].mxu0
      %v6900 = vpop.f32.mrb[0].mxu0
      %6901 = vdwg.mxu0
      %v6934 = vunpack.c.l.b16 %v6607
      %v6935 = vunpack.c.l.b16 %v6608
      %v6936 = vunpack.c.l.b16 %v6609
      %v6937 = vunpack.c.l.b16 %v6610
      %v6938 = vunpack.c.l.b16 %v6611
      %v6939 = vunpack.c.l.b16 %v6612
      %v6940 = vunpack.c.l.b16 %v6613
      %v6941 = vunpack.c.l.b16 %v6614
      %v6942 = vunpack.c.l.b16 %v6615
      %v6943 = vunpack.c.l.b16 %v6616
      %v6944 = vunpack.c.l.b16 %v6617
      %v6945 = vunpack.c.l.b16 %v6618
      %v6946 = vunpack.c.l.b16 %v6619
      %v6947 = vunpack.c.l.b16 %v6620
      %v6948 = vunpack.c.l.b16 %v6621
      %v6949 = vunpack.c.l.b16 %v6622
      %v6950 = vunpack.c.l.b16 %v6623
      %v6951 = vunpack.c.l.b16 %v6624
      %v6952 = vunpack.c.l.b16 %v6625
      %v6953 = vunpack.c.l.b16 %v6626
      %v6954 = vunpack.c.l.b16 %v6627
      %v6955 = vunpack.c.l.b16 %v6628
      %v6956 = vunpack.c.l.b16 %v6629
      %v6957 = vunpack.c.l.b16 %v6630
      %v6958 = vunpack.c.l.b16 %v6631
      %v6959 = vunpack.c.l.b16 %v6632
      %v6960 = vunpack.c.l.b16 %v6633
      %v6961 = vunpack.c.l.b16 %v6634
      %v6962 = vunpack.c.l.b16 %v6635
      %v6963 = vunpack.c.l.b16 %v6636
      %v6964 = vunpack.c.l.b16 %v6637
      %v6965 = vunpack.c.l.b16 %v6638
      %v6966 = vpack.c.b16 %v6935, %v6934
      %v6967 = vpack.c.b16 %v6937, %v6936
      %v6968 = vpack.c.b16 %v6939, %v6938
      %v6969 = vpack.c.b16 %v6941, %v6940
      %v6970 = vpack.c.b16 %v6943, %v6942
      %v6971 = vpack.c.b16 %v6945, %v6944
      %v6972 = vpack.c.b16 %v6947, %v6946
      %v6973 = vpack.c.b16 %v6949, %v6948
      %v6974 = vpack.c.b16 %v6951, %v6950
      %v6975 = vpack.c.b16 %v6953, %v6952
      %v6976 = vpack.c.b16 %v6955, %v6954
      %v6977 = vpack.c.b16 %v6957, %v6956
      %v6978 = vpack.c.b16 %v6959, %v6958
      %v6979 = vpack.c.b16 %v6961, %v6960
      %v6980 = vpack.c.b16 %v6963, %v6962
      %v6981 = vpack.c.b16 %v6965, %v6964
      %6998 = vmatprep.subr.bf16.mxu0 0
      %6999 = vmatpush1.bf16.msra.mxu0 %v6966
      %7000 = vmatprep.subr.bf16.mxu0 0
      %7001 = vmatpush1.bf16.msra.mxu0 %v6967
      %7002 = vmatprep.subr.bf16.mxu0 0
      %7003 = vmatpush1.bf16.msra.mxu0 %v6968
      %7004 = vmatprep.subr.bf16.mxu0 0
      %7005 = vmatpush1.bf16.msra.mxu0 %v6969
      %7006 = vmatprep.subr.bf16.mxu0 0
      %7007 = vmatpush1.bf16.msra.mxu0 %v6970
      %7008 = vmatprep.subr.bf16.mxu0 0
      %7009 = vmatpush1.bf16.msra.mxu0 %v6971
      %7010 = vmatprep.subr.bf16.mxu0 0
      %7011 = vmatpush1.bf16.msra.mxu0 %v6972
      %7012 = vmatprep.subr.bf16.mxu0 0
      %7013 = vmatpush1.bf16.msra.mxu0 %v6973
      %7014 = vmatprep.subr.bf16.mxu0 0
      %7015 = vmatpush1.bf16.msra.mxu0 %v6974
      %7016 = vmatprep.subr.bf16.mxu0 0
      %7017 = vmatpush1.bf16.msra.mxu0 %v6975
      %7018 = vmatprep.subr.bf16.mxu0 0
      %7019 = vmatpush1.bf16.msra.mxu0 %v6976
      %7020 = vmatprep.subr.bf16.mxu0 0
      %7021 = vmatpush1.bf16.msra.mxu0 %v6977
      %7022 = vmatprep.subr.bf16.mxu0 0
      %7023 = vmatpush1.bf16.msra.mxu0 %v6978
      %7024 = vmatprep.subr.bf16.mxu0 0
      %7025 = vmatpush1.bf16.msra.mxu0 %v6979
      %7026 = vmatprep.subr.bf16.mxu0 0
      %7027 = vmatpush1.bf16.msra.mxu0 %v6980
      %7028 = vmatprep.subr.bf16.mxu0 0
      %7029 = vmatpush1.bf16.msra.mxu0 %v6981
      %7030 = vmatprep.mubr.bf16.mxu0 %v6598
      %7031 = vmatmul.mubr.bf16.gmra.mrb[0].mxu0 %v6597
      %v7032 = vpop.f32.mrb[0].mxu0
      %v7033 = vadd.f32 %v6873, %v7032
      %v7034 = vpop.f32.mrb[0].mxu0
      %v7035 = vpop.f32.mrb[0].mxu0
      %v7036 = vadd.f32 %v6876, %v7035
      %v7037 = vpop.f32.mrb[0].mxu0
      %7038 = vmatprep.mubr.bf16.mxu0 %v6600
      %7039 = vmatmul.mubr.bf16.gmra.mrb[0].mxu0 %v6599
      %v7040 = vpop.f32.mrb[0].mxu0
      %v7041 = vadd.f32 %v6881, %v7040
      %v7042 = vpop.f32.mrb[0].mxu0
      %v7043 = vpop.f32.mrb[0].mxu0
      %v7044 = vadd.f32 %v6884, %v7043
      %v7045 = vpop.f32.mrb[0].mxu0
      %7046 = vmatprep.mubr.bf16.mxu0 %v6602
      %7047 = vmatmul.mubr.bf16.gmra.mrb[0].mxu0 %v6601
      %v7048 = vpop.f32.mrb[0].mxu0
      %v7049 = vadd.f32 %v6889, %v7048
      %v7050 = vpop.f32.mrb[0].mxu0
      %v7051 = vpop.f32.mrb[0].mxu0
      %v7052 = vadd.f32 %v6892, %v7051
      %v7053 = vpop.f32.mrb[0].mxu0
      %7054 = vmatprep.mubr.bf16.mxu0 %v6604
      %7055 = vmatmul.mubr.bf16.gmra.mrb[0].mxu0 %v6603
      %v7056 = vpop.f32.mrb[0].mxu0
      %v7057 = vadd.f32 %v6897, %v7056
      %v7058 = vpop.f32.mrb[0].mxu0
      %v7059 = vpop.f32.mrb[0].mxu0
      %v7060 = vpop.f32.mrb[0].mxu0
      %7061 = vdwg.mxu0
      %s7062 = scalar_lea.vmem %s13, 256
      %v7063 = vld [vmem:[%s7062] sm:$0xf]
      %v7064 = vld [vmem:[%s7062 + $0x4] sm:$0xf]
      %v7065 = vld [vmem:[%s7062 + $0x8] sm:$0xf]
      %v7066 = vld [vmem:[%s7062 + $0xc] sm:$0xf]
      %v7067 = vld [vmem:[%s7062 + $0x10] sm:$0xf]
      %v7068 = vld [vmem:[%s7062 + $0x14] sm:$0xf]
      %v7069 = vld [vmem:[%s7062 + $0x18] sm:$0xf]
      %v7070 = vld [vmem:[%s7062 + $0x1c] sm:$0xf]
      %v7071 = vld [vmem:[%s7062 + $0x20] sm:$0xf]
      %v7072 = vld [vmem:[%s7062 + $0x24] sm:$0xf]
      %v7073 = vld [vmem:[%s7062 + $0x28] sm:$0xf]
      %v7074 = vld [vmem:[%s7062 + $0x2c] sm:$0xf]
      %v7075 = vld [vmem:[%s7062 + $0x30] sm:$0xf]
      %v7076 = vld [vmem:[%s7062 + $0x34] sm:$0xf]
      %v7077 = vld [vmem:[%s7062 + $0x38] sm:$0xf]
      %v7078 = vld [vmem:[%s7062 + $0x3c] sm:$0xf]
      %v7079 = vld [vmem:[%s7062 + $0x40] sm:$0xf]
      %v7080 = vld [vmem:[%s7062 + $0x44] sm:$0xf]
      %v7081 = vld [vmem:[%s7062 + $0x48] sm:$0xf]
      %v7082 = vld [vmem:[%s7062 + $0x4c] sm:$0xf]
      %v7083 = vld [vmem:[%s7062 + $0x50] sm:$0xf]
      %v7084 = vld [vmem:[%s7062 + $0x54] sm:$0xf]
      %v7085 = vld [vmem:[%s7062 + $0x58] sm:$0xf]
      %v7086 = vld [vmem:[%s7062 + $0x5c] sm:$0xf]
      %v7087 = vld [vmem:[%s7062 + $0x60] sm:$0xf]
      %v7088 = vld [vmem:[%s7062 + $0x64] sm:$0xf]
      %v7089 = vld [vmem:[%s7062 + $0x68] sm:$0xf]
      %v7090 = vld [vmem:[%s7062 + $0x6c] sm:$0xf]
      %v7091 = vld [vmem:[%s7062 + $0x70] sm:$0xf]
      %v7092 = vld [vmem:[%s7062 + $0x74] sm:$0xf]
      %v7093 = vld [vmem:[%s7062 + $0x78] sm:$0xf]
      %v7094 = vld [vmem:[%s7062 + $0x7c] sm:$0xf]
      %v7103 = vrot.slane %v6597, 4
      %v7104 = vrot.slane %v6599, 4
      %v7105 = vsel %vm4866, %v7103, %v7104
      %v7106 = vrot.slane %v6598, 4
      %v7107 = vrot.slane %v6600, 4
      %v7108 = vsel %vm4866, %v7106, %v7107
      %v7109 = vrot.slane %v6601, 4
      %v7110 = vsel %vm4866, %v7104, %v7109
      %v7111 = vrot.slane %v6602, 4
      %v7112 = vsel %vm4866, %v7107, %v7111
      %v7113 = vrot.slane %v6603, 4
      %v7114 = vsel %vm4866, %v7109, %v7113
      %v7115 = vrot.slane %v6604, 4
      %v7116 = vsel %vm4866, %v7111, %v7115
      %v7157 = vunpack.c.l.b16 %v7063
      %v7158 = vunpack.c.l.b16 %v7064
      %v7159 = vunpack.c.l.b16 %v7065
      %v7160 = vunpack.c.l.b16 %v7066
      %v7161 = vunpack.c.l.b16 %v7067
      %v7162 = vunpack.c.l.b16 %v7068
      %v7163 = vunpack.c.l.b16 %v7069
      %v7164 = vunpack.c.l.b16 %v7070
      %v7165 = vunpack.c.l.b16 %v7071
      %v7166 = vunpack.c.l.b16 %v7072
      %v7167 = vunpack.c.l.b16 %v7073
      %v7168 = vunpack.c.l.b16 %v7074
      %v7169 = vunpack.c.l.b16 %v7075
      %v7170 = vunpack.c.l.b16 %v7076
      %v7171 = vunpack.c.l.b16 %v7077
      %v7172 = vunpack.c.l.b16 %v7078
      %v7173 = vunpack.c.l.b16 %v7079
      %v7174 = vunpack.c.l.b16 %v7080
      %v7175 = vunpack.c.l.b16 %v7081
      %v7176 = vunpack.c.l.b16 %v7082
      %v7177 = vunpack.c.l.b16 %v7083
      %v7178 = vunpack.c.l.b16 %v7084
      %v7179 = vunpack.c.l.b16 %v7085
      %v7180 = vunpack.c.l.b16 %v7086
      %v7181 = vunpack.c.l.b16 %v7087
      %v7182 = vunpack.c.l.b16 %v7088
      %v7183 = vunpack.c.l.b16 %v7089
      %v7184 = vunpack.c.l.b16 %v7090
      %v7185 = vunpack.c.l.b16 %v7091
      %v7186 = vunpack.c.l.b16 %v7092
      %v7187 = vunpack.c.l.b16 %v7093
      %v7188 = vunpack.c.l.b16 %v7094
      %v7189 = vpack.c.b16 %v7158, %v7157
      %v7190 = vpack.c.b16 %v7160, %v7159
      %v7191 = vpack.c.b16 %v7162, %v7161
      %v7192 = vpack.c.b16 %v7164, %v7163
      %v7193 = vpack.c.b16 %v7166, %v7165
      %v7194 = vpack.c.b16 %v7168, %v7167
      %v7195 = vpack.c.b16 %v7170, %v7169
      %v7196 = vpack.c.b16 %v7172, %v7171
      %v7197 = vpack.c.b16 %v7174, %v7173
      %v7198 = vpack.c.b16 %v7176, %v7175
      %v7199 = vpack.c.b16 %v7178, %v7177
      %v7200 = vpack.c.b16 %v7180, %v7179
      %v7201 = vpack.c.b16 %v7182, %v7181
      %v7202 = vpack.c.b16 %v7184, %v7183
      %v7203 = vpack.c.b16 %v7186, %v7185
      %v7204 = vpack.c.b16 %v7188, %v7187
      %7221 = vmatprep.subr.bf16.mxu0 0
      %7222 = vmatpush1.bf16.msra.mxu0 %v7189
      %7223 = vmatprep.subr.bf16.mxu0 0
      %7224 = vmatpush1.bf16.msra.mxu0 %v7190
      %7225 = vmatprep.subr.bf16.mxu0 0
      %7226 = vmatpush1.bf16.msra.mxu0 %v7191
      %7227 = vmatprep.subr.bf16.mxu0 0
      %7228 = vmatpush1.bf16.msra.mxu0 %v7192
      %7229 = vmatprep.subr.bf16.mxu0 0
      %7230 = vmatpush1.bf16.msra.mxu0 %v7193
      %7231 = vmatprep.subr.bf16.mxu0 0
      %7232 = vmatpush1.bf16.msra.mxu0 %v7194
      %7233 = vmatprep.subr.bf16.mxu0 0
      %7234 = vmatpush1.bf16.msra.mxu0 %v7195
      %7235 = vmatprep.subr.bf16.mxu0 0
      %7236 = vmatpush1.bf16.msra.mxu0 %v7196
      %7237 = vmatprep.subr.bf16.mxu0 0
      %7238 = vmatpush1.bf16.msra.mxu0 %v7197
      %7239 = vmatprep.subr.bf16.mxu0 0
      %7240 = vmatpush1.bf16.msra.mxu0 %v7198
      %7241 = vmatprep.subr.bf16.mxu0 0
      %7242 = vmatpush1.bf16.msra.mxu0 %v7199
      %7243 = vmatprep.subr.bf16.mxu0 0
      %7244 = vmatpush1.bf16.msra.mxu0 %v7200
      %7245 = vmatprep.subr.bf16.mxu0 0
      %7246 = vmatpush1.bf16.msra.mxu0 %v7201
      %7247 = vmatprep.subr.bf16.mxu0 0
      %7248 = vmatpush1.bf16.msra.mxu0 %v7202
      %7249 = vmatprep.subr.bf16.mxu0 0
      %7250 = vmatpush1.bf16.msra.mxu0 %v7203
      %7251 = vmatprep.subr.bf16.mxu0 0
      %7252 = vmatpush1.bf16.msra.mxu0 %v7204
      %7253 = vmatprep.mubr.bf16.mxu0 %v7108
      %7254 = vmatmul.mubr.bf16.gmra.mrb[0].mxu0 %v7105
      %v7255 = vpop.f32.mrb[0].mxu0
      %v7256 = vadd.f32 0.0, %v7255
      %v7257 = vpop.f32.mrb[0].mxu0
      %v7258 = vpop.f32.mrb[0].mxu0
      %v7259 = vadd.f32 0.0, %v7258
      %v7260 = vpop.f32.mrb[0].mxu0
      %7261 = vmatprep.mubr.bf16.mxu0 %v7112
      %7262 = vmatmul.mubr.bf16.gmra.mrb[0].mxu0 %v7110
      %v7263 = vpop.f32.mrb[0].mxu0
      %v7264 = vadd.f32 0.0, %v7263
      %v7265 = vpop.f32.mrb[0].mxu0
      %v7266 = vpop.f32.mrb[0].mxu0
      %v7267 = vadd.f32 0.0, %v7266
      %v7268 = vpop.f32.mrb[0].mxu0
      %7269 = vmatprep.mubr.bf16.mxu0 %v7116
      %7270 = vmatmul.mubr.bf16.gmra.mrb[0].mxu0 %v7114
      %v7271 = vpop.f32.mrb[0].mxu0
      %v7272 = vadd.f32 0.0, %v7271
      %v7273 = vpop.f32.mrb[0].mxu0
      %v7274 = vpop.f32.mrb[0].mxu0
      %v7275 = vadd.f32 0.0, %v7274
      %v7276 = vpop.f32.mrb[0].mxu0
      %7277 = vmatprep.mubr.bf16.mxu0 %v7115
      %7278 = vmatmul.mubr.bf16.gmra.mrb[0].mxu0 %v7113
      %v7279 = vpop.f32.mrb[0].mxu0
      %v7280 = vadd.f32 0.0, %v7279
      %v7281 = vpop.f32.mrb[0].mxu0
      %v7282 = vpop.f32.mrb[0].mxu0
      %v7283 = vpop.f32.mrb[0].mxu0
      %7284 = vdwg.mxu0
      %v7285 = vadd.f32 %v7033, %v7256
      %v7286 = vadd.f32 %v7036, %v7259
      %v7287 = vadd.f32 %v7041, %v7264
      %v7288 = vadd.f32 %v7044, %v7267
      %v7289 = vadd.f32 %v7049, %v7272
      %v7290 = vadd.f32 %v7052, %v7275
      %v7291 = vadd.f32 %v7057, %v7280
      %s7292 = scalar_lea.vmem %s13, 384
      %v7293 = vld [vmem:[%s7292] sm:$0xf]
      %v7294 = vld [vmem:[%s7292 + $0x4] sm:$0xf]
      %v7295 = vld [vmem:[%s7292 + $0x8] sm:$0xf]
      %v7296 = vld [vmem:[%s7292 + $0xc] sm:$0xf]
      %v7297 = vld [vmem:[%s7292 + $0x10] sm:$0xf]
      %v7298 = vld [vmem:[%s7292 + $0x14] sm:$0xf]
      %v7299 = vld [vmem:[%s7292 + $0x18] sm:$0xf]
      %v7300 = vld [vmem:[%s7292 + $0x1c] sm:$0xf]
      %v7301 = vld [vmem:[%s7292 + $0x20] sm:$0xf]
      %v7302 = vld [vmem:[%s7292 + $0x24] sm:$0xf]
      %v7303 = vld [vmem:[%s7292 + $0x28] sm:$0xf]
      %v7304 = vld [vmem:[%s7292 + $0x2c] sm:$0xf]
      %v7305 = vld [vmem:[%s7292 + $0x30] sm:$0xf]
      %v7306 = vld [vmem:[%s7292 + $0x34] sm:$0xf]
      %v7307 = vld [vmem:[%s7292 + $0x38] sm:$0xf]
      %v7308 = vld [vmem:[%s7292 + $0x3c] sm:$0xf]
      %v7309 = vld [vmem:[%s7292 + $0x40] sm:$0xf]
      %v7310 = vld [vmem:[%s7292 + $0x44] sm:$0xf]
      %v7311 = vld [vmem:[%s7292 + $0x48] sm:$0xf]
      %v7312 = vld [vmem:[%s7292 + $0x4c] sm:$0xf]
      %v7313 = vld [vmem:[%s7292 + $0x50] sm:$0xf]
      %v7314 = vld [vmem:[%s7292 + $0x54] sm:$0xf]
      %v7315 = vld [vmem:[%s7292 + $0x58] sm:$0xf]
      %v7316 = vld [vmem:[%s7292 + $0x5c] sm:$0xf]
      %v7317 = vld [vmem:[%s7292 + $0x60] sm:$0xf]
      %v7318 = vld [vmem:[%s7292 + $0x64] sm:$0xf]
      %v7319 = vld [vmem:[%s7292 + $0x68] sm:$0xf]
      %v7320 = vld [vmem:[%s7292 + $0x6c] sm:$0xf]
      %v7321 = vld [vmem:[%s7292 + $0x70] sm:$0xf]
      %v7322 = vld [vmem:[%s7292 + $0x74] sm:$0xf]
      %v7323 = vld [vmem:[%s7292 + $0x78] sm:$0xf]
      %v7324 = vld [vmem:[%s7292 + $0x7c] sm:$0xf]
      %v7325 = vrot.slane %v6673, 4
      %v7326 = vrot.slane %v6675, 5
      %v7327 = vor.u32 %v7325, %v7326
      %v7328 = vrot.slane %v6696, 4
      %v7329 = vrot.slane %v6680, 5
      %v7330 = vor.u32 %v7328, %v7329
      %v7331 = vsel %vm5001, %v7327, %v7330
      %v7332 = vrot.slane %v6685, 4
      %v7333 = vrot.slane %v6687, 5
      %v7334 = vor.u32 %v7332, %v7333
      %v7335 = vrot.slane %v6704, 4
      %v7336 = vrot.slane %v6692, 5
      %v7337 = vor.u32 %v7335, %v7336
      %v7338 = vsel %vm5001, %v7334, %v7337
      %v7339 = vrot.slane %v6712, 4
      %v7340 = vrot.slane %v6700, 5
      %v7341 = vor.u32 %v7339, %v7340
      %v7342 = vsel %vm5001, %v7330, %v7341
      %v7343 = vrot.slane %v6720, 4
      %v7344 = vrot.slane %v6708, 5
      %v7345 = vor.u32 %v7343, %v7344
      %v7346 = vsel %vm5001, %v7337, %v7345
      %v7347 = vrot.slane %v6728, 4
      %v7348 = vrot.slane %v6716, 5
      %v7349 = vor.u32 %v7347, %v7348
      %v7350 = vsel %vm5001, %v7341, %v7349
      %v7351 = vrot.slane %v6731, 4
      %v7352 = vrot.slane %v6724, 5
      %v7353 = vor.u32 %v7351, %v7352
      %v7354 = vsel %vm5001, %v7345, %v7353
      %v7356 = vshll.u32 %v6605, 16
      %v7358 = vrot.slane %v7356, 5
      %v7359 = vsel %vm5001, %v7349, %v7358
      %v7361 = vshll.u32 %v6606, 16
      %v7363 = vrot.slane %v7361, 5
      %v7364 = vsel %vm5001, %v7353, %v7363
      %v7405 = vunpack.c.l.b16 %v7293
      %v7406 = vunpack.c.l.b16 %v7294
      %v7407 = vunpack.c.l.b16 %v7295
      %v7408 = vunpack.c.l.b16 %v7296
      %v7409 = vunpack.c.l.b16 %v7297
      %v7410 = vunpack.c.l.b16 %v7298
      %v7411 = vunpack.c.l.b16 %v7299
      %v7412 = vunpack.c.l.b16 %v7300
      %v7413 = vunpack.c.l.b16 %v7301
      %v7414 = vunpack.c.l.b16 %v7302
      %v7415 = vunpack.c.l.b16 %v7303
      %v7416 = vunpack.c.l.b16 %v7304
      %v7417 = vunpack.c.l.b16 %v7305
      %v7418 = vunpack.c.l.b16 %v7306
      %v7419 = vunpack.c.l.b16 %v7307
      %v7420 = vunpack.c.l.b16 %v7308
      %v7421 = vunpack.c.l.b16 %v7309
      %v7422 = vunpack.c.l.b16 %v7310
      %v7423 = vunpack.c.l.b16 %v7311
      %v7424 = vunpack.c.l.b16 %v7312
      %v7425 = vunpack.c.l.b16 %v7313
      %v7426 = vunpack.c.l.b16 %v7314
      %v7427 = vunpack.c.l.b16 %v7315
      %v7428 = vunpack.c.l.b16 %v7316
      %v7429 = vunpack.c.l.b16 %v7317
      %v7430 = vunpack.c.l.b16 %v7318
      %v7431 = vunpack.c.l.b16 %v7319
      %v7432 = vunpack.c.l.b16 %v7320
      %v7433 = vunpack.c.l.b16 %v7321
      %v7434 = vunpack.c.l.b16 %v7322
      %v7435 = vunpack.c.l.b16 %v7323
      %v7436 = vunpack.c.l.b16 %v7324
      %v7437 = vpack.c.b16 %v7406, %v7405
      %v7438 = vpack.c.b16 %v7408, %v7407
      %v7439 = vpack.c.b16 %v7410, %v7409
      %v7440 = vpack.c.b16 %v7412, %v7411
      %v7441 = vpack.c.b16 %v7414, %v7413
      %v7442 = vpack.c.b16 %v7416, %v7415
      %v7443 = vpack.c.b16 %v7418, %v7417
      %v7444 = vpack.c.b16 %v7420, %v7419
      %v7445 = vpack.c.b16 %v7422, %v7421
      %v7446 = vpack.c.b16 %v7424, %v7423
      %v7447 = vpack.c.b16 %v7426, %v7425
      %v7448 = vpack.c.b16 %v7428, %v7427
      %v7449 = vpack.c.b16 %v7430, %v7429
      %v7450 = vpack.c.b16 %v7432, %v7431
      %v7451 = vpack.c.b16 %v7434, %v7433
      %v7452 = vpack.c.b16 %v7436, %v7435
      %7469 = vmatprep.subr.bf16.mxu0 0
      %7470 = vmatpush1.bf16.msra.mxu0 %v7437
      %7471 = vmatprep.subr.bf16.mxu0 0
      %7472 = vmatpush1.bf16.msra.mxu0 %v7438
      %7473 = vmatprep.subr.bf16.mxu0 0
      %7474 = vmatpush1.bf16.msra.mxu0 %v7439
      %7475 = vmatprep.subr.bf16.mxu0 0
      %7476 = vmatpush1.bf16.msra.mxu0 %v7440
      %7477 = vmatprep.subr.bf16.mxu0 0
      %7478 = vmatpush1.bf16.msra.mxu0 %v7441
      %7479 = vmatprep.subr.bf16.mxu0 0
      %7480 = vmatpush1.bf16.msra.mxu0 %v7442
      %7481 = vmatprep.subr.bf16.mxu0 0
      %7482 = vmatpush1.bf16.msra.mxu0 %v7443
      %7483 = vmatprep.subr.bf16.mxu0 0
      %7484 = vmatpush1.bf16.msra.mxu0 %v7444
      %7485 = vmatprep.subr.bf16.mxu0 0
      %7486 = vmatpush1.bf16.msra.mxu0 %v7445
      %7487 = vmatprep.subr.bf16.mxu0 0
      %7488 = vmatpush1.bf16.msra.mxu0 %v7446
      %7489 = vmatprep.subr.bf16.mxu0 0
      %7490 = vmatpush1.bf16.msra.mxu0 %v7447
      %7491 = vmatprep.subr.bf16.mxu0 0
      %7492 = vmatpush1.bf16.msra.mxu0 %v7448
      %7493 = vmatprep.subr.bf16.mxu0 0
      %7494 = vmatpush1.bf16.msra.mxu0 %v7449
      %7495 = vmatprep.subr.bf16.mxu0 0
      %7496 = vmatpush1.bf16.msra.mxu0 %v7450
      %7497 = vmatprep.subr.bf16.mxu0 0
      %7498 = vmatpush1.bf16.msra.mxu0 %v7451
      %7499 = vmatprep.subr.bf16.mxu0 0
      %7500 = vmatpush1.bf16.msra.mxu0 %v7452
      %7501 = vmatprep.mubr.bf16.mxu0 %v7338
      %7502 = vmatmul.mubr.bf16.gmra.mrb[0].mxu0 %v7331
      %v7503 = vpop.f32.mrb[0].mxu0
      %v7504 = vadd.f32 0.0, %v7503
      %v7505 = vpop.f32.mrb[0].mxu0
      %v7506 = vpop.f32.mrb[0].mxu0
      %v7507 = vadd.f32 0.0, %v7506
      %v7508 = vpop.f32.mrb[0].mxu0
      %7509 = vmatprep.mubr.bf16.mxu0 %v7346
      %7510 = vmatmul.mubr.bf16.gmra.mrb[0].mxu0 %v7342
      %v7511 = vpop.f32.mrb[0].mxu0
      %v7512 = vadd.f32 0.0, %v7511
      %v7513 = vpop.f32.mrb[0].mxu0
      %v7514 = vpop.f32.mrb[0].mxu0
      %v7515 = vadd.f32 0.0, %v7514
      %v7516 = vpop.f32.mrb[0].mxu0
      %7517 = vmatprep.mubr.bf16.mxu0 %v7354
      %7518 = vmatmul.mubr.bf16.gmra.mrb[0].mxu0 %v7350
      %v7519 = vpop.f32.mrb[0].mxu0
      %v7520 = vadd.f32 0.0, %v7519
      %v7521 = vpop.f32.mrb[0].mxu0
      %v7522 = vpop.f32.mrb[0].mxu0
      %v7523 = vadd.f32 0.0, %v7522
      %v7524 = vpop.f32.mrb[0].mxu0
      %7525 = vmatprep.mubr.bf16.mxu0 %v7364
      %7526 = vmatmul.mubr.bf16.gmra.mrb[0].mxu0 %v7359
      %v7527 = vpop.f32.mrb[0].mxu0
      %v7528 = vadd.f32 0.0, %v7527
      %v7529 = vpop.f32.mrb[0].mxu0
      %v7530 = vpop.f32.mrb[0].mxu0
      %v7531 = vpop.f32.mrb[0].mxu0
      %7532 = vdwg.mxu0
      %v7533 = vadd.f32 %v7285, %v7504
      %v7534 = vadd.f32 %v7286, %v7507
      %v7535 = vadd.f32 %v7287, %v7512
      %v7536 = vadd.f32 %v7288, %v7515
      %v7537 = vadd.f32 %v7289, %v7520
      %v7538 = vadd.f32 %v7290, %v7523
      %v7539 = vadd.f32 %v7291, %v7528
      %v7540 = vld [vmem:[%s14] sm:$0x1]
      %v7541 = vld [vmem:[%s14 + $0x1] sm:$0x1]
      %v7542 = vlaneseq
      %v7543 = vshrl.u32 %v7542, 7
      %v7544 = vsub.s32 0, %v7543
      %v7545 = vrot.slane %v7540, %v7544
      %v7546 = vmul.f32 %v7533, %v7545
      %v7547 = vmul.f32 %v7534, %v7545
      %v7548 = vmul.f32 %v7535, %v7545
      %v7549 = vmul.f32 %v7536, %v7545
      %v7550 = vmul.f32 %v7537, %v7545
      %v7551 = vmul.f32 %v7538, %v7545
      %v7552 = vmul.f32 %v7539, %v7545
      %v7553 = vlaneseq
      %v7554 = vshrl.u32 %v7553, 7
      %v7555 = vsub.s32 0, %v7554
      %v7556 = vrot.slane %v7541, %v7555
      %v7557 = vadd.f32 %v7546, %v7556
      %v7558 = vadd.f32 %v7547, %v7556
      %v7559 = vadd.f32 %v7548, %v7556
      %v7560 = vadd.f32 %v7549, %v7556
      %v7561 = vadd.f32 %v7550, %v7556
      %v7562 = vadd.f32 %v7551, %v7556
      %v7563 = vadd.f32 %v7552, %v7556
      %v7564 = vmax.f32 %v7557, 0.0
      %v7565 = vmax.f32 %v7558, 0.0
      %v7566 = vmax.f32 %v7559, 0.0
      %v7567 = vmax.f32 %v7560, 0.0
      %v7568 = vmax.f32 %v7561, 0.0
      %v7569 = vmax.f32 %v7562, 0.0
      %v7570 = vmax.f32 %v7563, 0.0
      %v7571 = vpack.c.bf16 %v7565, %v7564
      %v7572 = vpack.c.bf16 %v7567, %v7566
      %v7573 = vpack.c.bf16 %v7569, %v7568
      %v7574 = vpack.c.bf16 %v7570, %v7570
      %v7576 = vshrl.u32 %v7571, 16
      %v7578 = vshll.u32 %v7571, 16
      %v7580 = vrot.slane %v7578, 1
      %v7581 = vor.u32 %v7576, %v7580
      %v7583 = vshll.u32 %v7572, 16
      %v7585 = vrot.slane %v7583, 1
      %v7586 = vsel %vm1101, %v7581, %v7585
      %v7587 = vshrl.u32 %v7572, 16
      %v7589 = vor.u32 %v7587, %v7585
      %v7591 = vshll.u32 %v7573, 16
      %v7593 = vrot.slane %v7591, 1
      %v7594 = vsel %vm1101, %v7589, %v7593
      %v7595 = vshrl.u32 %v7573, 16
      %v7597 = vor.u32 %v7595, %v7593
      %v7599 = vshll.u32 %v7574, 16
      %v7601 = vrot.slane %v7599, 1
      %v7602 = vsel %vm1101, %v7597, %v7601
      %v7603 = vshrl.u32 %v7574, 16
      %v7605 = vor.u32 %v7603, %v7601
      %v7610 = vmax.bf16 %v7571, %v7586
      %v7611 = vmax.bf16 %v7572, %v7594
      %v7612 = vmax.bf16 %v7573, %v7602
      %v7613 = vmax.bf16 %v7574, %v7605
      %v7618 = vrot.slane %v7610, 4
      %v7619 = vrot.slane %v7611, 4
      %v7620 = vsel %vm4866, %v7618, %v7619
      %v7621 = vrot.slane %v7612, 4
      %v7622 = vsel %vm4866, %v7619, %v7621
      %v7623 = vrot.slane %v7613, 4
      %v7624 = vsel %vm4866, %v7621, %v7623
      %v7628 = vmax.bf16 %v7610, %v7620
      %v7629 = vmax.bf16 %v7611, %v7622
      %v7630 = vmax.bf16 %v7612, %v7624
      %v7631 = vld [vmem:[%s15] sm:$0xf]
      %v7632 = vld [vmem:[%s15 + $0x4] sm:$0x1]
      %v7635 = vunpack.c.l.b16 %v7631
      %v7636 = vunpack.c.l.b16 %v7632
      %v7637 = vpack.c.b16 %v7636, %v7635
      %vm7638 = vcmask 384000
      %v7640 = vsel %vm7638, %v7637, 0
      %vm7642 = vcmask 1046528
      %vm7643 = vcmask 1047552
      %v7644 = vsel %vm7642, 4294967295, 65535
      %v7645 = vsel %vm7643, %v7644, 0
      %v7647 = vand.u32 %v7630, %v7645
      %7649 = vmatprep.subr.bf16.mxu0 0
      %7650 = vmatpush1.bf16.msra.mxu0 %v7628
      %7651 = vmatprep.subr.bf16.mxu0 0
      %7652 = vmatpush1.bf16.msra.mxu0 %v7629
      %7653 = vmatprep.subr.bf16.mxu0 0
      %7654 = vmatpush1.bf16.msra.mxu0 %v7647
      %7655 = vmatprep.subr.bf16.mxu0 0
      %7656 = vmatpush1.bf16.msra.mxu0 0
      %7657 = vmatprep.subr.bf16.mxu0 0
      %7658 = vmatpush1.bf16.msra.mxu0 0
      %7659 = vmatprep.subr.bf16.mxu0 0
      %7660 = vmatpush1.bf16.msra.mxu0 0
      %7661 = vmatprep.subr.bf16.mxu0 0
      %7662 = vmatpush1.bf16.msra.mxu0 0
      %7663 = vmatprep.subr.bf16.mxu0 0
      %7664 = vmatpush1.bf16.msra.mxu0 0
      %7665 = vmatprep.subr.bf16.mxu0 0
      %7666 = vmatpush1.bf16.msra.mxu0 0
      %7667 = vmatprep.subr.bf16.mxu0 0
      %7668 = vmatpush1.bf16.msra.mxu0 0
      %7669 = vmatprep.subr.bf16.mxu0 0
      %7670 = vmatpush1.bf16.msra.mxu0 0
      %7671 = vmatprep.subr.bf16.mxu0 0
      %7672 = vmatpush1.bf16.msra.mxu0 0
      %7673 = vmatprep.subr.bf16.mxu0 0
      %7674 = vmatpush1.bf16.msra.mxu0 0
      %7675 = vmatprep.subr.bf16.mxu0 0
      %7676 = vmatpush1.bf16.msra.mxu0 0
      %7677 = vmatprep.subr.bf16.mxu0 0
      %7678 = vmatpush1.bf16.msra.mxu0 0
      %7679 = vmatprep.subr.bf16.mxu0 0
      %7680 = vmatpush1.bf16.msra.mxu0 0
      %7681 = vmatprep.mubr.bf16.mxu0 0
      %7682 = vmatmul.mubr.bf16.gmra.mrb[0].mxu0 %v7640
      %v7683 = vpop.f32.mrb[0].mxu0
      %v7684 = vadd.f32 0.0, %v7683
      %v7685 = vpop.f32.mrb[0].mxu0
      %v7686 = vpop.f32.mrb[0].mxu0
      %v7687 = vadd.f32 0.0, %v7686
      %v7688 = vpop.f32.mrb[0].mxu0
      %7689 = vdwg.mxu0
      %v7690 = vpack.c.bf16 %v7687, %v7684
      %v7692 = vunpack.c.l.b16 %v7690
      %v7693 = vunpack.c.h.b16 %v7690
      %v7694 = vpack.c.b16 %v7692, %v7692
      %v7695 = vpack.c.b16 %v7693, %v7693
      %7698 = vst [vmem:[%s521] sm:$0xf] %v7694
      %vm7699 = vmand %vm2817, %vm3034
      %v7700 = vld [vmem:[%s521 + $0x4] sm:$0x1]
      %v7701 = vsel %vm7699, %v7695, %v7700
      %7702 = vst [vmem:[%s521 + $0x4] sm:$0x1] %v7701
      %p7703 = scmp.lt.s32.totalorder %s27, 1
      %s7704 = scalar_select %p7703, %s27, 1
      %s7705 = smul.addr %s7704, 2
      %s7706 = smul.addr %s7705, 4
      %s7707 = scalar_lea.vmem %s16, %s7706
      // Predicated region
      $region85: #{alexnet_forward.1} parent=83 // pred_check
        %p7708 = pneg %p386
      $region86: #{alexnet_forward.1} parent=83 // pred_check_branch
        %7710 = sbr.rel (%p7708) target = $region88
      $region87: #{alexnet_forward.1} parent=83 // pred_region
        _
      $region88: #{alexnet_forward.1} parent=83 // pred_fallthru
        _
    $region84: #{alexnet_forward.1} parent=5 // pred_fallthru
      _
    %p7711 = scmp.le.s32.totalorder 2, %s22
    // Predicated region
    $region89: #{alexnet_forward.1} parent=5 // pred_check
      %p7712 = pneg %p7711
    $region90: #{alexnet_forward.1} parent=5 // pred_check_branch
      %7714 = sbr.rel (%p7712) target = $region92
    $region91: #{alexnet_forward.1} parent=5 // pred_region
      %s7715 = ssub.s32 %s22, 2
      // Predicated region
      $region93: #{alexnet_forward.1} parent=91 // pred_check
        %p7716 = pneg %p392
      $region94: #{alexnet_forward.1} parent=91 // pred_check_branch
        %7718 = sbr.rel (%p7716) target = $region96
      $region95: #{alexnet_forward.1} parent=91 // pred_region
        %p7719 = scmp.lt.s32.totalorder %s28, 1
        %s7720 = scalar_select %p7719, %s28, 1
        %s7721 = smul.addr %s7720, 2
        %s7722 = smul.addr %s7721, 4
        %s7723 = scalar_lea.vmem %s16, %s7722
      $region96: #{alexnet_forward.1} parent=91 // pred_fallthru
        _
    $region92: #{alexnet_forward.1} parent=5 // pred_fallthru
      _
  $region6: #{alexnet_forward.1} parent=0 // loop_footer
    %s26 = sadd.s32 1, %s22
  $region7: #{alexnet_forward.1} parent=0 // loop_footer_branch
    %21 = sbr.rel target = $region3
  $region8: #{alexnet_forward.1} parent=0 // loop_exit
    _

</llo_original>
